<compile_context>
chip_gen: v7x
topology: tpu7x:2x2x1
jax: 0.10.0
libtpu: 0.0.40
codegen_flags: <defaults>
</compile_context>

<pallas_src>
import functools

import jax
import jax.numpy as jnp
from jax.experimental import pallas as pl
from jax.experimental.pallas import tpu as pltpu


# ----------------------------------------------------------------------------
# Fused per-sample kernel: conv matmul (+ optional ReLU / InstanceNorm / ReLU).
#   p_ref : (HW, K)    bf16   im2col patches for one sample
#   w_ref : (K, Cout)  bf16   (or (1, K) for the Cout==1 VPU path)
#   o_ref : (HW, Cout) f32
# ----------------------------------------------------------------------------
def _conv_fused_kernel(p_ref, w_ref, o_ref, *, relu_pre, use_in, relu_post,
                       eps, vpu_path):
    p = p_ref[...]

    if vpu_path:
        # Tiny output channel count (Cout == 1): VPU multiply + lane reduction
        # instead of an MXU matmul with N=1.
        w = w_ref[...].astype(jnp.float32)                      # (1, K)
        y = jnp.sum(p.astype(jnp.float32) * w, axis=-1, keepdims=True)
    else:
        # bf16 operands, f32 accumulation on the MXU.
        y = jnp.dot(p, w_ref[...], preferred_element_type=jnp.float32)

    if relu_pre:                       # Conv -> ReLU (-> IN) ordering
        y = jnp.maximum(y, 0.0)

    if use_in:
        # InstanceNorm2d(affine=False, eps=1e-5), biased variance over H*W,
        # computed per channel on the resident f32 output of this sample.
        mean = jnp.mean(y, axis=0, keepdims=True)
        yc = y - mean
        var = jnp.mean(yc * yc, axis=0, keepdims=True)
        y = yc * jax.lax.rsqrt(var + eps)

    if relu_post:                      # Conv -> IN -> ReLU ordering
        y = jnp.maximum(y, 0.0)

    o_ref[...] = y.astype(o_ref.dtype)


# ----------------------------------------------------------------------------
# Conv2d (valid padding, bias=False) + fused ReLU/InstanceNorm epilogue.
# im2col is plain XLA glue; the matmul + epilogue runs in one Pallas kernel
# with grid=(batch,), one full sample per grid step.
# ----------------------------------------------------------------------------
def conv_block(x_nhwc, w_oihw, stride, *, relu_pre=False, use_in=False,
               relu_post=False, eps=1e-5):
    N, H, W, C = x_nhwc.shape
    Cout, Cin, kh, kw = w_oihw.shape
    assert C == Cin
    OH = (H - kh) // stride + 1
    OW = (W - kw) // stride + 1
    K = kh * kw * Cin
    HW = OH * OW

    # im2col in bf16: feature index = (dy*kw + dx)*Cin + ci.
    xb = x_nhwc.astype(jnp.bfloat16)
    cols = []
    for dy in range(kh):
        for dx in range(kw):
            cols.append(xb[:, dy:dy + stride * OH:stride,
                           dx:dx + stride * OW:stride, :])
    patches = jnp.concatenate(cols, axis=-1).reshape(N, HW, K)

    vpu_path = (Cout == 1)
    if vpu_path:
        # (Cout, K) row-vector weights for the VPU path.
        wmat = jnp.transpose(w_oihw, (0, 2, 3, 1)).reshape(Cout, K)
        w_spec = pl.BlockSpec((Cout, K), lambda n: (0, 0))
    else:
        # (K, Cout), matching the patch feature ordering (kh, kw, Cin).
        wmat = jnp.transpose(w_oihw, (2, 3, 1, 0)).reshape(K, Cout)
        w_spec = pl.BlockSpec((K, Cout), lambda n: (0, 0))
    wmat = wmat.astype(jnp.bfloat16)

    out = pl.pallas_call(
        functools.partial(_conv_fused_kernel, relu_pre=relu_pre, use_in=use_in,
                          relu_post=relu_post, eps=eps, vpu_path=vpu_path),
        out_shape=jax.ShapeDtypeStruct((N, HW, Cout), jnp.float32),
        grid_spec=pltpu.PrefetchScalarGridSpec(
            num_scalar_prefetch=0,
            grid=(N,),
            in_specs=[pl.BlockSpec((None, HW, K), lambda n: (n, 0, 0)),
                      w_spec],
            out_specs=pl.BlockSpec((None, HW, Cout), lambda n: (n, 0, 0))),
        compiler_params=pltpu.CompilerParams(
            dimension_semantics=("parallel",)),
    )(patches, wmat)
    return out.reshape(N, OH, OW, Cout)


# ----------------------------------------------------------------------------
# Parameter init (deterministic, PyTorch OIHW layout, bias=False).
# ----------------------------------------------------------------------------
def init_params(key):
    specs = [(64, 3), (64, 64), (64, 64), (128, 64),
             (128, 128), (256, 128), (1, 256)]
    params = []
    for co, ci in specs:
        key, sub = jax.random.split(key)
        fan_in = ci * 9
        w = jax.random.normal(sub, (co, ci, 3, 3), jnp.float32)
        params.append(w * (2.0 / fan_in) ** 0.5)
    return params


def base_discriminator_forward(x_nchw, params):
    x = jnp.transpose(x_nchw, (0, 2, 3, 1)).astype(jnp.float32)   # NCHW -> NHWC
    w1, w2, w3, w4, w5, w6, w7 = params
    x = conv_block(x, w1, 1, relu_pre=True)                    # Conv(3,64,s1)+ReLU
    x = conv_block(x, w2, 2, relu_pre=True, use_in=True)       # Conv(64,64,s2)+ReLU, IN
    x = conv_block(x, w3, 1, use_in=True, relu_post=True)      # Conv(64,64,s1), IN, ReLU
    x = conv_block(x, w4, 2, relu_pre=True, use_in=True)       # Conv(64,128,s2)+ReLU, IN
    x = conv_block(x, w5, 1, use_in=True, relu_post=True)      # Conv(128,128,s1), IN, ReLU
    x = conv_block(x, w6, 1, use_in=True, relu_post=True)      # Conv(128,256,s1), IN, ReLU
    x = conv_block(x, w7, 1)                                   # Conv(256,1,s1)
    return jnp.transpose(x, (0, 3, 1, 2))                      # NHWC -> NCHW


if __name__ == "__main__":
    key = jax.random.PRNGKey(0)
    pkey, xkey = jax.random.split(key)
    params = init_params(pkey)
    # 40x40 is the smallest "nice" size that survives all 7 valid-padded convs:
    # 40 -> 38 -> 18 -> 16 -> 7 -> 5 -> 3 -> 1
    x = jax.random.normal(xkey, (2, 3, 40, 40), jnp.float32)

    fwd = jax.jit(base_discriminator_forward)
    out = jax.block_until_ready(fwd(x, params))
    assert out.shape == (2, 1, 1, 1), out.shape
    assert bool(jnp.all(jnp.isfinite(out)))
    print("KERNEL_OK")
</pallas_src>

<mosaic_0001>
module attributes {stable_mosaic.version = 11 : i64} {
  func.func @_conv_fused_kernel(%arg0: i32, %arg1: memref<1x1444x27xbf16, #tpu.memory_space<vmem>>, %arg2: memref<27x64xbf16, #tpu.memory_space<vmem>>, %arg3: memref<1x1444x64xf32, #tpu.memory_space<vmem>>) attributes {dimension_semantics = [#tpu.dimension_semantics<parallel>], iteration_bounds = array<i64: 2>, scalar_prefetch = 0 : i64, scratch_operands = 0 : i64, tpu.core_type = #tpu.core_type<tc>, window_params = [{transform_indices = @transform_0, window_bounds = array<i64: 1, 1444, 27>}, {pipeline_mode = #tpu.pipeline_mode<synchronous>, transform_indices = @transform_1, window_bounds = array<i64: 27, 64>}, {transform_indices = @transform_2, window_bounds = array<i64: 1, 1444, 64>}]} {
    %c0 = arith.constant 0 : index
    %c0_0 = arith.constant 0 : index
    %c0_1 = arith.constant 0 : index
    %0 = vector.load %arg1[%c0, %c0_0, %c0_1] : memref<1x1444x27xbf16, #tpu.memory_space<vmem>>, vector<1x1444x27xbf16>
    %1 = vector.shape_cast %0 : vector<1x1444x27xbf16> to vector<1444x27xbf16>
    %c0_2 = arith.constant 0 : index
    %c0_3 = arith.constant 0 : index
    %2 = vector.load %arg2[%c0_2, %c0_3] : memref<27x64xbf16, #tpu.memory_space<vmem>>, vector<27x64xbf16>
    %cst = arith.constant dense<0.000000e+00> : vector<1444x64xf32>
    %3 = tpu.matmul %1, %2, %cst {dimension_numbers = #tpu.dot_dimension_numbers<[1], [0], [0], [1], [0, 0, 1, 1], [], []>} : vector<1444x27xbf16>, vector<27x64xbf16>, vector<1444x64xf32> -> vector<1444x64xf32>
    %cst_4 = arith.constant 0.000000e+00 : f32
    %4 = vector.broadcast %cst_4 : f32 to vector<1444x64xf32>
    %5 = arith.maximumf %3, %4 : vector<1444x64xf32>
    %c0_5 = arith.constant 0 : index
    %c0_6 = arith.constant 0 : index
    %c0_7 = arith.constant 0 : index
    %6 = vector.load %arg3[%c0_5, %c0_6, %c0_7] : memref<1x1444x64xf32, #tpu.memory_space<vmem>>, vector<1x1444x64xf32>
    %7 = vector.shape_cast %6 : vector<1x1444x64xf32> to vector<1444x64xf32>
    %8 = vector.shape_cast %5 : vector<1444x64xf32> to vector<1x1444x64xf32>
    tpu.vector_store %arg3[%c0_5, %c0_6, %c0_7], %8 {strides = array<i32>} : memref<1x1444x64xf32, #tpu.memory_space<vmem>>, vector<1x1444x64xf32>,
    return
  }
  func.func @transform_0(%arg0: i32) -> (i32, i32, i32) {
    %c0_i32 = arith.constant 0 : i32
    %c0_i32_0 = arith.constant 0 : i32
    %c0_i32_1 = arith.constant 0 : i32
    return %arg0, %c0_i32, %c0_i32_0 : i32, i32, i32
  }
  func.func @transform_1(%arg0: i32) -> (i32, i32) {
    %c0_i32 = arith.constant 0 : i32
    %c0_i32_0 = arith.constant 0 : i32
    %c0_i32_1 = arith.constant 0 : i32
    return %c0_i32, %c0_i32_0 : i32, i32
  }
  func.func @transform_2(%arg0: i32) -> (i32, i32, i32) {
    %c0_i32 = arith.constant 0 : i32
    %c0_i32_0 = arith.constant 0 : i32
    %c0_i32_1 = arith.constant 0 : i32
    return %arg0, %c0_i32, %c0_i32_0 : i32, i32, i32
  }
}

module attributes {stable_mosaic.version = 11 : i64} {
  func.func @_conv_fused_kernel(%arg0: i32, %arg1: memref<1x324x576xbf16, #tpu.memory_space<vmem>>, %arg2: memref<576x64xbf16, #tpu.memory_space<vmem>>, %arg3: memref<1x324x64xf32, #tpu.memory_space<vmem>>) attributes {dimension_semantics = [#tpu.dimension_semantics<parallel>], iteration_bounds = array<i64: 2>, scalar_prefetch = 0 : i64, scratch_operands = 0 : i64, tpu.core_type = #tpu.core_type<tc>, window_params = [{transform_indices = @transform_0, window_bounds = array<i64: 1, 324, 576>}, {pipeline_mode = #tpu.pipeline_mode<synchronous>, transform_indices = @transform_1, window_bounds = array<i64: 576, 64>}, {transform_indices = @transform_2, window_bounds = array<i64: 1, 324, 64>}]} {
    %c0 = arith.constant 0 : index
    %c0_0 = arith.constant 0 : index
    %c0_1 = arith.constant 0 : index
    %0 = vector.load %arg1[%c0, %c0_0, %c0_1] : memref<1x324x576xbf16, #tpu.memory_space<vmem>>, vector<1x324x576xbf16>
    %1 = vector.shape_cast %0 : vector<1x324x576xbf16> to vector<324x576xbf16>
    %c0_2 = arith.constant 0 : index
    %c0_3 = arith.constant 0 : index
    %2 = vector.load %arg2[%c0_2, %c0_3] : memref<576x64xbf16, #tpu.memory_space<vmem>>, vector<576x64xbf16>
    %cst = arith.constant dense<0.000000e+00> : vector<324x64xf32>
    %3 = tpu.matmul %1, %2, %cst {dimension_numbers = #tpu.dot_dimension_numbers<[1], [0], [0], [1], [0, 0, 1, 1], [], []>} : vector<324x576xbf16>, vector<576x64xbf16>, vector<324x64xf32> -> vector<324x64xf32>
    %cst_4 = arith.constant 0.000000e+00 : f32
    %4 = vector.broadcast %cst_4 : f32 to vector<324x64xf32>
    %5 = arith.maximumf %3, %4 : vector<324x64xf32>
    %cst_5 = arith.constant dense<0.000000e+00> : vector<64xf32>
    %6 = vector.multi_reduction <add>, %5, %cst_5 [0] : vector<324x64xf32> to vector<64xf32>
    %7 = vector.shape_cast %6 : vector<64xf32> to vector<1x64xf32>
    %cst_6 = arith.constant 3.240000e+02 : f32
    %8 = vector.broadcast %cst_6 : f32 to vector<1x64xf32>
    %9 = arith.divf %7, %8 : vector<1x64xf32>
    %10 = vector.broadcast %9 : vector<1x64xf32> to vector<324x64xf32>
    %11 = arith.subf %5, %10 : vector<324x64xf32>
    %12 = arith.mulf %11, %11 : vector<324x64xf32>
    %cst_7 = arith.constant dense<0.000000e+00> : vector<64xf32>
    %13 = vector.multi_reduction <add>, %12, %cst_7 [0] : vector<324x64xf32> to vector<64xf32>
    %14 = vector.shape_cast %13 : vector<64xf32> to vector<1x64xf32>
    %cst_8 = arith.constant 3.240000e+02 : f32
    %15 = vector.broadcast %cst_8 : f32 to vector<1x64xf32>
    %16 = arith.divf %14, %15 : vector<1x64xf32>
    %cst_9 = arith.constant 9.99999974E-6 : f32
    %17 = vector.broadcast %cst_9 : f32 to vector<1x64xf32>
    %18 = arith.addf %16, %17 : vector<1x64xf32>
    %19 = math.rsqrt %18 : vector<1x64xf32>
    %20 = vector.broadcast %19 : vector<1x64xf32> to vector<324x64xf32>
    %21 = arith.mulf %11, %20 : vector<324x64xf32>
    %c0_10 = arith.constant 0 : index
    %c0_11 = arith.constant 0 : index
    %c0_12 = arith.constant 0 : index
    %22 = vector.load %arg3[%c0_10, %c0_11, %c0_12] : memref<1x324x64xf32, #tpu.memory_space<vmem>>, vector<1x324x64xf32>
    %23 = vector.shape_cast %22 : vector<1x324x64xf32> to vector<324x64xf32>
    %24 = vector.shape_cast %21 : vector<324x64xf32> to vector<1x324x64xf32>
    tpu.vector_store %arg3[%c0_10, %c0_11, %c0_12], %24 {strides = array<i32>} : memref<1x324x64xf32, #tpu.memory_space<vmem>>, vector<1x324x64xf32>,
    return
  }
  func.func @transform_0(%arg0: i32) -> (i32, i32, i32) {
    %c0_i32 = arith.constant 0 : i32
    %c0_i32_0 = arith.constant 0 : i32
    %c0_i32_1 = arith.constant 0 : i32
    return %arg0, %c0_i32, %c0_i32_0 : i32, i32, i32
  }
  func.func @transform_1(%arg0: i32) -> (i32, i32) {
    %c0_i32 = arith.constant 0 : i32
    %c0_i32_0 = arith.constant 0 : i32
    %c0_i32_1 = arith.constant 0 : i32
    return %c0_i32, %c0_i32_0 : i32, i32
  }
  func.func @transform_2(%arg0: i32) -> (i32, i32, i32) {
    %c0_i32 = arith.constant 0 : i32
    %c0_i32_0 = arith.constant 0 : i32
    %c0_i32_1 = arith.constant 0 : i32
    return %arg0, %c0_i32, %c0_i32_0 : i32, i32, i32
  }
}

module attributes {stable_mosaic.version = 11 : i64} {
  func.func @_conv_fused_kernel(%arg0: i32, %arg1: memref<1x256x576xbf16, #tpu.memory_space<vmem>>, %arg2: memref<576x64xbf16, #tpu.memory_space<vmem>>, %arg3: memref<1x256x64xf32, #tpu.memory_space<vmem>>) attributes {dimension_semantics = [#tpu.dimension_semantics<parallel>], iteration_bounds = array<i64: 2>, scalar_prefetch = 0 : i64, scratch_operands = 0 : i64, tpu.core_type = #tpu.core_type<tc>, window_params = [{transform_indices = @transform_0, window_bounds = array<i64: 1, 256, 576>}, {pipeline_mode = #tpu.pipeline_mode<synchronous>, transform_indices = @transform_1, window_bounds = array<i64: 576, 64>}, {transform_indices = @transform_2, window_bounds = array<i64: 1, 256, 64>}]} {
    %c0 = arith.constant 0 : index
    %c0_0 = arith.constant 0 : index
    %c0_1 = arith.constant 0 : index
    %0 = vector.load %arg1[%c0, %c0_0, %c0_1] : memref<1x256x576xbf16, #tpu.memory_space<vmem>>, vector<1x256x576xbf16>
    %1 = vector.shape_cast %0 : vector<1x256x576xbf16> to vector<256x576xbf16>
    %c0_2 = arith.constant 0 : index
    %c0_3 = arith.constant 0 : index
    %2 = vector.load %arg2[%c0_2, %c0_3] : memref<576x64xbf16, #tpu.memory_space<vmem>>, vector<576x64xbf16>
    %cst = arith.constant dense<0.000000e+00> : vector<256x64xf32>
    %3 = tpu.matmul %1, %2, %cst {dimension_numbers = #tpu.dot_dimension_numbers<[1], [0], [0], [1], [0, 0, 1, 1], [], []>} : vector<256x576xbf16>, vector<576x64xbf16>, vector<256x64xf32> -> vector<256x64xf32>
    %cst_4 = arith.constant dense<0.000000e+00> : vector<64xf32>
    %4 = vector.multi_reduction <add>, %3, %cst_4 [0] : vector<256x64xf32> to vector<64xf32>
    %5 = vector.shape_cast %4 : vector<64xf32> to vector<1x64xf32>
    %cst_5 = arith.constant 2.560000e+02 : f32
    %6 = vector.broadcast %cst_5 : f32 to vector<1x64xf32>
    %7 = arith.divf %5, %6 : vector<1x64xf32>
    %8 = vector.broadcast %7 : vector<1x64xf32> to vector<256x64xf32>
    %9 = arith.subf %3, %8 : vector<256x64xf32>
    %10 = arith.mulf %9, %9 : vector<256x64xf32>
    %cst_6 = arith.constant dense<0.000000e+00> : vector<64xf32>
    %11 = vector.multi_reduction <add>, %10, %cst_6 [0] : vector<256x64xf32> to vector<64xf32>
    %12 = vector.shape_cast %11 : vector<64xf32> to vector<1x64xf32>
    %cst_7 = arith.constant 2.560000e+02 : f32
    %13 = vector.broadcast %cst_7 : f32 to vector<1x64xf32>
    %14 = arith.divf %12, %13 : vector<1x64xf32>
    %cst_8 = arith.constant 9.99999974E-6 : f32
    %15 = vector.broadcast %cst_8 : f32 to vector<1x64xf32>
    %16 = arith.addf %14, %15 : vector<1x64xf32>
    %17 = math.rsqrt %16 : vector<1x64xf32>
    %18 = vector.broadcast %17 : vector<1x64xf32> to vector<256x64xf32>
    %19 = arith.mulf %9, %18 : vector<256x64xf32>
    %cst_9 = arith.constant 0.000000e+00 : f32
    %20 = vector.broadcast %cst_9 : f32 to vector<256x64xf32>
    %21 = arith.maximumf %19, %20 : vector<256x64xf32>
    %c0_10 = arith.constant 0 : index
    %c0_11 = arith.constant 0 : index
    %c0_12 = arith.constant 0 : index
    %22 = vector.load %arg3[%c0_10, %c0_11, %c0_12] : memref<1x256x64xf32, #tpu.memory_space<vmem>>, vector<1x256x64xf32>
    %23 = vector.shape_cast %22 : vector<1x256x64xf32> to vector<256x64xf32>
    %24 = vector.shape_cast %21 : vector<256x64xf32> to vector<1x256x64xf32>
    tpu.vector_store %arg3[%c0_10, %c0_11, %c0_12], %24 {strides = array<i32>} : memref<1x256x64xf32, #tpu.memory_space<vmem>>, vector<1x256x64xf32>,
    return
  }
  func.func @transform_0(%arg0: i32) -> (i32, i32, i32) {
    %c0_i32 = arith.constant 0 : i32
    %c0_i32_0 = arith.constant 0 : i32
    %c0_i32_1 = arith.constant 0 : i32
    return %arg0, %c0_i32, %c0_i32_0 : i32, i32, i32
  }
  func.func @transform_1(%arg0: i32) -> (i32, i32) {
    %c0_i32 = arith.constant 0 : i32
    %c0_i32_0 = arith.constant 0 : i32
    %c0_i32_1 = arith.constant 0 : i32
    return %c0_i32, %c0_i32_0 : i32, i32
  }
  func.func @transform_2(%arg0: i32) -> (i32, i32, i32) {
    %c0_i32 = arith.constant 0 : i32
    %c0_i32_0 = arith.constant 0 : i32
    %c0_i32_1 = arith.constant 0 : i32
    return %arg0, %c0_i32, %c0_i32_0 : i32, i32, i32
  }
}

module attributes {stable_mosaic.version = 11 : i64} {
  func.func @_conv_fused_kernel(%arg0: i32, %arg1: memref<1x49x576xbf16, #tpu.memory_space<vmem>>, %arg2: memref<576x128xbf16, #tpu.memory_space<vmem>>, %arg3: memref<1x49x128xf32, #tpu.memory_space<vmem>>) attributes {dimension_semantics = [#tpu.dimension_semantics<parallel>], iteration_bounds = array<i64: 2>, scalar_prefetch = 0 : i64, scratch_operands = 0 : i64, tpu.core_type = #tpu.core_type<tc>, window_params = [{transform_indices = @transform_0, window_bounds = array<i64: 1, 49, 576>}, {pipeline_mode = #tpu.pipeline_mode<synchronous>, transform_indices = @transform_1, window_bounds = array<i64: 576, 128>}, {transform_indices = @transform_2, window_bounds = array<i64: 1, 49, 128>}]} {
    %c0 = arith.constant 0 : index
    %c0_0 = arith.constant 0 : index
    %c0_1 = arith.constant 0 : index
    %0 = vector.load %arg1[%c0, %c0_0, %c0_1] : memref<1x49x576xbf16, #tpu.memory_space<vmem>>, vector<1x49x576xbf16>
    %1 = vector.shape_cast %0 : vector<1x49x576xbf16> to vector<49x576xbf16>
    %c0_2 = arith.constant 0 : index
    %c0_3 = arith.constant 0 : index
    %2 = vector.load %arg2[%c0_2, %c0_3] : memref<576x128xbf16, #tpu.memory_space<vmem>>, vector<576x128xbf16>
    %cst = arith.constant dense<0.000000e+00> : vector<49x128xf32>
    %3 = tpu.matmul %1, %2, %cst {dimension_numbers = #tpu.dot_dimension_numbers<[1], [0], [0], [1], [0, 0, 1, 1], [], []>} : vector<49x576xbf16>, vector<576x128xbf16>, vector<49x128xf32> -> vector<49x128xf32>
    %cst_4 = arith.constant 0.000000e+00 : f32
    %4 = vector.broadcast %cst_4 : f32 to vector<49x128xf32>
    %5 = arith.maximumf %3, %4 : vector<49x128xf32>
    %cst_5 = arith.constant dense<0.000000e+00> : vector<128xf32>
    %6 = vector.multi_reduction <add>, %5, %cst_5 [0] : vector<49x128xf32> to vector<128xf32>
    %7 = vector.shape_cast %6 : vector<128xf32> to vector<1x128xf32>
    %cst_6 = arith.constant 4.900000e+01 : f32
    %8 = vector.broadcast %cst_6 : f32 to vector<1x128xf32>
    %9 = arith.divf %7, %8 : vector<1x128xf32>
    %10 = vector.broadcast %9 : vector<1x128xf32> to vector<49x128xf32>
    %11 = arith.subf %5, %10 : vector<49x128xf32>
    %12 = arith.mulf %11, %11 : vector<49x128xf32>
    %cst_7 = arith.constant dense<0.000000e+00> : vector<128xf32>
    %13 = vector.multi_reduction <add>, %12, %cst_7 [0] : vector<49x128xf32> to vector<128xf32>
    %14 = vector.shape_cast %13 : vector<128xf32> to vector<1x128xf32>
    %cst_8 = arith.constant 4.900000e+01 : f32
    %15 = vector.broadcast %cst_8 : f32 to vector<1x128xf32>
    %16 = arith.divf %14, %15 : vector<1x128xf32>
    %cst_9 = arith.constant 9.99999974E-6 : f32
    %17 = vector.broadcast %cst_9 : f32 to vector<1x128xf32>
    %18 = arith.addf %16, %17 : vector<1x128xf32>
    %19 = math.rsqrt %18 : vector<1x128xf32>
    %20 = vector.broadcast %19 : vector<1x128xf32> to vector<49x128xf32>
    %21 = arith.mulf %11, %20 : vector<49x128xf32>
    %c0_10 = arith.constant 0 : index
    %c0_11 = arith.constant 0 : index
    %c0_12 = arith.constant 0 : index
    %22 = vector.load %arg3[%c0_10, %c0_11, %c0_12] : memref<1x49x128xf32, #tpu.memory_space<vmem>>, vector<1x49x128xf32>
    %23 = vector.shape_cast %22 : vector<1x49x128xf32> to vector<49x128xf32>
    %24 = vector.shape_cast %21 : vector<49x128xf32> to vector<1x49x128xf32>
    tpu.vector_store %arg3[%c0_10, %c0_11, %c0_12], %24 {strides = array<i32>} : memref<1x49x128xf32, #tpu.memory_space<vmem>>, vector<1x49x128xf32>,
    return
  }
  func.func @transform_0(%arg0: i32) -> (i32, i32, i32) {
    %c0_i32 = arith.constant 0 : i32
    %c0_i32_0 = arith.constant 0 : i32
    %c0_i32_1 = arith.constant 0 : i32
    return %arg0, %c0_i32, %c0_i32_0 : i32, i32, i32
  }
  func.func @transform_1(%arg0: i32) -> (i32, i32) {
    %c0_i32 = arith.constant 0 : i32
    %c0_i32_0 = arith.constant 0 : i32
    %c0_i32_1 = arith.constant 0 : i32
    return %c0_i32, %c0_i32_0 : i32, i32
  }
  func.func @transform_2(%arg0: i32) -> (i32, i32, i32) {
    %c0_i32 = arith.constant 0 : i32
    %c0_i32_0 = arith.constant 0 : i32
    %c0_i32_1 = arith.constant 0 : i32
    return %arg0, %c0_i32, %c0_i32_0 : i32, i32, i32
  }
}

module attributes {stable_mosaic.version = 11 : i64} {
  func.func @_conv_fused_kernel(%arg0: i32, %arg1: memref<1x25x1152xbf16, #tpu.memory_space<vmem>>, %arg2: memref<1152x128xbf16, #tpu.memory_space<vmem>>, %arg3: memref<1x25x128xf32, #tpu.memory_space<vmem>>) attributes {dimension_semantics = [#tpu.dimension_semantics<parallel>], iteration_bounds = array<i64: 2>, scalar_prefetch = 0 : i64, scratch_operands = 0 : i64, tpu.core_type = #tpu.core_type<tc>, window_params = [{transform_indices = @transform_0, window_bounds = array<i64: 1, 25, 1152>}, {pipeline_mode = #tpu.pipeline_mode<synchronous>, transform_indices = @transform_1, window_bounds = array<i64: 1152, 128>}, {transform_indices = @transform_2, window_bounds = array<i64: 1, 25, 128>}]} {
    %c0 = arith.constant 0 : index
    %c0_0 = arith.constant 0 : index
    %c0_1 = arith.constant 0 : index
    %0 = vector.load %arg1[%c0, %c0_0, %c0_1] : memref<1x25x1152xbf16, #tpu.memory_space<vmem>>, vector<1x25x1152xbf16>
    %1 = vector.shape_cast %0 : vector<1x25x1152xbf16> to vector<25x1152xbf16>
    %c0_2 = arith.constant 0 : index
    %c0_3 = arith.constant 0 : index
    %2 = vector.load %arg2[%c0_2, %c0_3] : memref<1152x128xbf16, #tpu.memory_space<vmem>>, vector<1152x128xbf16>
    %cst = arith.constant dense<0.000000e+00> : vector<25x128xf32>
    %3 = tpu.matmul %1, %2, %cst {dimension_numbers = #tpu.dot_dimension_numbers<[1], [0], [0], [1], [0, 0, 1, 1], [], []>} : vector<25x1152xbf16>, vector<1152x128xbf16>, vector<25x128xf32> -> vector<25x128xf32>
    %cst_4 = arith.constant dense<0.000000e+00> : vector<128xf32>
    %4 = vector.multi_reduction <add>, %3, %cst_4 [0] : vector<25x128xf32> to vector<128xf32>
    %5 = vector.shape_cast %4 : vector<128xf32> to vector<1x128xf32>
    %cst_5 = arith.constant 2.500000e+01 : f32
    %6 = vector.broadcast %cst_5 : f32 to vector<1x128xf32>
    %7 = arith.divf %5, %6 : vector<1x128xf32>
    %8 = vector.broadcast %7 : vector<1x128xf32> to vector<25x128xf32>
    %9 = arith.subf %3, %8 : vector<25x128xf32>
    %10 = arith.mulf %9, %9 : vector<25x128xf32>
    %cst_6 = arith.constant dense<0.000000e+00> : vector<128xf32>
    %11 = vector.multi_reduction <add>, %10, %cst_6 [0] : vector<25x128xf32> to vector<128xf32>
    %12 = vector.shape_cast %11 : vector<128xf32> to vector<1x128xf32>
    %cst_7 = arith.constant 2.500000e+01 : f32
    %13 = vector.broadcast %cst_7 : f32 to vector<1x128xf32>
    %14 = arith.divf %12, %13 : vector<1x128xf32>
    %cst_8 = arith.constant 9.99999974E-6 : f32
    %15 = vector.broadcast %cst_8 : f32 to vector<1x128xf32>
    %16 = arith.addf %14, %15 : vector<1x128xf32>
    %17 = math.rsqrt %16 : vector<1x128xf32>
    %18 = vector.broadcast %17 : vector<1x128xf32> to vector<25x128xf32>
    %19 = arith.mulf %9, %18 : vector<25x128xf32>
    %cst_9 = arith.constant 0.000000e+00 : f32
    %20 = vector.broadcast %cst_9 : f32 to vector<25x128xf32>
    %21 = arith.maximumf %19, %20 : vector<25x128xf32>
    %c0_10 = arith.constant 0 : index
    %c0_11 = arith.constant 0 : index
    %c0_12 = arith.constant 0 : index
    %22 = vector.load %arg3[%c0_10, %c0_11, %c0_12] : memref<1x25x128xf32, #tpu.memory_space<vmem>>, vector<1x25x128xf32>
    %23 = vector.shape_cast %22 : vector<1x25x128xf32> to vector<25x128xf32>
    %24 = vector.shape_cast %21 : vector<25x128xf32> to vector<1x25x128xf32>
    tpu.vector_store %arg3[%c0_10, %c0_11, %c0_12], %24 {strides = array<i32>} : memref<1x25x128xf32, #tpu.memory_space<vmem>>, vector<1x25x128xf32>,
    return
  }
  func.func @transform_0(%arg0: i32) -> (i32, i32, i32) {
    %c0_i32 = arith.constant 0 : i32
    %c0_i32_0 = arith.constant 0 : i32
    %c0_i32_1 = arith.constant 0 : i32
    return %arg0, %c0_i32, %c0_i32_0 : i32, i32, i32
  }
  func.func @transform_1(%arg0: i32) -> (i32, i32) {
    %c0_i32 = arith.constant 0 : i32
    %c0_i32_0 = arith.constant 0 : i32
    %c0_i32_1 = arith.constant 0 : i32
    return %c0_i32, %c0_i32_0 : i32, i32
  }
  func.func @transform_2(%arg0: i32) -> (i32, i32, i32) {
    %c0_i32 = arith.constant 0 : i32
    %c0_i32_0 = arith.constant 0 : i32
    %c0_i32_1 = arith.constant 0 : i32
    return %arg0, %c0_i32, %c0_i32_0 : i32, i32, i32
  }
}

module attributes {stable_mosaic.version = 11 : i64} {
  func.func @_conv_fused_kernel(%arg0: i32, %arg1: memref<1x9x1152xbf16, #tpu.memory_space<vmem>>, %arg2: memref<1152x256xbf16, #tpu.memory_space<vmem>>, %arg3: memref<1x9x256xf32, #tpu.memory_space<vmem>>) attributes {dimension_semantics = [#tpu.dimension_semantics<parallel>], iteration_bounds = array<i64: 2>, scalar_prefetch = 0 : i64, scratch_operands = 0 : i64, tpu.core_type = #tpu.core_type<tc>, window_params = [{transform_indices = @transform_0, window_bounds = array<i64: 1, 9, 1152>}, {pipeline_mode = #tpu.pipeline_mode<synchronous>, transform_indices = @transform_1, window_bounds = array<i64: 1152, 256>}, {transform_indices = @transform_2, window_bounds = array<i64: 1, 9, 256>}]} {
    %c0 = arith.constant 0 : index
    %c0_0 = arith.constant 0 : index
    %c0_1 = arith.constant 0 : index
    %0 = vector.load %arg1[%c0, %c0_0, %c0_1] : memref<1x9x1152xbf16, #tpu.memory_space<vmem>>, vector<1x9x1152xbf16>
    %1 = vector.shape_cast %0 : vector<1x9x1152xbf16> to vector<9x1152xbf16>
    %c0_2 = arith.constant 0 : index
    %c0_3 = arith.constant 0 : index
    %2 = vector.load %arg2[%c0_2, %c0_3] : memref<1152x256xbf16, #tpu.memory_space<vmem>>, vector<1152x256xbf16>
    %cst = arith.constant dense<0.000000e+00> : vector<9x256xf32>
    %3 = tpu.matmul %1, %2, %cst {dimension_numbers = #tpu.dot_dimension_numbers<[1], [0], [0], [1], [0, 0, 1, 1], [], []>} : vector<9x1152xbf16>, vector<1152x256xbf16>, vector<9x256xf32> -> vector<9x256xf32>
    %cst_4 = arith.constant dense<0.000000e+00> : vector<256xf32>
    %4 = vector.multi_reduction <add>, %3, %cst_4 [0] : vector<9x256xf32> to vector<256xf32>
    %5 = vector.shape_cast %4 : vector<256xf32> to vector<1x256xf32>
    %cst_5 = arith.constant 9.000000e+00 : f32
    %6 = vector.broadcast %cst_5 : f32 to vector<1x256xf32>
    %7 = arith.divf %5, %6 : vector<1x256xf32>
    %8 = vector.broadcast %7 : vector<1x256xf32> to vector<9x256xf32>
    %9 = arith.subf %3, %8 : vector<9x256xf32>
    %10 = arith.mulf %9, %9 : vector<9x256xf32>
    %cst_6 = arith.constant dense<0.000000e+00> : vector<256xf32>
    %11 = vector.multi_reduction <add>, %10, %cst_6 [0] : vector<9x256xf32> to vector<256xf32>
    %12 = vector.shape_cast %11 : vector<256xf32> to vector<1x256xf32>
    %cst_7 = arith.constant 9.000000e+00 : f32
    %13 = vector.broadcast %cst_7 : f32 to vector<1x256xf32>
    %14 = arith.divf %12, %13 : vector<1x256xf32>
    %cst_8 = arith.constant 9.99999974E-6 : f32
    %15 = vector.broadcast %cst_8 : f32 to vector<1x256xf32>
    %16 = arith.addf %14, %15 : vector<1x256xf32>
    %17 = math.rsqrt %16 : vector<1x256xf32>
    %18 = vector.broadcast %17 : vector<1x256xf32> to vector<9x256xf32>
    %19 = arith.mulf %9, %18 : vector<9x256xf32>
    %cst_9 = arith.constant 0.000000e+00 : f32
    %20 = vector.broadcast %cst_9 : f32 to vector<9x256xf32>
    %21 = arith.maximumf %19, %20 : vector<9x256xf32>
    %c0_10 = arith.constant 0 : index
    %c0_11 = arith.constant 0 : index
    %c0_12 = arith.constant 0 : index
    %22 = vector.load %arg3[%c0_10, %c0_11, %c0_12] : memref<1x9x256xf32, #tpu.memory_space<vmem>>, vector<1x9x256xf32>
    %23 = vector.shape_cast %22 : vector<1x9x256xf32> to vector<9x256xf32>
    %24 = vector.shape_cast %21 : vector<9x256xf32> to vector<1x9x256xf32>
    tpu.vector_store %arg3[%c0_10, %c0_11, %c0_12], %24 {strides = array<i32>} : memref<1x9x256xf32, #tpu.memory_space<vmem>>, vector<1x9x256xf32>,
    return
  }
  func.func @transform_0(%arg0: i32) -> (i32, i32, i32) {
    %c0_i32 = arith.constant 0 : i32
    %c0_i32_0 = arith.constant 0 : i32
    %c0_i32_1 = arith.constant 0 : i32
    return %arg0, %c0_i32, %c0_i32_0 : i32, i32, i32
  }
  func.func @transform_1(%arg0: i32) -> (i32, i32) {
    %c0_i32 = arith.constant 0 : i32
    %c0_i32_0 = arith.constant 0 : i32
    %c0_i32_1 = arith.constant 0 : i32
    return %c0_i32, %c0_i32_0 : i32, i32
  }
  func.func @transform_2(%arg0: i32) -> (i32, i32, i32) {
    %c0_i32 = arith.constant 0 : i32
    %c0_i32_0 = arith.constant 0 : i32
    %c0_i32_1 = arith.constant 0 : i32
    return %arg0, %c0_i32, %c0_i32_0 : i32, i32, i32
  }
}

module attributes {stable_mosaic.version = 11 : i64} {
  func.func @_conv_fused_kernel(%arg0: i32, %arg1: memref<1x1x2304xbf16, #tpu.memory_space<vmem>>, %arg2: memref<1x2304xbf16, #tpu.memory_space<vmem>>, %arg3: memref<1x1x1xf32, #tpu.memory_space<vmem>>) attributes {dimension_semantics = [#tpu.dimension_semantics<parallel>], iteration_bounds = array<i64: 2>, scalar_prefetch = 0 : i64, scratch_operands = 0 : i64, tpu.core_type = #tpu.core_type<tc>, window_params = [{transform_indices = @transform_0, window_bounds = array<i64: 1, 1, 2304>}, {pipeline_mode = #tpu.pipeline_mode<synchronous>, transform_indices = @transform_1, window_bounds = array<i64: 1, 2304>}, {transform_indices = @transform_2, window_bounds = array<i64: 1, 1, 1>}]} {
    %c0 = arith.constant 0 : index
    %c0_0 = arith.constant 0 : index
    %c0_1 = arith.constant 0 : index
    %0 = vector.load %arg1[%c0, %c0_0, %c0_1] : memref<1x1x2304xbf16, #tpu.memory_space<vmem>>, vector<1x1x2304xbf16>
    %1 = vector.shape_cast %0 : vector<1x1x2304xbf16> to vector<1x2304xbf16>
    %c0_2 = arith.constant 0 : index
    %c0_3 = arith.constant 0 : index
    %2 = vector.load %arg2[%c0_2, %c0_3] : memref<1x2304xbf16, #tpu.memory_space<vmem>>, vector<1x2304xbf16>
    %3 = arith.extf %2 : vector<1x2304xbf16> to vector<1x2304xf32>
    %4 = arith.extf %1 : vector<1x2304xbf16> to vector<1x2304xf32>
    %5 = arith.mulf %4, %3 : vector<1x2304xf32>
    %cst = arith.constant dense<0.000000e+00> : vector<1xf32>
    %6 = vector.multi_reduction <add>, %5, %cst [1] : vector<1x2304xf32> to vector<1xf32>
    %7 = vector.shape_cast %6 : vector<1xf32> to vector<1x1xf32>
    %c0_4 = arith.constant 0 : index
    %c0_5 = arith.constant 0 : index
    %c0_6 = arith.constant 0 : index
    %8 = vector.load %arg3[%c0_4, %c0_5, %c0_6] : memref<1x1x1xf32, #tpu.memory_space<vmem>>, vector<1x1x1xf32>
    %9 = vector.shape_cast %8 : vector<1x1x1xf32> to vector<1x1xf32>
    %10 = vector.shape_cast %7 : vector<1x1xf32> to vector<1x1x1xf32>
    tpu.vector_store %arg3[%c0_4, %c0_5, %c0_6], %10 {strides = array<i32>} : memref<1x1x1xf32, #tpu.memory_space<vmem>>, vector<1x1x1xf32>,
    return
  }
  func.func @transform_0(%arg0: i32) -> (i32, i32, i32) {
    %c0_i32 = arith.constant 0 : i32
    %c0_i32_0 = arith.constant 0 : i32
    %c0_i32_1 = arith.constant 0 : i32
    return %arg0, %c0_i32, %c0_i32_0 : i32, i32, i32
  }
  func.func @transform_1(%arg0: i32) -> (i32, i32) {
    %c0_i32 = arith.constant 0 : i32
    %c0_i32_0 = arith.constant 0 : i32
    %c0_i32_1 = arith.constant 0 : i32
    return %c0_i32, %c0_i32_0 : i32, i32
  }
  func.func @transform_2(%arg0: i32) -> (i32, i32, i32) {
    %c0_i32 = arith.constant 0 : i32
    %c0_i32_0 = arith.constant 0 : i32
    %c0_i32_1 = arith.constant 0 : i32
    return %arg0, %c0_i32, %c0_i32_0 : i32, i32, i32
  }
}

</mosaic_0001>

<llo_original>
// kernel: base_discriminator_forward.7
$region0: #{base_discriminator_forward.7}
  #allocation0 [shape = 'u32[]', space=smem, size = 0x4, offset = 0x4, fixed_abs, tag = 'smem constant byte address 0x4 - core index']
  #allocation1 [shape = 'u32[144,128]{1,0:T(1,128)}', space=vmem, size = 0x12000, scoped, tag = 'internal scratch']
  %s0 = inlined_call_operand.vmem [shape: bf16[2,1444,27], index: 0, kind: input, shape index: {}]
  %s1 = inlined_call_operand.vmem [shape: bf16[27,64], index: 1, kind: input, shape index: {}]
  %s2 = inlined_call_operand.vmem [shape: f32[2,1444,64], index: 2, kind: output, shape index: {}]
  %s3 = sld [smem:[#allocation0]]
  $region41: #{base_discriminator_forward.7} parent=0
    _
  %s5 = ssub.s32 1, %s3
  %s6 = scalar_select 0, %s5, %s3
  loop: start=0, step=1, limit=4
  $region2: #{base_discriminator_forward.7} parent=0 // loop_pre_header
    _
  $region3: #{base_discriminator_forward.7} parent=0 // loop_header
    %s8 = sphi 0, %s12
    %p9 = scmp.ge.s32.totalorder %s8, 4
    %s18 = sphi 0, %s20
    %s21 = sphi 0, %s18
    %s22 = sphi 0, %s21
    %s38 = sphi 0, %s22
    %s42 = sphi 0, %s42
    %s44 = sphi 0, %s42
    %s45 = sphi 0, %s44
    %s59 = sphi 0, %s45
    %s65 = sphi 0, %s67
    %s68 = sphi 0, %s65
    %s69 = sphi 0, %s68
    %s85 = sphi 0, %s69
  $region4: #{base_discriminator_forward.7} parent=0 // loop_header_branch
    %11 = sbr.rel (%p9) target = $region8
  $region5: #{base_discriminator_forward.7} parent=0 // loop_body
    %s13 = ssub.s32 %s8, 1
    %s14 = ssub.s32 %s8, 2
    %s15 = sadd.s32 %s8, 1
    %s16 = ssub.s32 %s8, %s15
    %p17 = scmp.eq.s32.totalorder %s16, 0
    %s19 = sadd.s32 %s18, 1
    %s20 = scalar_select %p17, %s18, %s19
    %p23 = pneg %p17
    %p24 = scmp.eq.s32.totalorder %s8, 1
    %p25 = por %p23, %p24
    %p26 = scmp.ne.s32.totalorder %s18, %s21
    %p27 = scmp.eq.s32.totalorder %s8, 0
    %p28 = por %p26, %p27
    %p29 = scmp.ne.s32.totalorder %s18, %s21
    %p30 = scmp.eq.s32.totalorder %s13, 1
    %p31 = por %p29, %p30
    %p32 = scmp.ne.s32.totalorder %s21, %s22
    %p33 = scmp.eq.s32.totalorder %s13, 0
    %p34 = por %p32, %p33
    %p35 = scmp.ne.s32.totalorder %s21, %s22
    %p36 = scmp.eq.s32.totalorder %s14, 1
    %p37 = por %p35, %p36
    %p39 = scmp.ne.s32.totalorder %s22, %s38
    %p40 = scmp.eq.s32.totalorder %s14, 0
    %p41 = por %p39, %p40
    %s43 = sadd.s32 %s42, 1
    %p46 = scmp.eq.s32.totalorder %s8, 1
    %p47 = scmp.ne.s32.totalorder %s42, %s44
    %p48 = scmp.eq.s32.totalorder %s8, 0
    %p49 = por %p47, %p48
    %p50 = scmp.ne.s32.totalorder %s42, %s44
    %p51 = scmp.eq.s32.totalorder %s13, 1
    %p52 = por %p50, %p51
    %p53 = scmp.ne.s32.totalorder %s44, %s45
    %p54 = scmp.eq.s32.totalorder %s13, 0
    %p55 = por %p53, %p54
    %p56 = scmp.ne.s32.totalorder %s44, %s45
    %p57 = scmp.eq.s32.totalorder %s14, 1
    %p58 = por %p56, %p57
    %p60 = scmp.ne.s32.totalorder %s45, %s59
    %p61 = scmp.eq.s32.totalorder %s14, 0
    %p62 = por %p60, %p61
    %s63 = ssub.s32 %s8, %s15
    %p64 = scmp.eq.s32.totalorder %s63, 0
    %s66 = sadd.s32 %s65, 1
    %s67 = scalar_select %p64, %s65, %s66
    %p70 = pneg %p64
    %p71 = scmp.eq.s32.totalorder %s8, 1
    %p72 = por %p70, %p71
    %p73 = scmp.ne.s32.totalorder %s65, %s68
    %p74 = scmp.eq.s32.totalorder %s8, 0
    %p75 = por %p73, %p74
    %p76 = scmp.ne.s32.totalorder %s65, %s68
    %p77 = scmp.eq.s32.totalorder %s13, 1
    %p78 = por %p76, %p77
    %p79 = scmp.ne.s32.totalorder %s68, %s69
    %p80 = scmp.eq.s32.totalorder %s13, 0
    %p81 = por %p79, %p80
    %p82 = scmp.ne.s32.totalorder %s68, %s69
    %p83 = scmp.eq.s32.totalorder %s14, 1
    %p84 = por %p82, %p83
    %p86 = scmp.ne.s32.totalorder %s69, %s85
    %p87 = scmp.eq.s32.totalorder %s14, 0
    %p88 = por %p86, %p87
    %p89 = scmp.le.s32.totalorder 1, %s8
    %p90 = scmp.lt.s32.totalorder %s8, 3
    %p91 = pnand %p89, %p90
    %p92 = pneg %p91
    // Predicated region
    $region9: #{base_discriminator_forward.7} parent=5 // pred_check
      _
    $region10: #{base_discriminator_forward.7} parent=5 // pred_check_branch
      %94 = sbr.rel (%p91) target = $region12
    $region11: #{base_discriminator_forward.7} parent=5 // pred_region
      %s95 = ssub.s32 %s8, 1
      // Predicated region
      $region13: #{base_discriminator_forward.7} parent=11 // pred_check
        %p96 = pneg %p55
      $region14: #{base_discriminator_forward.7} parent=11 // pred_check_branch
        %98 = sbr.rel (%p96) target = $region16
      $region15: #{base_discriminator_forward.7} parent=11 // pred_region
        _
      $region16: #{base_discriminator_forward.7} parent=11 // pred_fallthru
        _
    $region12: #{base_discriminator_forward.7} parent=5 // pred_fallthru
      _
    %p99 = scmp.lt.s32.totalorder %s8, 2
    // Predicated region
    $region17: #{base_discriminator_forward.7} parent=5 // pred_check
      %p100 = pneg %p99
    $region18: #{base_discriminator_forward.7} parent=5 // pred_check_branch
      %102 = sbr.rel (%p100) target = $region20
    $region19: #{base_discriminator_forward.7} parent=5 // pred_region
      // Predicated region
      $region21: #{base_discriminator_forward.7} parent=19 // pred_check
        %p103 = pneg %p28
      $region22: #{base_discriminator_forward.7} parent=19 // pred_check_branch
        %105 = sbr.rel (%p103) target = $region24
      $region23: #{base_discriminator_forward.7} parent=19 // pred_region
        %p106 = scmp.lt.s32.totalorder %s8, 1
        %s107 = scalar_select %p106, %s8, 1
        %s108 = smul.addr %s107, 181
        %s109 = smul.addr %s108, 4
        %s110 = scalar_lea.vmem %s0, %s109
      $region24: #{base_discriminator_forward.7} parent=19 // pred_fallthru
        _
    $region20: #{base_discriminator_forward.7} parent=5 // pred_fallthru
      _
    %p111 = scmp.le.s32.totalorder 1, %s8
    %p112 = scmp.lt.s32.totalorder %s8, 3
    %p113 = pnand %p111, %p112
    %p114 = pneg %p113
    // Predicated region
    $region25: #{base_discriminator_forward.7} parent=5 // pred_check
      _
    $region26: #{base_discriminator_forward.7} parent=5 // pred_check_branch
      %116 = sbr.rel (%p113) target = $region28
    $region27: #{base_discriminator_forward.7} parent=5 // pred_region
      %s117 = ssub.s32 %s8, 1
      %p118 = scmp.lt.s32.totalorder %s13, 1
      %s119 = scalar_select %p118, %s13, 1
      %s120 = smul.addr %s119, 181
      %s121 = smul.addr %s120, 4
      %s122 = scalar_lea.vmem %s0, %s121
      %p123 = pneg %p34
      %p124 = pneg %p31
      %p125 = pneg %p55
      %p126 = pneg %p52
      %p127 = pneg %p81
      %p128 = pneg %p78
      %p129 = scmp.lt.s32.totalorder %s13, 1
      %s130 = scalar_select %p129, %s13, 1
      %s131 = smul.addr %s130, 181
      %s132 = smul.addr %s131, 8
      %s133 = scalar_lea.vmem %s2, %s132
      %p134 = scmp.lt.s32.totalorder %s13, 1
      %s135 = scalar_select %p134, %s13, 1
      %s136 = smul.addr %s135, 181
      %s137 = smul.addr %s136, 4
      %s138 = scalar_lea.vmem %s0, %s137
      %p139 = scmp.lt.s32.totalorder %s13, 1
      %s140 = scalar_select %p139, %s13, 1
      %s141 = smul.addr %s140, 181
      %s142 = smul.addr %s141, 8
      %s143 = scalar_lea.vmem %s2, %s142
      %v145 = vld [vmem:[%s138] sm:$0xf]
      %v146 = vld [vmem:[%s138 + $0x4] sm:$0xf]
      %v147 = vld [vmem:[%s138 + $0x8] sm:$0xf]
      %v148 = vld [vmem:[%s138 + $0xc] sm:$0xf]
      %v149 = vld [vmem:[%s138 + $0x10] sm:$0xf]
      %v150 = vld [vmem:[%s138 + $0x14] sm:$0xf]
      %v151 = vld [vmem:[%s138 + $0x18] sm:$0xf]
      %v152 = vld [vmem:[%s138 + $0x1c] sm:$0xf]
      %v153 = vld [vmem:[%s138 + $0x20] sm:$0xf]
      %v154 = vld [vmem:[%s138 + $0x24] sm:$0xf]
      %v155 = vld [vmem:[%s138 + $0x28] sm:$0xf]
      %v156 = vld [vmem:[%s138 + $0x2c] sm:$0xf]
      %v157 = vld [vmem:[%s138 + $0x30] sm:$0xf]
      %v158 = vld [vmem:[%s138 + $0x34] sm:$0xf]
      %v159 = vld [vmem:[%s138 + $0x38] sm:$0xf]
      %v160 = vld [vmem:[%s138 + $0x3c] sm:$0xf]
      %v161 = vld [vmem:[%s138 + $0x40] sm:$0xf]
      %v162 = vld [vmem:[%s138 + $0x44] sm:$0xf]
      %v163 = vld [vmem:[%s138 + $0x48] sm:$0xf]
      %v164 = vld [vmem:[%s138 + $0x4c] sm:$0xf]
      %v165 = vld [vmem:[%s138 + $0x50] sm:$0xf]
      %v166 = vld [vmem:[%s138 + $0x54] sm:$0xf]
      %v167 = vld [vmem:[%s138 + $0x58] sm:$0xf]
      %v168 = vld [vmem:[%s138 + $0x5c] sm:$0xf]
      %v169 = vld [vmem:[%s138 + $0x60] sm:$0xf]
      %v170 = vld [vmem:[%s138 + $0x64] sm:$0xf]
      %v171 = vld [vmem:[%s138 + $0x68] sm:$0xf]
      %v172 = vld [vmem:[%s138 + $0x6c] sm:$0xf]
      %v173 = vld [vmem:[%s138 + $0x70] sm:$0xf]
      %v174 = vld [vmem:[%s138 + $0x74] sm:$0xf]
      %v175 = vld [vmem:[%s138 + $0x78] sm:$0xf]
      %v176 = vld [vmem:[%s138 + $0x7c] sm:$0xf]
      %v177 = vld [vmem:[%s138 + $0x80] sm:$0xf]
      %v178 = vld [vmem:[%s138 + $0x84] sm:$0xf]
      %v179 = vld [vmem:[%s138 + $0x88] sm:$0xf]
      %v180 = vld [vmem:[%s138 + $0x8c] sm:$0xf]
      %v181 = vld [vmem:[%s138 + $0x90] sm:$0xf]
      %v182 = vld [vmem:[%s138 + $0x94] sm:$0xf]
      %v183 = vld [vmem:[%s138 + $0x98] sm:$0xf]
      %v184 = vld [vmem:[%s138 + $0x9c] sm:$0xf]
      %v185 = vld [vmem:[%s138 + $0xa0] sm:$0xf]
      %v186 = vld [vmem:[%s138 + $0xa4] sm:$0xf]
      %v187 = vld [vmem:[%s138 + $0xa8] sm:$0xf]
      %v188 = vld [vmem:[%s138 + $0xac] sm:$0xf]
      %v189 = vld [vmem:[%s138 + $0xb0] sm:$0xf]
      %v190 = vld [vmem:[%s138 + $0xb4] sm:$0xf]
      %v191 = vld [vmem:[%s138 + $0xb8] sm:$0xf]
      %v192 = vld [vmem:[%s138 + $0xbc] sm:$0xf]
      %v193 = vld [vmem:[%s138 + $0xc0] sm:$0xf]
      %v194 = vld [vmem:[%s138 + $0xc4] sm:$0xf]
      %v195 = vld [vmem:[%s138 + $0xc8] sm:$0xf]
      %v196 = vld [vmem:[%s138 + $0xcc] sm:$0xf]
      %v197 = vld [vmem:[%s138 + $0xd0] sm:$0xf]
      %v198 = vld [vmem:[%s138 + $0xd4] sm:$0xf]
      %v199 = vld [vmem:[%s138 + $0xd8] sm:$0xf]
      %v200 = vld [vmem:[%s138 + $0xdc] sm:$0xf]
      %v201 = vld [vmem:[%s138 + $0xe0] sm:$0xf]
      %v202 = vld [vmem:[%s138 + $0xe4] sm:$0xf]
      %v203 = vld [vmem:[%s138 + $0xe8] sm:$0xf]
      %v204 = vld [vmem:[%s138 + $0xec] sm:$0xf]
      %v205 = vld [vmem:[%s138 + $0xf0] sm:$0xf]
      %v206 = vld [vmem:[%s138 + $0xf4] sm:$0xf]
      %v207 = vld [vmem:[%s138 + $0xf8] sm:$0xf]
      %v208 = vld [vmem:[%s138 + $0xfc] sm:$0xf]
      %v209 = vld [vmem:[%s138 + $0x100] sm:$0xf]
      %v210 = vld [vmem:[%s138 + $0x104] sm:$0xf]
      %v211 = vld [vmem:[%s138 + $0x108] sm:$0xf]
      %v212 = vld [vmem:[%s138 + $0x10c] sm:$0xf]
      %v213 = vld [vmem:[%s138 + $0x110] sm:$0xf]
      %v214 = vld [vmem:[%s138 + $0x114] sm:$0xf]
      %v215 = vld [vmem:[%s138 + $0x118] sm:$0xf]
      %v216 = vld [vmem:[%s138 + $0x11c] sm:$0xf]
      %v217 = vld [vmem:[%s138 + $0x120] sm:$0xf]
      %v218 = vld [vmem:[%s138 + $0x124] sm:$0xf]
      %v219 = vld [vmem:[%s138 + $0x128] sm:$0xf]
      %v220 = vld [vmem:[%s138 + $0x12c] sm:$0xf]
      %v221 = vld [vmem:[%s138 + $0x130] sm:$0xf]
      %v222 = vld [vmem:[%s138 + $0x134] sm:$0xf]
      %v223 = vld [vmem:[%s138 + $0x138] sm:$0xf]
      %v224 = vld [vmem:[%s138 + $0x13c] sm:$0xf]
      %v225 = vld [vmem:[%s138 + $0x140] sm:$0xf]
      %v226 = vld [vmem:[%s138 + $0x144] sm:$0xf]
      %v227 = vld [vmem:[%s138 + $0x148] sm:$0xf]
      %v228 = vld [vmem:[%s138 + $0x14c] sm:$0xf]
      %v229 = vld [vmem:[%s138 + $0x150] sm:$0xf]
      %v230 = vld [vmem:[%s138 + $0x154] sm:$0xf]
      %v231 = vld [vmem:[%s138 + $0x158] sm:$0xf]
      %v232 = vld [vmem:[%s138 + $0x15c] sm:$0xf]
      %v233 = vld [vmem:[%s138 + $0x160] sm:$0xf]
      %v234 = vld [vmem:[%s138 + $0x164] sm:$0xf]
      %v235 = vld [vmem:[%s138 + $0x168] sm:$0xf]
      %v236 = vld [vmem:[%s138 + $0x16c] sm:$0xf]
      %v237 = vld [vmem:[%s138 + $0x170] sm:$0xf]
      %v238 = vld [vmem:[%s138 + $0x174] sm:$0xf]
      %v239 = vld [vmem:[%s138 + $0x178] sm:$0xf]
      %v240 = vld [vmem:[%s138 + $0x17c] sm:$0xf]
      %v241 = vld [vmem:[%s138 + $0x180] sm:$0xf]
      %v242 = vld [vmem:[%s138 + $0x184] sm:$0xf]
      %v243 = vld [vmem:[%s138 + $0x188] sm:$0xf]
      %v244 = vld [vmem:[%s138 + $0x18c] sm:$0xf]
      %v245 = vld [vmem:[%s138 + $0x190] sm:$0xf]
      %v246 = vld [vmem:[%s138 + $0x194] sm:$0xf]
      %v247 = vld [vmem:[%s138 + $0x198] sm:$0xf]
      %v248 = vld [vmem:[%s138 + $0x19c] sm:$0xf]
      %v249 = vld [vmem:[%s138 + $0x1a0] sm:$0xf]
      %v250 = vld [vmem:[%s138 + $0x1a4] sm:$0xf]
      %v251 = vld [vmem:[%s138 + $0x1a8] sm:$0xf]
      %v252 = vld [vmem:[%s138 + $0x1ac] sm:$0xf]
      %v253 = vld [vmem:[%s138 + $0x1b0] sm:$0xf]
      %v254 = vld [vmem:[%s138 + $0x1b4] sm:$0xf]
      %v255 = vld [vmem:[%s138 + $0x1b8] sm:$0xf]
      %v256 = vld [vmem:[%s138 + $0x1bc] sm:$0xf]
      %v257 = vld [vmem:[%s138 + $0x1c0] sm:$0xf]
      %v258 = vld [vmem:[%s138 + $0x1c4] sm:$0xf]
      %v259 = vld [vmem:[%s138 + $0x1c8] sm:$0xf]
      %v260 = vld [vmem:[%s138 + $0x1cc] sm:$0xf]
      %v261 = vld [vmem:[%s138 + $0x1d0] sm:$0xf]
      %v262 = vld [vmem:[%s138 + $0x1d4] sm:$0xf]
      %v263 = vld [vmem:[%s138 + $0x1d8] sm:$0xf]
      %v264 = vld [vmem:[%s138 + $0x1dc] sm:$0xf]
      %v265 = vld [vmem:[%s138 + $0x1e0] sm:$0xf]
      %v266 = vld [vmem:[%s138 + $0x1e4] sm:$0xf]
      %v267 = vld [vmem:[%s138 + $0x1e8] sm:$0xf]
      %v268 = vld [vmem:[%s138 + $0x1ec] sm:$0xf]
      %v269 = vld [vmem:[%s138 + $0x1f0] sm:$0xf]
      %v270 = vld [vmem:[%s138 + $0x1f4] sm:$0xf]
      %v271 = vld [vmem:[%s138 + $0x1f8] sm:$0xf]
      %v272 = vld [vmem:[%s138 + $0x1fc] sm:$0xf]
      %v273 = vld [vmem:[%s138 + $0x200] sm:$0xf]
      %v274 = vld [vmem:[%s138 + $0x204] sm:$0xf]
      %v275 = vld [vmem:[%s138 + $0x208] sm:$0xf]
      %v276 = vld [vmem:[%s138 + $0x20c] sm:$0xf]
      %v277 = vld [vmem:[%s138 + $0x210] sm:$0xf]
      %v278 = vld [vmem:[%s138 + $0x214] sm:$0xf]
      %v279 = vld [vmem:[%s138 + $0x218] sm:$0xf]
      %v280 = vld [vmem:[%s138 + $0x21c] sm:$0xf]
      %v281 = vld [vmem:[%s138 + $0x220] sm:$0xf]
      %v282 = vld [vmem:[%s138 + $0x224] sm:$0xf]
      %v283 = vld [vmem:[%s138 + $0x228] sm:$0xf]
      %v284 = vld [vmem:[%s138 + $0x22c] sm:$0xf]
      %v285 = vld [vmem:[%s138 + $0x230] sm:$0xf]
      %v286 = vld [vmem:[%s138 + $0x234] sm:$0xf]
      %v287 = vld [vmem:[%s138 + $0x238] sm:$0xf]
      %v288 = vld [vmem:[%s138 + $0x23c] sm:$0xf]
      %v289 = vld [vmem:[%s138 + $0x240] sm:$0xf]
      %v290 = vld [vmem:[%s138 + $0x244] sm:$0xf]
      %v291 = vld [vmem:[%s138 + $0x248] sm:$0xf]
      %v292 = vld [vmem:[%s138 + $0x24c] sm:$0xf]
      %v293 = vld [vmem:[%s138 + $0x250] sm:$0xf]
      %v294 = vld [vmem:[%s138 + $0x254] sm:$0xf]
      %v295 = vld [vmem:[%s138 + $0x258] sm:$0xf]
      %v296 = vld [vmem:[%s138 + $0x25c] sm:$0xf]
      %v297 = vld [vmem:[%s138 + $0x260] sm:$0xf]
      %v298 = vld [vmem:[%s138 + $0x264] sm:$0xf]
      %v299 = vld [vmem:[%s138 + $0x268] sm:$0xf]
      %v300 = vld [vmem:[%s138 + $0x26c] sm:$0xf]
      %v301 = vld [vmem:[%s138 + $0x270] sm:$0xf]
      %v302 = vld [vmem:[%s138 + $0x274] sm:$0xf]
      %v303 = vld [vmem:[%s138 + $0x278] sm:$0xf]
      %v304 = vld [vmem:[%s138 + $0x27c] sm:$0xf]
      %v305 = vld [vmem:[%s138 + $0x280] sm:$0xf]
      %v306 = vld [vmem:[%s138 + $0x284] sm:$0xf]
      %v307 = vld [vmem:[%s138 + $0x288] sm:$0xf]
      %v308 = vld [vmem:[%s138 + $0x28c] sm:$0xf]
      %v309 = vld [vmem:[%s138 + $0x290] sm:$0xf]
      %v310 = vld [vmem:[%s138 + $0x294] sm:$0xf]
      %v311 = vld [vmem:[%s138 + $0x298] sm:$0xf]
      %v312 = vld [vmem:[%s138 + $0x29c] sm:$0xf]
      %v313 = vld [vmem:[%s138 + $0x2a0] sm:$0xf]
      %v314 = vld [vmem:[%s138 + $0x2a4] sm:$0xf]
      %v315 = vld [vmem:[%s138 + $0x2a8] sm:$0xf]
      %v316 = vld [vmem:[%s138 + $0x2ac] sm:$0xf]
      %v317 = vld [vmem:[%s138 + $0x2b0] sm:$0xf]
      %v318 = vld [vmem:[%s138 + $0x2b4] sm:$0xf]
      %v319 = vld [vmem:[%s138 + $0x2b8] sm:$0xf]
      %v320 = vld [vmem:[%s138 + $0x2bc] sm:$0xf]
      %v321 = vld [vmem:[%s138 + $0x2c0] sm:$0xf]
      %v322 = vld [vmem:[%s138 + $0x2c4] sm:$0xf]
      %v323 = vld [vmem:[%s138 + $0x2c8] sm:$0xf]
      %v324 = vld [vmem:[%s138 + $0x2cc] sm:$0xf]
      %v325 = vld [vmem:[%s138 + $0x2d0] sm:$0x3]
      %v326 = vld [vmem:[%s1] sm:$0xf]
      %v327 = vld [vmem:[%s1 + $0x4] sm:$0xf]
      %v328 = vld [vmem:[%s1 + $0x8] sm:$0xf]
      %v329 = vld [vmem:[%s1 + $0xc] sm:$0x3]
      %v511 = vunpack.c.l.b16 %v145
      %v512 = vunpack.c.l.b16 %v146
      %v513 = vunpack.c.l.b16 %v147
      %v514 = vunpack.c.l.b16 %v148
      %v515 = vunpack.c.l.b16 %v149
      %v516 = vunpack.c.l.b16 %v150
      %v517 = vunpack.c.l.b16 %v151
      %v518 = vunpack.c.l.b16 %v152
      %v519 = vunpack.c.l.b16 %v153
      %v520 = vunpack.c.l.b16 %v154
      %v521 = vunpack.c.l.b16 %v155
      %v522 = vunpack.c.l.b16 %v156
      %v523 = vunpack.c.l.b16 %v157
      %v524 = vunpack.c.l.b16 %v158
      %v525 = vunpack.c.l.b16 %v159
      %v526 = vunpack.c.l.b16 %v160
      %v527 = vunpack.c.l.b16 %v161
      %v528 = vunpack.c.l.b16 %v162
      %v529 = vunpack.c.l.b16 %v163
      %v530 = vunpack.c.l.b16 %v164
      %v531 = vunpack.c.l.b16 %v165
      %v532 = vunpack.c.l.b16 %v166
      %v533 = vunpack.c.l.b16 %v167
      %v534 = vunpack.c.l.b16 %v168
      %v535 = vunpack.c.l.b16 %v169
      %v536 = vunpack.c.l.b16 %v170
      %v537 = vunpack.c.l.b16 %v171
      %v538 = vunpack.c.l.b16 %v172
      %v539 = vunpack.c.l.b16 %v173
      %v540 = vunpack.c.l.b16 %v174
      %v541 = vunpack.c.l.b16 %v175
      %v542 = vunpack.c.l.b16 %v176
      %v543 = vunpack.c.l.b16 %v177
      %v544 = vunpack.c.l.b16 %v178
      %v545 = vunpack.c.l.b16 %v179
      %v546 = vunpack.c.l.b16 %v180
      %v547 = vunpack.c.l.b16 %v181
      %v548 = vunpack.c.l.b16 %v182
      %v549 = vunpack.c.l.b16 %v183
      %v550 = vunpack.c.l.b16 %v184
      %v551 = vunpack.c.l.b16 %v185
      %v552 = vunpack.c.l.b16 %v186
      %v553 = vunpack.c.l.b16 %v187
      %v554 = vunpack.c.l.b16 %v188
      %v555 = vunpack.c.l.b16 %v189
      %v556 = vunpack.c.l.b16 %v190
      %v557 = vunpack.c.l.b16 %v191
      %v558 = vunpack.c.l.b16 %v192
      %v559 = vunpack.c.l.b16 %v193
      %v560 = vunpack.c.l.b16 %v194
      %v561 = vunpack.c.l.b16 %v195
      %v562 = vunpack.c.l.b16 %v196
      %v563 = vunpack.c.l.b16 %v197
      %v564 = vunpack.c.l.b16 %v198
      %v565 = vunpack.c.l.b16 %v199
      %v566 = vunpack.c.l.b16 %v200
      %v567 = vunpack.c.l.b16 %v201
      %v568 = vunpack.c.l.b16 %v202
      %v569 = vunpack.c.l.b16 %v203
      %v570 = vunpack.c.l.b16 %v204
      %v571 = vunpack.c.l.b16 %v205
      %v572 = vunpack.c.l.b16 %v206
      %v573 = vunpack.c.l.b16 %v207
      %v574 = vunpack.c.l.b16 %v208
      %v575 = vunpack.c.l.b16 %v209
      %v576 = vunpack.c.l.b16 %v210
      %v577 = vunpack.c.l.b16 %v211
      %v578 = vunpack.c.l.b16 %v212
      %v579 = vunpack.c.l.b16 %v213
      %v580 = vunpack.c.l.b16 %v214
      %v581 = vunpack.c.l.b16 %v215
      %v582 = vunpack.c.l.b16 %v216
      %v583 = vunpack.c.l.b16 %v217
      %v584 = vunpack.c.l.b16 %v218
      %v585 = vunpack.c.l.b16 %v219
      %v586 = vunpack.c.l.b16 %v220
      %v587 = vunpack.c.l.b16 %v221
      %v588 = vunpack.c.l.b16 %v222
      %v589 = vunpack.c.l.b16 %v223
      %v590 = vunpack.c.l.b16 %v224
      %v591 = vunpack.c.l.b16 %v225
      %v592 = vunpack.c.l.b16 %v226
      %v593 = vunpack.c.l.b16 %v227
      %v594 = vunpack.c.l.b16 %v228
      %v595 = vunpack.c.l.b16 %v229
      %v596 = vunpack.c.l.b16 %v230
      %v597 = vunpack.c.l.b16 %v231
      %v598 = vunpack.c.l.b16 %v232
      %v599 = vunpack.c.l.b16 %v233
      %v600 = vunpack.c.l.b16 %v234
      %v601 = vunpack.c.l.b16 %v235
      %v602 = vunpack.c.l.b16 %v236
      %v603 = vunpack.c.l.b16 %v237
      %v604 = vunpack.c.l.b16 %v238
      %v605 = vunpack.c.l.b16 %v239
      %v606 = vunpack.c.l.b16 %v240
      %v607 = vunpack.c.l.b16 %v241
      %v608 = vunpack.c.l.b16 %v242
      %v609 = vunpack.c.l.b16 %v243
      %v610 = vunpack.c.l.b16 %v244
      %v611 = vunpack.c.l.b16 %v245
      %v612 = vunpack.c.l.b16 %v246
      %v613 = vunpack.c.l.b16 %v247
      %v614 = vunpack.c.l.b16 %v248
      %v615 = vunpack.c.l.b16 %v249
      %v616 = vunpack.c.l.b16 %v250
      %v617 = vunpack.c.l.b16 %v251
      %v618 = vunpack.c.l.b16 %v252
      %v619 = vunpack.c.l.b16 %v253
      %v620 = vunpack.c.l.b16 %v254
      %v621 = vunpack.c.l.b16 %v255
      %v622 = vunpack.c.l.b16 %v256
      %v623 = vunpack.c.l.b16 %v257
      %v624 = vunpack.c.l.b16 %v258
      %v625 = vunpack.c.l.b16 %v259
      %v626 = vunpack.c.l.b16 %v260
      %v627 = vunpack.c.l.b16 %v261
      %v628 = vunpack.c.l.b16 %v262
      %v629 = vunpack.c.l.b16 %v263
      %v630 = vunpack.c.l.b16 %v264
      %v631 = vunpack.c.l.b16 %v265
      %v632 = vunpack.c.l.b16 %v266
      %v633 = vunpack.c.l.b16 %v267
      %v634 = vunpack.c.l.b16 %v268
      %v635 = vunpack.c.l.b16 %v269
      %v636 = vunpack.c.l.b16 %v270
      %v637 = vunpack.c.l.b16 %v271
      %v638 = vunpack.c.l.b16 %v272
      %v639 = vunpack.c.l.b16 %v273
      %v640 = vunpack.c.l.b16 %v274
      %v641 = vunpack.c.l.b16 %v275
      %v642 = vunpack.c.l.b16 %v276
      %v643 = vunpack.c.l.b16 %v277
      %v644 = vunpack.c.l.b16 %v278
      %v645 = vunpack.c.l.b16 %v279
      %v646 = vunpack.c.l.b16 %v280
      %v647 = vunpack.c.l.b16 %v281
      %v648 = vunpack.c.l.b16 %v282
      %v649 = vunpack.c.l.b16 %v283
      %v650 = vunpack.c.l.b16 %v284
      %v651 = vunpack.c.l.b16 %v285
      %v652 = vunpack.c.l.b16 %v286
      %v653 = vunpack.c.l.b16 %v287
      %v654 = vunpack.c.l.b16 %v288
      %v655 = vunpack.c.l.b16 %v289
      %v656 = vunpack.c.l.b16 %v290
      %v657 = vunpack.c.l.b16 %v291
      %v658 = vunpack.c.l.b16 %v292
      %v659 = vunpack.c.l.b16 %v293
      %v660 = vunpack.c.l.b16 %v294
      %v661 = vunpack.c.l.b16 %v295
      %v662 = vunpack.c.l.b16 %v296
      %v663 = vunpack.c.l.b16 %v297
      %v664 = vunpack.c.l.b16 %v298
      %v665 = vunpack.c.l.b16 %v299
      %v666 = vunpack.c.l.b16 %v300
      %v667 = vunpack.c.l.b16 %v301
      %v668 = vunpack.c.l.b16 %v302
      %v669 = vunpack.c.l.b16 %v303
      %v670 = vunpack.c.l.b16 %v304
      %v671 = vunpack.c.l.b16 %v305
      %v672 = vunpack.c.l.b16 %v306
      %v673 = vunpack.c.l.b16 %v307
      %v674 = vunpack.c.l.b16 %v308
      %v675 = vunpack.c.l.b16 %v309
      %v676 = vunpack.c.l.b16 %v310
      %v677 = vunpack.c.l.b16 %v311
      %v678 = vunpack.c.l.b16 %v312
      %v679 = vunpack.c.l.b16 %v313
      %v680 = vunpack.c.l.b16 %v314
      %v681 = vunpack.c.l.b16 %v315
      %v682 = vunpack.c.l.b16 %v316
      %v683 = vunpack.c.l.b16 %v317
      %v684 = vunpack.c.l.b16 %v318
      %v685 = vunpack.c.l.b16 %v319
      %v686 = vunpack.c.l.b16 %v320
      %v687 = vunpack.c.l.b16 %v321
      %v688 = vunpack.c.l.b16 %v322
      %v689 = vunpack.c.l.b16 %v323
      %v690 = vunpack.c.l.b16 %v324
      %v691 = vunpack.c.l.b16 %v325
      %v692 = vpack.c.b16 %v512, %v511
      %v693 = vpack.c.b16 %v514, %v513
      %v694 = vpack.c.b16 %v516, %v515
      %v695 = vpack.c.b16 %v518, %v517
      %v696 = vpack.c.b16 %v520, %v519
      %v697 = vpack.c.b16 %v522, %v521
      %v698 = vpack.c.b16 %v524, %v523
      %v699 = vpack.c.b16 %v526, %v525
      %v700 = vpack.c.b16 %v528, %v527
      %v701 = vpack.c.b16 %v530, %v529
      %v702 = vpack.c.b16 %v532, %v531
      %v703 = vpack.c.b16 %v534, %v533
      %v704 = vpack.c.b16 %v536, %v535
      %v705 = vpack.c.b16 %v538, %v537
      %v706 = vpack.c.b16 %v540, %v539
      %v707 = vpack.c.b16 %v542, %v541
      %v708 = vpack.c.b16 %v544, %v543
      %v709 = vpack.c.b16 %v546, %v545
      %v710 = vpack.c.b16 %v548, %v547
      %v711 = vpack.c.b16 %v550, %v549
      %v712 = vpack.c.b16 %v552, %v551
      %v713 = vpack.c.b16 %v554, %v553
      %v714 = vpack.c.b16 %v556, %v555
      %v715 = vpack.c.b16 %v558, %v557
      %v716 = vpack.c.b16 %v560, %v559
      %v717 = vpack.c.b16 %v562, %v561
      %v718 = vpack.c.b16 %v564, %v563
      %v719 = vpack.c.b16 %v566, %v565
      %v720 = vpack.c.b16 %v568, %v567
      %v721 = vpack.c.b16 %v570, %v569
      %v722 = vpack.c.b16 %v572, %v571
      %v723 = vpack.c.b16 %v574, %v573
      %v724 = vpack.c.b16 %v576, %v575
      %v725 = vpack.c.b16 %v578, %v577
      %v726 = vpack.c.b16 %v580, %v579
      %v727 = vpack.c.b16 %v582, %v581
      %v728 = vpack.c.b16 %v584, %v583
      %v729 = vpack.c.b16 %v586, %v585
      %v730 = vpack.c.b16 %v588, %v587
      %v731 = vpack.c.b16 %v590, %v589
      %v732 = vpack.c.b16 %v592, %v591
      %v733 = vpack.c.b16 %v594, %v593
      %v734 = vpack.c.b16 %v596, %v595
      %v735 = vpack.c.b16 %v598, %v597
      %v736 = vpack.c.b16 %v600, %v599
      %v737 = vpack.c.b16 %v602, %v601
      %v738 = vpack.c.b16 %v604, %v603
      %v739 = vpack.c.b16 %v606, %v605
      %v740 = vpack.c.b16 %v608, %v607
      %v741 = vpack.c.b16 %v610, %v609
      %v742 = vpack.c.b16 %v612, %v611
      %v743 = vpack.c.b16 %v614, %v613
      %v744 = vpack.c.b16 %v616, %v615
      %v745 = vpack.c.b16 %v618, %v617
      %v746 = vpack.c.b16 %v620, %v619
      %v747 = vpack.c.b16 %v622, %v621
      %v748 = vpack.c.b16 %v624, %v623
      %v749 = vpack.c.b16 %v626, %v625
      %v750 = vpack.c.b16 %v628, %v627
      %v751 = vpack.c.b16 %v630, %v629
      %v752 = vpack.c.b16 %v632, %v631
      %v753 = vpack.c.b16 %v634, %v633
      %v754 = vpack.c.b16 %v636, %v635
      %v755 = vpack.c.b16 %v638, %v637
      %v756 = vpack.c.b16 %v640, %v639
      %v757 = vpack.c.b16 %v642, %v641
      %v758 = vpack.c.b16 %v644, %v643
      %v759 = vpack.c.b16 %v646, %v645
      %v760 = vpack.c.b16 %v648, %v647
      %v761 = vpack.c.b16 %v650, %v649
      %v762 = vpack.c.b16 %v652, %v651
      %v763 = vpack.c.b16 %v654, %v653
      %v764 = vpack.c.b16 %v656, %v655
      %v765 = vpack.c.b16 %v658, %v657
      %v766 = vpack.c.b16 %v660, %v659
      %v767 = vpack.c.b16 %v662, %v661
      %v768 = vpack.c.b16 %v664, %v663
      %v769 = vpack.c.b16 %v666, %v665
      %v770 = vpack.c.b16 %v668, %v667
      %v771 = vpack.c.b16 %v670, %v669
      %v772 = vpack.c.b16 %v672, %v671
      %v773 = vpack.c.b16 %v674, %v673
      %v774 = vpack.c.b16 %v676, %v675
      %v775 = vpack.c.b16 %v678, %v677
      %v776 = vpack.c.b16 %v680, %v679
      %v777 = vpack.c.b16 %v682, %v681
      %v778 = vpack.c.b16 %v684, %v683
      %v779 = vpack.c.b16 %v686, %v685
      %v780 = vpack.c.b16 %v688, %v687
      %v781 = vpack.c.b16 %v690, %v689
      %v782 = vpack.c.b16 %v691, %v691
      %v787 = vunpack.c.l.b16 %v326
      %v788 = vunpack.c.l.b16 %v327
      %v789 = vunpack.c.l.b16 %v328
      %v790 = vunpack.c.l.b16 %v329
      %v791 = vpack.c.b16 %v788, %v787
      %v792 = vpack.c.b16 %v790, %v789
      %vm794 = vcmask 220160
      %v796 = vsel %vm794, %v692, 0
      %v799 = vsel %vm794, %v693, 0
      %v802 = vsel %vm794, %v694, 0
      %v805 = vsel %vm794, %v695, 0
      %v808 = vsel %vm794, %v696, 0
      %v811 = vsel %vm794, %v697, 0
      %v814 = vsel %vm794, %v698, 0
      %v817 = vsel %vm794, %v699, 0
      %v820 = vsel %vm794, %v700, 0
      %v823 = vsel %vm794, %v701, 0
      %v826 = vsel %vm794, %v702, 0
      %v829 = vsel %vm794, %v703, 0
      %v832 = vsel %vm794, %v704, 0
      %v835 = vsel %vm794, %v705, 0
      %v838 = vsel %vm794, %v706, 0
      %v841 = vsel %vm794, %v707, 0
      %v844 = vsel %vm794, %v708, 0
      %v847 = vsel %vm794, %v709, 0
      %v850 = vsel %vm794, %v710, 0
      %v853 = vsel %vm794, %v711, 0
      %v856 = vsel %vm794, %v712, 0
      %v859 = vsel %vm794, %v713, 0
      %v862 = vsel %vm794, %v714, 0
      %v865 = vsel %vm794, %v715, 0
      %v868 = vsel %vm794, %v716, 0
      %v871 = vsel %vm794, %v717, 0
      %v874 = vsel %vm794, %v718, 0
      %v877 = vsel %vm794, %v719, 0
      %v880 = vsel %vm794, %v720, 0
      %v883 = vsel %vm794, %v721, 0
      %v886 = vsel %vm794, %v722, 0
      %v889 = vsel %vm794, %v723, 0
      %v892 = vsel %vm794, %v724, 0
      %v895 = vsel %vm794, %v725, 0
      %v898 = vsel %vm794, %v726, 0
      %v901 = vsel %vm794, %v727, 0
      %v904 = vsel %vm794, %v728, 0
      %v907 = vsel %vm794, %v729, 0
      %v910 = vsel %vm794, %v730, 0
      %v913 = vsel %vm794, %v731, 0
      %v916 = vsel %vm794, %v732, 0
      %v919 = vsel %vm794, %v733, 0
      %v922 = vsel %vm794, %v734, 0
      %v925 = vsel %vm794, %v735, 0
      %v928 = vsel %vm794, %v736, 0
      %v931 = vsel %vm794, %v737, 0
      %v934 = vsel %vm794, %v738, 0
      %v937 = vsel %vm794, %v739, 0
      %v940 = vsel %vm794, %v740, 0
      %v943 = vsel %vm794, %v741, 0
      %v946 = vsel %vm794, %v742, 0
      %v949 = vsel %vm794, %v743, 0
      %v952 = vsel %vm794, %v744, 0
      %v955 = vsel %vm794, %v745, 0
      %v958 = vsel %vm794, %v746, 0
      %v961 = vsel %vm794, %v747, 0
      %v964 = vsel %vm794, %v748, 0
      %v967 = vsel %vm794, %v749, 0
      %v970 = vsel %vm794, %v750, 0
      %v973 = vsel %vm794, %v751, 0
      %v976 = vsel %vm794, %v752, 0
      %v979 = vsel %vm794, %v753, 0
      %v982 = vsel %vm794, %v754, 0
      %v985 = vsel %vm794, %v755, 0
      %v988 = vsel %vm794, %v756, 0
      %v991 = vsel %vm794, %v757, 0
      %v994 = vsel %vm794, %v758, 0
      %v997 = vsel %vm794, %v759, 0
      %v1000 = vsel %vm794, %v760, 0
      %v1003 = vsel %vm794, %v761, 0
      %v1006 = vsel %vm794, %v762, 0
      %v1009 = vsel %vm794, %v763, 0
      %v1012 = vsel %vm794, %v764, 0
      %v1015 = vsel %vm794, %v765, 0
      %v1018 = vsel %vm794, %v766, 0
      %v1021 = vsel %vm794, %v767, 0
      %v1024 = vsel %vm794, %v768, 0
      %v1027 = vsel %vm794, %v769, 0
      %v1030 = vsel %vm794, %v770, 0
      %v1033 = vsel %vm794, %v771, 0
      %v1036 = vsel %vm794, %v772, 0
      %v1039 = vsel %vm794, %v773, 0
      %v1042 = vsel %vm794, %v774, 0
      %v1045 = vsel %vm794, %v775, 0
      %v1048 = vsel %vm794, %v776, 0
      %v1051 = vsel %vm794, %v777, 0
      %v1054 = vsel %vm794, %v778, 0
      %v1057 = vsel %vm794, %v779, 0
      %v1060 = vsel %vm794, %v780, 0
      %v1063 = vsel %vm794, %v781, 0
      %v1066 = vsel %vm794, %v782, 0
      %vm1068 = vcmask 1044480
      %vm1069 = vcmask 1045504
      %v1070 = vsel %vm1068, 4294967295, 65535
      %v1071 = vsel %vm1069, %v1070, 0
      %v1073 = vand.u32 %v792, %v1071
      %1075 = vmatprep.subr.bf16.mxu0 0
      %1076 = vmatpush1.bf16.msra.mxu0 %v791
      %1077 = vmatprep.subr.bf16.mxu0 0
      %1078 = vmatpush1.bf16.msra.mxu0 %v1073
      %1079 = vmatprep.subr.bf16.mxu0 0
      %1080 = vmatpush1.bf16.msra.mxu0 0
      %1081 = vmatprep.subr.bf16.mxu0 0
      %1082 = vmatpush1.bf16.msra.mxu0 0
      %1083 = vmatprep.subr.bf16.mxu0 0
      %1084 = vmatpush1.bf16.msra.mxu0 0
      %1085 = vmatprep.subr.bf16.mxu0 0
      %1086 = vmatpush1.bf16.msra.mxu0 0
      %1087 = vmatprep.subr.bf16.mxu0 0
      %1088 = vmatpush1.bf16.msra.mxu0 0
      %1089 = vmatprep.subr.bf16.mxu0 0
      %1090 = vmatpush1.bf16.msra.mxu0 0
      %1091 = vmatprep.subr.bf16.mxu0 0
      %1092 = vmatpush1.bf16.msra.mxu0 0
      %1093 = vmatprep.subr.bf16.mxu0 0
      %1094 = vmatpush1.bf16.msra.mxu0 0
      %1095 = vmatprep.subr.bf16.mxu0 0
      %1096 = vmatpush1.bf16.msra.mxu0 0
      %1097 = vmatprep.subr.bf16.mxu0 0
      %1098 = vmatpush1.bf16.msra.mxu0 0
      %1099 = vmatprep.subr.bf16.mxu0 0
      %1100 = vmatpush1.bf16.msra.mxu0 0
      %1101 = vmatprep.subr.bf16.mxu0 0
      %1102 = vmatpush1.bf16.msra.mxu0 0
      %1103 = vmatprep.subr.bf16.mxu0 0
      %1104 = vmatpush1.bf16.msra.mxu0 0
      %1105 = vmatprep.subr.bf16.mxu0 0
      %1106 = vmatpush1.bf16.msra.mxu0 0
      %1107 = vmatprep.mubr.bf16.mxu0 0
      %1108 = vmatmul.mubr.bf16.gmra.mrb[0].mxu0 %v796
      %v1109 = vpop.f32.mrb[0].mxu0
      %v1110 = vadd.f32 0.0, %v1109
      %v1111 = vpop.f32.mrb[0].mxu0
      %v1112 = vpop.f32.mrb[0].mxu0
      %v1113 = vadd.f32 0.0, %v1112
      %v1114 = vpop.f32.mrb[0].mxu0
      %1115 = vmatprep.mubr.bf16.mxu0 0
      %1116 = vmatmul.mubr.bf16.gmra.mrb[0].mxu0 %v799
      %v1117 = vpop.f32.mrb[0].mxu0
      %v1118 = vadd.f32 0.0, %v1117
      %v1119 = vpop.f32.mrb[0].mxu0
      %v1120 = vpop.f32.mrb[0].mxu0
      %v1121 = vadd.f32 0.0, %v1120
      %v1122 = vpop.f32.mrb[0].mxu0
      %1123 = vmatprep.mubr.bf16.mxu0 0
      %1124 = vmatmul.mubr.bf16.gmra.mrb[0].mxu0 %v802
      %v1125 = vpop.f32.mrb[0].mxu0
      %v1126 = vadd.f32 0.0, %v1125
      %v1127 = vpop.f32.mrb[0].mxu0
      %v1128 = vpop.f32.mrb[0].mxu0
      %v1129 = vadd.f32 0.0, %v1128
      %v1130 = vpop.f32.mrb[0].mxu0
      %1131 = vmatprep.mubr.bf16.mxu0 0
      %1132 = vmatmul.mubr.bf16.gmra.mrb[0].mxu0 %v805
      %v1133 = vpop.f32.mrb[0].mxu0
      %v1134 = vadd.f32 0.0, %v1133
      %v1135 = vpop.f32.mrb[0].mxu0
      %v1136 = vpop.f32.mrb[0].mxu0
      %v1137 = vadd.f32 0.0, %v1136
      %v1138 = vpop.f32.mrb[0].mxu0
      %1139 = vmatprep.mubr.bf16.mxu0 0
      %1140 = vmatmul.mubr.bf16.gmra.mrb[0].mxu0 %v808
      %v1141 = vpop.f32.mrb[0].mxu0
      %v1142 = vadd.f32 0.0, %v1141
      %v1143 = vpop.f32.mrb[0].mxu0
      %v1144 = vpop.f32.mrb[0].mxu0
      %v1145 = vadd.f32 0.0, %v1144
      %v1146 = vpop.f32.mrb[0].mxu0
      %1147 = vmatprep.mubr.bf16.mxu0 0
      %1148 = vmatmul.mubr.bf16.gmra.mrb[0].mxu0 %v811
      %v1149 = vpop.f32.mrb[0].mxu0
      %v1150 = vadd.f32 0.0, %v1149
      %v1151 = vpop.f32.mrb[0].mxu0
      %v1152 = vpop.f32.mrb[0].mxu0
      %v1153 = vadd.f32 0.0, %v1152
      %v1154 = vpop.f32.mrb[0].mxu0
      %1155 = vmatprep.mubr.bf16.mxu0 0
      %1156 = vmatmul.mubr.bf16.gmra.mrb[0].mxu0 %v814
      %v1157 = vpop.f32.mrb[0].mxu0
      %v1158 = vadd.f32 0.0, %v1157
      %v1159 = vpop.f32.mrb[0].mxu0
      %v1160 = vpop.f32.mrb[0].mxu0
      %v1161 = vadd.f32 0.0, %v1160
      %v1162 = vpop.f32.mrb[0].mxu0
      %1163 = vmatprep.mubr.bf16.mxu0 0
      %1164 = vmatmul.mubr.bf16.gmra.mrb[0].mxu0 %v817
      %v1165 = vpop.f32.mrb[0].mxu0
      %v1166 = vadd.f32 0.0, %v1165
      %v1167 = vpop.f32.mrb[0].mxu0
      %v1168 = vpop.f32.mrb[0].mxu0
      %v1169 = vadd.f32 0.0, %v1168
      %v1170 = vpop.f32.mrb[0].mxu0
      %1171 = vmatprep.mubr.bf16.mxu0 0
      %1172 = vmatmul.mubr.bf16.gmra.mrb[0].mxu0 %v820
      %v1173 = vpop.f32.mrb[0].mxu0
      %v1174 = vadd.f32 0.0, %v1173
      %v1175 = vpop.f32.mrb[0].mxu0
      %v1176 = vpop.f32.mrb[0].mxu0
      %v1177 = vadd.f32 0.0, %v1176
      %v1178 = vpop.f32.mrb[0].mxu0
      %1179 = vmatprep.mubr.bf16.mxu0 0
      %1180 = vmatmul.mubr.bf16.gmra.mrb[0].mxu0 %v823
      %v1181 = vpop.f32.mrb[0].mxu0
      %v1182 = vadd.f32 0.0, %v1181
      %v1183 = vpop.f32.mrb[0].mxu0
      %v1184 = vpop.f32.mrb[0].mxu0
      %v1185 = vadd.f32 0.0, %v1184
      %v1186 = vpop.f32.mrb[0].mxu0
      %1187 = vmatprep.mubr.bf16.mxu0 0
      %1188 = vmatmul.mubr.bf16.gmra.mrb[0].mxu0 %v826
      %v1189 = vpop.f32.mrb[0].mxu0
      %v1190 = vadd.f32 0.0, %v1189
      %v1191 = vpop.f32.mrb[0].mxu0
      %v1192 = vpop.f32.mrb[0].mxu0
      %v1193 = vadd.f32 0.0, %v1192
      %v1194 = vpop.f32.mrb[0].mxu0
      %1195 = vmatprep.mubr.bf16.mxu0 0
      %1196 = vmatmul.mubr.bf16.gmra.mrb[0].mxu0 %v829
      %v1197 = vpop.f32.mrb[0].mxu0
      %v1198 = vadd.f32 0.0, %v1197
      %v1199 = vpop.f32.mrb[0].mxu0
      %v1200 = vpop.f32.mrb[0].mxu0
      %v1201 = vadd.f32 0.0, %v1200
      %v1202 = vpop.f32.mrb[0].mxu0
      %1203 = vmatprep.mubr.bf16.mxu0 0
      %1204 = vmatmul.mubr.bf16.gmra.mrb[0].mxu0 %v832
      %v1205 = vpop.f32.mrb[0].mxu0
      %v1206 = vadd.f32 0.0, %v1205
      %v1207 = vpop.f32.mrb[0].mxu0
      %v1208 = vpop.f32.mrb[0].mxu0
      %v1209 = vadd.f32 0.0, %v1208
      %v1210 = vpop.f32.mrb[0].mxu0
      %1211 = vmatprep.mubr.bf16.mxu0 0
      %1212 = vmatmul.mubr.bf16.gmra.mrb[0].mxu0 %v835
      %v1213 = vpop.f32.mrb[0].mxu0
      %v1214 = vadd.f32 0.0, %v1213
      %v1215 = vpop.f32.mrb[0].mxu0
      %v1216 = vpop.f32.mrb[0].mxu0
      %v1217 = vadd.f32 0.0, %v1216
      %v1218 = vpop.f32.mrb[0].mxu0
      %1219 = vmatprep.mubr.bf16.mxu0 0
      %1220 = vmatmul.mubr.bf16.gmra.mrb[0].mxu0 %v838
      %v1221 = vpop.f32.mrb[0].mxu0
      %v1222 = vadd.f32 0.0, %v1221
      %v1223 = vpop.f32.mrb[0].mxu0
      %v1224 = vpop.f32.mrb[0].mxu0
      %v1225 = vadd.f32 0.0, %v1224
      %v1226 = vpop.f32.mrb[0].mxu0
      %1227 = vmatprep.mubr.bf16.mxu0 0
      %1228 = vmatmul.mubr.bf16.gmra.mrb[0].mxu0 %v841
      %v1229 = vpop.f32.mrb[0].mxu0
      %v1230 = vadd.f32 0.0, %v1229
      %v1231 = vpop.f32.mrb[0].mxu0
      %v1232 = vpop.f32.mrb[0].mxu0
      %v1233 = vadd.f32 0.0, %v1232
      %v1234 = vpop.f32.mrb[0].mxu0
      %1235 = vmatprep.mubr.bf16.mxu0 0
      %1236 = vmatmul.mubr.bf16.gmra.mrb[0].mxu0 %v844
      %v1237 = vpop.f32.mrb[0].mxu0
      %v1238 = vadd.f32 0.0, %v1237
      %v1239 = vpop.f32.mrb[0].mxu0
      %v1240 = vpop.f32.mrb[0].mxu0
      %v1241 = vadd.f32 0.0, %v1240
      %v1242 = vpop.f32.mrb[0].mxu0
      %1243 = vmatprep.mubr.bf16.mxu0 0
      %1244 = vmatmul.mubr.bf16.gmra.mrb[0].mxu0 %v847
      %v1245 = vpop.f32.mrb[0].mxu0
      %v1246 = vadd.f32 0.0, %v1245
      %v1247 = vpop.f32.mrb[0].mxu0
      %v1248 = vpop.f32.mrb[0].mxu0
      %v1249 = vadd.f32 0.0, %v1248
      %v1250 = vpop.f32.mrb[0].mxu0
      %1251 = vmatprep.mubr.bf16.mxu0 0
      %1252 = vmatmul.mubr.bf16.gmra.mrb[0].mxu0 %v850
      %v1253 = vpop.f32.mrb[0].mxu0
      %v1254 = vadd.f32 0.0, %v1253
      %v1255 = vpop.f32.mrb[0].mxu0
      %v1256 = vpop.f32.mrb[0].mxu0
      %v1257 = vadd.f32 0.0, %v1256
      %v1258 = vpop.f32.mrb[0].mxu0
      %1259 = vmatprep.mubr.bf16.mxu0 0
      %1260 = vmatmul.mubr.bf16.gmra.mrb[0].mxu0 %v853
      %v1261 = vpop.f32.mrb[0].mxu0
      %v1262 = vadd.f32 0.0, %v1261
      %v1263 = vpop.f32.mrb[0].mxu0
      %v1264 = vpop.f32.mrb[0].mxu0
      %v1265 = vadd.f32 0.0, %v1264
      %v1266 = vpop.f32.mrb[0].mxu0
      %1267 = vmatprep.mubr.bf16.mxu0 0
      %1268 = vmatmul.mubr.bf16.gmra.mrb[0].mxu0 %v856
      %v1269 = vpop.f32.mrb[0].mxu0
      %v1270 = vadd.f32 0.0, %v1269
      %v1271 = vpop.f32.mrb[0].mxu0
      %v1272 = vpop.f32.mrb[0].mxu0
      %v1273 = vadd.f32 0.0, %v1272
      %v1274 = vpop.f32.mrb[0].mxu0
      %1275 = vmatprep.mubr.bf16.mxu0 0
      %1276 = vmatmul.mubr.bf16.gmra.mrb[0].mxu0 %v859
      %v1277 = vpop.f32.mrb[0].mxu0
      %v1278 = vadd.f32 0.0, %v1277
      %v1279 = vpop.f32.mrb[0].mxu0
      %v1280 = vpop.f32.mrb[0].mxu0
      %v1281 = vadd.f32 0.0, %v1280
      %v1282 = vpop.f32.mrb[0].mxu0
      %1283 = vmatprep.mubr.bf16.mxu0 0
      %1284 = vmatmul.mubr.bf16.gmra.mrb[0].mxu0 %v862
      %v1285 = vpop.f32.mrb[0].mxu0
      %v1286 = vadd.f32 0.0, %v1285
      %v1287 = vpop.f32.mrb[0].mxu0
      %v1288 = vpop.f32.mrb[0].mxu0
      %v1289 = vadd.f32 0.0, %v1288
      %v1290 = vpop.f32.mrb[0].mxu0
      %1291 = vmatprep.mubr.bf16.mxu0 0
      %1292 = vmatmul.mubr.bf16.gmra.mrb[0].mxu0 %v865
      %v1293 = vpop.f32.mrb[0].mxu0
      %v1294 = vadd.f32 0.0, %v1293
      %v1295 = vpop.f32.mrb[0].mxu0
      %v1296 = vpop.f32.mrb[0].mxu0
      %v1297 = vadd.f32 0.0, %v1296
      %v1298 = vpop.f32.mrb[0].mxu0
      %1299 = vmatprep.mubr.bf16.mxu0 0
      %1300 = vmatmul.mubr.bf16.gmra.mrb[0].mxu0 %v868
      %v1301 = vpop.f32.mrb[0].mxu0
      %v1302 = vadd.f32 0.0, %v1301
      %v1303 = vpop.f32.mrb[0].mxu0
      %v1304 = vpop.f32.mrb[0].mxu0
      %v1305 = vadd.f32 0.0, %v1304
      %v1306 = vpop.f32.mrb[0].mxu0
      %1307 = vmatprep.mubr.bf16.mxu0 0
      %1308 = vmatmul.mubr.bf16.gmra.mrb[0].mxu0 %v871
      %v1309 = vpop.f32.mrb[0].mxu0
      %v1310 = vadd.f32 0.0, %v1309
      %v1311 = vpop.f32.mrb[0].mxu0
      %v1312 = vpop.f32.mrb[0].mxu0
      %v1313 = vadd.f32 0.0, %v1312
      %v1314 = vpop.f32.mrb[0].mxu0
      %1315 = vmatprep.mubr.bf16.mxu0 0
      %1316 = vmatmul.mubr.bf16.gmra.mrb[0].mxu0 %v874
      %v1317 = vpop.f32.mrb[0].mxu0
      %v1318 = vadd.f32 0.0, %v1317
      %v1319 = vpop.f32.mrb[0].mxu0
      %v1320 = vpop.f32.mrb[0].mxu0
      %v1321 = vadd.f32 0.0, %v1320
      %v1322 = vpop.f32.mrb[0].mxu0
      %1323 = vmatprep.mubr.bf16.mxu0 0
      %1324 = vmatmul.mubr.bf16.gmra.mrb[0].mxu0 %v877
      %v1325 = vpop.f32.mrb[0].mxu0
      %v1326 = vadd.f32 0.0, %v1325
      %v1327 = vpop.f32.mrb[0].mxu0
      %v1328 = vpop.f32.mrb[0].mxu0
      %v1329 = vadd.f32 0.0, %v1328
      %v1330 = vpop.f32.mrb[0].mxu0
      %1331 = vmatprep.mubr.bf16.mxu0 0
      %1332 = vmatmul.mubr.bf16.gmra.mrb[0].mxu0 %v880
      %v1333 = vpop.f32.mrb[0].mxu0
      %v1334 = vadd.f32 0.0, %v1333
      %v1335 = vpop.f32.mrb[0].mxu0
      %v1336 = vpop.f32.mrb[0].mxu0
      %v1337 = vadd.f32 0.0, %v1336
      %v1338 = vpop.f32.mrb[0].mxu0
      %1339 = vmatprep.mubr.bf16.mxu0 0
      %1340 = vmatmul.mubr.bf16.gmra.mrb[0].mxu0 %v883
      %v1341 = vpop.f32.mrb[0].mxu0
      %v1342 = vadd.f32 0.0, %v1341
      %v1343 = vpop.f32.mrb[0].mxu0
      %v1344 = vpop.f32.mrb[0].mxu0
      %v1345 = vadd.f32 0.0, %v1344
      %v1346 = vpop.f32.mrb[0].mxu0
      %1347 = vmatprep.mubr.bf16.mxu0 0
      %1348 = vmatmul.mubr.bf16.gmra.mrb[0].mxu0 %v886
      %v1349 = vpop.f32.mrb[0].mxu0
      %v1350 = vadd.f32 0.0, %v1349
      %v1351 = vpop.f32.mrb[0].mxu0
      %v1352 = vpop.f32.mrb[0].mxu0
      %v1353 = vadd.f32 0.0, %v1352
      %v1354 = vpop.f32.mrb[0].mxu0
      %1355 = vmatprep.mubr.bf16.mxu0 0
      %1356 = vmatmul.mubr.bf16.gmra.mrb[0].mxu0 %v889
      %v1357 = vpop.f32.mrb[0].mxu0
      %v1358 = vadd.f32 0.0, %v1357
      %v1359 = vpop.f32.mrb[0].mxu0
      %v1360 = vpop.f32.mrb[0].mxu0
      %v1361 = vadd.f32 0.0, %v1360
      %v1362 = vpop.f32.mrb[0].mxu0
      %1363 = vmatprep.mubr.bf16.mxu0 0
      %1364 = vmatmul.mubr.bf16.gmra.mrb[0].mxu0 %v892
      %v1365 = vpop.f32.mrb[0].mxu0
      %v1366 = vadd.f32 0.0, %v1365
      %v1367 = vpop.f32.mrb[0].mxu0
      %v1368 = vpop.f32.mrb[0].mxu0
      %v1369 = vadd.f32 0.0, %v1368
      %v1370 = vpop.f32.mrb[0].mxu0
      %1371 = vmatprep.mubr.bf16.mxu0 0
      %1372 = vmatmul.mubr.bf16.gmra.mrb[0].mxu0 %v895
      %v1373 = vpop.f32.mrb[0].mxu0
      %v1374 = vadd.f32 0.0, %v1373
      %v1375 = vpop.f32.mrb[0].mxu0
      %v1376 = vpop.f32.mrb[0].mxu0
      %v1377 = vadd.f32 0.0, %v1376
      %v1378 = vpop.f32.mrb[0].mxu0
      %1379 = vmatprep.mubr.bf16.mxu0 0
      %1380 = vmatmul.mubr.bf16.gmra.mrb[0].mxu0 %v898
      %v1381 = vpop.f32.mrb[0].mxu0
      %v1382 = vadd.f32 0.0, %v1381
      %v1383 = vpop.f32.mrb[0].mxu0
      %v1384 = vpop.f32.mrb[0].mxu0
      %v1385 = vadd.f32 0.0, %v1384
      %v1386 = vpop.f32.mrb[0].mxu0
      %1387 = vmatprep.mubr.bf16.mxu0 0
      %1388 = vmatmul.mubr.bf16.gmra.mrb[0].mxu0 %v901
      %v1389 = vpop.f32.mrb[0].mxu0
      %v1390 = vadd.f32 0.0, %v1389
      %v1391 = vpop.f32.mrb[0].mxu0
      %v1392 = vpop.f32.mrb[0].mxu0
      %v1393 = vadd.f32 0.0, %v1392
      %v1394 = vpop.f32.mrb[0].mxu0
      %1395 = vmatprep.mubr.bf16.mxu0 0
      %1396 = vmatmul.mubr.bf16.gmra.mrb[0].mxu0 %v904
      %v1397 = vpop.f32.mrb[0].mxu0
      %v1398 = vadd.f32 0.0, %v1397
      %v1399 = vpop.f32.mrb[0].mxu0
      %v1400 = vpop.f32.mrb[0].mxu0
      %v1401 = vadd.f32 0.0, %v1400
      %v1402 = vpop.f32.mrb[0].mxu0
      %1403 = vmatprep.mubr.bf16.mxu0 0
      %1404 = vmatmul.mubr.bf16.gmra.mrb[0].mxu0 %v907
      %v1405 = vpop.f32.mrb[0].mxu0
      %v1406 = vadd.f32 0.0, %v1405
      %v1407 = vpop.f32.mrb[0].mxu0
      %v1408 = vpop.f32.mrb[0].mxu0
      %v1409 = vadd.f32 0.0, %v1408
      %v1410 = vpop.f32.mrb[0].mxu0
      %1411 = vmatprep.mubr.bf16.mxu0 0
      %1412 = vmatmul.mubr.bf16.gmra.mrb[0].mxu0 %v910
      %v1413 = vpop.f32.mrb[0].mxu0
      %v1414 = vadd.f32 0.0, %v1413
      %v1415 = vpop.f32.mrb[0].mxu0
      %v1416 = vpop.f32.mrb[0].mxu0
      %v1417 = vadd.f32 0.0, %v1416
      %v1418 = vpop.f32.mrb[0].mxu0
      %1419 = vmatprep.mubr.bf16.mxu0 0
      %1420 = vmatmul.mubr.bf16.gmra.mrb[0].mxu0 %v913
      %v1421 = vpop.f32.mrb[0].mxu0
      %v1422 = vadd.f32 0.0, %v1421
      %v1423 = vpop.f32.mrb[0].mxu0
      %v1424 = vpop.f32.mrb[0].mxu0
      %v1425 = vadd.f32 0.0, %v1424
      %v1426 = vpop.f32.mrb[0].mxu0
      %1427 = vmatprep.mubr.bf16.mxu0 0
      %1428 = vmatmul.mubr.bf16.gmra.mrb[0].mxu0 %v916
      %v1429 = vpop.f32.mrb[0].mxu0
      %v1430 = vadd.f32 0.0, %v1429
      %v1431 = vpop.f32.mrb[0].mxu0
      %v1432 = vpop.f32.mrb[0].mxu0
      %v1433 = vadd.f32 0.0, %v1432
      %v1434 = vpop.f32.mrb[0].mxu0
      %1435 = vmatprep.mubr.bf16.mxu0 0
      %1436 = vmatmul.mubr.bf16.gmra.mrb[0].mxu0 %v919
      %v1437 = vpop.f32.mrb[0].mxu0
      %v1438 = vadd.f32 0.0, %v1437
      %v1439 = vpop.f32.mrb[0].mxu0
      %v1440 = vpop.f32.mrb[0].mxu0
      %v1441 = vadd.f32 0.0, %v1440
      %v1442 = vpop.f32.mrb[0].mxu0
      %1443 = vmatprep.mubr.bf16.mxu0 0
      %1444 = vmatmul.mubr.bf16.gmra.mrb[0].mxu0 %v922
      %v1445 = vpop.f32.mrb[0].mxu0
      %v1446 = vadd.f32 0.0, %v1445
      %v1447 = vpop.f32.mrb[0].mxu0
      %v1448 = vpop.f32.mrb[0].mxu0
      %v1449 = vadd.f32 0.0, %v1448
      %v1450 = vpop.f32.mrb[0].mxu0
      %1451 = vmatprep.mubr.bf16.mxu0 0
      %1452 = vmatmul.mubr.bf16.gmra.mrb[0].mxu0 %v925
      %v1453 = vpop.f32.mrb[0].mxu0
      %v1454 = vadd.f32 0.0, %v1453
      %v1455 = vpop.f32.mrb[0].mxu0
      %v1456 = vpop.f32.mrb[0].mxu0
      %v1457 = vadd.f32 0.0, %v1456
      %v1458 = vpop.f32.mrb[0].mxu0
      %1459 = vmatprep.mubr.bf16.mxu0 0
      %1460 = vmatmul.mubr.bf16.gmra.mrb[0].mxu0 %v928
      %v1461 = vpop.f32.mrb[0].mxu0
      %v1462 = vadd.f32 0.0, %v1461
      %v1463 = vpop.f32.mrb[0].mxu0
      %v1464 = vpop.f32.mrb[0].mxu0
      %v1465 = vadd.f32 0.0, %v1464
      %v1466 = vpop.f32.mrb[0].mxu0
      %1467 = vmatprep.mubr.bf16.mxu0 0
      %1468 = vmatmul.mubr.bf16.gmra.mrb[0].mxu0 %v931
      %v1469 = vpop.f32.mrb[0].mxu0
      %v1470 = vadd.f32 0.0, %v1469
      %v1471 = vpop.f32.mrb[0].mxu0
      %v1472 = vpop.f32.mrb[0].mxu0
      %v1473 = vadd.f32 0.0, %v1472
      %v1474 = vpop.f32.mrb[0].mxu0
      %1475 = vmatprep.mubr.bf16.mxu0 0
      %1476 = vmatmul.mubr.bf16.gmra.mrb[0].mxu0 %v934
      %v1477 = vpop.f32.mrb[0].mxu0
      %v1478 = vadd.f32 0.0, %v1477
      %v1479 = vpop.f32.mrb[0].mxu0
      %v1480 = vpop.f32.mrb[0].mxu0
      %v1481 = vadd.f32 0.0, %v1480
      %v1482 = vpop.f32.mrb[0].mxu0
      %1483 = vmatprep.mubr.bf16.mxu0 0
      %1484 = vmatmul.mubr.bf16.gmra.mrb[0].mxu0 %v937
      %v1485 = vpop.f32.mrb[0].mxu0
      %v1486 = vadd.f32 0.0, %v1485
      %v1487 = vpop.f32.mrb[0].mxu0
      %v1488 = vpop.f32.mrb[0].mxu0
      %v1489 = vadd.f32 0.0, %v1488
      %v1490 = vpop.f32.mrb[0].mxu0
      %1491 = vmatprep.mubr.bf16.mxu0 0
      %1492 = vmatmul.mubr.bf16.gmra.mrb[0].mxu0 %v940
      %v1493 = vpop.f32.mrb[0].mxu0
      %v1494 = vadd.f32 0.0, %v1493
      %v1495 = vpop.f32.mrb[0].mxu0
      %v1496 = vpop.f32.mrb[0].mxu0
      %v1497 = vadd.f32 0.0, %v1496
      %v1498 = vpop.f32.mrb[0].mxu0
      %1499 = vmatprep.mubr.bf16.mxu0 0
      %1500 = vmatmul.mubr.bf16.gmra.mrb[0].mxu0 %v943
      %v1501 = vpop.f32.mrb[0].mxu0
      %v1502 = vadd.f32 0.0, %v1501
      %v1503 = vpop.f32.mrb[0].mxu0
      %v1504 = vpop.f32.mrb[0].mxu0
      %v1505 = vadd.f32 0.0, %v1504
      %v1506 = vpop.f32.mrb[0].mxu0
      %1507 = vmatprep.mubr.bf16.mxu0 0
      %1508 = vmatmul.mubr.bf16.gmra.mrb[0].mxu0 %v946
      %v1509 = vpop.f32.mrb[0].mxu0
      %v1510 = vadd.f32 0.0, %v1509
      %v1511 = vpop.f32.mrb[0].mxu0
      %v1512 = vpop.f32.mrb[0].mxu0
      %v1513 = vadd.f32 0.0, %v1512
      %v1514 = vpop.f32.mrb[0].mxu0
      %1515 = vmatprep.mubr.bf16.mxu0 0
      %1516 = vmatmul.mubr.bf16.gmra.mrb[0].mxu0 %v949
      %v1517 = vpop.f32.mrb[0].mxu0
      %v1518 = vadd.f32 0.0, %v1517
      %v1519 = vpop.f32.mrb[0].mxu0
      %v1520 = vpop.f32.mrb[0].mxu0
      %v1521 = vadd.f32 0.0, %v1520
      %v1522 = vpop.f32.mrb[0].mxu0
      %1523 = vmatprep.mubr.bf16.mxu0 0
      %1524 = vmatmul.mubr.bf16.gmra.mrb[0].mxu0 %v952
      %v1525 = vpop.f32.mrb[0].mxu0
      %v1526 = vadd.f32 0.0, %v1525
      %v1527 = vpop.f32.mrb[0].mxu0
      %v1528 = vpop.f32.mrb[0].mxu0
      %v1529 = vadd.f32 0.0, %v1528
      %v1530 = vpop.f32.mrb[0].mxu0
      %1531 = vmatprep.mubr.bf16.mxu0 0
      %1532 = vmatmul.mubr.bf16.gmra.mrb[0].mxu0 %v955
      %v1533 = vpop.f32.mrb[0].mxu0
      %v1534 = vadd.f32 0.0, %v1533
      %v1535 = vpop.f32.mrb[0].mxu0
      %v1536 = vpop.f32.mrb[0].mxu0
      %v1537 = vadd.f32 0.0, %v1536
      %v1538 = vpop.f32.mrb[0].mxu0
      %1539 = vmatprep.mubr.bf16.mxu0 0
      %1540 = vmatmul.mubr.bf16.gmra.mrb[0].mxu0 %v958
      %v1541 = vpop.f32.mrb[0].mxu0
      %v1542 = vadd.f32 0.0, %v1541
      %v1543 = vpop.f32.mrb[0].mxu0
      %v1544 = vpop.f32.mrb[0].mxu0
      %v1545 = vadd.f32 0.0, %v1544
      %v1546 = vpop.f32.mrb[0].mxu0
      %1547 = vmatprep.mubr.bf16.mxu0 0
      %1548 = vmatmul.mubr.bf16.gmra.mrb[0].mxu0 %v961
      %v1549 = vpop.f32.mrb[0].mxu0
      %v1550 = vadd.f32 0.0, %v1549
      %v1551 = vpop.f32.mrb[0].mxu0
      %v1552 = vpop.f32.mrb[0].mxu0
      %v1553 = vadd.f32 0.0, %v1552
      %v1554 = vpop.f32.mrb[0].mxu0
      %1555 = vmatprep.mubr.bf16.mxu0 0
      %1556 = vmatmul.mubr.bf16.gmra.mrb[0].mxu0 %v964
      %v1557 = vpop.f32.mrb[0].mxu0
      %v1558 = vadd.f32 0.0, %v1557
      %v1559 = vpop.f32.mrb[0].mxu0
      %v1560 = vpop.f32.mrb[0].mxu0
      %v1561 = vadd.f32 0.0, %v1560
      %v1562 = vpop.f32.mrb[0].mxu0
      %1563 = vmatprep.mubr.bf16.mxu0 0
      %1564 = vmatmul.mubr.bf16.gmra.mrb[0].mxu0 %v967
      %v1565 = vpop.f32.mrb[0].mxu0
      %v1566 = vadd.f32 0.0, %v1565
      %v1567 = vpop.f32.mrb[0].mxu0
      %v1568 = vpop.f32.mrb[0].mxu0
      %v1569 = vadd.f32 0.0, %v1568
      %v1570 = vpop.f32.mrb[0].mxu0
      %1571 = vmatprep.mubr.bf16.mxu0 0
      %1572 = vmatmul.mubr.bf16.gmra.mrb[0].mxu0 %v970
      %v1573 = vpop.f32.mrb[0].mxu0
      %v1574 = vadd.f32 0.0, %v1573
      %v1575 = vpop.f32.mrb[0].mxu0
      %v1576 = vpop.f32.mrb[0].mxu0
      %v1577 = vadd.f32 0.0, %v1576
      %v1578 = vpop.f32.mrb[0].mxu0
      %1579 = vmatprep.mubr.bf16.mxu0 0
      %1580 = vmatmul.mubr.bf16.gmra.mrb[0].mxu0 %v973
      %v1581 = vpop.f32.mrb[0].mxu0
      %v1582 = vadd.f32 0.0, %v1581
      %v1583 = vpop.f32.mrb[0].mxu0
      %v1584 = vpop.f32.mrb[0].mxu0
      %v1585 = vadd.f32 0.0, %v1584
      %v1586 = vpop.f32.mrb[0].mxu0
      %1587 = vmatprep.mubr.bf16.mxu0 0
      %1588 = vmatmul.mubr.bf16.gmra.mrb[0].mxu0 %v976
      %v1589 = vpop.f32.mrb[0].mxu0
      %v1590 = vadd.f32 0.0, %v1589
      %v1591 = vpop.f32.mrb[0].mxu0
      %v1592 = vpop.f32.mrb[0].mxu0
      %v1593 = vadd.f32 0.0, %v1592
      %v1594 = vpop.f32.mrb[0].mxu0
      %1595 = vmatprep.mubr.bf16.mxu0 0
      %1596 = vmatmul.mubr.bf16.gmra.mrb[0].mxu0 %v979
      %v1597 = vpop.f32.mrb[0].mxu0
      %v1598 = vadd.f32 0.0, %v1597
      %v1599 = vpop.f32.mrb[0].mxu0
      %v1600 = vpop.f32.mrb[0].mxu0
      %v1601 = vadd.f32 0.0, %v1600
      %v1602 = vpop.f32.mrb[0].mxu0
      %1603 = vmatprep.mubr.bf16.mxu0 0
      %1604 = vmatmul.mubr.bf16.gmra.mrb[0].mxu0 %v982
      %v1605 = vpop.f32.mrb[0].mxu0
      %v1606 = vadd.f32 0.0, %v1605
      %v1607 = vpop.f32.mrb[0].mxu0
      %v1608 = vpop.f32.mrb[0].mxu0
      %v1609 = vadd.f32 0.0, %v1608
      %v1610 = vpop.f32.mrb[0].mxu0
      %1611 = vmatprep.mubr.bf16.mxu0 0
      %1612 = vmatmul.mubr.bf16.gmra.mrb[0].mxu0 %v985
      %v1613 = vpop.f32.mrb[0].mxu0
      %v1614 = vadd.f32 0.0, %v1613
      %v1615 = vpop.f32.mrb[0].mxu0
      %v1616 = vpop.f32.mrb[0].mxu0
      %v1617 = vadd.f32 0.0, %v1616
      %v1618 = vpop.f32.mrb[0].mxu0
      %1619 = vmatprep.mubr.bf16.mxu0 0
      %1620 = vmatmul.mubr.bf16.gmra.mrb[0].mxu0 %v988
      %v1621 = vpop.f32.mrb[0].mxu0
      %v1622 = vadd.f32 0.0, %v1621
      %v1623 = vpop.f32.mrb[0].mxu0
      %v1624 = vpop.f32.mrb[0].mxu0
      %v1625 = vadd.f32 0.0, %v1624
      %v1626 = vpop.f32.mrb[0].mxu0
      %1627 = vmatprep.mubr.bf16.mxu0 0
      %1628 = vmatmul.mubr.bf16.gmra.mrb[0].mxu0 %v991
      %v1629 = vpop.f32.mrb[0].mxu0
      %v1630 = vadd.f32 0.0, %v1629
      %v1631 = vpop.f32.mrb[0].mxu0
      %v1632 = vpop.f32.mrb[0].mxu0
      %v1633 = vadd.f32 0.0, %v1632
      %v1634 = vpop.f32.mrb[0].mxu0
      %1635 = vmatprep.mubr.bf16.mxu0 0
      %1636 = vmatmul.mubr.bf16.gmra.mrb[0].mxu0 %v994
      %v1637 = vpop.f32.mrb[0].mxu0
      %v1638 = vadd.f32 0.0, %v1637
      %v1639 = vpop.f32.mrb[0].mxu0
      %v1640 = vpop.f32.mrb[0].mxu0
      %v1641 = vadd.f32 0.0, %v1640
      %v1642 = vpop.f32.mrb[0].mxu0
      %1643 = vmatprep.mubr.bf16.mxu0 0
      %1644 = vmatmul.mubr.bf16.gmra.mrb[0].mxu0 %v997
      %v1645 = vpop.f32.mrb[0].mxu0
      %v1646 = vadd.f32 0.0, %v1645
      %v1647 = vpop.f32.mrb[0].mxu0
      %v1648 = vpop.f32.mrb[0].mxu0
      %v1649 = vadd.f32 0.0, %v1648
      %v1650 = vpop.f32.mrb[0].mxu0
      %1651 = vmatprep.mubr.bf16.mxu0 0
      %1652 = vmatmul.mubr.bf16.gmra.mrb[0].mxu0 %v1000
      %v1653 = vpop.f32.mrb[0].mxu0
      %v1654 = vadd.f32 0.0, %v1653
      %v1655 = vpop.f32.mrb[0].mxu0
      %v1656 = vpop.f32.mrb[0].mxu0
      %v1657 = vadd.f32 0.0, %v1656
      %v1658 = vpop.f32.mrb[0].mxu0
      %1659 = vmatprep.mubr.bf16.mxu0 0
      %1660 = vmatmul.mubr.bf16.gmra.mrb[0].mxu0 %v1003
      %v1661 = vpop.f32.mrb[0].mxu0
      %v1662 = vadd.f32 0.0, %v1661
      %v1663 = vpop.f32.mrb[0].mxu0
      %v1664 = vpop.f32.mrb[0].mxu0
      %v1665 = vadd.f32 0.0, %v1664
      %v1666 = vpop.f32.mrb[0].mxu0
      %1667 = vmatprep.mubr.bf16.mxu0 0
      %1668 = vmatmul.mubr.bf16.gmra.mrb[0].mxu0 %v1006
      %v1669 = vpop.f32.mrb[0].mxu0
      %v1670 = vadd.f32 0.0, %v1669
      %v1671 = vpop.f32.mrb[0].mxu0
      %v1672 = vpop.f32.mrb[0].mxu0
      %v1673 = vadd.f32 0.0, %v1672
      %v1674 = vpop.f32.mrb[0].mxu0
      %1675 = vmatprep.mubr.bf16.mxu0 0
      %1676 = vmatmul.mubr.bf16.gmra.mrb[0].mxu0 %v1009
      %v1677 = vpop.f32.mrb[0].mxu0
      %v1678 = vadd.f32 0.0, %v1677
      %v1679 = vpop.f32.mrb[0].mxu0
      %v1680 = vpop.f32.mrb[0].mxu0
      %v1681 = vadd.f32 0.0, %v1680
      %v1682 = vpop.f32.mrb[0].mxu0
      %1683 = vmatprep.mubr.bf16.mxu0 0
      %1684 = vmatmul.mubr.bf16.gmra.mrb[0].mxu0 %v1012
      %v1685 = vpop.f32.mrb[0].mxu0
      %v1686 = vadd.f32 0.0, %v1685
      %v1687 = vpop.f32.mrb[0].mxu0
      %v1688 = vpop.f32.mrb[0].mxu0
      %v1689 = vadd.f32 0.0, %v1688
      %v1690 = vpop.f32.mrb[0].mxu0
      %1691 = vmatprep.mubr.bf16.mxu0 0
      %1692 = vmatmul.mubr.bf16.gmra.mrb[0].mxu0 %v1015
      %v1693 = vpop.f32.mrb[0].mxu0
      %v1694 = vadd.f32 0.0, %v1693
      %v1695 = vpop.f32.mrb[0].mxu0
      %v1696 = vpop.f32.mrb[0].mxu0
      %v1697 = vadd.f32 0.0, %v1696
      %v1698 = vpop.f32.mrb[0].mxu0
      %1699 = vmatprep.mubr.bf16.mxu0 0
      %1700 = vmatmul.mubr.bf16.gmra.mrb[0].mxu0 %v1018
      %v1701 = vpop.f32.mrb[0].mxu0
      %v1702 = vadd.f32 0.0, %v1701
      %v1703 = vpop.f32.mrb[0].mxu0
      %v1704 = vpop.f32.mrb[0].mxu0
      %v1705 = vadd.f32 0.0, %v1704
      %v1706 = vpop.f32.mrb[0].mxu0
      %1707 = vmatprep.mubr.bf16.mxu0 0
      %1708 = vmatmul.mubr.bf16.gmra.mrb[0].mxu0 %v1021
      %v1709 = vpop.f32.mrb[0].mxu0
      %v1710 = vadd.f32 0.0, %v1709
      %v1711 = vpop.f32.mrb[0].mxu0
      %v1712 = vpop.f32.mrb[0].mxu0
      %v1713 = vadd.f32 0.0, %v1712
      %v1714 = vpop.f32.mrb[0].mxu0
      %1715 = vmatprep.mubr.bf16.mxu0 0
      %1716 = vmatmul.mubr.bf16.gmra.mrb[0].mxu0 %v1024
      %v1717 = vpop.f32.mrb[0].mxu0
      %v1718 = vadd.f32 0.0, %v1717
      %v1719 = vpop.f32.mrb[0].mxu0
      %v1720 = vpop.f32.mrb[0].mxu0
      %v1721 = vadd.f32 0.0, %v1720
      %v1722 = vpop.f32.mrb[0].mxu0
      %1723 = vmatprep.mubr.bf16.mxu0 0
      %1724 = vmatmul.mubr.bf16.gmra.mrb[0].mxu0 %v1027
      %v1725 = vpop.f32.mrb[0].mxu0
      %v1726 = vadd.f32 0.0, %v1725
      %v1727 = vpop.f32.mrb[0].mxu0
      %v1728 = vpop.f32.mrb[0].mxu0
      %v1729 = vadd.f32 0.0, %v1728
      %v1730 = vpop.f32.mrb[0].mxu0
      %1731 = vmatprep.mubr.bf16.mxu0 0
      %1732 = vmatmul.mubr.bf16.gmra.mrb[0].mxu0 %v1030
      %v1733 = vpop.f32.mrb[0].mxu0
      %v1734 = vadd.f32 0.0, %v1733
      %v1735 = vpop.f32.mrb[0].mxu0
      %v1736 = vpop.f32.mrb[0].mxu0
      %v1737 = vadd.f32 0.0, %v1736
      %v1738 = vpop.f32.mrb[0].mxu0
      %1739 = vmatprep.mubr.bf16.mxu0 0
      %1740 = vmatmul.mubr.bf16.gmra.mrb[0].mxu0 %v1033
      %v1741 = vpop.f32.mrb[0].mxu0
      %v1742 = vadd.f32 0.0, %v1741
      %v1743 = vpop.f32.mrb[0].mxu0
      %v1744 = vpop.f32.mrb[0].mxu0
      %v1745 = vadd.f32 0.0, %v1744
      %v1746 = vpop.f32.mrb[0].mxu0
      %1747 = vmatprep.mubr.bf16.mxu0 0
      %1748 = vmatmul.mubr.bf16.gmra.mrb[0].mxu0 %v1036
      %v1749 = vpop.f32.mrb[0].mxu0
      %v1750 = vadd.f32 0.0, %v1749
      %v1751 = vpop.f32.mrb[0].mxu0
      %v1752 = vpop.f32.mrb[0].mxu0
      %v1753 = vadd.f32 0.0, %v1752
      %v1754 = vpop.f32.mrb[0].mxu0
      %1755 = vmatprep.mubr.bf16.mxu0 0
      %1756 = vmatmul.mubr.bf16.gmra.mrb[0].mxu0 %v1039
      %v1757 = vpop.f32.mrb[0].mxu0
      %v1758 = vadd.f32 0.0, %v1757
      %v1759 = vpop.f32.mrb[0].mxu0
      %v1760 = vpop.f32.mrb[0].mxu0
      %v1761 = vadd.f32 0.0, %v1760
      %v1762 = vpop.f32.mrb[0].mxu0
      %1763 = vmatprep.mubr.bf16.mxu0 0
      %1764 = vmatmul.mubr.bf16.gmra.mrb[0].mxu0 %v1042
      %v1765 = vpop.f32.mrb[0].mxu0
      %v1766 = vadd.f32 0.0, %v1765
      %v1767 = vpop.f32.mrb[0].mxu0
      %v1768 = vpop.f32.mrb[0].mxu0
      %v1769 = vadd.f32 0.0, %v1768
      %v1770 = vpop.f32.mrb[0].mxu0
      %1771 = vmatprep.mubr.bf16.mxu0 0
      %1772 = vmatmul.mubr.bf16.gmra.mrb[0].mxu0 %v1045
      %v1773 = vpop.f32.mrb[0].mxu0
      %v1774 = vadd.f32 0.0, %v1773
      %v1775 = vpop.f32.mrb[0].mxu0
      %v1776 = vpop.f32.mrb[0].mxu0
      %v1777 = vadd.f32 0.0, %v1776
      %v1778 = vpop.f32.mrb[0].mxu0
      %1779 = vmatprep.mubr.bf16.mxu0 0
      %1780 = vmatmul.mubr.bf16.gmra.mrb[0].mxu0 %v1048
      %v1781 = vpop.f32.mrb[0].mxu0
      %v1782 = vadd.f32 0.0, %v1781
      %v1783 = vpop.f32.mrb[0].mxu0
      %v1784 = vpop.f32.mrb[0].mxu0
      %v1785 = vadd.f32 0.0, %v1784
      %v1786 = vpop.f32.mrb[0].mxu0
      %1787 = vmatprep.mubr.bf16.mxu0 0
      %1788 = vmatmul.mubr.bf16.gmra.mrb[0].mxu0 %v1051
      %v1789 = vpop.f32.mrb[0].mxu0
      %v1790 = vadd.f32 0.0, %v1789
      %v1791 = vpop.f32.mrb[0].mxu0
      %v1792 = vpop.f32.mrb[0].mxu0
      %v1793 = vadd.f32 0.0, %v1792
      %v1794 = vpop.f32.mrb[0].mxu0
      %1795 = vmatprep.mubr.bf16.mxu0 0
      %1796 = vmatmul.mubr.bf16.gmra.mrb[0].mxu0 %v1054
      %v1797 = vpop.f32.mrb[0].mxu0
      %v1798 = vadd.f32 0.0, %v1797
      %v1799 = vpop.f32.mrb[0].mxu0
      %v1800 = vpop.f32.mrb[0].mxu0
      %v1801 = vadd.f32 0.0, %v1800
      %v1802 = vpop.f32.mrb[0].mxu0
      %1803 = vmatprep.mubr.bf16.mxu0 0
      %1804 = vmatmul.mubr.bf16.gmra.mrb[0].mxu0 %v1057
      %v1805 = vpop.f32.mrb[0].mxu0
      %v1806 = vadd.f32 0.0, %v1805
      %v1807 = vpop.f32.mrb[0].mxu0
      %v1808 = vpop.f32.mrb[0].mxu0
      %v1809 = vadd.f32 0.0, %v1808
      %v1810 = vpop.f32.mrb[0].mxu0
      %1811 = vmatprep.mubr.bf16.mxu0 0
      %1812 = vmatmul.mubr.bf16.gmra.mrb[0].mxu0 %v1060
      %v1813 = vpop.f32.mrb[0].mxu0
      %v1814 = vadd.f32 0.0, %v1813
      %v1815 = vpop.f32.mrb[0].mxu0
      %v1816 = vpop.f32.mrb[0].mxu0
      %v1817 = vadd.f32 0.0, %v1816
      %v1818 = vpop.f32.mrb[0].mxu0
      %1819 = vmatprep.mubr.bf16.mxu0 0
      %1820 = vmatmul.mubr.bf16.gmra.mrb[0].mxu0 %v1063
      %v1821 = vpop.f32.mrb[0].mxu0
      %v1822 = vadd.f32 0.0, %v1821
      %v1823 = vpop.f32.mrb[0].mxu0
      %v1824 = vpop.f32.mrb[0].mxu0
      %v1825 = vadd.f32 0.0, %v1824
      %v1826 = vpop.f32.mrb[0].mxu0
      %1827 = vmatprep.mubr.bf16.mxu0 0
      %1828 = vmatmul.mubr.bf16.gmra.mrb[0].mxu0 %v1066
      %v1829 = vpop.f32.mrb[0].mxu0
      %v1830 = vadd.f32 0.0, %v1829
      %v1831 = vpop.f32.mrb[0].mxu0
      %v1832 = vpop.f32.mrb[0].mxu0
      %v1833 = vpop.f32.mrb[0].mxu0
      %1834 = vdwg.mxu0
      %v1835 = vmax.f32 %v1110, 0.0
      %v1836 = vmax.f32 %v1113, 0.0
      %v1837 = vmax.f32 %v1118, 0.0
      %v1838 = vmax.f32 %v1121, 0.0
      %v1839 = vmax.f32 %v1126, 0.0
      %v1840 = vmax.f32 %v1129, 0.0
      %v1841 = vmax.f32 %v1134, 0.0
      %v1842 = vmax.f32 %v1137, 0.0
      %v1843 = vmax.f32 %v1142, 0.0
      %v1844 = vmax.f32 %v1145, 0.0
      %v1845 = vmax.f32 %v1150, 0.0
      %v1846 = vmax.f32 %v1153, 0.0
      %v1847 = vmax.f32 %v1158, 0.0
      %v1848 = vmax.f32 %v1161, 0.0
      %v1849 = vmax.f32 %v1166, 0.0
      %v1850 = vmax.f32 %v1169, 0.0
      %v1851 = vmax.f32 %v1174, 0.0
      %v1852 = vmax.f32 %v1177, 0.0
      %v1853 = vmax.f32 %v1182, 0.0
      %v1854 = vmax.f32 %v1185, 0.0
      %v1855 = vmax.f32 %v1190, 0.0
      %v1856 = vmax.f32 %v1193, 0.0
      %v1857 = vmax.f32 %v1198, 0.0
      %v1858 = vmax.f32 %v1201, 0.0
      %v1859 = vmax.f32 %v1206, 0.0
      %v1860 = vmax.f32 %v1209, 0.0
      %v1861 = vmax.f32 %v1214, 0.0
      %v1862 = vmax.f32 %v1217, 0.0
      %v1863 = vmax.f32 %v1222, 0.0
      %v1864 = vmax.f32 %v1225, 0.0
      %v1865 = vmax.f32 %v1230, 0.0
      %v1866 = vmax.f32 %v1233, 0.0
      %v1867 = vmax.f32 %v1238, 0.0
      %v1868 = vmax.f32 %v1241, 0.0
      %v1869 = vmax.f32 %v1246, 0.0
      %v1870 = vmax.f32 %v1249, 0.0
      %v1871 = vmax.f32 %v1254, 0.0
      %v1872 = vmax.f32 %v1257, 0.0
      %v1873 = vmax.f32 %v1262, 0.0
      %v1874 = vmax.f32 %v1265, 0.0
      %v1875 = vmax.f32 %v1270, 0.0
      %v1876 = vmax.f32 %v1273, 0.0
      %v1877 = vmax.f32 %v1278, 0.0
      %v1878 = vmax.f32 %v1281, 0.0
      %v1879 = vmax.f32 %v1286, 0.0
      %v1880 = vmax.f32 %v1289, 0.0
      %v1881 = vmax.f32 %v1294, 0.0
      %v1882 = vmax.f32 %v1297, 0.0
      %v1883 = vmax.f32 %v1302, 0.0
      %v1884 = vmax.f32 %v1305, 0.0
      %v1885 = vmax.f32 %v1310, 0.0
      %v1886 = vmax.f32 %v1313, 0.0
      %v1887 = vmax.f32 %v1318, 0.0
      %v1888 = vmax.f32 %v1321, 0.0
      %v1889 = vmax.f32 %v1326, 0.0
      %v1890 = vmax.f32 %v1329, 0.0
      %v1891 = vmax.f32 %v1334, 0.0
      %v1892 = vmax.f32 %v1337, 0.0
      %v1893 = vmax.f32 %v1342, 0.0
      %v1894 = vmax.f32 %v1345, 0.0
      %v1895 = vmax.f32 %v1350, 0.0
      %v1896 = vmax.f32 %v1353, 0.0
      %v1897 = vmax.f32 %v1358, 0.0
      %v1898 = vmax.f32 %v1361, 0.0
      %v1899 = vmax.f32 %v1366, 0.0
      %v1900 = vmax.f32 %v1369, 0.0
      %v1901 = vmax.f32 %v1374, 0.0
      %v1902 = vmax.f32 %v1377, 0.0
      %v1903 = vmax.f32 %v1382, 0.0
      %v1904 = vmax.f32 %v1385, 0.0
      %v1905 = vmax.f32 %v1390, 0.0
      %v1906 = vmax.f32 %v1393, 0.0
      %v1907 = vmax.f32 %v1398, 0.0
      %v1908 = vmax.f32 %v1401, 0.0
      %v1909 = vmax.f32 %v1406, 0.0
      %v1910 = vmax.f32 %v1409, 0.0
      %v1911 = vmax.f32 %v1414, 0.0
      %v1912 = vmax.f32 %v1417, 0.0
      %v1913 = vmax.f32 %v1422, 0.0
      %v1914 = vmax.f32 %v1425, 0.0
      %v1915 = vmax.f32 %v1430, 0.0
      %v1916 = vmax.f32 %v1433, 0.0
      %v1917 = vmax.f32 %v1438, 0.0
      %v1918 = vmax.f32 %v1441, 0.0
      %v1919 = vmax.f32 %v1446, 0.0
      %v1920 = vmax.f32 %v1449, 0.0
      %v1921 = vmax.f32 %v1454, 0.0
      %v1922 = vmax.f32 %v1457, 0.0
      %v1923 = vmax.f32 %v1462, 0.0
      %v1924 = vmax.f32 %v1465, 0.0
      %v1925 = vmax.f32 %v1470, 0.0
      %v1926 = vmax.f32 %v1473, 0.0
      %v1927 = vmax.f32 %v1478, 0.0
      %v1928 = vmax.f32 %v1481, 0.0
      %v1929 = vmax.f32 %v1486, 0.0
      %v1930 = vmax.f32 %v1489, 0.0
      %v1931 = vmax.f32 %v1494, 0.0
      %v1932 = vmax.f32 %v1497, 0.0
      %v1933 = vmax.f32 %v1502, 0.0
      %v1934 = vmax.f32 %v1505, 0.0
      %v1935 = vmax.f32 %v1510, 0.0
      %v1936 = vmax.f32 %v1513, 0.0
      %v1937 = vmax.f32 %v1518, 0.0
      %v1938 = vmax.f32 %v1521, 0.0
      %v1939 = vmax.f32 %v1526, 0.0
      %v1940 = vmax.f32 %v1529, 0.0
      %v1941 = vmax.f32 %v1534, 0.0
      %v1942 = vmax.f32 %v1537, 0.0
      %v1943 = vmax.f32 %v1542, 0.0
      %v1944 = vmax.f32 %v1545, 0.0
      %v1945 = vmax.f32 %v1550, 0.0
      %v1946 = vmax.f32 %v1553, 0.0
      %v1947 = vmax.f32 %v1558, 0.0
      %v1948 = vmax.f32 %v1561, 0.0
      %v1949 = vmax.f32 %v1566, 0.0
      %v1950 = vmax.f32 %v1569, 0.0
      %v1951 = vmax.f32 %v1574, 0.0
      %v1952 = vmax.f32 %v1577, 0.0
      %v1953 = vmax.f32 %v1582, 0.0
      %v1954 = vmax.f32 %v1585, 0.0
      %v1955 = vmax.f32 %v1590, 0.0
      %v1956 = vmax.f32 %v1593, 0.0
      %v1957 = vmax.f32 %v1598, 0.0
      %v1958 = vmax.f32 %v1601, 0.0
      %v1959 = vmax.f32 %v1606, 0.0
      %v1960 = vmax.f32 %v1609, 0.0
      %v1961 = vmax.f32 %v1614, 0.0
      %v1962 = vmax.f32 %v1617, 0.0
      %v1963 = vmax.f32 %v1622, 0.0
      %v1964 = vmax.f32 %v1625, 0.0
      %v1965 = vmax.f32 %v1630, 0.0
      %v1966 = vmax.f32 %v1633, 0.0
      %v1967 = vmax.f32 %v1638, 0.0
      %v1968 = vmax.f32 %v1641, 0.0
      %v1969 = vmax.f32 %v1646, 0.0
      %v1970 = vmax.f32 %v1649, 0.0
      %v1971 = vmax.f32 %v1654, 0.0
      %v1972 = vmax.f32 %v1657, 0.0
      %v1973 = vmax.f32 %v1662, 0.0
      %v1974 = vmax.f32 %v1665, 0.0
      %v1975 = vmax.f32 %v1670, 0.0
      %v1976 = vmax.f32 %v1673, 0.0
      %v1977 = vmax.f32 %v1678, 0.0
      %v1978 = vmax.f32 %v1681, 0.0
      %v1979 = vmax.f32 %v1686, 0.0
      %v1980 = vmax.f32 %v1689, 0.0
      %v1981 = vmax.f32 %v1694, 0.0
      %v1982 = vmax.f32 %v1697, 0.0
      %v1983 = vmax.f32 %v1702, 0.0
      %v1984 = vmax.f32 %v1705, 0.0
      %v1985 = vmax.f32 %v1710, 0.0
      %v1986 = vmax.f32 %v1713, 0.0
      %v1987 = vmax.f32 %v1718, 0.0
      %v1988 = vmax.f32 %v1721, 0.0
      %v1989 = vmax.f32 %v1726, 0.0
      %v1990 = vmax.f32 %v1729, 0.0
      %v1991 = vmax.f32 %v1734, 0.0
      %v1992 = vmax.f32 %v1737, 0.0
      %v1993 = vmax.f32 %v1742, 0.0
      %v1994 = vmax.f32 %v1745, 0.0
      %v1995 = vmax.f32 %v1750, 0.0
      %v1996 = vmax.f32 %v1753, 0.0
      %v1997 = vmax.f32 %v1758, 0.0
      %v1998 = vmax.f32 %v1761, 0.0
      %v1999 = vmax.f32 %v1766, 0.0
      %v2000 = vmax.f32 %v1769, 0.0
      %v2001 = vmax.f32 %v1774, 0.0
      %v2002 = vmax.f32 %v1777, 0.0
      %v2003 = vmax.f32 %v1782, 0.0
      %v2004 = vmax.f32 %v1785, 0.0
      %v2005 = vmax.f32 %v1790, 0.0
      %v2006 = vmax.f32 %v1793, 0.0
      %v2007 = vmax.f32 %v1798, 0.0
      %v2008 = vmax.f32 %v1801, 0.0
      %v2009 = vmax.f32 %v1806, 0.0
      %v2010 = vmax.f32 %v1809, 0.0
      %v2011 = vmax.f32 %v1814, 0.0
      %v2012 = vmax.f32 %v1817, 0.0
      %v2013 = vmax.f32 %v1822, 0.0
      %v2014 = vmax.f32 %v1825, 0.0
      %v2015 = vmax.f32 %v1830, 0.0
      %vm2016 = vcmask 523264
      %2017 = vst.msk [vmem:[%s143] sm:$0xff] %vm2016, %v1835
      %2018 = vst.msk [vmem:[%s143 + $0x8] sm:$0xff] %vm2016, %v1836
      %2019 = vst.msk [vmem:[%s143 + $0x10] sm:$0xff] %vm2016, %v1837
      %2020 = vst.msk [vmem:[%s143 + $0x18] sm:$0xff] %vm2016, %v1838
      %2021 = vst.msk [vmem:[%s143 + $0x20] sm:$0xff] %vm2016, %v1839
      %2022 = vst.msk [vmem:[%s143 + $0x28] sm:$0xff] %vm2016, %v1840
      %2023 = vst.msk [vmem:[%s143 + $0x30] sm:$0xff] %vm2016, %v1841
      %2024 = vst.msk [vmem:[%s143 + $0x38] sm:$0xff] %vm2016, %v1842
      %2025 = vst.msk [vmem:[%s143 + $0x40] sm:$0xff] %vm2016, %v1843
      %2026 = vst.msk [vmem:[%s143 + $0x48] sm:$0xff] %vm2016, %v1844
      %2027 = vst.msk [vmem:[%s143 + $0x50] sm:$0xff] %vm2016, %v1845
      %2028 = vst.msk [vmem:[%s143 + $0x58] sm:$0xff] %vm2016, %v1846
      %2029 = vst.msk [vmem:[%s143 + $0x60] sm:$0xff] %vm2016, %v1847
      %2030 = vst.msk [vmem:[%s143 + $0x68] sm:$0xff] %vm2016, %v1848
      %2031 = vst.msk [vmem:[%s143 + $0x70] sm:$0xff] %vm2016, %v1849
      %2032 = vst.msk [vmem:[%s143 + $0x78] sm:$0xff] %vm2016, %v1850
      %2033 = vst.msk [vmem:[%s143 + $0x80] sm:$0xff] %vm2016, %v1851
      %2034 = vst.msk [vmem:[%s143 + $0x88] sm:$0xff] %vm2016, %v1852
      %2035 = vst.msk [vmem:[%s143 + $0x90] sm:$0xff] %vm2016, %v1853
      %2036 = vst.msk [vmem:[%s143 + $0x98] sm:$0xff] %vm2016, %v1854
      %2037 = vst.msk [vmem:[%s143 + $0xa0] sm:$0xff] %vm2016, %v1855
      %2038 = vst.msk [vmem:[%s143 + $0xa8] sm:$0xff] %vm2016, %v1856
      %2039 = vst.msk [vmem:[%s143 + $0xb0] sm:$0xff] %vm2016, %v1857
      %2040 = vst.msk [vmem:[%s143 + $0xb8] sm:$0xff] %vm2016, %v1858
      %2041 = vst.msk [vmem:[%s143 + $0xc0] sm:$0xff] %vm2016, %v1859
      %2042 = vst.msk [vmem:[%s143 + $0xc8] sm:$0xff] %vm2016, %v1860
      %2043 = vst.msk [vmem:[%s143 + $0xd0] sm:$0xff] %vm2016, %v1861
      %2044 = vst.msk [vmem:[%s143 + $0xd8] sm:$0xff] %vm2016, %v1862
      %2045 = vst.msk [vmem:[%s143 + $0xe0] sm:$0xff] %vm2016, %v1863
      %2046 = vst.msk [vmem:[%s143 + $0xe8] sm:$0xff] %vm2016, %v1864
      %2047 = vst.msk [vmem:[%s143 + $0xf0] sm:$0xff] %vm2016, %v1865
      %2048 = vst.msk [vmem:[%s143 + $0xf8] sm:$0xff] %vm2016, %v1866
      %2049 = vst.msk [vmem:[%s143 + $0x100] sm:$0xff] %vm2016, %v1867
      %2050 = vst.msk [vmem:[%s143 + $0x108] sm:$0xff] %vm2016, %v1868
      %2051 = vst.msk [vmem:[%s143 + $0x110] sm:$0xff] %vm2016, %v1869
      %2052 = vst.msk [vmem:[%s143 + $0x118] sm:$0xff] %vm2016, %v1870
      %2053 = vst.msk [vmem:[%s143 + $0x120] sm:$0xff] %vm2016, %v1871
      %2054 = vst.msk [vmem:[%s143 + $0x128] sm:$0xff] %vm2016, %v1872
      %2055 = vst.msk [vmem:[%s143 + $0x130] sm:$0xff] %vm2016, %v1873
      %2056 = vst.msk [vmem:[%s143 + $0x138] sm:$0xff] %vm2016, %v1874
      %2057 = vst.msk [vmem:[%s143 + $0x140] sm:$0xff] %vm2016, %v1875
      %2058 = vst.msk [vmem:[%s143 + $0x148] sm:$0xff] %vm2016, %v1876
      %2059 = vst.msk [vmem:[%s143 + $0x150] sm:$0xff] %vm2016, %v1877
      %2060 = vst.msk [vmem:[%s143 + $0x158] sm:$0xff] %vm2016, %v1878
      %2061 = vst.msk [vmem:[%s143 + $0x160] sm:$0xff] %vm2016, %v1879
      %2062 = vst.msk [vmem:[%s143 + $0x168] sm:$0xff] %vm2016, %v1880
      %2063 = vst.msk [vmem:[%s143 + $0x170] sm:$0xff] %vm2016, %v1881
      %2064 = vst.msk [vmem:[%s143 + $0x178] sm:$0xff] %vm2016, %v1882
      %2065 = vst.msk [vmem:[%s143 + $0x180] sm:$0xff] %vm2016, %v1883
      %2066 = vst.msk [vmem:[%s143 + $0x188] sm:$0xff] %vm2016, %v1884
      %2067 = vst.msk [vmem:[%s143 + $0x190] sm:$0xff] %vm2016, %v1885
      %2068 = vst.msk [vmem:[%s143 + $0x198] sm:$0xff] %vm2016, %v1886
      %2069 = vst.msk [vmem:[%s143 + $0x1a0] sm:$0xff] %vm2016, %v1887
      %2070 = vst.msk [vmem:[%s143 + $0x1a8] sm:$0xff] %vm2016, %v1888
      %2071 = vst.msk [vmem:[%s143 + $0x1b0] sm:$0xff] %vm2016, %v1889
      %2072 = vst.msk [vmem:[%s143 + $0x1b8] sm:$0xff] %vm2016, %v1890
      %2073 = vst.msk [vmem:[%s143 + $0x1c0] sm:$0xff] %vm2016, %v1891
      %2074 = vst.msk [vmem:[%s143 + $0x1c8] sm:$0xff] %vm2016, %v1892
      %2075 = vst.msk [vmem:[%s143 + $0x1d0] sm:$0xff] %vm2016, %v1893
      %2076 = vst.msk [vmem:[%s143 + $0x1d8] sm:$0xff] %vm2016, %v1894
      %2077 = vst.msk [vmem:[%s143 + $0x1e0] sm:$0xff] %vm2016, %v1895
      %2078 = vst.msk [vmem:[%s143 + $0x1e8] sm:$0xff] %vm2016, %v1896
      %2079 = vst.msk [vmem:[%s143 + $0x1f0] sm:$0xff] %vm2016, %v1897
      %2080 = vst.msk [vmem:[%s143 + $0x1f8] sm:$0xff] %vm2016, %v1898
      %2081 = vst.msk [vmem:[%s143 + $0x200] sm:$0xff] %vm2016, %v1899
      %2082 = vst.msk [vmem:[%s143 + $0x208] sm:$0xff] %vm2016, %v1900
      %2083 = vst.msk [vmem:[%s143 + $0x210] sm:$0xff] %vm2016, %v1901
      %2084 = vst.msk [vmem:[%s143 + $0x218] sm:$0xff] %vm2016, %v1902
      %2085 = vst.msk [vmem:[%s143 + $0x220] sm:$0xff] %vm2016, %v1903
      %2086 = vst.msk [vmem:[%s143 + $0x228] sm:$0xff] %vm2016, %v1904
      %2087 = vst.msk [vmem:[%s143 + $0x230] sm:$0xff] %vm2016, %v1905
      %2088 = vst.msk [vmem:[%s143 + $0x238] sm:$0xff] %vm2016, %v1906
      %2089 = vst.msk [vmem:[%s143 + $0x240] sm:$0xff] %vm2016, %v1907
      %2090 = vst.msk [vmem:[%s143 + $0x248] sm:$0xff] %vm2016, %v1908
      %2091 = vst.msk [vmem:[%s143 + $0x250] sm:$0xff] %vm2016, %v1909
      %2092 = vst.msk [vmem:[%s143 + $0x258] sm:$0xff] %vm2016, %v1910
      %2093 = vst.msk [vmem:[%s143 + $0x260] sm:$0xff] %vm2016, %v1911
      %2094 = vst.msk [vmem:[%s143 + $0x268] sm:$0xff] %vm2016, %v1912
      %2095 = vst.msk [vmem:[%s143 + $0x270] sm:$0xff] %vm2016, %v1913
      %2096 = vst.msk [vmem:[%s143 + $0x278] sm:$0xff] %vm2016, %v1914
      %2097 = vst.msk [vmem:[%s143 + $0x280] sm:$0xff] %vm2016, %v1915
      %2098 = vst.msk [vmem:[%s143 + $0x288] sm:$0xff] %vm2016, %v1916
      %2099 = vst.msk [vmem:[%s143 + $0x290] sm:$0xff] %vm2016, %v1917
      %2100 = vst.msk [vmem:[%s143 + $0x298] sm:$0xff] %vm2016, %v1918
      %2101 = vst.msk [vmem:[%s143 + $0x2a0] sm:$0xff] %vm2016, %v1919
      %2102 = vst.msk [vmem:[%s143 + $0x2a8] sm:$0xff] %vm2016, %v1920
      %2103 = vst.msk [vmem:[%s143 + $0x2b0] sm:$0xff] %vm2016, %v1921
      %2104 = vst.msk [vmem:[%s143 + $0x2b8] sm:$0xff] %vm2016, %v1922
      %2105 = vst.msk [vmem:[%s143 + $0x2c0] sm:$0xff] %vm2016, %v1923
      %2106 = vst.msk [vmem:[%s143 + $0x2c8] sm:$0xff] %vm2016, %v1924
      %2107 = vst.msk [vmem:[%s143 + $0x2d0] sm:$0xff] %vm2016, %v1925
      %2108 = vst.msk [vmem:[%s143 + $0x2d8] sm:$0xff] %vm2016, %v1926
      %2109 = vst.msk [vmem:[%s143 + $0x2e0] sm:$0xff] %vm2016, %v1927
      %2110 = vst.msk [vmem:[%s143 + $0x2e8] sm:$0xff] %vm2016, %v1928
      %2111 = vst.msk [vmem:[%s143 + $0x2f0] sm:$0xff] %vm2016, %v1929
      %2112 = vst.msk [vmem:[%s143 + $0x2f8] sm:$0xff] %vm2016, %v1930
      %2113 = vst.msk [vmem:[%s143 + $0x300] sm:$0xff] %vm2016, %v1931
      %2114 = vst.msk [vmem:[%s143 + $0x308] sm:$0xff] %vm2016, %v1932
      %2115 = vst.msk [vmem:[%s143 + $0x310] sm:$0xff] %vm2016, %v1933
      %2116 = vst.msk [vmem:[%s143 + $0x318] sm:$0xff] %vm2016, %v1934
      %2117 = vst.msk [vmem:[%s143 + $0x320] sm:$0xff] %vm2016, %v1935
      %2118 = vst.msk [vmem:[%s143 + $0x328] sm:$0xff] %vm2016, %v1936
      %2119 = vst.msk [vmem:[%s143 + $0x330] sm:$0xff] %vm2016, %v1937
      %2120 = vst.msk [vmem:[%s143 + $0x338] sm:$0xff] %vm2016, %v1938
      %2121 = vst.msk [vmem:[%s143 + $0x340] sm:$0xff] %vm2016, %v1939
      %2122 = vst.msk [vmem:[%s143 + $0x348] sm:$0xff] %vm2016, %v1940
      %2123 = vst.msk [vmem:[%s143 + $0x350] sm:$0xff] %vm2016, %v1941
      %2124 = vst.msk [vmem:[%s143 + $0x358] sm:$0xff] %vm2016, %v1942
      %2125 = vst.msk [vmem:[%s143 + $0x360] sm:$0xff] %vm2016, %v1943
      %2126 = vst.msk [vmem:[%s143 + $0x368] sm:$0xff] %vm2016, %v1944
      %2127 = vst.msk [vmem:[%s143 + $0x370] sm:$0xff] %vm2016, %v1945
      %2128 = vst.msk [vmem:[%s143 + $0x378] sm:$0xff] %vm2016, %v1946
      %2129 = vst.msk [vmem:[%s143 + $0x380] sm:$0xff] %vm2016, %v1947
      %2130 = vst.msk [vmem:[%s143 + $0x388] sm:$0xff] %vm2016, %v1948
      %2131 = vst.msk [vmem:[%s143 + $0x390] sm:$0xff] %vm2016, %v1949
      %2132 = vst.msk [vmem:[%s143 + $0x398] sm:$0xff] %vm2016, %v1950
      %2133 = vst.msk [vmem:[%s143 + $0x3a0] sm:$0xff] %vm2016, %v1951
      %2134 = vst.msk [vmem:[%s143 + $0x3a8] sm:$0xff] %vm2016, %v1952
      %2135 = vst.msk [vmem:[%s143 + $0x3b0] sm:$0xff] %vm2016, %v1953
      %2136 = vst.msk [vmem:[%s143 + $0x3b8] sm:$0xff] %vm2016, %v1954
      %2137 = vst.msk [vmem:[%s143 + $0x3c0] sm:$0xff] %vm2016, %v1955
      %2138 = vst.msk [vmem:[%s143 + $0x3c8] sm:$0xff] %vm2016, %v1956
      %2139 = vst.msk [vmem:[%s143 + $0x3d0] sm:$0xff] %vm2016, %v1957
      %2140 = vst.msk [vmem:[%s143 + $0x3d8] sm:$0xff] %vm2016, %v1958
      %2141 = vst.msk [vmem:[%s143 + $0x3e0] sm:$0xff] %vm2016, %v1959
      %2142 = vst.msk [vmem:[%s143 + $0x3e8] sm:$0xff] %vm2016, %v1960
      %2143 = vst.msk [vmem:[%s143 + $0x3f0] sm:$0xff] %vm2016, %v1961
      %2144 = vst.msk [vmem:[%s143 + $0x3f8] sm:$0xff] %vm2016, %v1962
      %2145 = vst.msk [vmem:[%s143 + $0x400] sm:$0xff] %vm2016, %v1963
      %2146 = vst.msk [vmem:[%s143 + $0x408] sm:$0xff] %vm2016, %v1964
      %2147 = vst.msk [vmem:[%s143 + $0x410] sm:$0xff] %vm2016, %v1965
      %2148 = vst.msk [vmem:[%s143 + $0x418] sm:$0xff] %vm2016, %v1966
      %2149 = vst.msk [vmem:[%s143 + $0x420] sm:$0xff] %vm2016, %v1967
      %2150 = vst.msk [vmem:[%s143 + $0x428] sm:$0xff] %vm2016, %v1968
      %2151 = vst.msk [vmem:[%s143 + $0x430] sm:$0xff] %vm2016, %v1969
      %2152 = vst.msk [vmem:[%s143 + $0x438] sm:$0xff] %vm2016, %v1970
      %2153 = vst.msk [vmem:[%s143 + $0x440] sm:$0xff] %vm2016, %v1971
      %2154 = vst.msk [vmem:[%s143 + $0x448] sm:$0xff] %vm2016, %v1972
      %2155 = vst.msk [vmem:[%s143 + $0x450] sm:$0xff] %vm2016, %v1973
      %2156 = vst.msk [vmem:[%s143 + $0x458] sm:$0xff] %vm2016, %v1974
      %2157 = vst.msk [vmem:[%s143 + $0x460] sm:$0xff] %vm2016, %v1975
      %2158 = vst.msk [vmem:[%s143 + $0x468] sm:$0xff] %vm2016, %v1976
      %2159 = vst.msk [vmem:[%s143 + $0x470] sm:$0xff] %vm2016, %v1977
      %2160 = vst.msk [vmem:[%s143 + $0x478] sm:$0xff] %vm2016, %v1978
      %2161 = vst.msk [vmem:[%s143 + $0x480] sm:$0xff] %vm2016, %v1979
      %2162 = vst.msk [vmem:[%s143 + $0x488] sm:$0xff] %vm2016, %v1980
      %2163 = vst.msk [vmem:[%s143 + $0x490] sm:$0xff] %vm2016, %v1981
      %2164 = vst.msk [vmem:[%s143 + $0x498] sm:$0xff] %vm2016, %v1982
      %2165 = vst.msk [vmem:[%s143 + $0x4a0] sm:$0xff] %vm2016, %v1983
      %2166 = vst.msk [vmem:[%s143 + $0x4a8] sm:$0xff] %vm2016, %v1984
      %2167 = vst.msk [vmem:[%s143 + $0x4b0] sm:$0xff] %vm2016, %v1985
      %2168 = vst.msk [vmem:[%s143 + $0x4b8] sm:$0xff] %vm2016, %v1986
      %2169 = vst.msk [vmem:[%s143 + $0x4c0] sm:$0xff] %vm2016, %v1987
      %2170 = vst.msk [vmem:[%s143 + $0x4c8] sm:$0xff] %vm2016, %v1988
      %2171 = vst.msk [vmem:[%s143 + $0x4d0] sm:$0xff] %vm2016, %v1989
      %2172 = vst.msk [vmem:[%s143 + $0x4d8] sm:$0xff] %vm2016, %v1990
      %2173 = vst.msk [vmem:[%s143 + $0x4e0] sm:$0xff] %vm2016, %v1991
      %2174 = vst.msk [vmem:[%s143 + $0x4e8] sm:$0xff] %vm2016, %v1992
      %2175 = vst.msk [vmem:[%s143 + $0x4f0] sm:$0xff] %vm2016, %v1993
      %2176 = vst.msk [vmem:[%s143 + $0x4f8] sm:$0xff] %vm2016, %v1994
      %2177 = vst.msk [vmem:[%s143 + $0x500] sm:$0xff] %vm2016, %v1995
      %2178 = vst.msk [vmem:[%s143 + $0x508] sm:$0xff] %vm2016, %v1996
      %2179 = vst.msk [vmem:[%s143 + $0x510] sm:$0xff] %vm2016, %v1997
      %2180 = vst.msk [vmem:[%s143 + $0x518] sm:$0xff] %vm2016, %v1998
      %2181 = vst.msk [vmem:[%s143 + $0x520] sm:$0xff] %vm2016, %v1999
      %2182 = vst.msk [vmem:[%s143 + $0x528] sm:$0xff] %vm2016, %v2000
      %2183 = vst.msk [vmem:[%s143 + $0x530] sm:$0xff] %vm2016, %v2001
      %2184 = vst.msk [vmem:[%s143 + $0x538] sm:$0xff] %vm2016, %v2002
      %2185 = vst.msk [vmem:[%s143 + $0x540] sm:$0xff] %vm2016, %v2003
      %2186 = vst.msk [vmem:[%s143 + $0x548] sm:$0xff] %vm2016, %v2004
      %2187 = vst.msk [vmem:[%s143 + $0x550] sm:$0xff] %vm2016, %v2005
      %2188 = vst.msk [vmem:[%s143 + $0x558] sm:$0xff] %vm2016, %v2006
      %2189 = vst.msk [vmem:[%s143 + $0x560] sm:$0xff] %vm2016, %v2007
      %2190 = vst.msk [vmem:[%s143 + $0x568] sm:$0xff] %vm2016, %v2008
      %2191 = vst.msk [vmem:[%s143 + $0x570] sm:$0xff] %vm2016, %v2009
      %2192 = vst.msk [vmem:[%s143 + $0x578] sm:$0xff] %vm2016, %v2010
      %2193 = vst.msk [vmem:[%s143 + $0x580] sm:$0xff] %vm2016, %v2011
      %2194 = vst.msk [vmem:[%s143 + $0x588] sm:$0xff] %vm2016, %v2012
      %2195 = vst.msk [vmem:[%s143 + $0x590] sm:$0xff] %vm2016, %v2013
      %2196 = vst.msk [vmem:[%s143 + $0x598] sm:$0xff] %vm2016, %v2014
      %vm2197 = vcmask 519168
      %2198 = vst.msk [vmem:[%s143 + $0x5a0] sm:$0xf] %vm2197, %v2015
      %p2199 = scmp.lt.s32.totalorder %s13, 1
      %s2200 = scalar_select %p2199, %s13, 1
      %s2201 = smul.addr %s2200, 181
      %s2202 = smul.addr %s2201, 8
      %s2203 = scalar_lea.vmem %s2, %s2202
      // Predicated region
      $region29: #{base_discriminator_forward.7} parent=27 // pred_check
        %p2204 = pneg %p78
      $region30: #{base_discriminator_forward.7} parent=27 // pred_check_branch
        %2206 = sbr.rel (%p2204) target = $region32
      $region31: #{base_discriminator_forward.7} parent=27 // pred_region
        _
      $region32: #{base_discriminator_forward.7} parent=27 // pred_fallthru
        _
    $region28: #{base_discriminator_forward.7} parent=5 // pred_fallthru
      _
    %p2207 = scmp.le.s32.totalorder 2, %s8
    // Predicated region
    $region33: #{base_discriminator_forward.7} parent=5 // pred_check
      %p2208 = pneg %p2207
    $region34: #{base_discriminator_forward.7} parent=5 // pred_check_branch
      %2210 = sbr.rel (%p2208) target = $region36
    $region35: #{base_discriminator_forward.7} parent=5 // pred_region
      %s2211 = ssub.s32 %s8, 2
      // Predicated region
      $region37: #{base_discriminator_forward.7} parent=35 // pred_check
        %p2212 = pneg %p84
      $region38: #{base_discriminator_forward.7} parent=35 // pred_check_branch
        %2214 = sbr.rel (%p2212) target = $region40
      $region39: #{base_discriminator_forward.7} parent=35 // pred_region
        %p2215 = scmp.lt.s32.totalorder %s14, 1
        %s2216 = scalar_select %p2215, %s14, 1
        %s2217 = smul.addr %s2216, 181
        %s2218 = smul.addr %s2217, 8
        %s2219 = scalar_lea.vmem %s2, %s2218
      $region40: #{base_discriminator_forward.7} parent=35 // pred_fallthru
        _
    $region36: #{base_discriminator_forward.7} parent=5 // pred_fallthru
      _
  $region6: #{base_discriminator_forward.7} parent=0 // loop_footer
    %s12 = sadd.s32 1, %s8
  $region7: #{base_discriminator_forward.7} parent=0 // loop_footer_branch
    %7 = sbr.rel target = $region3
  $region8: #{base_discriminator_forward.7} parent=0 // loop_exit
    _

// kernel: base_discriminator_forward.8
$region0: #{base_discriminator_forward.8}
  #allocation0 [shape = 'u32[]', space=smem, size = 0x4, offset = 0x4, fixed_abs, tag = 'smem constant byte address 0x4 - core index']
  #allocation1 [shape = 'u32[144,128]{1,0:T(1,128)}', space=vmem, size = 0x12000, scoped, tag = 'internal scratch']
  %s0 = inlined_call_operand.vmem [shape: bf16[2,324,576], index: 0, kind: input, shape index: {}]
  %s1 = inlined_call_operand.vmem [shape: bf16[576,64], index: 1, kind: input, shape index: {}]
  %s2 = inlined_call_operand.vmem [shape: f32[2,324,64], index: 2, kind: output, shape index: {}]
  %s3 = sld [smem:[#allocation0]]
  $region41: #{base_discriminator_forward.8} parent=0
    _
  %s5 = ssub.s32 1, %s3
  %s6 = scalar_select 0, %s5, %s3
  loop: start=0, step=1, limit=4
  $region2: #{base_discriminator_forward.8} parent=0 // loop_pre_header
    _
  $region3: #{base_discriminator_forward.8} parent=0 // loop_header
    %s8 = sphi 0, %s12
    %p9 = scmp.ge.s32.totalorder %s8, 4
    %s18 = sphi 0, %s20
    %s21 = sphi 0, %s18
    %s22 = sphi 0, %s21
    %s38 = sphi 0, %s22
    %s42 = sphi 0, %s42
    %s44 = sphi 0, %s42
    %s45 = sphi 0, %s44
    %s59 = sphi 0, %s45
    %s65 = sphi 0, %s67
    %s68 = sphi 0, %s65
    %s69 = sphi 0, %s68
    %s85 = sphi 0, %s69
  $region4: #{base_discriminator_forward.8} parent=0 // loop_header_branch
    %11 = sbr.rel (%p9) target = $region8
  $region5: #{base_discriminator_forward.8} parent=0 // loop_body
    %s13 = ssub.s32 %s8, 1
    %s14 = ssub.s32 %s8, 2
    %s15 = sadd.s32 %s8, 1
    %s16 = ssub.s32 %s8, %s15
    %p17 = scmp.eq.s32.totalorder %s16, 0
    %s19 = sadd.s32 %s18, 1
    %s20 = scalar_select %p17, %s18, %s19
    %p23 = pneg %p17
    %p24 = scmp.eq.s32.totalorder %s8, 1
    %p25 = por %p23, %p24
    %p26 = scmp.ne.s32.totalorder %s18, %s21
    %p27 = scmp.eq.s32.totalorder %s8, 0
    %p28 = por %p26, %p27
    %p29 = scmp.ne.s32.totalorder %s18, %s21
    %p30 = scmp.eq.s32.totalorder %s13, 1
    %p31 = por %p29, %p30
    %p32 = scmp.ne.s32.totalorder %s21, %s22
    %p33 = scmp.eq.s32.totalorder %s13, 0
    %p34 = por %p32, %p33
    %p35 = scmp.ne.s32.totalorder %s21, %s22
    %p36 = scmp.eq.s32.totalorder %s14, 1
    %p37 = por %p35, %p36
    %p39 = scmp.ne.s32.totalorder %s22, %s38
    %p40 = scmp.eq.s32.totalorder %s14, 0
    %p41 = por %p39, %p40
    %s43 = sadd.s32 %s42, 1
    %p46 = scmp.eq.s32.totalorder %s8, 1
    %p47 = scmp.ne.s32.totalorder %s42, %s44
    %p48 = scmp.eq.s32.totalorder %s8, 0
    %p49 = por %p47, %p48
    %p50 = scmp.ne.s32.totalorder %s42, %s44
    %p51 = scmp.eq.s32.totalorder %s13, 1
    %p52 = por %p50, %p51
    %p53 = scmp.ne.s32.totalorder %s44, %s45
    %p54 = scmp.eq.s32.totalorder %s13, 0
    %p55 = por %p53, %p54
    %p56 = scmp.ne.s32.totalorder %s44, %s45
    %p57 = scmp.eq.s32.totalorder %s14, 1
    %p58 = por %p56, %p57
    %p60 = scmp.ne.s32.totalorder %s45, %s59
    %p61 = scmp.eq.s32.totalorder %s14, 0
    %p62 = por %p60, %p61
    %s63 = ssub.s32 %s8, %s15
    %p64 = scmp.eq.s32.totalorder %s63, 0
    %s66 = sadd.s32 %s65, 1
    %s67 = scalar_select %p64, %s65, %s66
    %p70 = pneg %p64
    %p71 = scmp.eq.s32.totalorder %s8, 1
    %p72 = por %p70, %p71
    %p73 = scmp.ne.s32.totalorder %s65, %s68
    %p74 = scmp.eq.s32.totalorder %s8, 0
    %p75 = por %p73, %p74
    %p76 = scmp.ne.s32.totalorder %s65, %s68
    %p77 = scmp.eq.s32.totalorder %s13, 1
    %p78 = por %p76, %p77
    %p79 = scmp.ne.s32.totalorder %s68, %s69
    %p80 = scmp.eq.s32.totalorder %s13, 0
    %p81 = por %p79, %p80
    %p82 = scmp.ne.s32.totalorder %s68, %s69
    %p83 = scmp.eq.s32.totalorder %s14, 1
    %p84 = por %p82, %p83
    %p86 = scmp.ne.s32.totalorder %s69, %s85
    %p87 = scmp.eq.s32.totalorder %s14, 0
    %p88 = por %p86, %p87
    %p89 = scmp.le.s32.totalorder 1, %s8
    %p90 = scmp.lt.s32.totalorder %s8, 3
    %p91 = pnand %p89, %p90
    %p92 = pneg %p91
    // Predicated region
    $region9: #{base_discriminator_forward.8} parent=5 // pred_check
      _
    $region10: #{base_discriminator_forward.8} parent=5 // pred_check_branch
      %94 = sbr.rel (%p91) target = $region12
    $region11: #{base_discriminator_forward.8} parent=5 // pred_region
      %s95 = ssub.s32 %s8, 1
      // Predicated region
      $region13: #{base_discriminator_forward.8} parent=11 // pred_check
        %p96 = pneg %p55
      $region14: #{base_discriminator_forward.8} parent=11 // pred_check_branch
        %98 = sbr.rel (%p96) target = $region16
      $region15: #{base_discriminator_forward.8} parent=11 // pred_region
        _
      $region16: #{base_discriminator_forward.8} parent=11 // pred_fallthru
        _
    $region12: #{base_discriminator_forward.8} parent=5 // pred_fallthru
      _
    %p99 = scmp.lt.s32.totalorder %s8, 2
    // Predicated region
    $region17: #{base_discriminator_forward.8} parent=5 // pred_check
      %p100 = pneg %p99
    $region18: #{base_discriminator_forward.8} parent=5 // pred_check_branch
      %102 = sbr.rel (%p100) target = $region20
    $region19: #{base_discriminator_forward.8} parent=5 // pred_region
      // Predicated region
      $region21: #{base_discriminator_forward.8} parent=19 // pred_check
        %p103 = pneg %p28
      $region22: #{base_discriminator_forward.8} parent=19 // pred_check_branch
        %105 = sbr.rel (%p103) target = $region24
      $region23: #{base_discriminator_forward.8} parent=19 // pred_region
        %p106 = scmp.lt.s32.totalorder %s8, 1
        %s107 = scalar_select %p106, %s8, 1
        %s108 = smul.addr %s107, 205
        %s109 = smul.addr %s108, 4
        %s110 = scalar_lea.vmem %s0, %s109
      $region24: #{base_discriminator_forward.8} parent=19 // pred_fallthru
        _
    $region20: #{base_discriminator_forward.8} parent=5 // pred_fallthru
      _
    %p111 = scmp.le.s32.totalorder 1, %s8
    %p112 = scmp.lt.s32.totalorder %s8, 3
    %p113 = pnand %p111, %p112
    %p114 = pneg %p113
    // Predicated region
    $region25: #{base_discriminator_forward.8} parent=5 // pred_check
      _
    $region26: #{base_discriminator_forward.8} parent=5 // pred_check_branch
      %116 = sbr.rel (%p113) target = $region28
    $region27: #{base_discriminator_forward.8} parent=5 // pred_region
      %s117 = ssub.s32 %s8, 1
      %p118 = scmp.lt.s32.totalorder %s13, 1
      %s119 = scalar_select %p118, %s13, 1
      %s120 = smul.addr %s119, 205
      %s121 = smul.addr %s120, 4
      %s122 = scalar_lea.vmem %s0, %s121
      %p123 = pneg %p34
      %p124 = pneg %p31
      %p125 = pneg %p55
      %p126 = pneg %p52
      %p127 = pneg %p81
      %p128 = pneg %p78
      %p129 = scmp.lt.s32.totalorder %s13, 1
      %s130 = scalar_select %p129, %s13, 1
      %s131 = smul.addr %s130, 41
      %s132 = smul.addr %s131, 8
      %s133 = scalar_lea.vmem %s2, %s132
      %p134 = scmp.lt.s32.totalorder %s13, 1
      %s135 = scalar_select %p134, %s13, 1
      %s136 = smul.addr %s135, 205
      %s137 = smul.addr %s136, 4
      %s138 = scalar_lea.vmem %s0, %s137
      %p139 = scmp.lt.s32.totalorder %s13, 1
      %s140 = scalar_select %p139, %s13, 1
      %s141 = smul.addr %s140, 41
      %s142 = smul.addr %s141, 8
      %s143 = scalar_lea.vmem %s2, %s142
      %v145 = vld [vmem:[%s138] sm:$0xff]
      %v146 = vld [vmem:[%s138 + $0x8] sm:$0xff]
      %v147 = vld [vmem:[%s138 + $0x10] sm:$0xf]
      %v148 = vld [vmem:[%s138 + $0x14] sm:$0xff]
      %v149 = vld [vmem:[%s138 + $0x1c] sm:$0xff]
      %v150 = vld [vmem:[%s138 + $0x24] sm:$0xf]
      %v151 = vld [vmem:[%s138 + $0x28] sm:$0xff]
      %v152 = vld [vmem:[%s138 + $0x30] sm:$0xff]
      %v153 = vld [vmem:[%s138 + $0x38] sm:$0xf]
      %v154 = vld [vmem:[%s138 + $0x3c] sm:$0xff]
      %v155 = vld [vmem:[%s138 + $0x44] sm:$0xff]
      %v156 = vld [vmem:[%s138 + $0x4c] sm:$0xf]
      %v157 = vld [vmem:[%s138 + $0x50] sm:$0xff]
      %v158 = vld [vmem:[%s138 + $0x58] sm:$0xff]
      %v159 = vld [vmem:[%s138 + $0x60] sm:$0xf]
      %v160 = vld [vmem:[%s138 + $0x64] sm:$0xff]
      %v161 = vld [vmem:[%s138 + $0x6c] sm:$0xff]
      %v162 = vld [vmem:[%s138 + $0x74] sm:$0xf]
      %v163 = vld [vmem:[%s138 + $0x78] sm:$0xff]
      %v164 = vld [vmem:[%s138 + $0x80] sm:$0xff]
      %v165 = vld [vmem:[%s138 + $0x88] sm:$0xf]
      %v166 = vld [vmem:[%s138 + $0x8c] sm:$0xff]
      %v167 = vld [vmem:[%s138 + $0x94] sm:$0xff]
      %v168 = vld [vmem:[%s138 + $0x9c] sm:$0xf]
      %v169 = vld [vmem:[%s138 + $0xa0] sm:$0xff]
      %v170 = vld [vmem:[%s138 + $0xa8] sm:$0xff]
      %v171 = vld [vmem:[%s138 + $0xb0] sm:$0xf]
      %v172 = vld [vmem:[%s138 + $0xb4] sm:$0xff]
      %v173 = vld [vmem:[%s138 + $0xbc] sm:$0xff]
      %v174 = vld [vmem:[%s138 + $0xc4] sm:$0xf]
      %v175 = vld [vmem:[%s138 + $0xc8] sm:$0xff]
      %v176 = vld [vmem:[%s138 + $0xd0] sm:$0xff]
      %v177 = vld [vmem:[%s138 + $0xd8] sm:$0xf]
      %v178 = vld [vmem:[%s138 + $0xdc] sm:$0xff]
      %v179 = vld [vmem:[%s138 + $0xe4] sm:$0xff]
      %v180 = vld [vmem:[%s138 + $0xec] sm:$0xf]
      %v181 = vld [vmem:[%s138 + $0xf0] sm:$0xff]
      %v182 = vld [vmem:[%s138 + $0xf8] sm:$0xff]
      %v183 = vld [vmem:[%s138 + $0x100] sm:$0xf]
      %v184 = vld [vmem:[%s138 + $0x104] sm:$0xff]
      %v185 = vld [vmem:[%s138 + $0x10c] sm:$0xff]
      %v186 = vld [vmem:[%s138 + $0x114] sm:$0xf]
      %v187 = vld [vmem:[%s138 + $0x118] sm:$0xff]
      %v188 = vld [vmem:[%s138 + $0x120] sm:$0xff]
      %v189 = vld [vmem:[%s138 + $0x128] sm:$0xf]
      %v190 = vld [vmem:[%s138 + $0x12c] sm:$0xff]
      %v191 = vld [vmem:[%s138 + $0x134] sm:$0xff]
      %v192 = vld [vmem:[%s138 + $0x13c] sm:$0xf]
      %v193 = vld [vmem:[%s138 + $0x140] sm:$0xff]
      %v194 = vld [vmem:[%s138 + $0x148] sm:$0xff]
      %v195 = vld [vmem:[%s138 + $0x150] sm:$0xf]
      %v196 = vld [vmem:[%s138 + $0x154] sm:$0xff]
      %v197 = vld [vmem:[%s138 + $0x15c] sm:$0xff]
      %v198 = vld [vmem:[%s138 + $0x164] sm:$0xf]
      %v199 = vld [vmem:[%s138 + $0x168] sm:$0xff]
      %v200 = vld [vmem:[%s138 + $0x170] sm:$0xff]
      %v201 = vld [vmem:[%s138 + $0x178] sm:$0xf]
      %v202 = vld [vmem:[%s138 + $0x17c] sm:$0xff]
      %v203 = vld [vmem:[%s138 + $0x184] sm:$0xff]
      %v204 = vld [vmem:[%s138 + $0x18c] sm:$0xf]
      %v205 = vld [vmem:[%s138 + $0x190] sm:$0xff]
      %v206 = vld [vmem:[%s138 + $0x198] sm:$0xff]
      %v207 = vld [vmem:[%s138 + $0x1a0] sm:$0xf]
      %v208 = vld [vmem:[%s138 + $0x1a4] sm:$0xff]
      %v209 = vld [vmem:[%s138 + $0x1ac] sm:$0xff]
      %v210 = vld [vmem:[%s138 + $0x1b4] sm:$0xf]
      %v211 = vld [vmem:[%s138 + $0x1b8] sm:$0xff]
      %v212 = vld [vmem:[%s138 + $0x1c0] sm:$0xff]
      %v213 = vld [vmem:[%s138 + $0x1c8] sm:$0xf]
      %v214 = vld [vmem:[%s138 + $0x1cc] sm:$0xff]
      %v215 = vld [vmem:[%s138 + $0x1d4] sm:$0xff]
      %v216 = vld [vmem:[%s138 + $0x1dc] sm:$0xf]
      %v217 = vld [vmem:[%s138 + $0x1e0] sm:$0xff]
      %v218 = vld [vmem:[%s138 + $0x1e8] sm:$0xff]
      %v219 = vld [vmem:[%s138 + $0x1f0] sm:$0xf]
      %v220 = vld [vmem:[%s138 + $0x1f4] sm:$0xff]
      %v221 = vld [vmem:[%s138 + $0x1fc] sm:$0xff]
      %v222 = vld [vmem:[%s138 + $0x204] sm:$0xf]
      %v223 = vld [vmem:[%s138 + $0x208] sm:$0xff]
      %v224 = vld [vmem:[%s138 + $0x210] sm:$0xff]
      %v225 = vld [vmem:[%s138 + $0x218] sm:$0xf]
      %v226 = vld [vmem:[%s138 + $0x21c] sm:$0xff]
      %v227 = vld [vmem:[%s138 + $0x224] sm:$0xff]
      %v228 = vld [vmem:[%s138 + $0x22c] sm:$0xf]
      %v229 = vld [vmem:[%s138 + $0x230] sm:$0xff]
      %v230 = vld [vmem:[%s138 + $0x238] sm:$0xff]
      %v231 = vld [vmem:[%s138 + $0x240] sm:$0xf]
      %v232 = vld [vmem:[%s138 + $0x244] sm:$0xff]
      %v233 = vld [vmem:[%s138 + $0x24c] sm:$0xff]
      %v234 = vld [vmem:[%s138 + $0x254] sm:$0xf]
      %v235 = vld [vmem:[%s138 + $0x258] sm:$0xff]
      %v236 = vld [vmem:[%s138 + $0x260] sm:$0xff]
      %v237 = vld [vmem:[%s138 + $0x268] sm:$0xf]
      %v238 = vld [vmem:[%s138 + $0x26c] sm:$0xff]
      %v239 = vld [vmem:[%s138 + $0x274] sm:$0xff]
      %v240 = vld [vmem:[%s138 + $0x27c] sm:$0xf]
      %v241 = vld [vmem:[%s138 + $0x280] sm:$0xff]
      %v242 = vld [vmem:[%s138 + $0x288] sm:$0xff]
      %v243 = vld [vmem:[%s138 + $0x290] sm:$0xf]
      %v244 = vld [vmem:[%s138 + $0x294] sm:$0xff]
      %v245 = vld [vmem:[%s138 + $0x29c] sm:$0xff]
      %v246 = vld [vmem:[%s138 + $0x2a4] sm:$0xf]
      %v247 = vld [vmem:[%s138 + $0x2a8] sm:$0xff]
      %v248 = vld [vmem:[%s138 + $0x2b0] sm:$0xff]
      %v249 = vld [vmem:[%s138 + $0x2b8] sm:$0xf]
      %v250 = vld [vmem:[%s138 + $0x2bc] sm:$0xff]
      %v251 = vld [vmem:[%s138 + $0x2c4] sm:$0xff]
      %v252 = vld [vmem:[%s138 + $0x2cc] sm:$0xf]
      %v253 = vld [vmem:[%s138 + $0x2d0] sm:$0xff]
      %v254 = vld [vmem:[%s138 + $0x2d8] sm:$0xff]
      %v255 = vld [vmem:[%s138 + $0x2e0] sm:$0xf]
      %v256 = vld [vmem:[%s138 + $0x2e4] sm:$0xff]
      %v257 = vld [vmem:[%s138 + $0x2ec] sm:$0xff]
      %v258 = vld [vmem:[%s138 + $0x2f4] sm:$0xf]
      %v259 = vld [vmem:[%s138 + $0x2f8] sm:$0xff]
      %v260 = vld [vmem:[%s138 + $0x300] sm:$0xff]
      %v261 = vld [vmem:[%s138 + $0x308] sm:$0xf]
      %v262 = vld [vmem:[%s138 + $0x30c] sm:$0xff]
      %v263 = vld [vmem:[%s138 + $0x314] sm:$0xff]
      %v264 = vld [vmem:[%s138 + $0x31c] sm:$0xf]
      %v265 = vld [vmem:[%s138 + $0x320] sm:$0x33]
      %v266 = vld [vmem:[%s138 + $0x328] sm:$0x33]
      %v267 = vld [vmem:[%s138 + $0x330] sm:$0x3]
      %v268 = vld [vmem:[%s1] sm:$0xf]
      %v269 = vld [vmem:[%s1 + $0x4] sm:$0xf]
      %v270 = vld [vmem:[%s1 + $0x8] sm:$0xf]
      %v271 = vld [vmem:[%s1 + $0xc] sm:$0xf]
      %v272 = vld [vmem:[%s1 + $0x10] sm:$0xf]
      %v273 = vld [vmem:[%s1 + $0x14] sm:$0xf]
      %v274 = vld [vmem:[%s1 + $0x18] sm:$0xf]
      %v275 = vld [vmem:[%s1 + $0x1c] sm:$0xf]
      %v276 = vld [vmem:[%s1 + $0x20] sm:$0xf]
      %v277 = vld [vmem:[%s1 + $0x24] sm:$0xf]
      %v278 = vld [vmem:[%s1 + $0x28] sm:$0xf]
      %v279 = vld [vmem:[%s1 + $0x2c] sm:$0xf]
      %v280 = vld [vmem:[%s1 + $0x30] sm:$0xf]
      %v281 = vld [vmem:[%s1 + $0x34] sm:$0xf]
      %v282 = vld [vmem:[%s1 + $0x38] sm:$0xf]
      %v283 = vld [vmem:[%s1 + $0x3c] sm:$0xf]
      %v284 = vld [vmem:[%s1 + $0x40] sm:$0xf]
      %v285 = vld [vmem:[%s1 + $0x44] sm:$0xf]
      %v286 = vld [vmem:[%s1 + $0x48] sm:$0xf]
      %v287 = vld [vmem:[%s1 + $0x4c] sm:$0xf]
      %v288 = vld [vmem:[%s1 + $0x50] sm:$0xf]
      %v289 = vld [vmem:[%s1 + $0x54] sm:$0xf]
      %v290 = vld [vmem:[%s1 + $0x58] sm:$0xf]
      %v291 = vld [vmem:[%s1 + $0x5c] sm:$0xf]
      %v292 = vld [vmem:[%s1 + $0x60] sm:$0xf]
      %v293 = vld [vmem:[%s1 + $0x64] sm:$0xf]
      %v294 = vld [vmem:[%s1 + $0x68] sm:$0xf]
      %v295 = vld [vmem:[%s1 + $0x6c] sm:$0xf]
      %v296 = vld [vmem:[%s1 + $0x70] sm:$0xf]
      %v297 = vld [vmem:[%s1 + $0x74] sm:$0xf]
      %v298 = vld [vmem:[%s1 + $0x78] sm:$0xf]
      %v299 = vld [vmem:[%s1 + $0x7c] sm:$0xf]
      %v300 = vld [vmem:[%s1 + $0x80] sm:$0xf]
      %v301 = vld [vmem:[%s1 + $0x84] sm:$0xf]
      %v302 = vld [vmem:[%s1 + $0x88] sm:$0xf]
      %v303 = vld [vmem:[%s1 + $0x8c] sm:$0xf]
      %v304 = vld [vmem:[%s1 + $0x90] sm:$0xf]
      %v305 = vld [vmem:[%s1 + $0x94] sm:$0xf]
      %v306 = vld [vmem:[%s1 + $0x98] sm:$0xf]
      %v307 = vld [vmem:[%s1 + $0x9c] sm:$0xf]
      %v308 = vld [vmem:[%s1 + $0xa0] sm:$0xf]
      %v309 = vld [vmem:[%s1 + $0xa4] sm:$0xf]
      %v310 = vld [vmem:[%s1 + $0xa8] sm:$0xf]
      %v311 = vld [vmem:[%s1 + $0xac] sm:$0xf]
      %v312 = vld [vmem:[%s1 + $0xb0] sm:$0xf]
      %v313 = vld [vmem:[%s1 + $0xb4] sm:$0xf]
      %v314 = vld [vmem:[%s1 + $0xb8] sm:$0xf]
      %v315 = vld [vmem:[%s1 + $0xbc] sm:$0xf]
      %v316 = vld [vmem:[%s1 + $0xc0] sm:$0xf]
      %v317 = vld [vmem:[%s1 + $0xc4] sm:$0xf]
      %v318 = vld [vmem:[%s1 + $0xc8] sm:$0xf]
      %v319 = vld [vmem:[%s1 + $0xcc] sm:$0xf]
      %v320 = vld [vmem:[%s1 + $0xd0] sm:$0xf]
      %v321 = vld [vmem:[%s1 + $0xd4] sm:$0xf]
      %v322 = vld [vmem:[%s1 + $0xd8] sm:$0xf]
      %v323 = vld [vmem:[%s1 + $0xdc] sm:$0xf]
      %v324 = vld [vmem:[%s1 + $0xe0] sm:$0xf]
      %v325 = vld [vmem:[%s1 + $0xe4] sm:$0xf]
      %v326 = vld [vmem:[%s1 + $0xe8] sm:$0xf]
      %v327 = vld [vmem:[%s1 + $0xec] sm:$0xf]
      %v328 = vld [vmem:[%s1 + $0xf0] sm:$0xf]
      %v329 = vld [vmem:[%s1 + $0xf4] sm:$0xf]
      %v330 = vld [vmem:[%s1 + $0xf8] sm:$0xf]
      %v331 = vld [vmem:[%s1 + $0xfc] sm:$0xf]
      %v332 = vld [vmem:[%s1 + $0x100] sm:$0xf]
      %v333 = vld [vmem:[%s1 + $0x104] sm:$0xf]
      %v334 = vld [vmem:[%s1 + $0x108] sm:$0xf]
      %v335 = vld [vmem:[%s1 + $0x10c] sm:$0xf]
      %v336 = vld [vmem:[%s1 + $0x110] sm:$0xf]
      %v337 = vld [vmem:[%s1 + $0x114] sm:$0xf]
      %v338 = vld [vmem:[%s1 + $0x118] sm:$0xf]
      %v339 = vld [vmem:[%s1 + $0x11c] sm:$0xf]
      %v463 = vunpack.c.l.b16 %v145
      %v464 = vunpack.c.h.b16 %v145
      %v465 = vunpack.c.l.b16 %v146
      %v466 = vunpack.c.h.b16 %v146
      %v467 = vunpack.c.l.b16 %v147
      %v468 = vunpack.c.l.b16 %v148
      %v469 = vunpack.c.h.b16 %v148
      %v470 = vunpack.c.l.b16 %v149
      %v471 = vunpack.c.h.b16 %v149
      %v472 = vunpack.c.l.b16 %v150
      %v473 = vunpack.c.l.b16 %v151
      %v474 = vunpack.c.h.b16 %v151
      %v475 = vunpack.c.l.b16 %v152
      %v476 = vunpack.c.h.b16 %v152
      %v477 = vunpack.c.l.b16 %v153
      %v478 = vunpack.c.l.b16 %v154
      %v479 = vunpack.c.h.b16 %v154
      %v480 = vunpack.c.l.b16 %v155
      %v481 = vunpack.c.h.b16 %v155
      %v482 = vunpack.c.l.b16 %v156
      %v483 = vunpack.c.l.b16 %v157
      %v484 = vunpack.c.h.b16 %v157
      %v485 = vunpack.c.l.b16 %v158
      %v486 = vunpack.c.h.b16 %v158
      %v487 = vunpack.c.l.b16 %v159
      %v488 = vunpack.c.l.b16 %v160
      %v489 = vunpack.c.h.b16 %v160
      %v490 = vunpack.c.l.b16 %v161
      %v491 = vunpack.c.h.b16 %v161
      %v492 = vunpack.c.l.b16 %v162
      %v493 = vunpack.c.l.b16 %v163
      %v494 = vunpack.c.h.b16 %v163
      %v495 = vunpack.c.l.b16 %v164
      %v496 = vunpack.c.h.b16 %v164
      %v497 = vunpack.c.l.b16 %v165
      %v498 = vunpack.c.l.b16 %v166
      %v499 = vunpack.c.h.b16 %v166
      %v500 = vunpack.c.l.b16 %v167
      %v501 = vunpack.c.h.b16 %v167
      %v502 = vunpack.c.l.b16 %v168
      %v503 = vunpack.c.l.b16 %v169
      %v504 = vunpack.c.h.b16 %v169
      %v505 = vunpack.c.l.b16 %v170
      %v506 = vunpack.c.h.b16 %v170
      %v507 = vunpack.c.l.b16 %v171
      %v508 = vunpack.c.l.b16 %v172
      %v509 = vunpack.c.h.b16 %v172
      %v510 = vunpack.c.l.b16 %v173
      %v511 = vunpack.c.h.b16 %v173
      %v512 = vunpack.c.l.b16 %v174
      %v513 = vunpack.c.l.b16 %v175
      %v514 = vunpack.c.h.b16 %v175
      %v515 = vunpack.c.l.b16 %v176
      %v516 = vunpack.c.h.b16 %v176
      %v517 = vunpack.c.l.b16 %v177
      %v518 = vunpack.c.l.b16 %v178
      %v519 = vunpack.c.h.b16 %v178
      %v520 = vunpack.c.l.b16 %v179
      %v521 = vunpack.c.h.b16 %v179
      %v522 = vunpack.c.l.b16 %v180
      %v523 = vunpack.c.l.b16 %v181
      %v524 = vunpack.c.h.b16 %v181
      %v525 = vunpack.c.l.b16 %v182
      %v526 = vunpack.c.h.b16 %v182
      %v527 = vunpack.c.l.b16 %v183
      %v528 = vunpack.c.l.b16 %v184
      %v529 = vunpack.c.h.b16 %v184
      %v530 = vunpack.c.l.b16 %v185
      %v531 = vunpack.c.h.b16 %v185
      %v532 = vunpack.c.l.b16 %v186
      %v533 = vunpack.c.l.b16 %v187
      %v534 = vunpack.c.h.b16 %v187
      %v535 = vunpack.c.l.b16 %v188
      %v536 = vunpack.c.h.b16 %v188
      %v537 = vunpack.c.l.b16 %v189
      %v538 = vunpack.c.l.b16 %v190
      %v539 = vunpack.c.h.b16 %v190
      %v540 = vunpack.c.l.b16 %v191
      %v541 = vunpack.c.h.b16 %v191
      %v542 = vunpack.c.l.b16 %v192
      %v543 = vunpack.c.l.b16 %v193
      %v544 = vunpack.c.h.b16 %v193
      %v545 = vunpack.c.l.b16 %v194
      %v546 = vunpack.c.h.b16 %v194
      %v547 = vunpack.c.l.b16 %v195
      %v548 = vunpack.c.l.b16 %v196
      %v549 = vunpack.c.h.b16 %v196
      %v550 = vunpack.c.l.b16 %v197
      %v551 = vunpack.c.h.b16 %v197
      %v552 = vunpack.c.l.b16 %v198
      %v553 = vunpack.c.l.b16 %v199
      %v554 = vunpack.c.h.b16 %v199
      %v555 = vunpack.c.l.b16 %v200
      %v556 = vunpack.c.h.b16 %v200
      %v557 = vunpack.c.l.b16 %v201
      %v558 = vunpack.c.l.b16 %v202
      %v559 = vunpack.c.h.b16 %v202
      %v560 = vunpack.c.l.b16 %v203
      %v561 = vunpack.c.h.b16 %v203
      %v562 = vunpack.c.l.b16 %v204
      %v563 = vunpack.c.l.b16 %v205
      %v564 = vunpack.c.h.b16 %v205
      %v565 = vunpack.c.l.b16 %v206
      %v566 = vunpack.c.h.b16 %v206
      %v567 = vunpack.c.l.b16 %v207
      %v568 = vunpack.c.l.b16 %v208
      %v569 = vunpack.c.h.b16 %v208
      %v570 = vunpack.c.l.b16 %v209
      %v571 = vunpack.c.h.b16 %v209
      %v572 = vunpack.c.l.b16 %v210
      %v573 = vunpack.c.l.b16 %v211
      %v574 = vunpack.c.h.b16 %v211
      %v575 = vunpack.c.l.b16 %v212
      %v576 = vunpack.c.h.b16 %v212
      %v577 = vunpack.c.l.b16 %v213
      %v578 = vunpack.c.l.b16 %v214
      %v579 = vunpack.c.h.b16 %v214
      %v580 = vunpack.c.l.b16 %v215
      %v581 = vunpack.c.h.b16 %v215
      %v582 = vunpack.c.l.b16 %v216
      %v583 = vunpack.c.l.b16 %v217
      %v584 = vunpack.c.h.b16 %v217
      %v585 = vunpack.c.l.b16 %v218
      %v586 = vunpack.c.h.b16 %v218
      %v587 = vunpack.c.l.b16 %v219
      %v588 = vunpack.c.l.b16 %v220
      %v589 = vunpack.c.h.b16 %v220
      %v590 = vunpack.c.l.b16 %v221
      %v591 = vunpack.c.h.b16 %v221
      %v592 = vunpack.c.l.b16 %v222
      %v593 = vunpack.c.l.b16 %v223
      %v594 = vunpack.c.h.b16 %v223
      %v595 = vunpack.c.l.b16 %v224
      %v596 = vunpack.c.h.b16 %v224
      %v597 = vunpack.c.l.b16 %v225
      %v598 = vunpack.c.l.b16 %v226
      %v599 = vunpack.c.h.b16 %v226
      %v600 = vunpack.c.l.b16 %v227
      %v601 = vunpack.c.h.b16 %v227
      %v602 = vunpack.c.l.b16 %v228
      %v603 = vunpack.c.l.b16 %v229
      %v604 = vunpack.c.h.b16 %v229
      %v605 = vunpack.c.l.b16 %v230
      %v606 = vunpack.c.h.b16 %v230
      %v607 = vunpack.c.l.b16 %v231
      %v608 = vunpack.c.l.b16 %v232
      %v609 = vunpack.c.h.b16 %v232
      %v610 = vunpack.c.l.b16 %v233
      %v611 = vunpack.c.h.b16 %v233
      %v612 = vunpack.c.l.b16 %v234
      %v613 = vunpack.c.l.b16 %v235
      %v614 = vunpack.c.h.b16 %v235
      %v615 = vunpack.c.l.b16 %v236
      %v616 = vunpack.c.h.b16 %v236
      %v617 = vunpack.c.l.b16 %v237
      %v618 = vunpack.c.l.b16 %v238
      %v619 = vunpack.c.h.b16 %v238
      %v620 = vunpack.c.l.b16 %v239
      %v621 = vunpack.c.h.b16 %v239
      %v622 = vunpack.c.l.b16 %v240
      %v623 = vunpack.c.l.b16 %v241
      %v624 = vunpack.c.h.b16 %v241
      %v625 = vunpack.c.l.b16 %v242
      %v626 = vunpack.c.h.b16 %v242
      %v627 = vunpack.c.l.b16 %v243
      %v628 = vunpack.c.l.b16 %v244
      %v629 = vunpack.c.h.b16 %v244
      %v630 = vunpack.c.l.b16 %v245
      %v631 = vunpack.c.h.b16 %v245
      %v632 = vunpack.c.l.b16 %v246
      %v633 = vunpack.c.l.b16 %v247
      %v634 = vunpack.c.h.b16 %v247
      %v635 = vunpack.c.l.b16 %v248
      %v636 = vunpack.c.h.b16 %v248
      %v637 = vunpack.c.l.b16 %v249
      %v638 = vunpack.c.l.b16 %v250
      %v639 = vunpack.c.h.b16 %v250
      %v640 = vunpack.c.l.b16 %v251
      %v641 = vunpack.c.h.b16 %v251
      %v642 = vunpack.c.l.b16 %v252
      %v643 = vunpack.c.l.b16 %v253
      %v644 = vunpack.c.h.b16 %v253
      %v645 = vunpack.c.l.b16 %v254
      %v646 = vunpack.c.h.b16 %v254
      %v647 = vunpack.c.l.b16 %v255
      %v648 = vunpack.c.l.b16 %v256
      %v649 = vunpack.c.h.b16 %v256
      %v650 = vunpack.c.l.b16 %v257
      %v651 = vunpack.c.h.b16 %v257
      %v652 = vunpack.c.l.b16 %v258
      %v653 = vunpack.c.l.b16 %v259
      %v654 = vunpack.c.h.b16 %v259
      %v655 = vunpack.c.l.b16 %v260
      %v656 = vunpack.c.h.b16 %v260
      %v657 = vunpack.c.l.b16 %v261
      %v658 = vunpack.c.l.b16 %v262
      %v659 = vunpack.c.h.b16 %v262
      %v660 = vunpack.c.l.b16 %v263
      %v661 = vunpack.c.h.b16 %v263
      %v662 = vunpack.c.l.b16 %v264
      %v663 = vunpack.c.l.b16 %v265
      %v664 = vunpack.c.h.b16 %v265
      %v665 = vunpack.c.l.b16 %v266
      %v666 = vunpack.c.h.b16 %v266
      %v667 = vunpack.c.l.b16 %v267
      %v668 = vpack.c.b16 %v468, %v463
      %v669 = vpack.c.b16 %v469, %v464
      %v670 = vpack.c.b16 %v470, %v465
      %v671 = vpack.c.b16 %v471, %v466
      %v672 = vpack.c.b16 %v472, %v467
      %v673 = vpack.c.b16 %v478, %v473
      %v674 = vpack.c.b16 %v479, %v474
      %v675 = vpack.c.b16 %v480, %v475
      %v676 = vpack.c.b16 %v481, %v476
      %v677 = vpack.c.b16 %v482, %v477
      %v678 = vpack.c.b16 %v488, %v483
      %v679 = vpack.c.b16 %v489, %v484
      %v680 = vpack.c.b16 %v490, %v485
      %v681 = vpack.c.b16 %v491, %v486
      %v682 = vpack.c.b16 %v492, %v487
      %v683 = vpack.c.b16 %v498, %v493
      %v684 = vpack.c.b16 %v499, %v494
      %v685 = vpack.c.b16 %v500, %v495
      %v686 = vpack.c.b16 %v501, %v496
      %v687 = vpack.c.b16 %v502, %v497
      %v688 = vpack.c.b16 %v508, %v503
      %v689 = vpack.c.b16 %v509, %v504
      %v690 = vpack.c.b16 %v510, %v505
      %v691 = vpack.c.b16 %v511, %v506
      %v692 = vpack.c.b16 %v512, %v507
      %v693 = vpack.c.b16 %v518, %v513
      %v694 = vpack.c.b16 %v519, %v514
      %v695 = vpack.c.b16 %v520, %v515
      %v696 = vpack.c.b16 %v521, %v516
      %v697 = vpack.c.b16 %v522, %v517
      %v698 = vpack.c.b16 %v528, %v523
      %v699 = vpack.c.b16 %v529, %v524
      %v700 = vpack.c.b16 %v530, %v525
      %v701 = vpack.c.b16 %v531, %v526
      %v702 = vpack.c.b16 %v532, %v527
      %v703 = vpack.c.b16 %v538, %v533
      %v704 = vpack.c.b16 %v539, %v534
      %v705 = vpack.c.b16 %v540, %v535
      %v706 = vpack.c.b16 %v541, %v536
      %v707 = vpack.c.b16 %v542, %v537
      %v708 = vpack.c.b16 %v548, %v543
      %v709 = vpack.c.b16 %v549, %v544
      %v710 = vpack.c.b16 %v550, %v545
      %v711 = vpack.c.b16 %v551, %v546
      %v712 = vpack.c.b16 %v552, %v547
      %v713 = vpack.c.b16 %v558, %v553
      %v714 = vpack.c.b16 %v559, %v554
      %v715 = vpack.c.b16 %v560, %v555
      %v716 = vpack.c.b16 %v561, %v556
      %v717 = vpack.c.b16 %v562, %v557
      %v718 = vpack.c.b16 %v568, %v563
      %v719 = vpack.c.b16 %v569, %v564
      %v720 = vpack.c.b16 %v570, %v565
      %v721 = vpack.c.b16 %v571, %v566
      %v722 = vpack.c.b16 %v572, %v567
      %v723 = vpack.c.b16 %v578, %v573
      %v724 = vpack.c.b16 %v579, %v574
      %v725 = vpack.c.b16 %v580, %v575
      %v726 = vpack.c.b16 %v581, %v576
      %v727 = vpack.c.b16 %v582, %v577
      %v728 = vpack.c.b16 %v588, %v583
      %v729 = vpack.c.b16 %v589, %v584
      %v730 = vpack.c.b16 %v590, %v585
      %v731 = vpack.c.b16 %v591, %v586
      %v732 = vpack.c.b16 %v592, %v587
      %v733 = vpack.c.b16 %v598, %v593
      %v734 = vpack.c.b16 %v599, %v594
      %v735 = vpack.c.b16 %v600, %v595
      %v736 = vpack.c.b16 %v601, %v596
      %v737 = vpack.c.b16 %v602, %v597
      %v738 = vpack.c.b16 %v608, %v603
      %v739 = vpack.c.b16 %v609, %v604
      %v740 = vpack.c.b16 %v610, %v605
      %v741 = vpack.c.b16 %v611, %v606
      %v742 = vpack.c.b16 %v612, %v607
      %v743 = vpack.c.b16 %v618, %v613
      %v744 = vpack.c.b16 %v619, %v614
      %v745 = vpack.c.b16 %v620, %v615
      %v746 = vpack.c.b16 %v621, %v616
      %v747 = vpack.c.b16 %v622, %v617
      %v748 = vpack.c.b16 %v628, %v623
      %v749 = vpack.c.b16 %v629, %v624
      %v750 = vpack.c.b16 %v630, %v625
      %v751 = vpack.c.b16 %v631, %v626
      %v752 = vpack.c.b16 %v632, %v627
      %v753 = vpack.c.b16 %v638, %v633
      %v754 = vpack.c.b16 %v639, %v634
      %v755 = vpack.c.b16 %v640, %v635
      %v756 = vpack.c.b16 %v641, %v636
      %v757 = vpack.c.b16 %v642, %v637
      %v758 = vpack.c.b16 %v648, %v643
      %v759 = vpack.c.b16 %v649, %v644
      %v760 = vpack.c.b16 %v650, %v645
      %v761 = vpack.c.b16 %v651, %v646
      %v762 = vpack.c.b16 %v652, %v647
      %v763 = vpack.c.b16 %v658, %v653
      %v764 = vpack.c.b16 %v659, %v654
      %v765 = vpack.c.b16 %v660, %v655
      %v766 = vpack.c.b16 %v661, %v656
      %v767 = vpack.c.b16 %v662, %v657
      %v768 = vpack.c.b16 %v663, %v663
      %v769 = vpack.c.b16 %v664, %v664
      %v770 = vpack.c.b16 %v665, %v665
      %v771 = vpack.c.b16 %v666, %v666
      %v772 = vpack.c.b16 %v667, %v667
      %v929 = vunpack.c.l.b16 %v268
      %v930 = vunpack.c.l.b16 %v269
      %v931 = vunpack.c.l.b16 %v270
      %v932 = vunpack.c.l.b16 %v271
      %v933 = vunpack.c.l.b16 %v272
      %v934 = vunpack.c.l.b16 %v273
      %v935 = vunpack.c.l.b16 %v274
      %v936 = vunpack.c.l.b16 %v275
      %v937 = vunpack.c.l.b16 %v276
      %v938 = vunpack.c.l.b16 %v277
      %v939 = vunpack.c.l.b16 %v278
      %v940 = vunpack.c.l.b16 %v279
      %v941 = vunpack.c.l.b16 %v280
      %v942 = vunpack.c.l.b16 %v281
      %v943 = vunpack.c.l.b16 %v282
      %v944 = vunpack.c.l.b16 %v283
      %v945 = vunpack.c.l.b16 %v284
      %v946 = vunpack.c.l.b16 %v285
      %v947 = vunpack.c.l.b16 %v286
      %v948 = vunpack.c.l.b16 %v287
      %v949 = vunpack.c.l.b16 %v288
      %v950 = vunpack.c.l.b16 %v289
      %v951 = vunpack.c.l.b16 %v290
      %v952 = vunpack.c.l.b16 %v291
      %v953 = vunpack.c.l.b16 %v292
      %v954 = vunpack.c.l.b16 %v293
      %v955 = vunpack.c.l.b16 %v294
      %v956 = vunpack.c.l.b16 %v295
      %v957 = vunpack.c.l.b16 %v296
      %v958 = vunpack.c.l.b16 %v297
      %v959 = vunpack.c.l.b16 %v298
      %v960 = vunpack.c.l.b16 %v299
      %v961 = vunpack.c.l.b16 %v300
      %v962 = vunpack.c.l.b16 %v301
      %v963 = vunpack.c.l.b16 %v302
      %v964 = vunpack.c.l.b16 %v303
      %v965 = vunpack.c.l.b16 %v304
      %v966 = vunpack.c.l.b16 %v305
      %v967 = vunpack.c.l.b16 %v306
      %v968 = vunpack.c.l.b16 %v307
      %v969 = vunpack.c.l.b16 %v308
      %v970 = vunpack.c.l.b16 %v309
      %v971 = vunpack.c.l.b16 %v310
      %v972 = vunpack.c.l.b16 %v311
      %v973 = vunpack.c.l.b16 %v312
      %v974 = vunpack.c.l.b16 %v313
      %v975 = vunpack.c.l.b16 %v314
      %v976 = vunpack.c.l.b16 %v315
      %v977 = vunpack.c.l.b16 %v316
      %v978 = vunpack.c.l.b16 %v317
      %v979 = vunpack.c.l.b16 %v318
      %v980 = vunpack.c.l.b16 %v319
      %v981 = vunpack.c.l.b16 %v320
      %v982 = vunpack.c.l.b16 %v321
      %v983 = vunpack.c.l.b16 %v322
      %v984 = vunpack.c.l.b16 %v323
      %v985 = vunpack.c.l.b16 %v324
      %v986 = vunpack.c.l.b16 %v325
      %v987 = vunpack.c.l.b16 %v326
      %v988 = vunpack.c.l.b16 %v327
      %v989 = vunpack.c.l.b16 %v328
      %v990 = vunpack.c.l.b16 %v329
      %v991 = vunpack.c.l.b16 %v330
      %v992 = vunpack.c.l.b16 %v331
      %v993 = vunpack.c.l.b16 %v332
      %v994 = vunpack.c.l.b16 %v333
      %v995 = vunpack.c.l.b16 %v334
      %v996 = vunpack.c.l.b16 %v335
      %v997 = vunpack.c.l.b16 %v336
      %v998 = vunpack.c.l.b16 %v337
      %v999 = vunpack.c.l.b16 %v338
      %v1000 = vunpack.c.l.b16 %v339
      %v1001 = vpack.c.b16 %v930, %v929
      %v1002 = vpack.c.b16 %v932, %v931
      %v1003 = vpack.c.b16 %v934, %v933
      %v1004 = vpack.c.b16 %v936, %v935
      %v1005 = vpack.c.b16 %v938, %v937
      %v1006 = vpack.c.b16 %v940, %v939
      %v1007 = vpack.c.b16 %v942, %v941
      %v1008 = vpack.c.b16 %v944, %v943
      %v1009 = vpack.c.b16 %v946, %v945
      %v1010 = vpack.c.b16 %v948, %v947
      %v1011 = vpack.c.b16 %v950, %v949
      %v1012 = vpack.c.b16 %v952, %v951
      %v1013 = vpack.c.b16 %v954, %v953
      %v1014 = vpack.c.b16 %v956, %v955
      %v1015 = vpack.c.b16 %v958, %v957
      %v1016 = vpack.c.b16 %v960, %v959
      %v1017 = vpack.c.b16 %v962, %v961
      %v1018 = vpack.c.b16 %v964, %v963
      %v1019 = vpack.c.b16 %v966, %v965
      %v1020 = vpack.c.b16 %v968, %v967
      %v1021 = vpack.c.b16 %v970, %v969
      %v1022 = vpack.c.b16 %v972, %v971
      %v1023 = vpack.c.b16 %v974, %v973
      %v1024 = vpack.c.b16 %v976, %v975
      %v1025 = vpack.c.b16 %v978, %v977
      %v1026 = vpack.c.b16 %v980, %v979
      %v1027 = vpack.c.b16 %v982, %v981
      %v1028 = vpack.c.b16 %v984, %v983
      %v1029 = vpack.c.b16 %v986, %v985
      %v1030 = vpack.c.b16 %v988, %v987
      %v1031 = vpack.c.b16 %v990, %v989
      %v1032 = vpack.c.b16 %v992, %v991
      %v1033 = vpack.c.b16 %v994, %v993
      %v1034 = vpack.c.b16 %v996, %v995
      %v1035 = vpack.c.b16 %v998, %v997
      %v1036 = vpack.c.b16 %v1000, %v999
      %vm1073 = vcmask 523264
      %v1075 = vsel %vm1073, %v672, 0
      %v1078 = vsel %vm1073, %v677, 0
      %v1081 = vsel %vm1073, %v682, 0
      %v1084 = vsel %vm1073, %v687, 0
      %v1087 = vsel %vm1073, %v692, 0
      %v1090 = vsel %vm1073, %v697, 0
      %v1093 = vsel %vm1073, %v702, 0
      %v1096 = vsel %vm1073, %v707, 0
      %v1099 = vsel %vm1073, %v712, 0
      %v1102 = vsel %vm1073, %v717, 0
      %v1105 = vsel %vm1073, %v722, 0
      %v1108 = vsel %vm1073, %v727, 0
      %v1111 = vsel %vm1073, %v732, 0
      %v1114 = vsel %vm1073, %v737, 0
      %v1117 = vsel %vm1073, %v742, 0
      %v1120 = vsel %vm1073, %v747, 0
      %v1123 = vsel %vm1073, %v752, 0
      %v1126 = vsel %vm1073, %v757, 0
      %v1129 = vsel %vm1073, %v762, 0
      %v1132 = vsel %vm1073, %v767, 0
      %v1135 = vsel %vm1073, %v772, 0
      %1137 = vmatprep.subr.bf16.mxu0 0
      %1138 = vmatpush1.bf16.msra.mxu0 %v1001
      %1139 = vmatprep.subr.bf16.mxu0 0
      %1140 = vmatpush1.bf16.msra.mxu0 %v1002
      %1141 = vmatprep.subr.bf16.mxu0 0
      %1142 = vmatpush1.bf16.msra.mxu0 %v1003
      %1143 = vmatprep.subr.bf16.mxu0 0
      %1144 = vmatpush1.bf16.msra.mxu0 %v1004
      %1145 = vmatprep.subr.bf16.mxu0 0
      %1146 = vmatpush1.bf16.msra.mxu0 %v1005
      %1147 = vmatprep.subr.bf16.mxu0 0
      %1148 = vmatpush1.bf16.msra.mxu0 %v1006
      %1149 = vmatprep.subr.bf16.mxu0 0
      %1150 = vmatpush1.bf16.msra.mxu0 %v1007
      %1151 = vmatprep.subr.bf16.mxu0 0
      %1152 = vmatpush1.bf16.msra.mxu0 %v1008
      %1153 = vmatprep.subr.bf16.mxu0 0
      %1154 = vmatpush1.bf16.msra.mxu0 %v1009
      %1155 = vmatprep.subr.bf16.mxu0 0
      %1156 = vmatpush1.bf16.msra.mxu0 %v1010
      %1157 = vmatprep.subr.bf16.mxu0 0
      %1158 = vmatpush1.bf16.msra.mxu0 %v1011
      %1159 = vmatprep.subr.bf16.mxu0 0
      %1160 = vmatpush1.bf16.msra.mxu0 %v1012
      %1161 = vmatprep.subr.bf16.mxu0 0
      %1162 = vmatpush1.bf16.msra.mxu0 %v1013
      %1163 = vmatprep.subr.bf16.mxu0 0
      %1164 = vmatpush1.bf16.msra.mxu0 %v1014
      %1165 = vmatprep.subr.bf16.mxu0 0
      %1166 = vmatpush1.bf16.msra.mxu0 %v1015
      %1167 = vmatprep.subr.bf16.mxu0 0
      %1168 = vmatpush1.bf16.msra.mxu0 %v1016
      %1169 = vmatprep.mubr.bf16.mxu0 %v669
      %1170 = vmatmul.mubr.bf16.gmra.mrb[0].mxu0 %v668
      %v1171 = vpop.f32.mrb[0].mxu0
      %v1172 = vadd.f32 0.0, %v1171
      %v1173 = vpop.f32.mrb[0].mxu0
      %v1174 = vpop.f32.mrb[0].mxu0
      %v1175 = vadd.f32 0.0, %v1174
      %v1176 = vpop.f32.mrb[0].mxu0
      %1177 = vmatprep.mubr.bf16.mxu0 %v674
      %1178 = vmatmul.mubr.bf16.gmra.mrb[0].mxu0 %v673
      %v1179 = vpop.f32.mrb[0].mxu0
      %v1180 = vadd.f32 0.0, %v1179
      %v1181 = vpop.f32.mrb[0].mxu0
      %v1182 = vpop.f32.mrb[0].mxu0
      %v1183 = vadd.f32 0.0, %v1182
      %v1184 = vpop.f32.mrb[0].mxu0
      %1185 = vmatprep.mubr.bf16.mxu0 %v679
      %1186 = vmatmul.mubr.bf16.gmra.mrb[0].mxu0 %v678
      %v1187 = vpop.f32.mrb[0].mxu0
      %v1188 = vadd.f32 0.0, %v1187
      %v1189 = vpop.f32.mrb[0].mxu0
      %v1190 = vpop.f32.mrb[0].mxu0
      %v1191 = vadd.f32 0.0, %v1190
      %v1192 = vpop.f32.mrb[0].mxu0
      %1193 = vmatprep.mubr.bf16.mxu0 %v684
      %1194 = vmatmul.mubr.bf16.gmra.mrb[0].mxu0 %v683
      %v1195 = vpop.f32.mrb[0].mxu0
      %v1196 = vadd.f32 0.0, %v1195
      %v1197 = vpop.f32.mrb[0].mxu0
      %v1198 = vpop.f32.mrb[0].mxu0
      %v1199 = vadd.f32 0.0, %v1198
      %v1200 = vpop.f32.mrb[0].mxu0
      %1201 = vmatprep.mubr.bf16.mxu0 %v689
      %1202 = vmatmul.mubr.bf16.gmra.mrb[0].mxu0 %v688
      %v1203 = vpop.f32.mrb[0].mxu0
      %v1204 = vadd.f32 0.0, %v1203
      %v1205 = vpop.f32.mrb[0].mxu0
      %v1206 = vpop.f32.mrb[0].mxu0
      %v1207 = vadd.f32 0.0, %v1206
      %v1208 = vpop.f32.mrb[0].mxu0
      %1209 = vmatprep.mubr.bf16.mxu0 %v694
      %1210 = vmatmul.mubr.bf16.gmra.mrb[0].mxu0 %v693
      %v1211 = vpop.f32.mrb[0].mxu0
      %v1212 = vadd.f32 0.0, %v1211
      %v1213 = vpop.f32.mrb[0].mxu0
      %v1214 = vpop.f32.mrb[0].mxu0
      %v1215 = vadd.f32 0.0, %v1214
      %v1216 = vpop.f32.mrb[0].mxu0
      %1217 = vmatprep.mubr.bf16.mxu0 %v699
      %1218 = vmatmul.mubr.bf16.gmra.mrb[0].mxu0 %v698
      %v1219 = vpop.f32.mrb[0].mxu0
      %v1220 = vadd.f32 0.0, %v1219
      %v1221 = vpop.f32.mrb[0].mxu0
      %v1222 = vpop.f32.mrb[0].mxu0
      %v1223 = vadd.f32 0.0, %v1222
      %v1224 = vpop.f32.mrb[0].mxu0
      %1225 = vmatprep.mubr.bf16.mxu0 %v704
      %1226 = vmatmul.mubr.bf16.gmra.mrb[0].mxu0 %v703
      %v1227 = vpop.f32.mrb[0].mxu0
      %v1228 = vadd.f32 0.0, %v1227
      %v1229 = vpop.f32.mrb[0].mxu0
      %v1230 = vpop.f32.mrb[0].mxu0
      %v1231 = vadd.f32 0.0, %v1230
      %v1232 = vpop.f32.mrb[0].mxu0
      %1233 = vmatprep.mubr.bf16.mxu0 %v709
      %1234 = vmatmul.mubr.bf16.gmra.mrb[0].mxu0 %v708
      %v1235 = vpop.f32.mrb[0].mxu0
      %v1236 = vadd.f32 0.0, %v1235
      %v1237 = vpop.f32.mrb[0].mxu0
      %v1238 = vpop.f32.mrb[0].mxu0
      %v1239 = vadd.f32 0.0, %v1238
      %v1240 = vpop.f32.mrb[0].mxu0
      %1241 = vmatprep.mubr.bf16.mxu0 %v714
      %1242 = vmatmul.mubr.bf16.gmra.mrb[0].mxu0 %v713
      %v1243 = vpop.f32.mrb[0].mxu0
      %v1244 = vadd.f32 0.0, %v1243
      %v1245 = vpop.f32.mrb[0].mxu0
      %v1246 = vpop.f32.mrb[0].mxu0
      %v1247 = vadd.f32 0.0, %v1246
      %v1248 = vpop.f32.mrb[0].mxu0
      %1249 = vmatprep.mubr.bf16.mxu0 %v719
      %1250 = vmatmul.mubr.bf16.gmra.mrb[0].mxu0 %v718
      %v1251 = vpop.f32.mrb[0].mxu0
      %v1252 = vadd.f32 0.0, %v1251
      %v1253 = vpop.f32.mrb[0].mxu0
      %v1254 = vpop.f32.mrb[0].mxu0
      %v1255 = vadd.f32 0.0, %v1254
      %v1256 = vpop.f32.mrb[0].mxu0
      %1257 = vmatprep.mubr.bf16.mxu0 %v724
      %1258 = vmatmul.mubr.bf16.gmra.mrb[0].mxu0 %v723
      %v1259 = vpop.f32.mrb[0].mxu0
      %v1260 = vadd.f32 0.0, %v1259
      %v1261 = vpop.f32.mrb[0].mxu0
      %v1262 = vpop.f32.mrb[0].mxu0
      %v1263 = vadd.f32 0.0, %v1262
      %v1264 = vpop.f32.mrb[0].mxu0
      %1265 = vmatprep.mubr.bf16.mxu0 %v729
      %1266 = vmatmul.mubr.bf16.gmra.mrb[0].mxu0 %v728
      %v1267 = vpop.f32.mrb[0].mxu0
      %v1268 = vadd.f32 0.0, %v1267
      %v1269 = vpop.f32.mrb[0].mxu0
      %v1270 = vpop.f32.mrb[0].mxu0
      %v1271 = vadd.f32 0.0, %v1270
      %v1272 = vpop.f32.mrb[0].mxu0
      %1273 = vmatprep.mubr.bf16.mxu0 %v734
      %1274 = vmatmul.mubr.bf16.gmra.mrb[0].mxu0 %v733
      %v1275 = vpop.f32.mrb[0].mxu0
      %v1276 = vadd.f32 0.0, %v1275
      %v1277 = vpop.f32.mrb[0].mxu0
      %v1278 = vpop.f32.mrb[0].mxu0
      %v1279 = vadd.f32 0.0, %v1278
      %v1280 = vpop.f32.mrb[0].mxu0
      %1281 = vmatprep.mubr.bf16.mxu0 %v739
      %1282 = vmatmul.mubr.bf16.gmra.mrb[0].mxu0 %v738
      %v1283 = vpop.f32.mrb[0].mxu0
      %v1284 = vadd.f32 0.0, %v1283
      %v1285 = vpop.f32.mrb[0].mxu0
      %v1286 = vpop.f32.mrb[0].mxu0
      %v1287 = vadd.f32 0.0, %v1286
      %v1288 = vpop.f32.mrb[0].mxu0
      %1289 = vmatprep.mubr.bf16.mxu0 %v744
      %1290 = vmatmul.mubr.bf16.gmra.mrb[0].mxu0 %v743
      %v1291 = vpop.f32.mrb[0].mxu0
      %v1292 = vadd.f32 0.0, %v1291
      %v1293 = vpop.f32.mrb[0].mxu0
      %v1294 = vpop.f32.mrb[0].mxu0
      %v1295 = vadd.f32 0.0, %v1294
      %v1296 = vpop.f32.mrb[0].mxu0
      %1297 = vmatprep.mubr.bf16.mxu0 %v749
      %1298 = vmatmul.mubr.bf16.gmra.mrb[0].mxu0 %v748
      %v1299 = vpop.f32.mrb[0].mxu0
      %v1300 = vadd.f32 0.0, %v1299
      %v1301 = vpop.f32.mrb[0].mxu0
      %v1302 = vpop.f32.mrb[0].mxu0
      %v1303 = vadd.f32 0.0, %v1302
      %v1304 = vpop.f32.mrb[0].mxu0
      %1305 = vmatprep.mubr.bf16.mxu0 %v754
      %1306 = vmatmul.mubr.bf16.gmra.mrb[0].mxu0 %v753
      %v1307 = vpop.f32.mrb[0].mxu0
      %v1308 = vadd.f32 0.0, %v1307
      %v1309 = vpop.f32.mrb[0].mxu0
      %v1310 = vpop.f32.mrb[0].mxu0
      %v1311 = vadd.f32 0.0, %v1310
      %v1312 = vpop.f32.mrb[0].mxu0
      %1313 = vmatprep.mubr.bf16.mxu0 %v759
      %1314 = vmatmul.mubr.bf16.gmra.mrb[0].mxu0 %v758
      %v1315 = vpop.f32.mrb[0].mxu0
      %v1316 = vadd.f32 0.0, %v1315
      %v1317 = vpop.f32.mrb[0].mxu0
      %v1318 = vpop.f32.mrb[0].mxu0
      %v1319 = vadd.f32 0.0, %v1318
      %v1320 = vpop.f32.mrb[0].mxu0
      %1321 = vmatprep.mubr.bf16.mxu0 %v764
      %1322 = vmatmul.mubr.bf16.gmra.mrb[0].mxu0 %v763
      %v1323 = vpop.f32.mrb[0].mxu0
      %v1324 = vadd.f32 0.0, %v1323
      %v1325 = vpop.f32.mrb[0].mxu0
      %v1326 = vpop.f32.mrb[0].mxu0
      %v1327 = vadd.f32 0.0, %v1326
      %v1328 = vpop.f32.mrb[0].mxu0
      %1329 = vmatprep.mubr.bf16.mxu0 %v769
      %1330 = vmatmul.mubr.bf16.gmra.mrb[0].mxu0 %v768
      %v1331 = vpop.f32.mrb[0].mxu0
      %v1332 = vadd.f32 0.0, %v1331
      %v1333 = vpop.f32.mrb[0].mxu0
      %v1334 = vpop.f32.mrb[0].mxu0
      %v1335 = vpop.f32.mrb[0].mxu0
      %1336 = vdwg.mxu0
      %1337 = vmatprep.subr.bf16.mxu0 0
      %1338 = vmatpush1.bf16.msra.mxu0 %v1017
      %1339 = vmatprep.subr.bf16.mxu0 0
      %1340 = vmatpush1.bf16.msra.mxu0 %v1018
      %1341 = vmatprep.subr.bf16.mxu0 0
      %1342 = vmatpush1.bf16.msra.mxu0 %v1019
      %1343 = vmatprep.subr.bf16.mxu0 0
      %1344 = vmatpush1.bf16.msra.mxu0 %v1020
      %1345 = vmatprep.subr.bf16.mxu0 0
      %1346 = vmatpush1.bf16.msra.mxu0 %v1021
      %1347 = vmatprep.subr.bf16.mxu0 0
      %1348 = vmatpush1.bf16.msra.mxu0 %v1022
      %1349 = vmatprep.subr.bf16.mxu0 0
      %1350 = vmatpush1.bf16.msra.mxu0 %v1023
      %1351 = vmatprep.subr.bf16.mxu0 0
      %1352 = vmatpush1.bf16.msra.mxu0 %v1024
      %1353 = vmatprep.subr.bf16.mxu0 0
      %1354 = vmatpush1.bf16.msra.mxu0 %v1025
      %1355 = vmatprep.subr.bf16.mxu0 0
      %1356 = vmatpush1.bf16.msra.mxu0 %v1026
      %1357 = vmatprep.subr.bf16.mxu0 0
      %1358 = vmatpush1.bf16.msra.mxu0 %v1027
      %1359 = vmatprep.subr.bf16.mxu0 0
      %1360 = vmatpush1.bf16.msra.mxu0 %v1028
      %1361 = vmatprep.subr.bf16.mxu0 0
      %1362 = vmatpush1.bf16.msra.mxu0 %v1029
      %1363 = vmatprep.subr.bf16.mxu0 0
      %1364 = vmatpush1.bf16.msra.mxu0 %v1030
      %1365 = vmatprep.subr.bf16.mxu0 0
      %1366 = vmatpush1.bf16.msra.mxu0 %v1031
      %1367 = vmatprep.subr.bf16.mxu0 0
      %1368 = vmatpush1.bf16.msra.mxu0 %v1032
      %1369 = vmatprep.mubr.bf16.mxu0 %v671
      %1370 = vmatmul.mubr.bf16.gmra.mrb[0].mxu0 %v670
      %v1371 = vpop.f32.mrb[0].mxu0
      %v1372 = vadd.f32 %v1172, %v1371
      %v1373 = vpop.f32.mrb[0].mxu0
      %v1374 = vpop.f32.mrb[0].mxu0
      %v1375 = vadd.f32 %v1175, %v1374
      %v1376 = vpop.f32.mrb[0].mxu0
      %1377 = vmatprep.mubr.bf16.mxu0 %v676
      %1378 = vmatmul.mubr.bf16.gmra.mrb[0].mxu0 %v675
      %v1379 = vpop.f32.mrb[0].mxu0
      %v1380 = vadd.f32 %v1180, %v1379
      %v1381 = vpop.f32.mrb[0].mxu0
      %v1382 = vpop.f32.mrb[0].mxu0
      %v1383 = vadd.f32 %v1183, %v1382
      %v1384 = vpop.f32.mrb[0].mxu0
      %1385 = vmatprep.mubr.bf16.mxu0 %v681
      %1386 = vmatmul.mubr.bf16.gmra.mrb[0].mxu0 %v680
      %v1387 = vpop.f32.mrb[0].mxu0
      %v1388 = vadd.f32 %v1188, %v1387
      %v1389 = vpop.f32.mrb[0].mxu0
      %v1390 = vpop.f32.mrb[0].mxu0
      %v1391 = vadd.f32 %v1191, %v1390
      %v1392 = vpop.f32.mrb[0].mxu0
      %1393 = vmatprep.mubr.bf16.mxu0 %v686
      %1394 = vmatmul.mubr.bf16.gmra.mrb[0].mxu0 %v685
      %v1395 = vpop.f32.mrb[0].mxu0
      %v1396 = vadd.f32 %v1196, %v1395
      %v1397 = vpop.f32.mrb[0].mxu0
      %v1398 = vpop.f32.mrb[0].mxu0
      %v1399 = vadd.f32 %v1199, %v1398
      %v1400 = vpop.f32.mrb[0].mxu0
      %1401 = vmatprep.mubr.bf16.mxu0 %v691
      %1402 = vmatmul.mubr.bf16.gmra.mrb[0].mxu0 %v690
      %v1403 = vpop.f32.mrb[0].mxu0
      %v1404 = vadd.f32 %v1204, %v1403
      %v1405 = vpop.f32.mrb[0].mxu0
      %v1406 = vpop.f32.mrb[0].mxu0
      %v1407 = vadd.f32 %v1207, %v1406
      %v1408 = vpop.f32.mrb[0].mxu0
      %1409 = vmatprep.mubr.bf16.mxu0 %v696
      %1410 = vmatmul.mubr.bf16.gmra.mrb[0].mxu0 %v695
      %v1411 = vpop.f32.mrb[0].mxu0
      %v1412 = vadd.f32 %v1212, %v1411
      %v1413 = vpop.f32.mrb[0].mxu0
      %v1414 = vpop.f32.mrb[0].mxu0
      %v1415 = vadd.f32 %v1215, %v1414
      %v1416 = vpop.f32.mrb[0].mxu0
      %1417 = vmatprep.mubr.bf16.mxu0 %v701
      %1418 = vmatmul.mubr.bf16.gmra.mrb[0].mxu0 %v700
      %v1419 = vpop.f32.mrb[0].mxu0
      %v1420 = vadd.f32 %v1220, %v1419
      %v1421 = vpop.f32.mrb[0].mxu0
      %v1422 = vpop.f32.mrb[0].mxu0
      %v1423 = vadd.f32 %v1223, %v1422
      %v1424 = vpop.f32.mrb[0].mxu0
      %1425 = vmatprep.mubr.bf16.mxu0 %v706
      %1426 = vmatmul.mubr.bf16.gmra.mrb[0].mxu0 %v705
      %v1427 = vpop.f32.mrb[0].mxu0
      %v1428 = vadd.f32 %v1228, %v1427
      %v1429 = vpop.f32.mrb[0].mxu0
      %v1430 = vpop.f32.mrb[0].mxu0
      %v1431 = vadd.f32 %v1231, %v1430
      %v1432 = vpop.f32.mrb[0].mxu0
      %1433 = vmatprep.mubr.bf16.mxu0 %v711
      %1434 = vmatmul.mubr.bf16.gmra.mrb[0].mxu0 %v710
      %v1435 = vpop.f32.mrb[0].mxu0
      %v1436 = vadd.f32 %v1236, %v1435
      %v1437 = vpop.f32.mrb[0].mxu0
      %v1438 = vpop.f32.mrb[0].mxu0
      %v1439 = vadd.f32 %v1239, %v1438
      %v1440 = vpop.f32.mrb[0].mxu0
      %1441 = vmatprep.mubr.bf16.mxu0 %v716
      %1442 = vmatmul.mubr.bf16.gmra.mrb[0].mxu0 %v715
      %v1443 = vpop.f32.mrb[0].mxu0
      %v1444 = vadd.f32 %v1244, %v1443
      %v1445 = vpop.f32.mrb[0].mxu0
      %v1446 = vpop.f32.mrb[0].mxu0
      %v1447 = vadd.f32 %v1247, %v1446
      %v1448 = vpop.f32.mrb[0].mxu0
      %1449 = vmatprep.mubr.bf16.mxu0 %v721
      %1450 = vmatmul.mubr.bf16.gmra.mrb[0].mxu0 %v720
      %v1451 = vpop.f32.mrb[0].mxu0
      %v1452 = vadd.f32 %v1252, %v1451
      %v1453 = vpop.f32.mrb[0].mxu0
      %v1454 = vpop.f32.mrb[0].mxu0
      %v1455 = vadd.f32 %v1255, %v1454
      %v1456 = vpop.f32.mrb[0].mxu0
      %1457 = vmatprep.mubr.bf16.mxu0 %v726
      %1458 = vmatmul.mubr.bf16.gmra.mrb[0].mxu0 %v725
      %v1459 = vpop.f32.mrb[0].mxu0
      %v1460 = vadd.f32 %v1260, %v1459
      %v1461 = vpop.f32.mrb[0].mxu0
      %v1462 = vpop.f32.mrb[0].mxu0
      %v1463 = vadd.f32 %v1263, %v1462
      %v1464 = vpop.f32.mrb[0].mxu0
      %1465 = vmatprep.mubr.bf16.mxu0 %v731
      %1466 = vmatmul.mubr.bf16.gmra.mrb[0].mxu0 %v730
      %v1467 = vpop.f32.mrb[0].mxu0
      %v1468 = vadd.f32 %v1268, %v1467
      %v1469 = vpop.f32.mrb[0].mxu0
      %v1470 = vpop.f32.mrb[0].mxu0
      %v1471 = vadd.f32 %v1271, %v1470
      %v1472 = vpop.f32.mrb[0].mxu0
      %1473 = vmatprep.mubr.bf16.mxu0 %v736
      %1474 = vmatmul.mubr.bf16.gmra.mrb[0].mxu0 %v735
      %v1475 = vpop.f32.mrb[0].mxu0
      %v1476 = vadd.f32 %v1276, %v1475
      %v1477 = vpop.f32.mrb[0].mxu0
      %v1478 = vpop.f32.mrb[0].mxu0
      %v1479 = vadd.f32 %v1279, %v1478
      %v1480 = vpop.f32.mrb[0].mxu0
      %1481 = vmatprep.mubr.bf16.mxu0 %v741
      %1482 = vmatmul.mubr.bf16.gmra.mrb[0].mxu0 %v740
      %v1483 = vpop.f32.mrb[0].mxu0
      %v1484 = vadd.f32 %v1284, %v1483
      %v1485 = vpop.f32.mrb[0].mxu0
      %v1486 = vpop.f32.mrb[0].mxu0
      %v1487 = vadd.f32 %v1287, %v1486
      %v1488 = vpop.f32.mrb[0].mxu0
      %1489 = vmatprep.mubr.bf16.mxu0 %v746
      %1490 = vmatmul.mubr.bf16.gmra.mrb[0].mxu0 %v745
      %v1491 = vpop.f32.mrb[0].mxu0
      %v1492 = vadd.f32 %v1292, %v1491
      %v1493 = vpop.f32.mrb[0].mxu0
      %v1494 = vpop.f32.mrb[0].mxu0
      %v1495 = vadd.f32 %v1295, %v1494
      %v1496 = vpop.f32.mrb[0].mxu0
      %1497 = vmatprep.mubr.bf16.mxu0 %v751
      %1498 = vmatmul.mubr.bf16.gmra.mrb[0].mxu0 %v750
      %v1499 = vpop.f32.mrb[0].mxu0
      %v1500 = vadd.f32 %v1300, %v1499
      %v1501 = vpop.f32.mrb[0].mxu0
      %v1502 = vpop.f32.mrb[0].mxu0
      %v1503 = vadd.f32 %v1303, %v1502
      %v1504 = vpop.f32.mrb[0].mxu0
      %1505 = vmatprep.mubr.bf16.mxu0 %v756
      %1506 = vmatmul.mubr.bf16.gmra.mrb[0].mxu0 %v755
      %v1507 = vpop.f32.mrb[0].mxu0
      %v1508 = vadd.f32 %v1308, %v1507
      %v1509 = vpop.f32.mrb[0].mxu0
      %v1510 = vpop.f32.mrb[0].mxu0
      %v1511 = vadd.f32 %v1311, %v1510
      %v1512 = vpop.f32.mrb[0].mxu0
      %1513 = vmatprep.mubr.bf16.mxu0 %v761
      %1514 = vmatmul.mubr.bf16.gmra.mrb[0].mxu0 %v760
      %v1515 = vpop.f32.mrb[0].mxu0
      %v1516 = vadd.f32 %v1316, %v1515
      %v1517 = vpop.f32.mrb[0].mxu0
      %v1518 = vpop.f32.mrb[0].mxu0
      %v1519 = vadd.f32 %v1319, %v1518
      %v1520 = vpop.f32.mrb[0].mxu0
      %1521 = vmatprep.mubr.bf16.mxu0 %v766
      %1522 = vmatmul.mubr.bf16.gmra.mrb[0].mxu0 %v765
      %v1523 = vpop.f32.mrb[0].mxu0
      %v1524 = vadd.f32 %v1324, %v1523
      %v1525 = vpop.f32.mrb[0].mxu0
      %v1526 = vpop.f32.mrb[0].mxu0
      %v1527 = vadd.f32 %v1327, %v1526
      %v1528 = vpop.f32.mrb[0].mxu0
      %1529 = vmatprep.mubr.bf16.mxu0 %v771
      %1530 = vmatmul.mubr.bf16.gmra.mrb[0].mxu0 %v770
      %v1531 = vpop.f32.mrb[0].mxu0
      %v1532 = vadd.f32 %v1332, %v1531
      %v1533 = vpop.f32.mrb[0].mxu0
      %v1534 = vpop.f32.mrb[0].mxu0
      %v1535 = vpop.f32.mrb[0].mxu0
      %1536 = vdwg.mxu0
      %1537 = vmatprep.subr.bf16.mxu0 0
      %1538 = vmatpush1.bf16.msra.mxu0 %v1033
      %1539 = vmatprep.subr.bf16.mxu0 0
      %1540 = vmatpush1.bf16.msra.mxu0 %v1034
      %1541 = vmatprep.subr.bf16.mxu0 0
      %1542 = vmatpush1.bf16.msra.mxu0 %v1035
      %1543 = vmatprep.subr.bf16.mxu0 0
      %1544 = vmatpush1.bf16.msra.mxu0 %v1036
      %1545 = vmatprep.subr.bf16.mxu0 0
      %1546 = vmatpush1.bf16.msra.mxu0 0
      %1547 = vmatprep.subr.bf16.mxu0 0
      %1548 = vmatpush1.bf16.msra.mxu0 0
      %1549 = vmatprep.subr.bf16.mxu0 0
      %1550 = vmatpush1.bf16.msra.mxu0 0
      %1551 = vmatprep.subr.bf16.mxu0 0
      %1552 = vmatpush1.bf16.msra.mxu0 0
      %1553 = vmatprep.subr.bf16.mxu0 0
      %1554 = vmatpush1.bf16.msra.mxu0 0
      %1555 = vmatprep.subr.bf16.mxu0 0
      %1556 = vmatpush1.bf16.msra.mxu0 0
      %1557 = vmatprep.subr.bf16.mxu0 0
      %1558 = vmatpush1.bf16.msra.mxu0 0
      %1559 = vmatprep.subr.bf16.mxu0 0
      %1560 = vmatpush1.bf16.msra.mxu0 0
      %1561 = vmatprep.subr.bf16.mxu0 0
      %1562 = vmatpush1.bf16.msra.mxu0 0
      %1563 = vmatprep.subr.bf16.mxu0 0
      %1564 = vmatpush1.bf16.msra.mxu0 0
      %1565 = vmatprep.subr.bf16.mxu0 0
      %1566 = vmatpush1.bf16.msra.mxu0 0
      %1567 = vmatprep.subr.bf16.mxu0 0
      %1568 = vmatpush1.bf16.msra.mxu0 0
      %1569 = vmatprep.mubr.bf16.mxu0 0
      %1570 = vmatmul.mubr.bf16.gmra.mrb[0].mxu0 %v1075
      %v1571 = vpop.f32.mrb[0].mxu0
      %v1572 = vadd.f32 %v1372, %v1571
      %v1573 = vpop.f32.mrb[0].mxu0
      %v1574 = vpop.f32.mrb[0].mxu0
      %v1575 = vadd.f32 %v1375, %v1574
      %v1576 = vpop.f32.mrb[0].mxu0
      %1577 = vmatprep.mubr.bf16.mxu0 0
      %1578 = vmatmul.mubr.bf16.gmra.mrb[0].mxu0 %v1078
      %v1579 = vpop.f32.mrb[0].mxu0
      %v1580 = vadd.f32 %v1380, %v1579
      %v1581 = vpop.f32.mrb[0].mxu0
      %v1582 = vpop.f32.mrb[0].mxu0
      %v1583 = vadd.f32 %v1383, %v1582
      %v1584 = vpop.f32.mrb[0].mxu0
      %1585 = vmatprep.mubr.bf16.mxu0 0
      %1586 = vmatmul.mubr.bf16.gmra.mrb[0].mxu0 %v1081
      %v1587 = vpop.f32.mrb[0].mxu0
      %v1588 = vadd.f32 %v1388, %v1587
      %v1589 = vpop.f32.mrb[0].mxu0
      %v1590 = vpop.f32.mrb[0].mxu0
      %v1591 = vadd.f32 %v1391, %v1590
      %v1592 = vpop.f32.mrb[0].mxu0
      %1593 = vmatprep.mubr.bf16.mxu0 0
      %1594 = vmatmul.mubr.bf16.gmra.mrb[0].mxu0 %v1084
      %v1595 = vpop.f32.mrb[0].mxu0
      %v1596 = vadd.f32 %v1396, %v1595
      %v1597 = vpop.f32.mrb[0].mxu0
      %v1598 = vpop.f32.mrb[0].mxu0
      %v1599 = vadd.f32 %v1399, %v1598
      %v1600 = vpop.f32.mrb[0].mxu0
      %1601 = vmatprep.mubr.bf16.mxu0 0
      %1602 = vmatmul.mubr.bf16.gmra.mrb[0].mxu0 %v1087
      %v1603 = vpop.f32.mrb[0].mxu0
      %v1604 = vadd.f32 %v1404, %v1603
      %v1605 = vpop.f32.mrb[0].mxu0
      %v1606 = vpop.f32.mrb[0].mxu0
      %v1607 = vadd.f32 %v1407, %v1606
      %v1608 = vpop.f32.mrb[0].mxu0
      %1609 = vmatprep.mubr.bf16.mxu0 0
      %1610 = vmatmul.mubr.bf16.gmra.mrb[0].mxu0 %v1090
      %v1611 = vpop.f32.mrb[0].mxu0
      %v1612 = vadd.f32 %v1412, %v1611
      %v1613 = vpop.f32.mrb[0].mxu0
      %v1614 = vpop.f32.mrb[0].mxu0
      %v1615 = vadd.f32 %v1415, %v1614
      %v1616 = vpop.f32.mrb[0].mxu0
      %1617 = vmatprep.mubr.bf16.mxu0 0
      %1618 = vmatmul.mubr.bf16.gmra.mrb[0].mxu0 %v1093
      %v1619 = vpop.f32.mrb[0].mxu0
      %v1620 = vadd.f32 %v1420, %v1619
      %v1621 = vpop.f32.mrb[0].mxu0
      %v1622 = vpop.f32.mrb[0].mxu0
      %v1623 = vadd.f32 %v1423, %v1622
      %v1624 = vpop.f32.mrb[0].mxu0
      %1625 = vmatprep.mubr.bf16.mxu0 0
      %1626 = vmatmul.mubr.bf16.gmra.mrb[0].mxu0 %v1096
      %v1627 = vpop.f32.mrb[0].mxu0
      %v1628 = vadd.f32 %v1428, %v1627
      %v1629 = vpop.f32.mrb[0].mxu0
      %v1630 = vpop.f32.mrb[0].mxu0
      %v1631 = vadd.f32 %v1431, %v1630
      %v1632 = vpop.f32.mrb[0].mxu0
      %1633 = vmatprep.mubr.bf16.mxu0 0
      %1634 = vmatmul.mubr.bf16.gmra.mrb[0].mxu0 %v1099
      %v1635 = vpop.f32.mrb[0].mxu0
      %v1636 = vadd.f32 %v1436, %v1635
      %v1637 = vpop.f32.mrb[0].mxu0
      %v1638 = vpop.f32.mrb[0].mxu0
      %v1639 = vadd.f32 %v1439, %v1638
      %v1640 = vpop.f32.mrb[0].mxu0
      %1641 = vmatprep.mubr.bf16.mxu0 0
      %1642 = vmatmul.mubr.bf16.gmra.mrb[0].mxu0 %v1102
      %v1643 = vpop.f32.mrb[0].mxu0
      %v1644 = vadd.f32 %v1444, %v1643
      %v1645 = vpop.f32.mrb[0].mxu0
      %v1646 = vpop.f32.mrb[0].mxu0
      %v1647 = vadd.f32 %v1447, %v1646
      %v1648 = vpop.f32.mrb[0].mxu0
      %1649 = vmatprep.mubr.bf16.mxu0 0
      %1650 = vmatmul.mubr.bf16.gmra.mrb[0].mxu0 %v1105
      %v1651 = vpop.f32.mrb[0].mxu0
      %v1652 = vadd.f32 %v1452, %v1651
      %v1653 = vpop.f32.mrb[0].mxu0
      %v1654 = vpop.f32.mrb[0].mxu0
      %v1655 = vadd.f32 %v1455, %v1654
      %v1656 = vpop.f32.mrb[0].mxu0
      %1657 = vmatprep.mubr.bf16.mxu0 0
      %1658 = vmatmul.mubr.bf16.gmra.mrb[0].mxu0 %v1108
      %v1659 = vpop.f32.mrb[0].mxu0
      %v1660 = vadd.f32 %v1460, %v1659
      %v1661 = vpop.f32.mrb[0].mxu0
      %v1662 = vpop.f32.mrb[0].mxu0
      %v1663 = vadd.f32 %v1463, %v1662
      %v1664 = vpop.f32.mrb[0].mxu0
      %1665 = vmatprep.mubr.bf16.mxu0 0
      %1666 = vmatmul.mubr.bf16.gmra.mrb[0].mxu0 %v1111
      %v1667 = vpop.f32.mrb[0].mxu0
      %v1668 = vadd.f32 %v1468, %v1667
      %v1669 = vpop.f32.mrb[0].mxu0
      %v1670 = vpop.f32.mrb[0].mxu0
      %v1671 = vadd.f32 %v1471, %v1670
      %v1672 = vpop.f32.mrb[0].mxu0
      %1673 = vmatprep.mubr.bf16.mxu0 0
      %1674 = vmatmul.mubr.bf16.gmra.mrb[0].mxu0 %v1114
      %v1675 = vpop.f32.mrb[0].mxu0
      %v1676 = vadd.f32 %v1476, %v1675
      %v1677 = vpop.f32.mrb[0].mxu0
      %v1678 = vpop.f32.mrb[0].mxu0
      %v1679 = vadd.f32 %v1479, %v1678
      %v1680 = vpop.f32.mrb[0].mxu0
      %1681 = vmatprep.mubr.bf16.mxu0 0
      %1682 = vmatmul.mubr.bf16.gmra.mrb[0].mxu0 %v1117
      %v1683 = vpop.f32.mrb[0].mxu0
      %v1684 = vadd.f32 %v1484, %v1683
      %v1685 = vpop.f32.mrb[0].mxu0
      %v1686 = vpop.f32.mrb[0].mxu0
      %v1687 = vadd.f32 %v1487, %v1686
      %v1688 = vpop.f32.mrb[0].mxu0
      %1689 = vmatprep.mubr.bf16.mxu0 0
      %1690 = vmatmul.mubr.bf16.gmra.mrb[0].mxu0 %v1120
      %v1691 = vpop.f32.mrb[0].mxu0
      %v1692 = vadd.f32 %v1492, %v1691
      %v1693 = vpop.f32.mrb[0].mxu0
      %v1694 = vpop.f32.mrb[0].mxu0
      %v1695 = vadd.f32 %v1495, %v1694
      %v1696 = vpop.f32.mrb[0].mxu0
      %1697 = vmatprep.mubr.bf16.mxu0 0
      %1698 = vmatmul.mubr.bf16.gmra.mrb[0].mxu0 %v1123
      %v1699 = vpop.f32.mrb[0].mxu0
      %v1700 = vadd.f32 %v1500, %v1699
      %v1701 = vpop.f32.mrb[0].mxu0
      %v1702 = vpop.f32.mrb[0].mxu0
      %v1703 = vadd.f32 %v1503, %v1702
      %v1704 = vpop.f32.mrb[0].mxu0
      %1705 = vmatprep.mubr.bf16.mxu0 0
      %1706 = vmatmul.mubr.bf16.gmra.mrb[0].mxu0 %v1126
      %v1707 = vpop.f32.mrb[0].mxu0
      %v1708 = vadd.f32 %v1508, %v1707
      %v1709 = vpop.f32.mrb[0].mxu0
      %v1710 = vpop.f32.mrb[0].mxu0
      %v1711 = vadd.f32 %v1511, %v1710
      %v1712 = vpop.f32.mrb[0].mxu0
      %1713 = vmatprep.mubr.bf16.mxu0 0
      %1714 = vmatmul.mubr.bf16.gmra.mrb[0].mxu0 %v1129
      %v1715 = vpop.f32.mrb[0].mxu0
      %v1716 = vadd.f32 %v1516, %v1715
      %v1717 = vpop.f32.mrb[0].mxu0
      %v1718 = vpop.f32.mrb[0].mxu0
      %v1719 = vadd.f32 %v1519, %v1718
      %v1720 = vpop.f32.mrb[0].mxu0
      %1721 = vmatprep.mubr.bf16.mxu0 0
      %1722 = vmatmul.mubr.bf16.gmra.mrb[0].mxu0 %v1132
      %v1723 = vpop.f32.mrb[0].mxu0
      %v1724 = vadd.f32 %v1524, %v1723
      %v1725 = vpop.f32.mrb[0].mxu0
      %v1726 = vpop.f32.mrb[0].mxu0
      %v1727 = vadd.f32 %v1527, %v1726
      %v1728 = vpop.f32.mrb[0].mxu0
      %1729 = vmatprep.mubr.bf16.mxu0 0
      %1730 = vmatmul.mubr.bf16.gmra.mrb[0].mxu0 %v1135
      %v1731 = vpop.f32.mrb[0].mxu0
      %v1732 = vadd.f32 %v1532, %v1731
      %v1733 = vpop.f32.mrb[0].mxu0
      %v1734 = vpop.f32.mrb[0].mxu0
      %v1735 = vpop.f32.mrb[0].mxu0
      %1736 = vdwg.mxu0
      %v1737 = vmax.f32 %v1572, 0.0
      %v1738 = vmax.f32 %v1575, 0.0
      %v1739 = vmax.f32 %v1580, 0.0
      %v1740 = vmax.f32 %v1583, 0.0
      %v1741 = vmax.f32 %v1588, 0.0
      %v1742 = vmax.f32 %v1591, 0.0
      %v1743 = vmax.f32 %v1596, 0.0
      %v1744 = vmax.f32 %v1599, 0.0
      %v1745 = vmax.f32 %v1604, 0.0
      %v1746 = vmax.f32 %v1607, 0.0
      %v1747 = vmax.f32 %v1612, 0.0
      %v1748 = vmax.f32 %v1615, 0.0
      %v1749 = vmax.f32 %v1620, 0.0
      %v1750 = vmax.f32 %v1623, 0.0
      %v1751 = vmax.f32 %v1628, 0.0
      %v1752 = vmax.f32 %v1631, 0.0
      %v1753 = vmax.f32 %v1636, 0.0
      %v1754 = vmax.f32 %v1639, 0.0
      %v1755 = vmax.f32 %v1644, 0.0
      %v1756 = vmax.f32 %v1647, 0.0
      %v1757 = vmax.f32 %v1652, 0.0
      %v1758 = vmax.f32 %v1655, 0.0
      %v1759 = vmax.f32 %v1660, 0.0
      %v1760 = vmax.f32 %v1663, 0.0
      %v1761 = vmax.f32 %v1668, 0.0
      %v1762 = vmax.f32 %v1671, 0.0
      %v1763 = vmax.f32 %v1676, 0.0
      %v1764 = vmax.f32 %v1679, 0.0
      %v1765 = vmax.f32 %v1684, 0.0
      %v1766 = vmax.f32 %v1687, 0.0
      %v1767 = vmax.f32 %v1692, 0.0
      %v1768 = vmax.f32 %v1695, 0.0
      %v1769 = vmax.f32 %v1700, 0.0
      %v1770 = vmax.f32 %v1703, 0.0
      %v1771 = vmax.f32 %v1708, 0.0
      %v1772 = vmax.f32 %v1711, 0.0
      %v1773 = vmax.f32 %v1716, 0.0
      %v1774 = vmax.f32 %v1719, 0.0
      %v1775 = vmax.f32 %v1724, 0.0
      %v1776 = vmax.f32 %v1727, 0.0
      %v1777 = vmax.f32 %v1732, 0.0
      %v1778 = vsel %vm1073, %v1737, 0.0
      %v1779 = vsel %vm1073, %v1738, 0.0
      %v1780 = vadd.f32 %v1778, %v1779
      %v1781 = vsel %vm1073, %v1739, 0.0
      %v1782 = vadd.f32 %v1780, %v1781
      %v1783 = vsel %vm1073, %v1740, 0.0
      %v1784 = vadd.f32 %v1782, %v1783
      %v1785 = vsel %vm1073, %v1741, 0.0
      %v1786 = vadd.f32 %v1784, %v1785
      %v1787 = vsel %vm1073, %v1742, 0.0
      %v1788 = vadd.f32 %v1786, %v1787
      %v1789 = vsel %vm1073, %v1743, 0.0
      %v1790 = vadd.f32 %v1788, %v1789
      %v1791 = vsel %vm1073, %v1744, 0.0
      %v1792 = vadd.f32 %v1790, %v1791
      %v1793 = vsel %vm1073, %v1745, 0.0
      %v1794 = vadd.f32 %v1792, %v1793
      %v1795 = vsel %vm1073, %v1746, 0.0
      %v1796 = vadd.f32 %v1794, %v1795
      %v1797 = vsel %vm1073, %v1747, 0.0
      %v1798 = vadd.f32 %v1796, %v1797
      %v1799 = vsel %vm1073, %v1748, 0.0
      %v1800 = vadd.f32 %v1798, %v1799
      %v1801 = vsel %vm1073, %v1749, 0.0
      %v1802 = vadd.f32 %v1800, %v1801
      %v1803 = vsel %vm1073, %v1750, 0.0
      %v1804 = vadd.f32 %v1802, %v1803
      %v1805 = vsel %vm1073, %v1751, 0.0
      %v1806 = vadd.f32 %v1804, %v1805
      %v1807 = vsel %vm1073, %v1752, 0.0
      %v1808 = vadd.f32 %v1806, %v1807
      %v1809 = vsel %vm1073, %v1753, 0.0
      %v1810 = vadd.f32 %v1808, %v1809
      %v1811 = vsel %vm1073, %v1754, 0.0
      %v1812 = vadd.f32 %v1810, %v1811
      %v1813 = vsel %vm1073, %v1755, 0.0
      %v1814 = vadd.f32 %v1812, %v1813
      %v1815 = vsel %vm1073, %v1756, 0.0
      %v1816 = vadd.f32 %v1814, %v1815
      %v1817 = vsel %vm1073, %v1757, 0.0
      %v1818 = vadd.f32 %v1816, %v1817
      %v1819 = vsel %vm1073, %v1758, 0.0
      %v1820 = vadd.f32 %v1818, %v1819
      %v1821 = vsel %vm1073, %v1759, 0.0
      %v1822 = vadd.f32 %v1820, %v1821
      %v1823 = vsel %vm1073, %v1760, 0.0
      %v1824 = vadd.f32 %v1822, %v1823
      %v1825 = vsel %vm1073, %v1761, 0.0
      %v1826 = vadd.f32 %v1824, %v1825
      %v1827 = vsel %vm1073, %v1762, 0.0
      %v1828 = vadd.f32 %v1826, %v1827
      %v1829 = vsel %vm1073, %v1763, 0.0
      %v1830 = vadd.f32 %v1828, %v1829
      %v1831 = vsel %vm1073, %v1764, 0.0
      %v1832 = vadd.f32 %v1830, %v1831
      %v1833 = vsel %vm1073, %v1765, 0.0
      %v1834 = vadd.f32 %v1832, %v1833
      %v1835 = vsel %vm1073, %v1766, 0.0
      %v1836 = vadd.f32 %v1834, %v1835
      %v1837 = vsel %vm1073, %v1767, 0.0
      %v1838 = vadd.f32 %v1836, %v1837
      %v1839 = vsel %vm1073, %v1768, 0.0
      %v1840 = vadd.f32 %v1838, %v1839
      %v1841 = vsel %vm1073, %v1769, 0.0
      %v1842 = vadd.f32 %v1840, %v1841
      %v1843 = vsel %vm1073, %v1770, 0.0
      %v1844 = vadd.f32 %v1842, %v1843
      %v1845 = vsel %vm1073, %v1771, 0.0
      %v1846 = vadd.f32 %v1844, %v1845
      %v1847 = vsel %vm1073, %v1772, 0.0
      %v1848 = vadd.f32 %v1846, %v1847
      %v1849 = vsel %vm1073, %v1773, 0.0
      %v1850 = vadd.f32 %v1848, %v1849
      %v1851 = vsel %vm1073, %v1774, 0.0
      %v1852 = vadd.f32 %v1850, %v1851
      %v1853 = vsel %vm1073, %v1775, 0.0
      %v1854 = vadd.f32 %v1852, %v1853
      %v1855 = vsel %vm1073, %v1776, 0.0
      %v1856 = vadd.f32 %v1854, %v1855
      %vm1857 = vcmask 519168
      %v1858 = vsel %vm1857, %v1777, 0.0
      %v1859 = vadd.f32 %v1856, %v1858
      %v1860 = vrot.slane %v1859, 4
      %v1861 = vadd.f32 %v1859, %v1860
      %v1862 = vrot.slane %v1861, 2
      %v1863 = vadd.f32 %v1861, %v1862
      %v1864 = vrot.slane %v1863, 1
      %v1865 = vadd.f32 %v1863, %v1864
      %v1866 = vrcp.pop 324.0
      %v1867 = vmul.f32 %v1865, %v1866
      %v1868 = vsub.f32 %v1737, %v1867
      %v1869 = vsub.f32 %v1738, %v1867
      %v1870 = vsub.f32 %v1739, %v1867
      %v1871 = vsub.f32 %v1740, %v1867
      %v1872 = vsub.f32 %v1741, %v1867
      %v1873 = vsub.f32 %v1742, %v1867
      %v1874 = vsub.f32 %v1743, %v1867
      %v1875 = vsub.f32 %v1744, %v1867
      %v1876 = vsub.f32 %v1745, %v1867
      %v1877 = vsub.f32 %v1746, %v1867
      %v1878 = vsub.f32 %v1747, %v1867
      %v1879 = vsub.f32 %v1748, %v1867
      %v1880 = vsub.f32 %v1749, %v1867
      %v1881 = vsub.f32 %v1750, %v1867
      %v1882 = vsub.f32 %v1751, %v1867
      %v1883 = vsub.f32 %v1752, %v1867
      %v1884 = vsub.f32 %v1753, %v1867
      %v1885 = vsub.f32 %v1754, %v1867
      %v1886 = vsub.f32 %v1755, %v1867
      %v1887 = vsub.f32 %v1756, %v1867
      %v1888 = vsub.f32 %v1757, %v1867
      %v1889 = vsub.f32 %v1758, %v1867
      %v1890 = vsub.f32 %v1759, %v1867
      %v1891 = vsub.f32 %v1760, %v1867
      %v1892 = vsub.f32 %v1761, %v1867
      %v1893 = vsub.f32 %v1762, %v1867
      %v1894 = vsub.f32 %v1763, %v1867
      %v1895 = vsub.f32 %v1764, %v1867
      %v1896 = vsub.f32 %v1765, %v1867
      %v1897 = vsub.f32 %v1766, %v1867
      %v1898 = vsub.f32 %v1767, %v1867
      %v1899 = vsub.f32 %v1768, %v1867
      %v1900 = vsub.f32 %v1769, %v1867
      %v1901 = vsub.f32 %v1770, %v1867
      %v1902 = vsub.f32 %v1771, %v1867
      %v1903 = vsub.f32 %v1772, %v1867
      %v1904 = vsub.f32 %v1773, %v1867
      %v1905 = vsub.f32 %v1774, %v1867
      %v1906 = vsub.f32 %v1775, %v1867
      %v1907 = vsub.f32 %v1776, %v1867
      %v1908 = vsub.f32 %v1777, %v1867
      %v1909 = vmul.f32 %v1868, %v1868
      %v1910 = vmul.f32 %v1869, %v1869
      %v1911 = vmul.f32 %v1870, %v1870
      %v1912 = vmul.f32 %v1871, %v1871
      %v1913 = vmul.f32 %v1872, %v1872
      %v1914 = vmul.f32 %v1873, %v1873
      %v1915 = vmul.f32 %v1874, %v1874
      %v1916 = vmul.f32 %v1875, %v1875
      %v1917 = vmul.f32 %v1876, %v1876
      %v1918 = vmul.f32 %v1877, %v1877
      %v1919 = vmul.f32 %v1878, %v1878
      %v1920 = vmul.f32 %v1879, %v1879
      %v1921 = vmul.f32 %v1880, %v1880
      %v1922 = vmul.f32 %v1881, %v1881
      %v1923 = vmul.f32 %v1882, %v1882
      %v1924 = vmul.f32 %v1883, %v1883
      %v1925 = vmul.f32 %v1884, %v1884
      %v1926 = vmul.f32 %v1885, %v1885
      %v1927 = vmul.f32 %v1886, %v1886
      %v1928 = vmul.f32 %v1887, %v1887
      %v1929 = vmul.f32 %v1888, %v1888
      %v1930 = vmul.f32 %v1889, %v1889
      %v1931 = vmul.f32 %v1890, %v1890
      %v1932 = vmul.f32 %v1891, %v1891
      %v1933 = vmul.f32 %v1892, %v1892
      %v1934 = vmul.f32 %v1893, %v1893
      %v1935 = vmul.f32 %v1894, %v1894
      %v1936 = vmul.f32 %v1895, %v1895
      %v1937 = vmul.f32 %v1896, %v1896
      %v1938 = vmul.f32 %v1897, %v1897
      %v1939 = vmul.f32 %v1898, %v1898
      %v1940 = vmul.f32 %v1899, %v1899
      %v1941 = vmul.f32 %v1900, %v1900
      %v1942 = vmul.f32 %v1901, %v1901
      %v1943 = vmul.f32 %v1902, %v1902
      %v1944 = vmul.f32 %v1903, %v1903
      %v1945 = vmul.f32 %v1904, %v1904
      %v1946 = vmul.f32 %v1905, %v1905
      %v1947 = vmul.f32 %v1906, %v1906
      %v1948 = vmul.f32 %v1907, %v1907
      %v1949 = vmul.f32 %v1908, %v1908
      %v1950 = vsel %vm1073, %v1909, 0.0
      %v1951 = vsel %vm1073, %v1910, 0.0
      %v1952 = vadd.f32 %v1950, %v1951
      %v1953 = vsel %vm1073, %v1911, 0.0
      %v1954 = vadd.f32 %v1952, %v1953
      %v1955 = vsel %vm1073, %v1912, 0.0
      %v1956 = vadd.f32 %v1954, %v1955
      %v1957 = vsel %vm1073, %v1913, 0.0
      %v1958 = vadd.f32 %v1956, %v1957
      %v1959 = vsel %vm1073, %v1914, 0.0
      %v1960 = vadd.f32 %v1958, %v1959
      %v1961 = vsel %vm1073, %v1915, 0.0
      %v1962 = vadd.f32 %v1960, %v1961
      %v1963 = vsel %vm1073, %v1916, 0.0
      %v1964 = vadd.f32 %v1962, %v1963
      %v1965 = vsel %vm1073, %v1917, 0.0
      %v1966 = vadd.f32 %v1964, %v1965
      %v1967 = vsel %vm1073, %v1918, 0.0
      %v1968 = vadd.f32 %v1966, %v1967
      %v1969 = vsel %vm1073, %v1919, 0.0
      %v1970 = vadd.f32 %v1968, %v1969
      %v1971 = vsel %vm1073, %v1920, 0.0
      %v1972 = vadd.f32 %v1970, %v1971
      %v1973 = vsel %vm1073, %v1921, 0.0
      %v1974 = vadd.f32 %v1972, %v1973
      %v1975 = vsel %vm1073, %v1922, 0.0
      %v1976 = vadd.f32 %v1974, %v1975
      %v1977 = vsel %vm1073, %v1923, 0.0
      %v1978 = vadd.f32 %v1976, %v1977
      %v1979 = vsel %vm1073, %v1924, 0.0
      %v1980 = vadd.f32 %v1978, %v1979
      %v1981 = vsel %vm1073, %v1925, 0.0
      %v1982 = vadd.f32 %v1980, %v1981
      %v1983 = vsel %vm1073, %v1926, 0.0
      %v1984 = vadd.f32 %v1982, %v1983
      %v1985 = vsel %vm1073, %v1927, 0.0
      %v1986 = vadd.f32 %v1984, %v1985
      %v1987 = vsel %vm1073, %v1928, 0.0
      %v1988 = vadd.f32 %v1986, %v1987
      %v1989 = vsel %vm1073, %v1929, 0.0
      %v1990 = vadd.f32 %v1988, %v1989
      %v1991 = vsel %vm1073, %v1930, 0.0
      %v1992 = vadd.f32 %v1990, %v1991
      %v1993 = vsel %vm1073, %v1931, 0.0
      %v1994 = vadd.f32 %v1992, %v1993
      %v1995 = vsel %vm1073, %v1932, 0.0
      %v1996 = vadd.f32 %v1994, %v1995
      %v1997 = vsel %vm1073, %v1933, 0.0
      %v1998 = vadd.f32 %v1996, %v1997
      %v1999 = vsel %vm1073, %v1934, 0.0
      %v2000 = vadd.f32 %v1998, %v1999
      %v2001 = vsel %vm1073, %v1935, 0.0
      %v2002 = vadd.f32 %v2000, %v2001
      %v2003 = vsel %vm1073, %v1936, 0.0
      %v2004 = vadd.f32 %v2002, %v2003
      %v2005 = vsel %vm1073, %v1937, 0.0
      %v2006 = vadd.f32 %v2004, %v2005
      %v2007 = vsel %vm1073, %v1938, 0.0
      %v2008 = vadd.f32 %v2006, %v2007
      %v2009 = vsel %vm1073, %v1939, 0.0
      %v2010 = vadd.f32 %v2008, %v2009
      %v2011 = vsel %vm1073, %v1940, 0.0
      %v2012 = vadd.f32 %v2010, %v2011
      %v2013 = vsel %vm1073, %v1941, 0.0
      %v2014 = vadd.f32 %v2012, %v2013
      %v2015 = vsel %vm1073, %v1942, 0.0
      %v2016 = vadd.f32 %v2014, %v2015
      %v2017 = vsel %vm1073, %v1943, 0.0
      %v2018 = vadd.f32 %v2016, %v2017
      %v2019 = vsel %vm1073, %v1944, 0.0
      %v2020 = vadd.f32 %v2018, %v2019
      %v2021 = vsel %vm1073, %v1945, 0.0
      %v2022 = vadd.f32 %v2020, %v2021
      %v2023 = vsel %vm1073, %v1946, 0.0
      %v2024 = vadd.f32 %v2022, %v2023
      %v2025 = vsel %vm1073, %v1947, 0.0
      %v2026 = vadd.f32 %v2024, %v2025
      %v2027 = vsel %vm1073, %v1948, 0.0
      %v2028 = vadd.f32 %v2026, %v2027
      %v2029 = vsel %vm1857, %v1949, 0.0
      %v2030 = vadd.f32 %v2028, %v2029
      %v2031 = vrot.slane %v2030, 4
      %v2032 = vadd.f32 %v2030, %v2031
      %v2033 = vrot.slane %v2032, 2
      %v2034 = vadd.f32 %v2032, %v2033
      %v2035 = vrot.slane %v2034, 1
      %v2036 = vadd.f32 %v2034, %v2035
      %v2037 = vmul.f32 %v2036, %v1866
      %v2038 = vadd.f32 %v2037, 1e-05
      %v2039 = vrsqrt.pop %v2038
      %v2040 = vmul.f32 %v1868, %v2039
      %v2041 = vmul.f32 %v1869, %v2039
      %v2042 = vmul.f32 %v1870, %v2039
      %v2043 = vmul.f32 %v1871, %v2039
      %v2044 = vmul.f32 %v1872, %v2039
      %v2045 = vmul.f32 %v1873, %v2039
      %v2046 = vmul.f32 %v1874, %v2039
      %v2047 = vmul.f32 %v1875, %v2039
      %v2048 = vmul.f32 %v1876, %v2039
      %v2049 = vmul.f32 %v1877, %v2039
      %v2050 = vmul.f32 %v1878, %v2039
      %v2051 = vmul.f32 %v1879, %v2039
      %v2052 = vmul.f32 %v1880, %v2039
      %v2053 = vmul.f32 %v1881, %v2039
      %v2054 = vmul.f32 %v1882, %v2039
      %v2055 = vmul.f32 %v1883, %v2039
      %v2056 = vmul.f32 %v1884, %v2039
      %v2057 = vmul.f32 %v1885, %v2039
      %v2058 = vmul.f32 %v1886, %v2039
      %v2059 = vmul.f32 %v1887, %v2039
      %v2060 = vmul.f32 %v1888, %v2039
      %v2061 = vmul.f32 %v1889, %v2039
      %v2062 = vmul.f32 %v1890, %v2039
      %v2063 = vmul.f32 %v1891, %v2039
      %v2064 = vmul.f32 %v1892, %v2039
      %v2065 = vmul.f32 %v1893, %v2039
      %v2066 = vmul.f32 %v1894, %v2039
      %v2067 = vmul.f32 %v1895, %v2039
      %v2068 = vmul.f32 %v1896, %v2039
      %v2069 = vmul.f32 %v1897, %v2039
      %v2070 = vmul.f32 %v1898, %v2039
      %v2071 = vmul.f32 %v1899, %v2039
      %v2072 = vmul.f32 %v1900, %v2039
      %v2073 = vmul.f32 %v1901, %v2039
      %v2074 = vmul.f32 %v1902, %v2039
      %v2075 = vmul.f32 %v1903, %v2039
      %v2076 = vmul.f32 %v1904, %v2039
      %v2077 = vmul.f32 %v1905, %v2039
      %v2078 = vmul.f32 %v1906, %v2039
      %v2079 = vmul.f32 %v1907, %v2039
      %v2080 = vmul.f32 %v1908, %v2039
      %2081 = vst.msk [vmem:[%s143] sm:$0xff] %vm1073, %v2040
      %2082 = vst.msk [vmem:[%s143 + $0x8] sm:$0xff] %vm1073, %v2041
      %2083 = vst.msk [vmem:[%s143 + $0x10] sm:$0xff] %vm1073, %v2042
      %2084 = vst.msk [vmem:[%s143 + $0x18] sm:$0xff] %vm1073, %v2043
      %2085 = vst.msk [vmem:[%s143 + $0x20] sm:$0xff] %vm1073, %v2044
      %2086 = vst.msk [vmem:[%s143 + $0x28] sm:$0xff] %vm1073, %v2045
      %2087 = vst.msk [vmem:[%s143 + $0x30] sm:$0xff] %vm1073, %v2046
      %2088 = vst.msk [vmem:[%s143 + $0x38] sm:$0xff] %vm1073, %v2047
      %2089 = vst.msk [vmem:[%s143 + $0x40] sm:$0xff] %vm1073, %v2048
      %2090 = vst.msk [vmem:[%s143 + $0x48] sm:$0xff] %vm1073, %v2049
      %2091 = vst.msk [vmem:[%s143 + $0x50] sm:$0xff] %vm1073, %v2050
      %2092 = vst.msk [vmem:[%s143 + $0x58] sm:$0xff] %vm1073, %v2051
      %2093 = vst.msk [vmem:[%s143 + $0x60] sm:$0xff] %vm1073, %v2052
      %2094 = vst.msk [vmem:[%s143 + $0x68] sm:$0xff] %vm1073, %v2053
      %2095 = vst.msk [vmem:[%s143 + $0x70] sm:$0xff] %vm1073, %v2054
      %2096 = vst.msk [vmem:[%s143 + $0x78] sm:$0xff] %vm1073, %v2055
      %2097 = vst.msk [vmem:[%s143 + $0x80] sm:$0xff] %vm1073, %v2056
      %2098 = vst.msk [vmem:[%s143 + $0x88] sm:$0xff] %vm1073, %v2057
      %2099 = vst.msk [vmem:[%s143 + $0x90] sm:$0xff] %vm1073, %v2058
      %2100 = vst.msk [vmem:[%s143 + $0x98] sm:$0xff] %vm1073, %v2059
      %2101 = vst.msk [vmem:[%s143 + $0xa0] sm:$0xff] %vm1073, %v2060
      %2102 = vst.msk [vmem:[%s143 + $0xa8] sm:$0xff] %vm1073, %v2061
      %2103 = vst.msk [vmem:[%s143 + $0xb0] sm:$0xff] %vm1073, %v2062
      %2104 = vst.msk [vmem:[%s143 + $0xb8] sm:$0xff] %vm1073, %v2063
      %2105 = vst.msk [vmem:[%s143 + $0xc0] sm:$0xff] %vm1073, %v2064
      %2106 = vst.msk [vmem:[%s143 + $0xc8] sm:$0xff] %vm1073, %v2065
      %2107 = vst.msk [vmem:[%s143 + $0xd0] sm:$0xff] %vm1073, %v2066
      %2108 = vst.msk [vmem:[%s143 + $0xd8] sm:$0xff] %vm1073, %v2067
      %2109 = vst.msk [vmem:[%s143 + $0xe0] sm:$0xff] %vm1073, %v2068
      %2110 = vst.msk [vmem:[%s143 + $0xe8] sm:$0xff] %vm1073, %v2069
      %2111 = vst.msk [vmem:[%s143 + $0xf0] sm:$0xff] %vm1073, %v2070
      %2112 = vst.msk [vmem:[%s143 + $0xf8] sm:$0xff] %vm1073, %v2071
      %2113 = vst.msk [vmem:[%s143 + $0x100] sm:$0xff] %vm1073, %v2072
      %2114 = vst.msk [vmem:[%s143 + $0x108] sm:$0xff] %vm1073, %v2073
      %2115 = vst.msk [vmem:[%s143 + $0x110] sm:$0xff] %vm1073, %v2074
      %2116 = vst.msk [vmem:[%s143 + $0x118] sm:$0xff] %vm1073, %v2075
      %2117 = vst.msk [vmem:[%s143 + $0x120] sm:$0xff] %vm1073, %v2076
      %2118 = vst.msk [vmem:[%s143 + $0x128] sm:$0xff] %vm1073, %v2077
      %2119 = vst.msk [vmem:[%s143 + $0x130] sm:$0xff] %vm1073, %v2078
      %2120 = vst.msk [vmem:[%s143 + $0x138] sm:$0xff] %vm1073, %v2079
      %2121 = vst.msk [vmem:[%s143 + $0x140] sm:$0xf] %vm1857, %v2080
      %p2122 = scmp.lt.s32.totalorder %s13, 1
      %s2123 = scalar_select %p2122, %s13, 1
      %s2124 = smul.addr %s2123, 41
      %s2125 = smul.addr %s2124, 8
      %s2126 = scalar_lea.vmem %s2, %s2125
      // Predicated region
      $region29: #{base_discriminator_forward.8} parent=27 // pred_check
        %p2127 = pneg %p78
      $region30: #{base_discriminator_forward.8} parent=27 // pred_check_branch
        %2129 = sbr.rel (%p2127) target = $region32
      $region31: #{base_discriminator_forward.8} parent=27 // pred_region
        _
      $region32: #{base_discriminator_forward.8} parent=27 // pred_fallthru
        _
    $region28: #{base_discriminator_forward.8} parent=5 // pred_fallthru
      _
    %p2130 = scmp.le.s32.totalorder 2, %s8
    // Predicated region
    $region33: #{base_discriminator_forward.8} parent=5 // pred_check
      %p2131 = pneg %p2130
    $region34: #{base_discriminator_forward.8} parent=5 // pred_check_branch
      %2133 = sbr.rel (%p2131) target = $region36
    $region35: #{base_discriminator_forward.8} parent=5 // pred_region
      %s2134 = ssub.s32 %s8, 2
      // Predicated region
      $region37: #{base_discriminator_forward.8} parent=35 // pred_check
        %p2135 = pneg %p84
      $region38: #{base_discriminator_forward.8} parent=35 // pred_check_branch
        %2137 = sbr.rel (%p2135) target = $region40
      $region39: #{base_discriminator_forward.8} parent=35 // pred_region
        %p2138 = scmp.lt.s32.totalorder %s14, 1
        %s2139 = scalar_select %p2138, %s14, 1
        %s2140 = smul.addr %s2139, 41
        %s2141 = smul.addr %s2140, 8
        %s2142 = scalar_lea.vmem %s2, %s2141
      $region40: #{base_discriminator_forward.8} parent=35 // pred_fallthru
        _
    $region36: #{base_discriminator_forward.8} parent=5 // pred_fallthru
      _
  $region6: #{base_discriminator_forward.8} parent=0 // loop_footer
    %s12 = sadd.s32 1, %s8
  $region7: #{base_discriminator_forward.8} parent=0 // loop_footer_branch
    %7 = sbr.rel target = $region3
  $region8: #{base_discriminator_forward.8} parent=0 // loop_exit
    _

// kernel: base_discriminator_forward.9
$region0: #{base_discriminator_forward.9}
  #allocation0 [shape = 'u32[]', space=smem, size = 0x4, offset = 0x4, fixed_abs, tag = 'smem constant byte address 0x4 - core index']
  #allocation1 [shape = 'u32[144,128]{1,0:T(1,128)}', space=vmem, size = 0x12000, scoped, tag = 'internal scratch']
  %s0 = inlined_call_operand.vmem [shape: bf16[2,256,576], index: 0, kind: input, shape index: {}]
  %s1 = inlined_call_operand.vmem [shape: bf16[576,64], index: 1, kind: input, shape index: {}]
  %s2 = inlined_call_operand.vmem [shape: f32[2,256,64], index: 2, kind: output, shape index: {}]
  %s3 = sld [smem:[#allocation0]]
  $region41: #{base_discriminator_forward.9} parent=0
    _
  %s5 = ssub.s32 1, %s3
  %s6 = scalar_select 0, %s5, %s3
  loop: start=0, step=1, limit=4
  $region2: #{base_discriminator_forward.9} parent=0 // loop_pre_header
    _
  $region3: #{base_discriminator_forward.9} parent=0 // loop_header
    %s8 = sphi 0, %s12
    %p9 = scmp.ge.s32.totalorder %s8, 4
    %s18 = sphi 0, %s20
    %s21 = sphi 0, %s18
    %s22 = sphi 0, %s21
    %s38 = sphi 0, %s22
    %s42 = sphi 0, %s42
    %s44 = sphi 0, %s42
    %s45 = sphi 0, %s44
    %s59 = sphi 0, %s45
    %s65 = sphi 0, %s67
    %s68 = sphi 0, %s65
    %s69 = sphi 0, %s68
    %s85 = sphi 0, %s69
  $region4: #{base_discriminator_forward.9} parent=0 // loop_header_branch
    %11 = sbr.rel (%p9) target = $region8
  $region5: #{base_discriminator_forward.9} parent=0 // loop_body
    %s13 = ssub.s32 %s8, 1
    %s14 = ssub.s32 %s8, 2
    %s15 = sadd.s32 %s8, 1
    %s16 = ssub.s32 %s8, %s15
    %p17 = scmp.eq.s32.totalorder %s16, 0
    %s19 = sadd.s32 %s18, 1
    %s20 = scalar_select %p17, %s18, %s19
    %p23 = pneg %p17
    %p24 = scmp.eq.s32.totalorder %s8, 1
    %p25 = por %p23, %p24
    %p26 = scmp.ne.s32.totalorder %s18, %s21
    %p27 = scmp.eq.s32.totalorder %s8, 0
    %p28 = por %p26, %p27
    %p29 = scmp.ne.s32.totalorder %s18, %s21
    %p30 = scmp.eq.s32.totalorder %s13, 1
    %p31 = por %p29, %p30
    %p32 = scmp.ne.s32.totalorder %s21, %s22
    %p33 = scmp.eq.s32.totalorder %s13, 0
    %p34 = por %p32, %p33
    %p35 = scmp.ne.s32.totalorder %s21, %s22
    %p36 = scmp.eq.s32.totalorder %s14, 1
    %p37 = por %p35, %p36
    %p39 = scmp.ne.s32.totalorder %s22, %s38
    %p40 = scmp.eq.s32.totalorder %s14, 0
    %p41 = por %p39, %p40
    %s43 = sadd.s32 %s42, 1
    %p46 = scmp.eq.s32.totalorder %s8, 1
    %p47 = scmp.ne.s32.totalorder %s42, %s44
    %p48 = scmp.eq.s32.totalorder %s8, 0
    %p49 = por %p47, %p48
    %p50 = scmp.ne.s32.totalorder %s42, %s44
    %p51 = scmp.eq.s32.totalorder %s13, 1
    %p52 = por %p50, %p51
    %p53 = scmp.ne.s32.totalorder %s44, %s45
    %p54 = scmp.eq.s32.totalorder %s13, 0
    %p55 = por %p53, %p54
    %p56 = scmp.ne.s32.totalorder %s44, %s45
    %p57 = scmp.eq.s32.totalorder %s14, 1
    %p58 = por %p56, %p57
    %p60 = scmp.ne.s32.totalorder %s45, %s59
    %p61 = scmp.eq.s32.totalorder %s14, 0
    %p62 = por %p60, %p61
    %s63 = ssub.s32 %s8, %s15
    %p64 = scmp.eq.s32.totalorder %s63, 0
    %s66 = sadd.s32 %s65, 1
    %s67 = scalar_select %p64, %s65, %s66
    %p70 = pneg %p64
    %p71 = scmp.eq.s32.totalorder %s8, 1
    %p72 = por %p70, %p71
    %p73 = scmp.ne.s32.totalorder %s65, %s68
    %p74 = scmp.eq.s32.totalorder %s8, 0
    %p75 = por %p73, %p74
    %p76 = scmp.ne.s32.totalorder %s65, %s68
    %p77 = scmp.eq.s32.totalorder %s13, 1
    %p78 = por %p76, %p77
    %p79 = scmp.ne.s32.totalorder %s68, %s69
    %p80 = scmp.eq.s32.totalorder %s13, 0
    %p81 = por %p79, %p80
    %p82 = scmp.ne.s32.totalorder %s68, %s69
    %p83 = scmp.eq.s32.totalorder %s14, 1
    %p84 = por %p82, %p83
    %p86 = scmp.ne.s32.totalorder %s69, %s85
    %p87 = scmp.eq.s32.totalorder %s14, 0
    %p88 = por %p86, %p87
    %p89 = scmp.le.s32.totalorder 1, %s8
    %p90 = scmp.lt.s32.totalorder %s8, 3
    %p91 = pnand %p89, %p90
    %p92 = pneg %p91
    // Predicated region
    $region9: #{base_discriminator_forward.9} parent=5 // pred_check
      _
    $region10: #{base_discriminator_forward.9} parent=5 // pred_check_branch
      %94 = sbr.rel (%p91) target = $region12
    $region11: #{base_discriminator_forward.9} parent=5 // pred_region
      %s95 = ssub.s32 %s8, 1
      // Predicated region
      $region13: #{base_discriminator_forward.9} parent=11 // pred_check
        %p96 = pneg %p55
      $region14: #{base_discriminator_forward.9} parent=11 // pred_check_branch
        %98 = sbr.rel (%p96) target = $region16
      $region15: #{base_discriminator_forward.9} parent=11 // pred_region
        _
      $region16: #{base_discriminator_forward.9} parent=11 // pred_fallthru
        _
    $region12: #{base_discriminator_forward.9} parent=5 // pred_fallthru
      _
    %p99 = scmp.lt.s32.totalorder %s8, 2
    // Predicated region
    $region17: #{base_discriminator_forward.9} parent=5 // pred_check
      %p100 = pneg %p99
    $region18: #{base_discriminator_forward.9} parent=5 // pred_check_branch
      %102 = sbr.rel (%p100) target = $region20
    $region19: #{base_discriminator_forward.9} parent=5 // pred_region
      // Predicated region
      $region21: #{base_discriminator_forward.9} parent=19 // pred_check
        %p103 = pneg %p28
      $region22: #{base_discriminator_forward.9} parent=19 // pred_check_branch
        %105 = sbr.rel (%p103) target = $region24
      $region23: #{base_discriminator_forward.9} parent=19 // pred_region
        %p106 = scmp.lt.s32.totalorder %s8, 1
        %s107 = scalar_select %p106, %s8, 1
        %s108 = smul.addr %s107, 160
        %s109 = smul.addr %s108, 4
        %s110 = scalar_lea.vmem %s0, %s109
      $region24: #{base_discriminator_forward.9} parent=19 // pred_fallthru
        _
    $region20: #{base_discriminator_forward.9} parent=5 // pred_fallthru
      _
    %p111 = scmp.le.s32.totalorder 1, %s8
    %p112 = scmp.lt.s32.totalorder %s8, 3
    %p113 = pnand %p111, %p112
    %p114 = pneg %p113
    // Predicated region
    $region25: #{base_discriminator_forward.9} parent=5 // pred_check
      _
    $region26: #{base_discriminator_forward.9} parent=5 // pred_check_branch
      %116 = sbr.rel (%p113) target = $region28
    $region27: #{base_discriminator_forward.9} parent=5 // pred_region
      %s117 = ssub.s32 %s8, 1
      %p118 = scmp.lt.s32.totalorder %s13, 1
      %s119 = scalar_select %p118, %s13, 1
      %s120 = smul.addr %s119, 160
      %s121 = smul.addr %s120, 4
      %s122 = scalar_lea.vmem %s0, %s121
      %p123 = pneg %p34
      %p124 = pneg %p31
      %p125 = pneg %p55
      %p126 = pneg %p52
      %p127 = pneg %p81
      %p128 = pneg %p78
      %p129 = scmp.lt.s32.totalorder %s13, 1
      %s130 = scalar_select %p129, %s13, 1
      %s131 = smul.addr %s130, 32
      %s132 = smul.addr %s131, 8
      %s133 = scalar_lea.vmem %s2, %s132
      %p134 = scmp.lt.s32.totalorder %s13, 1
      %s135 = scalar_select %p134, %s13, 1
      %s136 = smul.addr %s135, 160
      %s137 = smul.addr %s136, 4
      %s138 = scalar_lea.vmem %s0, %s137
      %p139 = scmp.lt.s32.totalorder %s13, 1
      %s140 = scalar_select %p139, %s13, 1
      %s141 = smul.addr %s140, 32
      %s142 = smul.addr %s141, 8
      %s143 = scalar_lea.vmem %s2, %s142
      %v145 = vld [vmem:[%s138] sm:$0xff]
      %v146 = vld [vmem:[%s138 + $0x8] sm:$0xff]
      %v147 = vld [vmem:[%s138 + $0x10] sm:$0xf]
      %v148 = vld [vmem:[%s138 + $0x14] sm:$0xff]
      %v149 = vld [vmem:[%s138 + $0x1c] sm:$0xff]
      %v150 = vld [vmem:[%s138 + $0x24] sm:$0xf]
      %v151 = vld [vmem:[%s138 + $0x28] sm:$0xff]
      %v152 = vld [vmem:[%s138 + $0x30] sm:$0xff]
      %v153 = vld [vmem:[%s138 + $0x38] sm:$0xf]
      %v154 = vld [vmem:[%s138 + $0x3c] sm:$0xff]
      %v155 = vld [vmem:[%s138 + $0x44] sm:$0xff]
      %v156 = vld [vmem:[%s138 + $0x4c] sm:$0xf]
      %v157 = vld [vmem:[%s138 + $0x50] sm:$0xff]
      %v158 = vld [vmem:[%s138 + $0x58] sm:$0xff]
      %v159 = vld [vmem:[%s138 + $0x60] sm:$0xf]
      %v160 = vld [vmem:[%s138 + $0x64] sm:$0xff]
      %v161 = vld [vmem:[%s138 + $0x6c] sm:$0xff]
      %v162 = vld [vmem:[%s138 + $0x74] sm:$0xf]
      %v163 = vld [vmem:[%s138 + $0x78] sm:$0xff]
      %v164 = vld [vmem:[%s138 + $0x80] sm:$0xff]
      %v165 = vld [vmem:[%s138 + $0x88] sm:$0xf]
      %v166 = vld [vmem:[%s138 + $0x8c] sm:$0xff]
      %v167 = vld [vmem:[%s138 + $0x94] sm:$0xff]
      %v168 = vld [vmem:[%s138 + $0x9c] sm:$0xf]
      %v169 = vld [vmem:[%s138 + $0xa0] sm:$0xff]
      %v170 = vld [vmem:[%s138 + $0xa8] sm:$0xff]
      %v171 = vld [vmem:[%s138 + $0xb0] sm:$0xf]
      %v172 = vld [vmem:[%s138 + $0xb4] sm:$0xff]
      %v173 = vld [vmem:[%s138 + $0xbc] sm:$0xff]
      %v174 = vld [vmem:[%s138 + $0xc4] sm:$0xf]
      %v175 = vld [vmem:[%s138 + $0xc8] sm:$0xff]
      %v176 = vld [vmem:[%s138 + $0xd0] sm:$0xff]
      %v177 = vld [vmem:[%s138 + $0xd8] sm:$0xf]
      %v178 = vld [vmem:[%s138 + $0xdc] sm:$0xff]
      %v179 = vld [vmem:[%s138 + $0xe4] sm:$0xff]
      %v180 = vld [vmem:[%s138 + $0xec] sm:$0xf]
      %v181 = vld [vmem:[%s138 + $0xf0] sm:$0xff]
      %v182 = vld [vmem:[%s138 + $0xf8] sm:$0xff]
      %v183 = vld [vmem:[%s138 + $0x100] sm:$0xf]
      %v184 = vld [vmem:[%s138 + $0x104] sm:$0xff]
      %v185 = vld [vmem:[%s138 + $0x10c] sm:$0xff]
      %v186 = vld [vmem:[%s138 + $0x114] sm:$0xf]
      %v187 = vld [vmem:[%s138 + $0x118] sm:$0xff]
      %v188 = vld [vmem:[%s138 + $0x120] sm:$0xff]
      %v189 = vld [vmem:[%s138 + $0x128] sm:$0xf]
      %v190 = vld [vmem:[%s138 + $0x12c] sm:$0xff]
      %v191 = vld [vmem:[%s138 + $0x134] sm:$0xff]
      %v192 = vld [vmem:[%s138 + $0x13c] sm:$0xf]
      %v193 = vld [vmem:[%s138 + $0x140] sm:$0xff]
      %v194 = vld [vmem:[%s138 + $0x148] sm:$0xff]
      %v195 = vld [vmem:[%s138 + $0x150] sm:$0xf]
      %v196 = vld [vmem:[%s138 + $0x154] sm:$0xff]
      %v197 = vld [vmem:[%s138 + $0x15c] sm:$0xff]
      %v198 = vld [vmem:[%s138 + $0x164] sm:$0xf]
      %v199 = vld [vmem:[%s138 + $0x168] sm:$0xff]
      %v200 = vld [vmem:[%s138 + $0x170] sm:$0xff]
      %v201 = vld [vmem:[%s138 + $0x178] sm:$0xf]
      %v202 = vld [vmem:[%s138 + $0x17c] sm:$0xff]
      %v203 = vld [vmem:[%s138 + $0x184] sm:$0xff]
      %v204 = vld [vmem:[%s138 + $0x18c] sm:$0xf]
      %v205 = vld [vmem:[%s138 + $0x190] sm:$0xff]
      %v206 = vld [vmem:[%s138 + $0x198] sm:$0xff]
      %v207 = vld [vmem:[%s138 + $0x1a0] sm:$0xf]
      %v208 = vld [vmem:[%s138 + $0x1a4] sm:$0xff]
      %v209 = vld [vmem:[%s138 + $0x1ac] sm:$0xff]
      %v210 = vld [vmem:[%s138 + $0x1b4] sm:$0xf]
      %v211 = vld [vmem:[%s138 + $0x1b8] sm:$0xff]
      %v212 = vld [vmem:[%s138 + $0x1c0] sm:$0xff]
      %v213 = vld [vmem:[%s138 + $0x1c8] sm:$0xf]
      %v214 = vld [vmem:[%s138 + $0x1cc] sm:$0xff]
      %v215 = vld [vmem:[%s138 + $0x1d4] sm:$0xff]
      %v216 = vld [vmem:[%s138 + $0x1dc] sm:$0xf]
      %v217 = vld [vmem:[%s138 + $0x1e0] sm:$0xff]
      %v218 = vld [vmem:[%s138 + $0x1e8] sm:$0xff]
      %v219 = vld [vmem:[%s138 + $0x1f0] sm:$0xf]
      %v220 = vld [vmem:[%s138 + $0x1f4] sm:$0xff]
      %v221 = vld [vmem:[%s138 + $0x1fc] sm:$0xff]
      %v222 = vld [vmem:[%s138 + $0x204] sm:$0xf]
      %v223 = vld [vmem:[%s138 + $0x208] sm:$0xff]
      %v224 = vld [vmem:[%s138 + $0x210] sm:$0xff]
      %v225 = vld [vmem:[%s138 + $0x218] sm:$0xf]
      %v226 = vld [vmem:[%s138 + $0x21c] sm:$0xff]
      %v227 = vld [vmem:[%s138 + $0x224] sm:$0xff]
      %v228 = vld [vmem:[%s138 + $0x22c] sm:$0xf]
      %v229 = vld [vmem:[%s138 + $0x230] sm:$0xff]
      %v230 = vld [vmem:[%s138 + $0x238] sm:$0xff]
      %v231 = vld [vmem:[%s138 + $0x240] sm:$0xf]
      %v232 = vld [vmem:[%s138 + $0x244] sm:$0xff]
      %v233 = vld [vmem:[%s138 + $0x24c] sm:$0xff]
      %v234 = vld [vmem:[%s138 + $0x254] sm:$0xf]
      %v235 = vld [vmem:[%s138 + $0x258] sm:$0xff]
      %v236 = vld [vmem:[%s138 + $0x260] sm:$0xff]
      %v237 = vld [vmem:[%s138 + $0x268] sm:$0xf]
      %v238 = vld [vmem:[%s138 + $0x26c] sm:$0xff]
      %v239 = vld [vmem:[%s138 + $0x274] sm:$0xff]
      %v240 = vld [vmem:[%s138 + $0x27c] sm:$0xf]
      %v241 = vld [vmem:[%s1] sm:$0xf]
      %v242 = vld [vmem:[%s1 + $0x4] sm:$0xf]
      %v243 = vld [vmem:[%s1 + $0x8] sm:$0xf]
      %v244 = vld [vmem:[%s1 + $0xc] sm:$0xf]
      %v245 = vld [vmem:[%s1 + $0x10] sm:$0xf]
      %v246 = vld [vmem:[%s1 + $0x14] sm:$0xf]
      %v247 = vld [vmem:[%s1 + $0x18] sm:$0xf]
      %v248 = vld [vmem:[%s1 + $0x1c] sm:$0xf]
      %v249 = vld [vmem:[%s1 + $0x20] sm:$0xf]
      %v250 = vld [vmem:[%s1 + $0x24] sm:$0xf]
      %v251 = vld [vmem:[%s1 + $0x28] sm:$0xf]
      %v252 = vld [vmem:[%s1 + $0x2c] sm:$0xf]
      %v253 = vld [vmem:[%s1 + $0x30] sm:$0xf]
      %v254 = vld [vmem:[%s1 + $0x34] sm:$0xf]
      %v255 = vld [vmem:[%s1 + $0x38] sm:$0xf]
      %v256 = vld [vmem:[%s1 + $0x3c] sm:$0xf]
      %v257 = vld [vmem:[%s1 + $0x40] sm:$0xf]
      %v258 = vld [vmem:[%s1 + $0x44] sm:$0xf]
      %v259 = vld [vmem:[%s1 + $0x48] sm:$0xf]
      %v260 = vld [vmem:[%s1 + $0x4c] sm:$0xf]
      %v261 = vld [vmem:[%s1 + $0x50] sm:$0xf]
      %v262 = vld [vmem:[%s1 + $0x54] sm:$0xf]
      %v263 = vld [vmem:[%s1 + $0x58] sm:$0xf]
      %v264 = vld [vmem:[%s1 + $0x5c] sm:$0xf]
      %v265 = vld [vmem:[%s1 + $0x60] sm:$0xf]
      %v266 = vld [vmem:[%s1 + $0x64] sm:$0xf]
      %v267 = vld [vmem:[%s1 + $0x68] sm:$0xf]
      %v268 = vld [vmem:[%s1 + $0x6c] sm:$0xf]
      %v269 = vld [vmem:[%s1 + $0x70] sm:$0xf]
      %v270 = vld [vmem:[%s1 + $0x74] sm:$0xf]
      %v271 = vld [vmem:[%s1 + $0x78] sm:$0xf]
      %v272 = vld [vmem:[%s1 + $0x7c] sm:$0xf]
      %v273 = vld [vmem:[%s1 + $0x80] sm:$0xf]
      %v274 = vld [vmem:[%s1 + $0x84] sm:$0xf]
      %v275 = vld [vmem:[%s1 + $0x88] sm:$0xf]
      %v276 = vld [vmem:[%s1 + $0x8c] sm:$0xf]
      %v277 = vld [vmem:[%s1 + $0x90] sm:$0xf]
      %v278 = vld [vmem:[%s1 + $0x94] sm:$0xf]
      %v279 = vld [vmem:[%s1 + $0x98] sm:$0xf]
      %v280 = vld [vmem:[%s1 + $0x9c] sm:$0xf]
      %v281 = vld [vmem:[%s1 + $0xa0] sm:$0xf]
      %v282 = vld [vmem:[%s1 + $0xa4] sm:$0xf]
      %v283 = vld [vmem:[%s1 + $0xa8] sm:$0xf]
      %v284 = vld [vmem:[%s1 + $0xac] sm:$0xf]
      %v285 = vld [vmem:[%s1 + $0xb0] sm:$0xf]
      %v286 = vld [vmem:[%s1 + $0xb4] sm:$0xf]
      %v287 = vld [vmem:[%s1 + $0xb8] sm:$0xf]
      %v288 = vld [vmem:[%s1 + $0xbc] sm:$0xf]
      %v289 = vld [vmem:[%s1 + $0xc0] sm:$0xf]
      %v290 = vld [vmem:[%s1 + $0xc4] sm:$0xf]
      %v291 = vld [vmem:[%s1 + $0xc8] sm:$0xf]
      %v292 = vld [vmem:[%s1 + $0xcc] sm:$0xf]
      %v293 = vld [vmem:[%s1 + $0xd0] sm:$0xf]
      %v294 = vld [vmem:[%s1 + $0xd4] sm:$0xf]
      %v295 = vld [vmem:[%s1 + $0xd8] sm:$0xf]
      %v296 = vld [vmem:[%s1 + $0xdc] sm:$0xf]
      %v297 = vld [vmem:[%s1 + $0xe0] sm:$0xf]
      %v298 = vld [vmem:[%s1 + $0xe4] sm:$0xf]
      %v299 = vld [vmem:[%s1 + $0xe8] sm:$0xf]
      %v300 = vld [vmem:[%s1 + $0xec] sm:$0xf]
      %v301 = vld [vmem:[%s1 + $0xf0] sm:$0xf]
      %v302 = vld [vmem:[%s1 + $0xf4] sm:$0xf]
      %v303 = vld [vmem:[%s1 + $0xf8] sm:$0xf]
      %v304 = vld [vmem:[%s1 + $0xfc] sm:$0xf]
      %v305 = vld [vmem:[%s1 + $0x100] sm:$0xf]
      %v306 = vld [vmem:[%s1 + $0x104] sm:$0xf]
      %v307 = vld [vmem:[%s1 + $0x108] sm:$0xf]
      %v308 = vld [vmem:[%s1 + $0x10c] sm:$0xf]
      %v309 = vld [vmem:[%s1 + $0x110] sm:$0xf]
      %v310 = vld [vmem:[%s1 + $0x114] sm:$0xf]
      %v311 = vld [vmem:[%s1 + $0x118] sm:$0xf]
      %v312 = vld [vmem:[%s1 + $0x11c] sm:$0xf]
      %v409 = vunpack.c.l.b16 %v145
      %v410 = vunpack.c.h.b16 %v145
      %v411 = vunpack.c.l.b16 %v146
      %v412 = vunpack.c.h.b16 %v146
      %v413 = vunpack.c.l.b16 %v147
      %v414 = vunpack.c.l.b16 %v148
      %v415 = vunpack.c.h.b16 %v148
      %v416 = vunpack.c.l.b16 %v149
      %v417 = vunpack.c.h.b16 %v149
      %v418 = vunpack.c.l.b16 %v150
      %v419 = vunpack.c.l.b16 %v151
      %v420 = vunpack.c.h.b16 %v151
      %v421 = vunpack.c.l.b16 %v152
      %v422 = vunpack.c.h.b16 %v152
      %v423 = vunpack.c.l.b16 %v153
      %v424 = vunpack.c.l.b16 %v154
      %v425 = vunpack.c.h.b16 %v154
      %v426 = vunpack.c.l.b16 %v155
      %v427 = vunpack.c.h.b16 %v155
      %v428 = vunpack.c.l.b16 %v156
      %v429 = vunpack.c.l.b16 %v157
      %v430 = vunpack.c.h.b16 %v157
      %v431 = vunpack.c.l.b16 %v158
      %v432 = vunpack.c.h.b16 %v158
      %v433 = vunpack.c.l.b16 %v159
      %v434 = vunpack.c.l.b16 %v160
      %v435 = vunpack.c.h.b16 %v160
      %v436 = vunpack.c.l.b16 %v161
      %v437 = vunpack.c.h.b16 %v161
      %v438 = vunpack.c.l.b16 %v162
      %v439 = vunpack.c.l.b16 %v163
      %v440 = vunpack.c.h.b16 %v163
      %v441 = vunpack.c.l.b16 %v164
      %v442 = vunpack.c.h.b16 %v164
      %v443 = vunpack.c.l.b16 %v165
      %v444 = vunpack.c.l.b16 %v166
      %v445 = vunpack.c.h.b16 %v166
      %v446 = vunpack.c.l.b16 %v167
      %v447 = vunpack.c.h.b16 %v167
      %v448 = vunpack.c.l.b16 %v168
      %v449 = vunpack.c.l.b16 %v169
      %v450 = vunpack.c.h.b16 %v169
      %v451 = vunpack.c.l.b16 %v170
      %v452 = vunpack.c.h.b16 %v170
      %v453 = vunpack.c.l.b16 %v171
      %v454 = vunpack.c.l.b16 %v172
      %v455 = vunpack.c.h.b16 %v172
      %v456 = vunpack.c.l.b16 %v173
      %v457 = vunpack.c.h.b16 %v173
      %v458 = vunpack.c.l.b16 %v174
      %v459 = vunpack.c.l.b16 %v175
      %v460 = vunpack.c.h.b16 %v175
      %v461 = vunpack.c.l.b16 %v176
      %v462 = vunpack.c.h.b16 %v176
      %v463 = vunpack.c.l.b16 %v177
      %v464 = vunpack.c.l.b16 %v178
      %v465 = vunpack.c.h.b16 %v178
      %v466 = vunpack.c.l.b16 %v179
      %v467 = vunpack.c.h.b16 %v179
      %v468 = vunpack.c.l.b16 %v180
      %v469 = vunpack.c.l.b16 %v181
      %v470 = vunpack.c.h.b16 %v181
      %v471 = vunpack.c.l.b16 %v182
      %v472 = vunpack.c.h.b16 %v182
      %v473 = vunpack.c.l.b16 %v183
      %v474 = vunpack.c.l.b16 %v184
      %v475 = vunpack.c.h.b16 %v184
      %v476 = vunpack.c.l.b16 %v185
      %v477 = vunpack.c.h.b16 %v185
      %v478 = vunpack.c.l.b16 %v186
      %v479 = vunpack.c.l.b16 %v187
      %v480 = vunpack.c.h.b16 %v187
      %v481 = vunpack.c.l.b16 %v188
      %v482 = vunpack.c.h.b16 %v188
      %v483 = vunpack.c.l.b16 %v189
      %v484 = vunpack.c.l.b16 %v190
      %v485 = vunpack.c.h.b16 %v190
      %v486 = vunpack.c.l.b16 %v191
      %v487 = vunpack.c.h.b16 %v191
      %v488 = vunpack.c.l.b16 %v192
      %v489 = vunpack.c.l.b16 %v193
      %v490 = vunpack.c.h.b16 %v193
      %v491 = vunpack.c.l.b16 %v194
      %v492 = vunpack.c.h.b16 %v194
      %v493 = vunpack.c.l.b16 %v195
      %v494 = vunpack.c.l.b16 %v196
      %v495 = vunpack.c.h.b16 %v196
      %v496 = vunpack.c.l.b16 %v197
      %v497 = vunpack.c.h.b16 %v197
      %v498 = vunpack.c.l.b16 %v198
      %v499 = vunpack.c.l.b16 %v199
      %v500 = vunpack.c.h.b16 %v199
      %v501 = vunpack.c.l.b16 %v200
      %v502 = vunpack.c.h.b16 %v200
      %v503 = vunpack.c.l.b16 %v201
      %v504 = vunpack.c.l.b16 %v202
      %v505 = vunpack.c.h.b16 %v202
      %v506 = vunpack.c.l.b16 %v203
      %v507 = vunpack.c.h.b16 %v203
      %v508 = vunpack.c.l.b16 %v204
      %v509 = vunpack.c.l.b16 %v205
      %v510 = vunpack.c.h.b16 %v205
      %v511 = vunpack.c.l.b16 %v206
      %v512 = vunpack.c.h.b16 %v206
      %v513 = vunpack.c.l.b16 %v207
      %v514 = vunpack.c.l.b16 %v208
      %v515 = vunpack.c.h.b16 %v208
      %v516 = vunpack.c.l.b16 %v209
      %v517 = vunpack.c.h.b16 %v209
      %v518 = vunpack.c.l.b16 %v210
      %v519 = vunpack.c.l.b16 %v211
      %v520 = vunpack.c.h.b16 %v211
      %v521 = vunpack.c.l.b16 %v212
      %v522 = vunpack.c.h.b16 %v212
      %v523 = vunpack.c.l.b16 %v213
      %v524 = vunpack.c.l.b16 %v214
      %v525 = vunpack.c.h.b16 %v214
      %v526 = vunpack.c.l.b16 %v215
      %v527 = vunpack.c.h.b16 %v215
      %v528 = vunpack.c.l.b16 %v216
      %v529 = vunpack.c.l.b16 %v217
      %v530 = vunpack.c.h.b16 %v217
      %v531 = vunpack.c.l.b16 %v218
      %v532 = vunpack.c.h.b16 %v218
      %v533 = vunpack.c.l.b16 %v219
      %v534 = vunpack.c.l.b16 %v220
      %v535 = vunpack.c.h.b16 %v220
      %v536 = vunpack.c.l.b16 %v221
      %v537 = vunpack.c.h.b16 %v221
      %v538 = vunpack.c.l.b16 %v222
      %v539 = vunpack.c.l.b16 %v223
      %v540 = vunpack.c.h.b16 %v223
      %v541 = vunpack.c.l.b16 %v224
      %v542 = vunpack.c.h.b16 %v224
      %v543 = vunpack.c.l.b16 %v225
      %v544 = vunpack.c.l.b16 %v226
      %v545 = vunpack.c.h.b16 %v226
      %v546 = vunpack.c.l.b16 %v227
      %v547 = vunpack.c.h.b16 %v227
      %v548 = vunpack.c.l.b16 %v228
      %v549 = vunpack.c.l.b16 %v229
      %v550 = vunpack.c.h.b16 %v229
      %v551 = vunpack.c.l.b16 %v230
      %v552 = vunpack.c.h.b16 %v230
      %v553 = vunpack.c.l.b16 %v231
      %v554 = vunpack.c.l.b16 %v232
      %v555 = vunpack.c.h.b16 %v232
      %v556 = vunpack.c.l.b16 %v233
      %v557 = vunpack.c.h.b16 %v233
      %v558 = vunpack.c.l.b16 %v234
      %v559 = vunpack.c.l.b16 %v235
      %v560 = vunpack.c.h.b16 %v235
      %v561 = vunpack.c.l.b16 %v236
      %v562 = vunpack.c.h.b16 %v236
      %v563 = vunpack.c.l.b16 %v237
      %v564 = vunpack.c.l.b16 %v238
      %v565 = vunpack.c.h.b16 %v238
      %v566 = vunpack.c.l.b16 %v239
      %v567 = vunpack.c.h.b16 %v239
      %v568 = vunpack.c.l.b16 %v240
      %v569 = vpack.c.b16 %v414, %v409
      %v570 = vpack.c.b16 %v415, %v410
      %v571 = vpack.c.b16 %v416, %v411
      %v572 = vpack.c.b16 %v417, %v412
      %v573 = vpack.c.b16 %v418, %v413
      %v574 = vpack.c.b16 %v424, %v419
      %v575 = vpack.c.b16 %v425, %v420
      %v576 = vpack.c.b16 %v426, %v421
      %v577 = vpack.c.b16 %v427, %v422
      %v578 = vpack.c.b16 %v428, %v423
      %v579 = vpack.c.b16 %v434, %v429
      %v580 = vpack.c.b16 %v435, %v430
      %v581 = vpack.c.b16 %v436, %v431
      %v582 = vpack.c.b16 %v437, %v432
      %v583 = vpack.c.b16 %v438, %v433
      %v584 = vpack.c.b16 %v444, %v439
      %v585 = vpack.c.b16 %v445, %v440
      %v586 = vpack.c.b16 %v446, %v441
      %v587 = vpack.c.b16 %v447, %v442
      %v588 = vpack.c.b16 %v448, %v443
      %v589 = vpack.c.b16 %v454, %v449
      %v590 = vpack.c.b16 %v455, %v450
      %v591 = vpack.c.b16 %v456, %v451
      %v592 = vpack.c.b16 %v457, %v452
      %v593 = vpack.c.b16 %v458, %v453
      %v594 = vpack.c.b16 %v464, %v459
      %v595 = vpack.c.b16 %v465, %v460
      %v596 = vpack.c.b16 %v466, %v461
      %v597 = vpack.c.b16 %v467, %v462
      %v598 = vpack.c.b16 %v468, %v463
      %v599 = vpack.c.b16 %v474, %v469
      %v600 = vpack.c.b16 %v475, %v470
      %v601 = vpack.c.b16 %v476, %v471
      %v602 = vpack.c.b16 %v477, %v472
      %v603 = vpack.c.b16 %v478, %v473
      %v604 = vpack.c.b16 %v484, %v479
      %v605 = vpack.c.b16 %v485, %v480
      %v606 = vpack.c.b16 %v486, %v481
      %v607 = vpack.c.b16 %v487, %v482
      %v608 = vpack.c.b16 %v488, %v483
      %v609 = vpack.c.b16 %v494, %v489
      %v610 = vpack.c.b16 %v495, %v490
      %v611 = vpack.c.b16 %v496, %v491
      %v612 = vpack.c.b16 %v497, %v492
      %v613 = vpack.c.b16 %v498, %v493
      %v614 = vpack.c.b16 %v504, %v499
      %v615 = vpack.c.b16 %v505, %v500
      %v616 = vpack.c.b16 %v506, %v501
      %v617 = vpack.c.b16 %v507, %v502
      %v618 = vpack.c.b16 %v508, %v503
      %v619 = vpack.c.b16 %v514, %v509
      %v620 = vpack.c.b16 %v515, %v510
      %v621 = vpack.c.b16 %v516, %v511
      %v622 = vpack.c.b16 %v517, %v512
      %v623 = vpack.c.b16 %v518, %v513
      %v624 = vpack.c.b16 %v524, %v519
      %v625 = vpack.c.b16 %v525, %v520
      %v626 = vpack.c.b16 %v526, %v521
      %v627 = vpack.c.b16 %v527, %v522
      %v628 = vpack.c.b16 %v528, %v523
      %v629 = vpack.c.b16 %v534, %v529
      %v630 = vpack.c.b16 %v535, %v530
      %v631 = vpack.c.b16 %v536, %v531
      %v632 = vpack.c.b16 %v537, %v532
      %v633 = vpack.c.b16 %v538, %v533
      %v634 = vpack.c.b16 %v544, %v539
      %v635 = vpack.c.b16 %v545, %v540
      %v636 = vpack.c.b16 %v546, %v541
      %v637 = vpack.c.b16 %v547, %v542
      %v638 = vpack.c.b16 %v548, %v543
      %v639 = vpack.c.b16 %v554, %v549
      %v640 = vpack.c.b16 %v555, %v550
      %v641 = vpack.c.b16 %v556, %v551
      %v642 = vpack.c.b16 %v557, %v552
      %v643 = vpack.c.b16 %v558, %v553
      %v644 = vpack.c.b16 %v564, %v559
      %v645 = vpack.c.b16 %v565, %v560
      %v646 = vpack.c.b16 %v566, %v561
      %v647 = vpack.c.b16 %v567, %v562
      %v648 = vpack.c.b16 %v568, %v563
      %v785 = vunpack.c.l.b16 %v241
      %v786 = vunpack.c.l.b16 %v242
      %v787 = vunpack.c.l.b16 %v243
      %v788 = vunpack.c.l.b16 %v244
      %v789 = vunpack.c.l.b16 %v245
      %v790 = vunpack.c.l.b16 %v246
      %v791 = vunpack.c.l.b16 %v247
      %v792 = vunpack.c.l.b16 %v248
      %v793 = vunpack.c.l.b16 %v249
      %v794 = vunpack.c.l.b16 %v250
      %v795 = vunpack.c.l.b16 %v251
      %v796 = vunpack.c.l.b16 %v252
      %v797 = vunpack.c.l.b16 %v253
      %v798 = vunpack.c.l.b16 %v254
      %v799 = vunpack.c.l.b16 %v255
      %v800 = vunpack.c.l.b16 %v256
      %v801 = vunpack.c.l.b16 %v257
      %v802 = vunpack.c.l.b16 %v258
      %v803 = vunpack.c.l.b16 %v259
      %v804 = vunpack.c.l.b16 %v260
      %v805 = vunpack.c.l.b16 %v261
      %v806 = vunpack.c.l.b16 %v262
      %v807 = vunpack.c.l.b16 %v263
      %v808 = vunpack.c.l.b16 %v264
      %v809 = vunpack.c.l.b16 %v265
      %v810 = vunpack.c.l.b16 %v266
      %v811 = vunpack.c.l.b16 %v267
      %v812 = vunpack.c.l.b16 %v268
      %v813 = vunpack.c.l.b16 %v269
      %v814 = vunpack.c.l.b16 %v270
      %v815 = vunpack.c.l.b16 %v271
      %v816 = vunpack.c.l.b16 %v272
      %v817 = vunpack.c.l.b16 %v273
      %v818 = vunpack.c.l.b16 %v274
      %v819 = vunpack.c.l.b16 %v275
      %v820 = vunpack.c.l.b16 %v276
      %v821 = vunpack.c.l.b16 %v277
      %v822 = vunpack.c.l.b16 %v278
      %v823 = vunpack.c.l.b16 %v279
      %v824 = vunpack.c.l.b16 %v280
      %v825 = vunpack.c.l.b16 %v281
      %v826 = vunpack.c.l.b16 %v282
      %v827 = vunpack.c.l.b16 %v283
      %v828 = vunpack.c.l.b16 %v284
      %v829 = vunpack.c.l.b16 %v285
      %v830 = vunpack.c.l.b16 %v286
      %v831 = vunpack.c.l.b16 %v287
      %v832 = vunpack.c.l.b16 %v288
      %v833 = vunpack.c.l.b16 %v289
      %v834 = vunpack.c.l.b16 %v290
      %v835 = vunpack.c.l.b16 %v291
      %v836 = vunpack.c.l.b16 %v292
      %v837 = vunpack.c.l.b16 %v293
      %v838 = vunpack.c.l.b16 %v294
      %v839 = vunpack.c.l.b16 %v295
      %v840 = vunpack.c.l.b16 %v296
      %v841 = vunpack.c.l.b16 %v297
      %v842 = vunpack.c.l.b16 %v298
      %v843 = vunpack.c.l.b16 %v299
      %v844 = vunpack.c.l.b16 %v300
      %v845 = vunpack.c.l.b16 %v301
      %v846 = vunpack.c.l.b16 %v302
      %v847 = vunpack.c.l.b16 %v303
      %v848 = vunpack.c.l.b16 %v304
      %v849 = vunpack.c.l.b16 %v305
      %v850 = vunpack.c.l.b16 %v306
      %v851 = vunpack.c.l.b16 %v307
      %v852 = vunpack.c.l.b16 %v308
      %v853 = vunpack.c.l.b16 %v309
      %v854 = vunpack.c.l.b16 %v310
      %v855 = vunpack.c.l.b16 %v311
      %v856 = vunpack.c.l.b16 %v312
      %v857 = vpack.c.b16 %v786, %v785
      %v858 = vpack.c.b16 %v788, %v787
      %v859 = vpack.c.b16 %v790, %v789
      %v860 = vpack.c.b16 %v792, %v791
      %v861 = vpack.c.b16 %v794, %v793
      %v862 = vpack.c.b16 %v796, %v795
      %v863 = vpack.c.b16 %v798, %v797
      %v864 = vpack.c.b16 %v800, %v799
      %v865 = vpack.c.b16 %v802, %v801
      %v866 = vpack.c.b16 %v804, %v803
      %v867 = vpack.c.b16 %v806, %v805
      %v868 = vpack.c.b16 %v808, %v807
      %v869 = vpack.c.b16 %v810, %v809
      %v870 = vpack.c.b16 %v812, %v811
      %v871 = vpack.c.b16 %v814, %v813
      %v872 = vpack.c.b16 %v816, %v815
      %v873 = vpack.c.b16 %v818, %v817
      %v874 = vpack.c.b16 %v820, %v819
      %v875 = vpack.c.b16 %v822, %v821
      %v876 = vpack.c.b16 %v824, %v823
      %v877 = vpack.c.b16 %v826, %v825
      %v878 = vpack.c.b16 %v828, %v827
      %v879 = vpack.c.b16 %v830, %v829
      %v880 = vpack.c.b16 %v832, %v831
      %v881 = vpack.c.b16 %v834, %v833
      %v882 = vpack.c.b16 %v836, %v835
      %v883 = vpack.c.b16 %v838, %v837
      %v884 = vpack.c.b16 %v840, %v839
      %v885 = vpack.c.b16 %v842, %v841
      %v886 = vpack.c.b16 %v844, %v843
      %v887 = vpack.c.b16 %v846, %v845
      %v888 = vpack.c.b16 %v848, %v847
      %v889 = vpack.c.b16 %v850, %v849
      %v890 = vpack.c.b16 %v852, %v851
      %v891 = vpack.c.b16 %v854, %v853
      %v892 = vpack.c.b16 %v856, %v855
      %vm929 = vcmask 523264
      %v931 = vsel %vm929, %v573, 0
      %v934 = vsel %vm929, %v578, 0
      %v937 = vsel %vm929, %v583, 0
      %v940 = vsel %vm929, %v588, 0
      %v943 = vsel %vm929, %v593, 0
      %v946 = vsel %vm929, %v598, 0
      %v949 = vsel %vm929, %v603, 0
      %v952 = vsel %vm929, %v608, 0
      %v955 = vsel %vm929, %v613, 0
      %v958 = vsel %vm929, %v618, 0
      %v961 = vsel %vm929, %v623, 0
      %v964 = vsel %vm929, %v628, 0
      %v967 = vsel %vm929, %v633, 0
      %v970 = vsel %vm929, %v638, 0
      %v973 = vsel %vm929, %v643, 0
      %v976 = vsel %vm929, %v648, 0
      %978 = vmatprep.subr.bf16.mxu0 0
      %979 = vmatpush1.bf16.msra.mxu0 %v857
      %980 = vmatprep.subr.bf16.mxu0 0
      %981 = vmatpush1.bf16.msra.mxu0 %v858
      %982 = vmatprep.subr.bf16.mxu0 0
      %983 = vmatpush1.bf16.msra.mxu0 %v859
      %984 = vmatprep.subr.bf16.mxu0 0
      %985 = vmatpush1.bf16.msra.mxu0 %v860
      %986 = vmatprep.subr.bf16.mxu0 0
      %987 = vmatpush1.bf16.msra.mxu0 %v861
      %988 = vmatprep.subr.bf16.mxu0 0
      %989 = vmatpush1.bf16.msra.mxu0 %v862
      %990 = vmatprep.subr.bf16.mxu0 0
      %991 = vmatpush1.bf16.msra.mxu0 %v863
      %992 = vmatprep.subr.bf16.mxu0 0
      %993 = vmatpush1.bf16.msra.mxu0 %v864
      %994 = vmatprep.subr.bf16.mxu0 0
      %995 = vmatpush1.bf16.msra.mxu0 %v865
      %996 = vmatprep.subr.bf16.mxu0 0
      %997 = vmatpush1.bf16.msra.mxu0 %v866
      %998 = vmatprep.subr.bf16.mxu0 0
      %999 = vmatpush1.bf16.msra.mxu0 %v867
      %1000 = vmatprep.subr.bf16.mxu0 0
      %1001 = vmatpush1.bf16.msra.mxu0 %v868
      %1002 = vmatprep.subr.bf16.mxu0 0
      %1003 = vmatpush1.bf16.msra.mxu0 %v869
      %1004 = vmatprep.subr.bf16.mxu0 0
      %1005 = vmatpush1.bf16.msra.mxu0 %v870
      %1006 = vmatprep.subr.bf16.mxu0 0
      %1007 = vmatpush1.bf16.msra.mxu0 %v871
      %1008 = vmatprep.subr.bf16.mxu0 0
      %1009 = vmatpush1.bf16.msra.mxu0 %v872
      %1010 = vmatprep.mubr.bf16.mxu0 %v570
      %1011 = vmatmul.mubr.bf16.gmra.mrb[0].mxu0 %v569
      %v1012 = vpop.f32.mrb[0].mxu0
      %v1013 = vadd.f32 0.0, %v1012
      %v1014 = vpop.f32.mrb[0].mxu0
      %v1015 = vpop.f32.mrb[0].mxu0
      %v1016 = vadd.f32 0.0, %v1015
      %v1017 = vpop.f32.mrb[0].mxu0
      %1018 = vmatprep.mubr.bf16.mxu0 %v575
      %1019 = vmatmul.mubr.bf16.gmra.mrb[0].mxu0 %v574
      %v1020 = vpop.f32.mrb[0].mxu0
      %v1021 = vadd.f32 0.0, %v1020
      %v1022 = vpop.f32.mrb[0].mxu0
      %v1023 = vpop.f32.mrb[0].mxu0
      %v1024 = vadd.f32 0.0, %v1023
      %v1025 = vpop.f32.mrb[0].mxu0
      %1026 = vmatprep.mubr.bf16.mxu0 %v580
      %1027 = vmatmul.mubr.bf16.gmra.mrb[0].mxu0 %v579
      %v1028 = vpop.f32.mrb[0].mxu0
      %v1029 = vadd.f32 0.0, %v1028
      %v1030 = vpop.f32.mrb[0].mxu0
      %v1031 = vpop.f32.mrb[0].mxu0
      %v1032 = vadd.f32 0.0, %v1031
      %v1033 = vpop.f32.mrb[0].mxu0
      %1034 = vmatprep.mubr.bf16.mxu0 %v585
      %1035 = vmatmul.mubr.bf16.gmra.mrb[0].mxu0 %v584
      %v1036 = vpop.f32.mrb[0].mxu0
      %v1037 = vadd.f32 0.0, %v1036
      %v1038 = vpop.f32.mrb[0].mxu0
      %v1039 = vpop.f32.mrb[0].mxu0
      %v1040 = vadd.f32 0.0, %v1039
      %v1041 = vpop.f32.mrb[0].mxu0
      %1042 = vmatprep.mubr.bf16.mxu0 %v590
      %1043 = vmatmul.mubr.bf16.gmra.mrb[0].mxu0 %v589
      %v1044 = vpop.f32.mrb[0].mxu0
      %v1045 = vadd.f32 0.0, %v1044
      %v1046 = vpop.f32.mrb[0].mxu0
      %v1047 = vpop.f32.mrb[0].mxu0
      %v1048 = vadd.f32 0.0, %v1047
      %v1049 = vpop.f32.mrb[0].mxu0
      %1050 = vmatprep.mubr.bf16.mxu0 %v595
      %1051 = vmatmul.mubr.bf16.gmra.mrb[0].mxu0 %v594
      %v1052 = vpop.f32.mrb[0].mxu0
      %v1053 = vadd.f32 0.0, %v1052
      %v1054 = vpop.f32.mrb[0].mxu0
      %v1055 = vpop.f32.mrb[0].mxu0
      %v1056 = vadd.f32 0.0, %v1055
      %v1057 = vpop.f32.mrb[0].mxu0
      %1058 = vmatprep.mubr.bf16.mxu0 %v600
      %1059 = vmatmul.mubr.bf16.gmra.mrb[0].mxu0 %v599
      %v1060 = vpop.f32.mrb[0].mxu0
      %v1061 = vadd.f32 0.0, %v1060
      %v1062 = vpop.f32.mrb[0].mxu0
      %v1063 = vpop.f32.mrb[0].mxu0
      %v1064 = vadd.f32 0.0, %v1063
      %v1065 = vpop.f32.mrb[0].mxu0
      %1066 = vmatprep.mubr.bf16.mxu0 %v605
      %1067 = vmatmul.mubr.bf16.gmra.mrb[0].mxu0 %v604
      %v1068 = vpop.f32.mrb[0].mxu0
      %v1069 = vadd.f32 0.0, %v1068
      %v1070 = vpop.f32.mrb[0].mxu0
      %v1071 = vpop.f32.mrb[0].mxu0
      %v1072 = vadd.f32 0.0, %v1071
      %v1073 = vpop.f32.mrb[0].mxu0
      %1074 = vmatprep.mubr.bf16.mxu0 %v610
      %1075 = vmatmul.mubr.bf16.gmra.mrb[0].mxu0 %v609
      %v1076 = vpop.f32.mrb[0].mxu0
      %v1077 = vadd.f32 0.0, %v1076
      %v1078 = vpop.f32.mrb[0].mxu0
      %v1079 = vpop.f32.mrb[0].mxu0
      %v1080 = vadd.f32 0.0, %v1079
      %v1081 = vpop.f32.mrb[0].mxu0
      %1082 = vmatprep.mubr.bf16.mxu0 %v615
      %1083 = vmatmul.mubr.bf16.gmra.mrb[0].mxu0 %v614
      %v1084 = vpop.f32.mrb[0].mxu0
      %v1085 = vadd.f32 0.0, %v1084
      %v1086 = vpop.f32.mrb[0].mxu0
      %v1087 = vpop.f32.mrb[0].mxu0
      %v1088 = vadd.f32 0.0, %v1087
      %v1089 = vpop.f32.mrb[0].mxu0
      %1090 = vmatprep.mubr.bf16.mxu0 %v620
      %1091 = vmatmul.mubr.bf16.gmra.mrb[0].mxu0 %v619
      %v1092 = vpop.f32.mrb[0].mxu0
      %v1093 = vadd.f32 0.0, %v1092
      %v1094 = vpop.f32.mrb[0].mxu0
      %v1095 = vpop.f32.mrb[0].mxu0
      %v1096 = vadd.f32 0.0, %v1095
      %v1097 = vpop.f32.mrb[0].mxu0
      %1098 = vmatprep.mubr.bf16.mxu0 %v625
      %1099 = vmatmul.mubr.bf16.gmra.mrb[0].mxu0 %v624
      %v1100 = vpop.f32.mrb[0].mxu0
      %v1101 = vadd.f32 0.0, %v1100
      %v1102 = vpop.f32.mrb[0].mxu0
      %v1103 = vpop.f32.mrb[0].mxu0
      %v1104 = vadd.f32 0.0, %v1103
      %v1105 = vpop.f32.mrb[0].mxu0
      %1106 = vmatprep.mubr.bf16.mxu0 %v630
      %1107 = vmatmul.mubr.bf16.gmra.mrb[0].mxu0 %v629
      %v1108 = vpop.f32.mrb[0].mxu0
      %v1109 = vadd.f32 0.0, %v1108
      %v1110 = vpop.f32.mrb[0].mxu0
      %v1111 = vpop.f32.mrb[0].mxu0
      %v1112 = vadd.f32 0.0, %v1111
      %v1113 = vpop.f32.mrb[0].mxu0
      %1114 = vmatprep.mubr.bf16.mxu0 %v635
      %1115 = vmatmul.mubr.bf16.gmra.mrb[0].mxu0 %v634
      %v1116 = vpop.f32.mrb[0].mxu0
      %v1117 = vadd.f32 0.0, %v1116
      %v1118 = vpop.f32.mrb[0].mxu0
      %v1119 = vpop.f32.mrb[0].mxu0
      %v1120 = vadd.f32 0.0, %v1119
      %v1121 = vpop.f32.mrb[0].mxu0
      %1122 = vmatprep.mubr.bf16.mxu0 %v640
      %1123 = vmatmul.mubr.bf16.gmra.mrb[0].mxu0 %v639
      %v1124 = vpop.f32.mrb[0].mxu0
      %v1125 = vadd.f32 0.0, %v1124
      %v1126 = vpop.f32.mrb[0].mxu0
      %v1127 = vpop.f32.mrb[0].mxu0
      %v1128 = vadd.f32 0.0, %v1127
      %v1129 = vpop.f32.mrb[0].mxu0
      %1130 = vmatprep.mubr.bf16.mxu0 %v645
      %1131 = vmatmul.mubr.bf16.gmra.mrb[0].mxu0 %v644
      %v1132 = vpop.f32.mrb[0].mxu0
      %v1133 = vadd.f32 0.0, %v1132
      %v1134 = vpop.f32.mrb[0].mxu0
      %v1135 = vpop.f32.mrb[0].mxu0
      %v1136 = vadd.f32 0.0, %v1135
      %v1137 = vpop.f32.mrb[0].mxu0
      %1138 = vdwg.mxu0
      %1139 = vmatprep.subr.bf16.mxu0 0
      %1140 = vmatpush1.bf16.msra.mxu0 %v873
      %1141 = vmatprep.subr.bf16.mxu0 0
      %1142 = vmatpush1.bf16.msra.mxu0 %v874
      %1143 = vmatprep.subr.bf16.mxu0 0
      %1144 = vmatpush1.bf16.msra.mxu0 %v875
      %1145 = vmatprep.subr.bf16.mxu0 0
      %1146 = vmatpush1.bf16.msra.mxu0 %v876
      %1147 = vmatprep.subr.bf16.mxu0 0
      %1148 = vmatpush1.bf16.msra.mxu0 %v877
      %1149 = vmatprep.subr.bf16.mxu0 0
      %1150 = vmatpush1.bf16.msra.mxu0 %v878
      %1151 = vmatprep.subr.bf16.mxu0 0
      %1152 = vmatpush1.bf16.msra.mxu0 %v879
      %1153 = vmatprep.subr.bf16.mxu0 0
      %1154 = vmatpush1.bf16.msra.mxu0 %v880
      %1155 = vmatprep.subr.bf16.mxu0 0
      %1156 = vmatpush1.bf16.msra.mxu0 %v881
      %1157 = vmatprep.subr.bf16.mxu0 0
      %1158 = vmatpush1.bf16.msra.mxu0 %v882
      %1159 = vmatprep.subr.bf16.mxu0 0
      %1160 = vmatpush1.bf16.msra.mxu0 %v883
      %1161 = vmatprep.subr.bf16.mxu0 0
      %1162 = vmatpush1.bf16.msra.mxu0 %v884
      %1163 = vmatprep.subr.bf16.mxu0 0
      %1164 = vmatpush1.bf16.msra.mxu0 %v885
      %1165 = vmatprep.subr.bf16.mxu0 0
      %1166 = vmatpush1.bf16.msra.mxu0 %v886
      %1167 = vmatprep.subr.bf16.mxu0 0
      %1168 = vmatpush1.bf16.msra.mxu0 %v887
      %1169 = vmatprep.subr.bf16.mxu0 0
      %1170 = vmatpush1.bf16.msra.mxu0 %v888
      %1171 = vmatprep.mubr.bf16.mxu0 %v572
      %1172 = vmatmul.mubr.bf16.gmra.mrb[0].mxu0 %v571
      %v1173 = vpop.f32.mrb[0].mxu0
      %v1174 = vadd.f32 %v1013, %v1173
      %v1175 = vpop.f32.mrb[0].mxu0
      %v1176 = vpop.f32.mrb[0].mxu0
      %v1177 = vadd.f32 %v1016, %v1176
      %v1178 = vpop.f32.mrb[0].mxu0
      %1179 = vmatprep.mubr.bf16.mxu0 %v577
      %1180 = vmatmul.mubr.bf16.gmra.mrb[0].mxu0 %v576
      %v1181 = vpop.f32.mrb[0].mxu0
      %v1182 = vadd.f32 %v1021, %v1181
      %v1183 = vpop.f32.mrb[0].mxu0
      %v1184 = vpop.f32.mrb[0].mxu0
      %v1185 = vadd.f32 %v1024, %v1184
      %v1186 = vpop.f32.mrb[0].mxu0
      %1187 = vmatprep.mubr.bf16.mxu0 %v582
      %1188 = vmatmul.mubr.bf16.gmra.mrb[0].mxu0 %v581
      %v1189 = vpop.f32.mrb[0].mxu0
      %v1190 = vadd.f32 %v1029, %v1189
      %v1191 = vpop.f32.mrb[0].mxu0
      %v1192 = vpop.f32.mrb[0].mxu0
      %v1193 = vadd.f32 %v1032, %v1192
      %v1194 = vpop.f32.mrb[0].mxu0
      %1195 = vmatprep.mubr.bf16.mxu0 %v587
      %1196 = vmatmul.mubr.bf16.gmra.mrb[0].mxu0 %v586
      %v1197 = vpop.f32.mrb[0].mxu0
      %v1198 = vadd.f32 %v1037, %v1197
      %v1199 = vpop.f32.mrb[0].mxu0
      %v1200 = vpop.f32.mrb[0].mxu0
      %v1201 = vadd.f32 %v1040, %v1200
      %v1202 = vpop.f32.mrb[0].mxu0
      %1203 = vmatprep.mubr.bf16.mxu0 %v592
      %1204 = vmatmul.mubr.bf16.gmra.mrb[0].mxu0 %v591
      %v1205 = vpop.f32.mrb[0].mxu0
      %v1206 = vadd.f32 %v1045, %v1205
      %v1207 = vpop.f32.mrb[0].mxu0
      %v1208 = vpop.f32.mrb[0].mxu0
      %v1209 = vadd.f32 %v1048, %v1208
      %v1210 = vpop.f32.mrb[0].mxu0
      %1211 = vmatprep.mubr.bf16.mxu0 %v597
      %1212 = vmatmul.mubr.bf16.gmra.mrb[0].mxu0 %v596
      %v1213 = vpop.f32.mrb[0].mxu0
      %v1214 = vadd.f32 %v1053, %v1213
      %v1215 = vpop.f32.mrb[0].mxu0
      %v1216 = vpop.f32.mrb[0].mxu0
      %v1217 = vadd.f32 %v1056, %v1216
      %v1218 = vpop.f32.mrb[0].mxu0
      %1219 = vmatprep.mubr.bf16.mxu0 %v602
      %1220 = vmatmul.mubr.bf16.gmra.mrb[0].mxu0 %v601
      %v1221 = vpop.f32.mrb[0].mxu0
      %v1222 = vadd.f32 %v1061, %v1221
      %v1223 = vpop.f32.mrb[0].mxu0
      %v1224 = vpop.f32.mrb[0].mxu0
      %v1225 = vadd.f32 %v1064, %v1224
      %v1226 = vpop.f32.mrb[0].mxu0
      %1227 = vmatprep.mubr.bf16.mxu0 %v607
      %1228 = vmatmul.mubr.bf16.gmra.mrb[0].mxu0 %v606
      %v1229 = vpop.f32.mrb[0].mxu0
      %v1230 = vadd.f32 %v1069, %v1229
      %v1231 = vpop.f32.mrb[0].mxu0
      %v1232 = vpop.f32.mrb[0].mxu0
      %v1233 = vadd.f32 %v1072, %v1232
      %v1234 = vpop.f32.mrb[0].mxu0
      %1235 = vmatprep.mubr.bf16.mxu0 %v612
      %1236 = vmatmul.mubr.bf16.gmra.mrb[0].mxu0 %v611
      %v1237 = vpop.f32.mrb[0].mxu0
      %v1238 = vadd.f32 %v1077, %v1237
      %v1239 = vpop.f32.mrb[0].mxu0
      %v1240 = vpop.f32.mrb[0].mxu0
      %v1241 = vadd.f32 %v1080, %v1240
      %v1242 = vpop.f32.mrb[0].mxu0
      %1243 = vmatprep.mubr.bf16.mxu0 %v617
      %1244 = vmatmul.mubr.bf16.gmra.mrb[0].mxu0 %v616
      %v1245 = vpop.f32.mrb[0].mxu0
      %v1246 = vadd.f32 %v1085, %v1245
      %v1247 = vpop.f32.mrb[0].mxu0
      %v1248 = vpop.f32.mrb[0].mxu0
      %v1249 = vadd.f32 %v1088, %v1248
      %v1250 = vpop.f32.mrb[0].mxu0
      %1251 = vmatprep.mubr.bf16.mxu0 %v622
      %1252 = vmatmul.mubr.bf16.gmra.mrb[0].mxu0 %v621
      %v1253 = vpop.f32.mrb[0].mxu0
      %v1254 = vadd.f32 %v1093, %v1253
      %v1255 = vpop.f32.mrb[0].mxu0
      %v1256 = vpop.f32.mrb[0].mxu0
      %v1257 = vadd.f32 %v1096, %v1256
      %v1258 = vpop.f32.mrb[0].mxu0
      %1259 = vmatprep.mubr.bf16.mxu0 %v627
      %1260 = vmatmul.mubr.bf16.gmra.mrb[0].mxu0 %v626
      %v1261 = vpop.f32.mrb[0].mxu0
      %v1262 = vadd.f32 %v1101, %v1261
      %v1263 = vpop.f32.mrb[0].mxu0
      %v1264 = vpop.f32.mrb[0].mxu0
      %v1265 = vadd.f32 %v1104, %v1264
      %v1266 = vpop.f32.mrb[0].mxu0
      %1267 = vmatprep.mubr.bf16.mxu0 %v632
      %1268 = vmatmul.mubr.bf16.gmra.mrb[0].mxu0 %v631
      %v1269 = vpop.f32.mrb[0].mxu0
      %v1270 = vadd.f32 %v1109, %v1269
      %v1271 = vpop.f32.mrb[0].mxu0
      %v1272 = vpop.f32.mrb[0].mxu0
      %v1273 = vadd.f32 %v1112, %v1272
      %v1274 = vpop.f32.mrb[0].mxu0
      %1275 = vmatprep.mubr.bf16.mxu0 %v637
      %1276 = vmatmul.mubr.bf16.gmra.mrb[0].mxu0 %v636
      %v1277 = vpop.f32.mrb[0].mxu0
      %v1278 = vadd.f32 %v1117, %v1277
      %v1279 = vpop.f32.mrb[0].mxu0
      %v1280 = vpop.f32.mrb[0].mxu0
      %v1281 = vadd.f32 %v1120, %v1280
      %v1282 = vpop.f32.mrb[0].mxu0
      %1283 = vmatprep.mubr.bf16.mxu0 %v642
      %1284 = vmatmul.mubr.bf16.gmra.mrb[0].mxu0 %v641
      %v1285 = vpop.f32.mrb[0].mxu0
      %v1286 = vadd.f32 %v1125, %v1285
      %v1287 = vpop.f32.mrb[0].mxu0
      %v1288 = vpop.f32.mrb[0].mxu0
      %v1289 = vadd.f32 %v1128, %v1288
      %v1290 = vpop.f32.mrb[0].mxu0
      %1291 = vmatprep.mubr.bf16.mxu0 %v647
      %1292 = vmatmul.mubr.bf16.gmra.mrb[0].mxu0 %v646
      %v1293 = vpop.f32.mrb[0].mxu0
      %v1294 = vadd.f32 %v1133, %v1293
      %v1295 = vpop.f32.mrb[0].mxu0
      %v1296 = vpop.f32.mrb[0].mxu0
      %v1297 = vadd.f32 %v1136, %v1296
      %v1298 = vpop.f32.mrb[0].mxu0
      %1299 = vdwg.mxu0
      %1300 = vmatprep.subr.bf16.mxu0 0
      %1301 = vmatpush1.bf16.msra.mxu0 %v889
      %1302 = vmatprep.subr.bf16.mxu0 0
      %1303 = vmatpush1.bf16.msra.mxu0 %v890
      %1304 = vmatprep.subr.bf16.mxu0 0
      %1305 = vmatpush1.bf16.msra.mxu0 %v891
      %1306 = vmatprep.subr.bf16.mxu0 0
      %1307 = vmatpush1.bf16.msra.mxu0 %v892
      %1308 = vmatprep.subr.bf16.mxu0 0
      %1309 = vmatpush1.bf16.msra.mxu0 0
      %1310 = vmatprep.subr.bf16.mxu0 0
      %1311 = vmatpush1.bf16.msra.mxu0 0
      %1312 = vmatprep.subr.bf16.mxu0 0
      %1313 = vmatpush1.bf16.msra.mxu0 0
      %1314 = vmatprep.subr.bf16.mxu0 0
      %1315 = vmatpush1.bf16.msra.mxu0 0
      %1316 = vmatprep.subr.bf16.mxu0 0
      %1317 = vmatpush1.bf16.msra.mxu0 0
      %1318 = vmatprep.subr.bf16.mxu0 0
      %1319 = vmatpush1.bf16.msra.mxu0 0
      %1320 = vmatprep.subr.bf16.mxu0 0
      %1321 = vmatpush1.bf16.msra.mxu0 0
      %1322 = vmatprep.subr.bf16.mxu0 0
      %1323 = vmatpush1.bf16.msra.mxu0 0
      %1324 = vmatprep.subr.bf16.mxu0 0
      %1325 = vmatpush1.bf16.msra.mxu0 0
      %1326 = vmatprep.subr.bf16.mxu0 0
      %1327 = vmatpush1.bf16.msra.mxu0 0
      %1328 = vmatprep.subr.bf16.mxu0 0
      %1329 = vmatpush1.bf16.msra.mxu0 0
      %1330 = vmatprep.subr.bf16.mxu0 0
      %1331 = vmatpush1.bf16.msra.mxu0 0
      %1332 = vmatprep.mubr.bf16.mxu0 0
      %1333 = vmatmul.mubr.bf16.gmra.mrb[0].mxu0 %v931
      %v1334 = vpop.f32.mrb[0].mxu0
      %v1335 = vadd.f32 %v1174, %v1334
      %v1336 = vpop.f32.mrb[0].mxu0
      %v1337 = vpop.f32.mrb[0].mxu0
      %v1338 = vadd.f32 %v1177, %v1337
      %v1339 = vpop.f32.mrb[0].mxu0
      %1340 = vmatprep.mubr.bf16.mxu0 0
      %1341 = vmatmul.mubr.bf16.gmra.mrb[0].mxu0 %v934
      %v1342 = vpop.f32.mrb[0].mxu0
      %v1343 = vadd.f32 %v1182, %v1342
      %v1344 = vpop.f32.mrb[0].mxu0
      %v1345 = vpop.f32.mrb[0].mxu0
      %v1346 = vadd.f32 %v1185, %v1345
      %v1347 = vpop.f32.mrb[0].mxu0
      %1348 = vmatprep.mubr.bf16.mxu0 0
      %1349 = vmatmul.mubr.bf16.gmra.mrb[0].mxu0 %v937
      %v1350 = vpop.f32.mrb[0].mxu0
      %v1351 = vadd.f32 %v1190, %v1350
      %v1352 = vpop.f32.mrb[0].mxu0
      %v1353 = vpop.f32.mrb[0].mxu0
      %v1354 = vadd.f32 %v1193, %v1353
      %v1355 = vpop.f32.mrb[0].mxu0
      %1356 = vmatprep.mubr.bf16.mxu0 0
      %1357 = vmatmul.mubr.bf16.gmra.mrb[0].mxu0 %v940
      %v1358 = vpop.f32.mrb[0].mxu0
      %v1359 = vadd.f32 %v1198, %v1358
      %v1360 = vpop.f32.mrb[0].mxu0
      %v1361 = vpop.f32.mrb[0].mxu0
      %v1362 = vadd.f32 %v1201, %v1361
      %v1363 = vpop.f32.mrb[0].mxu0
      %1364 = vmatprep.mubr.bf16.mxu0 0
      %1365 = vmatmul.mubr.bf16.gmra.mrb[0].mxu0 %v943
      %v1366 = vpop.f32.mrb[0].mxu0
      %v1367 = vadd.f32 %v1206, %v1366
      %v1368 = vpop.f32.mrb[0].mxu0
      %v1369 = vpop.f32.mrb[0].mxu0
      %v1370 = vadd.f32 %v1209, %v1369
      %v1371 = vpop.f32.mrb[0].mxu0
      %1372 = vmatprep.mubr.bf16.mxu0 0
      %1373 = vmatmul.mubr.bf16.gmra.mrb[0].mxu0 %v946
      %v1374 = vpop.f32.mrb[0].mxu0
      %v1375 = vadd.f32 %v1214, %v1374
      %v1376 = vpop.f32.mrb[0].mxu0
      %v1377 = vpop.f32.mrb[0].mxu0
      %v1378 = vadd.f32 %v1217, %v1377
      %v1379 = vpop.f32.mrb[0].mxu0
      %1380 = vmatprep.mubr.bf16.mxu0 0
      %1381 = vmatmul.mubr.bf16.gmra.mrb[0].mxu0 %v949
      %v1382 = vpop.f32.mrb[0].mxu0
      %v1383 = vadd.f32 %v1222, %v1382
      %v1384 = vpop.f32.mrb[0].mxu0
      %v1385 = vpop.f32.mrb[0].mxu0
      %v1386 = vadd.f32 %v1225, %v1385
      %v1387 = vpop.f32.mrb[0].mxu0
      %1388 = vmatprep.mubr.bf16.mxu0 0
      %1389 = vmatmul.mubr.bf16.gmra.mrb[0].mxu0 %v952
      %v1390 = vpop.f32.mrb[0].mxu0
      %v1391 = vadd.f32 %v1230, %v1390
      %v1392 = vpop.f32.mrb[0].mxu0
      %v1393 = vpop.f32.mrb[0].mxu0
      %v1394 = vadd.f32 %v1233, %v1393
      %v1395 = vpop.f32.mrb[0].mxu0
      %1396 = vmatprep.mubr.bf16.mxu0 0
      %1397 = vmatmul.mubr.bf16.gmra.mrb[0].mxu0 %v955
      %v1398 = vpop.f32.mrb[0].mxu0
      %v1399 = vadd.f32 %v1238, %v1398
      %v1400 = vpop.f32.mrb[0].mxu0
      %v1401 = vpop.f32.mrb[0].mxu0
      %v1402 = vadd.f32 %v1241, %v1401
      %v1403 = vpop.f32.mrb[0].mxu0
      %1404 = vmatprep.mubr.bf16.mxu0 0
      %1405 = vmatmul.mubr.bf16.gmra.mrb[0].mxu0 %v958
      %v1406 = vpop.f32.mrb[0].mxu0
      %v1407 = vadd.f32 %v1246, %v1406
      %v1408 = vpop.f32.mrb[0].mxu0
      %v1409 = vpop.f32.mrb[0].mxu0
      %v1410 = vadd.f32 %v1249, %v1409
      %v1411 = vpop.f32.mrb[0].mxu0
      %1412 = vmatprep.mubr.bf16.mxu0 0
      %1413 = vmatmul.mubr.bf16.gmra.mrb[0].mxu0 %v961
      %v1414 = vpop.f32.mrb[0].mxu0
      %v1415 = vadd.f32 %v1254, %v1414
      %v1416 = vpop.f32.mrb[0].mxu0
      %v1417 = vpop.f32.mrb[0].mxu0
      %v1418 = vadd.f32 %v1257, %v1417
      %v1419 = vpop.f32.mrb[0].mxu0
      %1420 = vmatprep.mubr.bf16.mxu0 0
      %1421 = vmatmul.mubr.bf16.gmra.mrb[0].mxu0 %v964
      %v1422 = vpop.f32.mrb[0].mxu0
      %v1423 = vadd.f32 %v1262, %v1422
      %v1424 = vpop.f32.mrb[0].mxu0
      %v1425 = vpop.f32.mrb[0].mxu0
      %v1426 = vadd.f32 %v1265, %v1425
      %v1427 = vpop.f32.mrb[0].mxu0
      %1428 = vmatprep.mubr.bf16.mxu0 0
      %1429 = vmatmul.mubr.bf16.gmra.mrb[0].mxu0 %v967
      %v1430 = vpop.f32.mrb[0].mxu0
      %v1431 = vadd.f32 %v1270, %v1430
      %v1432 = vpop.f32.mrb[0].mxu0
      %v1433 = vpop.f32.mrb[0].mxu0
      %v1434 = vadd.f32 %v1273, %v1433
      %v1435 = vpop.f32.mrb[0].mxu0
      %1436 = vmatprep.mubr.bf16.mxu0 0
      %1437 = vmatmul.mubr.bf16.gmra.mrb[0].mxu0 %v970
      %v1438 = vpop.f32.mrb[0].mxu0
      %v1439 = vadd.f32 %v1278, %v1438
      %v1440 = vpop.f32.mrb[0].mxu0
      %v1441 = vpop.f32.mrb[0].mxu0
      %v1442 = vadd.f32 %v1281, %v1441
      %v1443 = vpop.f32.mrb[0].mxu0
      %1444 = vmatprep.mubr.bf16.mxu0 0
      %1445 = vmatmul.mubr.bf16.gmra.mrb[0].mxu0 %v973
      %v1446 = vpop.f32.mrb[0].mxu0
      %v1447 = vadd.f32 %v1286, %v1446
      %v1448 = vpop.f32.mrb[0].mxu0
      %v1449 = vpop.f32.mrb[0].mxu0
      %v1450 = vadd.f32 %v1289, %v1449
      %v1451 = vpop.f32.mrb[0].mxu0
      %1452 = vmatprep.mubr.bf16.mxu0 0
      %1453 = vmatmul.mubr.bf16.gmra.mrb[0].mxu0 %v976
      %v1454 = vpop.f32.mrb[0].mxu0
      %v1455 = vadd.f32 %v1294, %v1454
      %v1456 = vpop.f32.mrb[0].mxu0
      %v1457 = vpop.f32.mrb[0].mxu0
      %v1458 = vadd.f32 %v1297, %v1457
      %v1459 = vpop.f32.mrb[0].mxu0
      %1460 = vdwg.mxu0
      %v1461 = vsel %vm929, %v1335, 0.0
      %v1462 = vsel %vm929, %v1338, 0.0
      %v1463 = vadd.f32 %v1461, %v1462
      %v1464 = vsel %vm929, %v1343, 0.0
      %v1465 = vadd.f32 %v1463, %v1464
      %v1466 = vsel %vm929, %v1346, 0.0
      %v1467 = vadd.f32 %v1465, %v1466
      %v1468 = vsel %vm929, %v1351, 0.0
      %v1469 = vadd.f32 %v1467, %v1468
      %v1470 = vsel %vm929, %v1354, 0.0
      %v1471 = vadd.f32 %v1469, %v1470
      %v1472 = vsel %vm929, %v1359, 0.0
      %v1473 = vadd.f32 %v1471, %v1472
      %v1474 = vsel %vm929, %v1362, 0.0
      %v1475 = vadd.f32 %v1473, %v1474
      %v1476 = vsel %vm929, %v1367, 0.0
      %v1477 = vadd.f32 %v1475, %v1476
      %v1478 = vsel %vm929, %v1370, 0.0
      %v1479 = vadd.f32 %v1477, %v1478
      %v1480 = vsel %vm929, %v1375, 0.0
      %v1481 = vadd.f32 %v1479, %v1480
      %v1482 = vsel %vm929, %v1378, 0.0
      %v1483 = vadd.f32 %v1481, %v1482
      %v1484 = vsel %vm929, %v1383, 0.0
      %v1485 = vadd.f32 %v1483, %v1484
      %v1486 = vsel %vm929, %v1386, 0.0
      %v1487 = vadd.f32 %v1485, %v1486
      %v1488 = vsel %vm929, %v1391, 0.0
      %v1489 = vadd.f32 %v1487, %v1488
      %v1490 = vsel %vm929, %v1394, 0.0
      %v1491 = vadd.f32 %v1489, %v1490
      %v1492 = vsel %vm929, %v1399, 0.0
      %v1493 = vadd.f32 %v1491, %v1492
      %v1494 = vsel %vm929, %v1402, 0.0
      %v1495 = vadd.f32 %v1493, %v1494
      %v1496 = vsel %vm929, %v1407, 0.0
      %v1497 = vadd.f32 %v1495, %v1496
      %v1498 = vsel %vm929, %v1410, 0.0
      %v1499 = vadd.f32 %v1497, %v1498
      %v1500 = vsel %vm929, %v1415, 0.0
      %v1501 = vadd.f32 %v1499, %v1500
      %v1502 = vsel %vm929, %v1418, 0.0
      %v1503 = vadd.f32 %v1501, %v1502
      %v1504 = vsel %vm929, %v1423, 0.0
      %v1505 = vadd.f32 %v1503, %v1504
      %v1506 = vsel %vm929, %v1426, 0.0
      %v1507 = vadd.f32 %v1505, %v1506
      %v1508 = vsel %vm929, %v1431, 0.0
      %v1509 = vadd.f32 %v1507, %v1508
      %v1510 = vsel %vm929, %v1434, 0.0
      %v1511 = vadd.f32 %v1509, %v1510
      %v1512 = vsel %vm929, %v1439, 0.0
      %v1513 = vadd.f32 %v1511, %v1512
      %v1514 = vsel %vm929, %v1442, 0.0
      %v1515 = vadd.f32 %v1513, %v1514
      %v1516 = vsel %vm929, %v1447, 0.0
      %v1517 = vadd.f32 %v1515, %v1516
      %v1518 = vsel %vm929, %v1450, 0.0
      %v1519 = vadd.f32 %v1517, %v1518
      %v1520 = vsel %vm929, %v1455, 0.0
      %v1521 = vadd.f32 %v1519, %v1520
      %v1522 = vsel %vm929, %v1458, 0.0
      %v1523 = vadd.f32 %v1521, %v1522
      %v1524 = vrot.slane %v1523, 4
      %v1525 = vadd.f32 %v1523, %v1524
      %v1526 = vrot.slane %v1525, 2
      %v1527 = vadd.f32 %v1525, %v1526
      %v1528 = vrot.slane %v1527, 1
      %v1529 = vadd.f32 %v1527, %v1528
      %v1530 = vrcp.pop 256.0
      %v1531 = vmul.f32 %v1529, %v1530
      %v1532 = vsub.f32 %v1335, %v1531
      %v1533 = vsub.f32 %v1338, %v1531
      %v1534 = vsub.f32 %v1343, %v1531
      %v1535 = vsub.f32 %v1346, %v1531
      %v1536 = vsub.f32 %v1351, %v1531
      %v1537 = vsub.f32 %v1354, %v1531
      %v1538 = vsub.f32 %v1359, %v1531
      %v1539 = vsub.f32 %v1362, %v1531
      %v1540 = vsub.f32 %v1367, %v1531
      %v1541 = vsub.f32 %v1370, %v1531
      %v1542 = vsub.f32 %v1375, %v1531
      %v1543 = vsub.f32 %v1378, %v1531
      %v1544 = vsub.f32 %v1383, %v1531
      %v1545 = vsub.f32 %v1386, %v1531
      %v1546 = vsub.f32 %v1391, %v1531
      %v1547 = vsub.f32 %v1394, %v1531
      %v1548 = vsub.f32 %v1399, %v1531
      %v1549 = vsub.f32 %v1402, %v1531
      %v1550 = vsub.f32 %v1407, %v1531
      %v1551 = vsub.f32 %v1410, %v1531
      %v1552 = vsub.f32 %v1415, %v1531
      %v1553 = vsub.f32 %v1418, %v1531
      %v1554 = vsub.f32 %v1423, %v1531
      %v1555 = vsub.f32 %v1426, %v1531
      %v1556 = vsub.f32 %v1431, %v1531
      %v1557 = vsub.f32 %v1434, %v1531
      %v1558 = vsub.f32 %v1439, %v1531
      %v1559 = vsub.f32 %v1442, %v1531
      %v1560 = vsub.f32 %v1447, %v1531
      %v1561 = vsub.f32 %v1450, %v1531
      %v1562 = vsub.f32 %v1455, %v1531
      %v1563 = vsub.f32 %v1458, %v1531
      %v1564 = vmul.f32 %v1532, %v1532
      %v1565 = vmul.f32 %v1533, %v1533
      %v1566 = vmul.f32 %v1534, %v1534
      %v1567 = vmul.f32 %v1535, %v1535
      %v1568 = vmul.f32 %v1536, %v1536
      %v1569 = vmul.f32 %v1537, %v1537
      %v1570 = vmul.f32 %v1538, %v1538
      %v1571 = vmul.f32 %v1539, %v1539
      %v1572 = vmul.f32 %v1540, %v1540
      %v1573 = vmul.f32 %v1541, %v1541
      %v1574 = vmul.f32 %v1542, %v1542
      %v1575 = vmul.f32 %v1543, %v1543
      %v1576 = vmul.f32 %v1544, %v1544
      %v1577 = vmul.f32 %v1545, %v1545
      %v1578 = vmul.f32 %v1546, %v1546
      %v1579 = vmul.f32 %v1547, %v1547
      %v1580 = vmul.f32 %v1548, %v1548
      %v1581 = vmul.f32 %v1549, %v1549
      %v1582 = vmul.f32 %v1550, %v1550
      %v1583 = vmul.f32 %v1551, %v1551
      %v1584 = vmul.f32 %v1552, %v1552
      %v1585 = vmul.f32 %v1553, %v1553
      %v1586 = vmul.f32 %v1554, %v1554
      %v1587 = vmul.f32 %v1555, %v1555
      %v1588 = vmul.f32 %v1556, %v1556
      %v1589 = vmul.f32 %v1557, %v1557
      %v1590 = vmul.f32 %v1558, %v1558
      %v1591 = vmul.f32 %v1559, %v1559
      %v1592 = vmul.f32 %v1560, %v1560
      %v1593 = vmul.f32 %v1561, %v1561
      %v1594 = vmul.f32 %v1562, %v1562
      %v1595 = vmul.f32 %v1563, %v1563
      %v1596 = vsel %vm929, %v1564, 0.0
      %v1597 = vsel %vm929, %v1565, 0.0
      %v1598 = vadd.f32 %v1596, %v1597
      %v1599 = vsel %vm929, %v1566, 0.0
      %v1600 = vadd.f32 %v1598, %v1599
      %v1601 = vsel %vm929, %v1567, 0.0
      %v1602 = vadd.f32 %v1600, %v1601
      %v1603 = vsel %vm929, %v1568, 0.0
      %v1604 = vadd.f32 %v1602, %v1603
      %v1605 = vsel %vm929, %v1569, 0.0
      %v1606 = vadd.f32 %v1604, %v1605
      %v1607 = vsel %vm929, %v1570, 0.0
      %v1608 = vadd.f32 %v1606, %v1607
      %v1609 = vsel %vm929, %v1571, 0.0
      %v1610 = vadd.f32 %v1608, %v1609
      %v1611 = vsel %vm929, %v1572, 0.0
      %v1612 = vadd.f32 %v1610, %v1611
      %v1613 = vsel %vm929, %v1573, 0.0
      %v1614 = vadd.f32 %v1612, %v1613
      %v1615 = vsel %vm929, %v1574, 0.0
      %v1616 = vadd.f32 %v1614, %v1615
      %v1617 = vsel %vm929, %v1575, 0.0
      %v1618 = vadd.f32 %v1616, %v1617
      %v1619 = vsel %vm929, %v1576, 0.0
      %v1620 = vadd.f32 %v1618, %v1619
      %v1621 = vsel %vm929, %v1577, 0.0
      %v1622 = vadd.f32 %v1620, %v1621
      %v1623 = vsel %vm929, %v1578, 0.0
      %v1624 = vadd.f32 %v1622, %v1623
      %v1625 = vsel %vm929, %v1579, 0.0
      %v1626 = vadd.f32 %v1624, %v1625
      %v1627 = vsel %vm929, %v1580, 0.0
      %v1628 = vadd.f32 %v1626, %v1627
      %v1629 = vsel %vm929, %v1581, 0.0
      %v1630 = vadd.f32 %v1628, %v1629
      %v1631 = vsel %vm929, %v1582, 0.0
      %v1632 = vadd.f32 %v1630, %v1631
      %v1633 = vsel %vm929, %v1583, 0.0
      %v1634 = vadd.f32 %v1632, %v1633
      %v1635 = vsel %vm929, %v1584, 0.0
      %v1636 = vadd.f32 %v1634, %v1635
      %v1637 = vsel %vm929, %v1585, 0.0
      %v1638 = vadd.f32 %v1636, %v1637
      %v1639 = vsel %vm929, %v1586, 0.0
      %v1640 = vadd.f32 %v1638, %v1639
      %v1641 = vsel %vm929, %v1587, 0.0
      %v1642 = vadd.f32 %v1640, %v1641
      %v1643 = vsel %vm929, %v1588, 0.0
      %v1644 = vadd.f32 %v1642, %v1643
      %v1645 = vsel %vm929, %v1589, 0.0
      %v1646 = vadd.f32 %v1644, %v1645
      %v1647 = vsel %vm929, %v1590, 0.0
      %v1648 = vadd.f32 %v1646, %v1647
      %v1649 = vsel %vm929, %v1591, 0.0
      %v1650 = vadd.f32 %v1648, %v1649
      %v1651 = vsel %vm929, %v1592, 0.0
      %v1652 = vadd.f32 %v1650, %v1651
      %v1653 = vsel %vm929, %v1593, 0.0
      %v1654 = vadd.f32 %v1652, %v1653
      %v1655 = vsel %vm929, %v1594, 0.0
      %v1656 = vadd.f32 %v1654, %v1655
      %v1657 = vsel %vm929, %v1595, 0.0
      %v1658 = vadd.f32 %v1656, %v1657
      %v1659 = vrot.slane %v1658, 4
      %v1660 = vadd.f32 %v1658, %v1659
      %v1661 = vrot.slane %v1660, 2
      %v1662 = vadd.f32 %v1660, %v1661
      %v1663 = vrot.slane %v1662, 1
      %v1664 = vadd.f32 %v1662, %v1663
      %v1665 = vmul.f32 %v1664, %v1530
      %v1666 = vadd.f32 %v1665, 1e-05
      %v1667 = vrsqrt.pop %v1666
      %v1668 = vmul.f32 %v1532, %v1667
      %v1669 = vmul.f32 %v1533, %v1667
      %v1670 = vmul.f32 %v1534, %v1667
      %v1671 = vmul.f32 %v1535, %v1667
      %v1672 = vmul.f32 %v1536, %v1667
      %v1673 = vmul.f32 %v1537, %v1667
      %v1674 = vmul.f32 %v1538, %v1667
      %v1675 = vmul.f32 %v1539, %v1667
      %v1676 = vmul.f32 %v1540, %v1667
      %v1677 = vmul.f32 %v1541, %v1667
      %v1678 = vmul.f32 %v1542, %v1667
      %v1679 = vmul.f32 %v1543, %v1667
      %v1680 = vmul.f32 %v1544, %v1667
      %v1681 = vmul.f32 %v1545, %v1667
      %v1682 = vmul.f32 %v1546, %v1667
      %v1683 = vmul.f32 %v1547, %v1667
      %v1684 = vmul.f32 %v1548, %v1667
      %v1685 = vmul.f32 %v1549, %v1667
      %v1686 = vmul.f32 %v1550, %v1667
      %v1687 = vmul.f32 %v1551, %v1667
      %v1688 = vmul.f32 %v1552, %v1667
      %v1689 = vmul.f32 %v1553, %v1667
      %v1690 = vmul.f32 %v1554, %v1667
      %v1691 = vmul.f32 %v1555, %v1667
      %v1692 = vmul.f32 %v1556, %v1667
      %v1693 = vmul.f32 %v1557, %v1667
      %v1694 = vmul.f32 %v1558, %v1667
      %v1695 = vmul.f32 %v1559, %v1667
      %v1696 = vmul.f32 %v1560, %v1667
      %v1697 = vmul.f32 %v1561, %v1667
      %v1698 = vmul.f32 %v1562, %v1667
      %v1699 = vmul.f32 %v1563, %v1667
      %v1700 = vmax.f32 %v1668, 0.0
      %v1701 = vmax.f32 %v1669, 0.0
      %v1702 = vmax.f32 %v1670, 0.0
      %v1703 = vmax.f32 %v1671, 0.0
      %v1704 = vmax.f32 %v1672, 0.0
      %v1705 = vmax.f32 %v1673, 0.0
      %v1706 = vmax.f32 %v1674, 0.0
      %v1707 = vmax.f32 %v1675, 0.0
      %v1708 = vmax.f32 %v1676, 0.0
      %v1709 = vmax.f32 %v1677, 0.0
      %v1710 = vmax.f32 %v1678, 0.0
      %v1711 = vmax.f32 %v1679, 0.0
      %v1712 = vmax.f32 %v1680, 0.0
      %v1713 = vmax.f32 %v1681, 0.0
      %v1714 = vmax.f32 %v1682, 0.0
      %v1715 = vmax.f32 %v1683, 0.0
      %v1716 = vmax.f32 %v1684, 0.0
      %v1717 = vmax.f32 %v1685, 0.0
      %v1718 = vmax.f32 %v1686, 0.0
      %v1719 = vmax.f32 %v1687, 0.0
      %v1720 = vmax.f32 %v1688, 0.0
      %v1721 = vmax.f32 %v1689, 0.0
      %v1722 = vmax.f32 %v1690, 0.0
      %v1723 = vmax.f32 %v1691, 0.0
      %v1724 = vmax.f32 %v1692, 0.0
      %v1725 = vmax.f32 %v1693, 0.0
      %v1726 = vmax.f32 %v1694, 0.0
      %v1727 = vmax.f32 %v1695, 0.0
      %v1728 = vmax.f32 %v1696, 0.0
      %v1729 = vmax.f32 %v1697, 0.0
      %v1730 = vmax.f32 %v1698, 0.0
      %v1731 = vmax.f32 %v1699, 0.0
      %1732 = vst.msk [vmem:[%s143] sm:$0xff] %vm929, %v1700
      %1733 = vst.msk [vmem:[%s143 + $0x8] sm:$0xff] %vm929, %v1701
      %1734 = vst.msk [vmem:[%s143 + $0x10] sm:$0xff] %vm929, %v1702
      %1735 = vst.msk [vmem:[%s143 + $0x18] sm:$0xff] %vm929, %v1703
      %1736 = vst.msk [vmem:[%s143 + $0x20] sm:$0xff] %vm929, %v1704
      %1737 = vst.msk [vmem:[%s143 + $0x28] sm:$0xff] %vm929, %v1705
      %1738 = vst.msk [vmem:[%s143 + $0x30] sm:$0xff] %vm929, %v1706
      %1739 = vst.msk [vmem:[%s143 + $0x38] sm:$0xff] %vm929, %v1707
      %1740 = vst.msk [vmem:[%s143 + $0x40] sm:$0xff] %vm929, %v1708
      %1741 = vst.msk [vmem:[%s143 + $0x48] sm:$0xff] %vm929, %v1709
      %1742 = vst.msk [vmem:[%s143 + $0x50] sm:$0xff] %vm929, %v1710
      %1743 = vst.msk [vmem:[%s143 + $0x58] sm:$0xff] %vm929, %v1711
      %1744 = vst.msk [vmem:[%s143 + $0x60] sm:$0xff] %vm929, %v1712
      %1745 = vst.msk [vmem:[%s143 + $0x68] sm:$0xff] %vm929, %v1713
      %1746 = vst.msk [vmem:[%s143 + $0x70] sm:$0xff] %vm929, %v1714
      %1747 = vst.msk [vmem:[%s143 + $0x78] sm:$0xff] %vm929, %v1715
      %1748 = vst.msk [vmem:[%s143 + $0x80] sm:$0xff] %vm929, %v1716
      %1749 = vst.msk [vmem:[%s143 + $0x88] sm:$0xff] %vm929, %v1717
      %1750 = vst.msk [vmem:[%s143 + $0x90] sm:$0xff] %vm929, %v1718
      %1751 = vst.msk [vmem:[%s143 + $0x98] sm:$0xff] %vm929, %v1719
      %1752 = vst.msk [vmem:[%s143 + $0xa0] sm:$0xff] %vm929, %v1720
      %1753 = vst.msk [vmem:[%s143 + $0xa8] sm:$0xff] %vm929, %v1721
      %1754 = vst.msk [vmem:[%s143 + $0xb0] sm:$0xff] %vm929, %v1722
      %1755 = vst.msk [vmem:[%s143 + $0xb8] sm:$0xff] %vm929, %v1723
      %1756 = vst.msk [vmem:[%s143 + $0xc0] sm:$0xff] %vm929, %v1724
      %1757 = vst.msk [vmem:[%s143 + $0xc8] sm:$0xff] %vm929, %v1725
      %1758 = vst.msk [vmem:[%s143 + $0xd0] sm:$0xff] %vm929, %v1726
      %1759 = vst.msk [vmem:[%s143 + $0xd8] sm:$0xff] %vm929, %v1727
      %1760 = vst.msk [vmem:[%s143 + $0xe0] sm:$0xff] %vm929, %v1728
      %1761 = vst.msk [vmem:[%s143 + $0xe8] sm:$0xff] %vm929, %v1729
      %1762 = vst.msk [vmem:[%s143 + $0xf0] sm:$0xff] %vm929, %v1730
      %1763 = vst.msk [vmem:[%s143 + $0xf8] sm:$0xff] %vm929, %v1731
      %p1764 = scmp.lt.s32.totalorder %s13, 1
      %s1765 = scalar_select %p1764, %s13, 1
      %s1766 = smul.addr %s1765, 32
      %s1767 = smul.addr %s1766, 8
      %s1768 = scalar_lea.vmem %s2, %s1767
      // Predicated region
      $region29: #{base_discriminator_forward.9} parent=27 // pred_check
        %p1769 = pneg %p78
      $region30: #{base_discriminator_forward.9} parent=27 // pred_check_branch
        %1771 = sbr.rel (%p1769) target = $region32
      $region31: #{base_discriminator_forward.9} parent=27 // pred_region
        _
      $region32: #{base_discriminator_forward.9} parent=27 // pred_fallthru
        _
    $region28: #{base_discriminator_forward.9} parent=5 // pred_fallthru
      _
    %p1772 = scmp.le.s32.totalorder 2, %s8
    // Predicated region
    $region33: #{base_discriminator_forward.9} parent=5 // pred_check
      %p1773 = pneg %p1772
    $region34: #{base_discriminator_forward.9} parent=5 // pred_check_branch
      %1775 = sbr.rel (%p1773) target = $region36
    $region35: #{base_discriminator_forward.9} parent=5 // pred_region
      %s1776 = ssub.s32 %s8, 2
      // Predicated region
      $region37: #{base_discriminator_forward.9} parent=35 // pred_check
        %p1777 = pneg %p84
      $region38: #{base_discriminator_forward.9} parent=35 // pred_check_branch
        %1779 = sbr.rel (%p1777) target = $region40
      $region39: #{base_discriminator_forward.9} parent=35 // pred_region
        %p1780 = scmp.lt.s32.totalorder %s14, 1
        %s1781 = scalar_select %p1780, %s14, 1
        %s1782 = smul.addr %s1781, 32
        %s1783 = smul.addr %s1782, 8
        %s1784 = scalar_lea.vmem %s2, %s1783
      $region40: #{base_discriminator_forward.9} parent=35 // pred_fallthru
        _
    $region36: #{base_discriminator_forward.9} parent=5 // pred_fallthru
      _
  $region6: #{base_discriminator_forward.9} parent=0 // loop_footer
    %s12 = sadd.s32 1, %s8
  $region7: #{base_discriminator_forward.9} parent=0 // loop_footer_branch
    %7 = sbr.rel target = $region3
  $region8: #{base_discriminator_forward.9} parent=0 // loop_exit
    _

// kernel: base_discriminator_forward.10
$region0: #{base_discriminator_forward.10}
  #allocation0 [shape = 'u32[]', space=smem, size = 0x4, offset = 0x4, fixed_abs, tag = 'smem constant byte address 0x4 - core index']
  #allocation1 [shape = 'u32[144,128]{1,0:T(1,128)}', space=vmem, size = 0x12000, scoped, tag = 'internal scratch']
  %s0 = inlined_call_operand.vmem [shape: bf16[2,49,576], index: 0, kind: input, shape index: {}]
  %s1 = inlined_call_operand.vmem [shape: bf16[576,128], index: 1, kind: input, shape index: {}]
  %s2 = inlined_call_operand.vmem [shape: f32[2,49,128], index: 2, kind: output, shape index: {}]
  %s3 = sld [smem:[#allocation0]]
  $region41: #{base_discriminator_forward.10} parent=0
    _
  %s5 = ssub.s32 1, %s3
  %s6 = scalar_select 0, %s5, %s3
  loop: start=0, step=1, limit=4
  $region2: #{base_discriminator_forward.10} parent=0 // loop_pre_header
    _
  $region3: #{base_discriminator_forward.10} parent=0 // loop_header
    %s8 = sphi 0, %s12
    %p9 = scmp.ge.s32.totalorder %s8, 4
    %s18 = sphi 0, %s20
    %s21 = sphi 0, %s18
    %s22 = sphi 0, %s21
    %s38 = sphi 0, %s22
    %s42 = sphi 0, %s42
    %s44 = sphi 0, %s42
    %s45 = sphi 0, %s44
    %s59 = sphi 0, %s45
    %s65 = sphi 0, %s67
    %s68 = sphi 0, %s65
    %s69 = sphi 0, %s68
    %s85 = sphi 0, %s69
  $region4: #{base_discriminator_forward.10} parent=0 // loop_header_branch
    %11 = sbr.rel (%p9) target = $region8
  $region5: #{base_discriminator_forward.10} parent=0 // loop_body
    %s13 = ssub.s32 %s8, 1
    %s14 = ssub.s32 %s8, 2
    %s15 = sadd.s32 %s8, 1
    %s16 = ssub.s32 %s8, %s15
    %p17 = scmp.eq.s32.totalorder %s16, 0
    %s19 = sadd.s32 %s18, 1
    %s20 = scalar_select %p17, %s18, %s19
    %p23 = pneg %p17
    %p24 = scmp.eq.s32.totalorder %s8, 1
    %p25 = por %p23, %p24
    %p26 = scmp.ne.s32.totalorder %s18, %s21
    %p27 = scmp.eq.s32.totalorder %s8, 0
    %p28 = por %p26, %p27
    %p29 = scmp.ne.s32.totalorder %s18, %s21
    %p30 = scmp.eq.s32.totalorder %s13, 1
    %p31 = por %p29, %p30
    %p32 = scmp.ne.s32.totalorder %s21, %s22
    %p33 = scmp.eq.s32.totalorder %s13, 0
    %p34 = por %p32, %p33
    %p35 = scmp.ne.s32.totalorder %s21, %s22
    %p36 = scmp.eq.s32.totalorder %s14, 1
    %p37 = por %p35, %p36
    %p39 = scmp.ne.s32.totalorder %s22, %s38
    %p40 = scmp.eq.s32.totalorder %s14, 0
    %p41 = por %p39, %p40
    %s43 = sadd.s32 %s42, 1
    %p46 = scmp.eq.s32.totalorder %s8, 1
    %p47 = scmp.ne.s32.totalorder %s42, %s44
    %p48 = scmp.eq.s32.totalorder %s8, 0
    %p49 = por %p47, %p48
    %p50 = scmp.ne.s32.totalorder %s42, %s44
    %p51 = scmp.eq.s32.totalorder %s13, 1
    %p52 = por %p50, %p51
    %p53 = scmp.ne.s32.totalorder %s44, %s45
    %p54 = scmp.eq.s32.totalorder %s13, 0
    %p55 = por %p53, %p54
    %p56 = scmp.ne.s32.totalorder %s44, %s45
    %p57 = scmp.eq.s32.totalorder %s14, 1
    %p58 = por %p56, %p57
    %p60 = scmp.ne.s32.totalorder %s45, %s59
    %p61 = scmp.eq.s32.totalorder %s14, 0
    %p62 = por %p60, %p61
    %s63 = ssub.s32 %s8, %s15
    %p64 = scmp.eq.s32.totalorder %s63, 0
    %s66 = sadd.s32 %s65, 1
    %s67 = scalar_select %p64, %s65, %s66
    %p70 = pneg %p64
    %p71 = scmp.eq.s32.totalorder %s8, 1
    %p72 = por %p70, %p71
    %p73 = scmp.ne.s32.totalorder %s65, %s68
    %p74 = scmp.eq.s32.totalorder %s8, 0
    %p75 = por %p73, %p74
    %p76 = scmp.ne.s32.totalorder %s65, %s68
    %p77 = scmp.eq.s32.totalorder %s13, 1
    %p78 = por %p76, %p77
    %p79 = scmp.ne.s32.totalorder %s68, %s69
    %p80 = scmp.eq.s32.totalorder %s13, 0
    %p81 = por %p79, %p80
    %p82 = scmp.ne.s32.totalorder %s68, %s69
    %p83 = scmp.eq.s32.totalorder %s14, 1
    %p84 = por %p82, %p83
    %p86 = scmp.ne.s32.totalorder %s69, %s85
    %p87 = scmp.eq.s32.totalorder %s14, 0
    %p88 = por %p86, %p87
    %p89 = scmp.le.s32.totalorder 1, %s8
    %p90 = scmp.lt.s32.totalorder %s8, 3
    %p91 = pnand %p89, %p90
    %p92 = pneg %p91
    // Predicated region
    $region9: #{base_discriminator_forward.10} parent=5 // pred_check
      _
    $region10: #{base_discriminator_forward.10} parent=5 // pred_check_branch
      %94 = sbr.rel (%p91) target = $region12
    $region11: #{base_discriminator_forward.10} parent=5 // pred_region
      %s95 = ssub.s32 %s8, 1
      // Predicated region
      $region13: #{base_discriminator_forward.10} parent=11 // pred_check
        %p96 = pneg %p55
      $region14: #{base_discriminator_forward.10} parent=11 // pred_check_branch
        %98 = sbr.rel (%p96) target = $region16
      $region15: #{base_discriminator_forward.10} parent=11 // pred_region
        _
      $region16: #{base_discriminator_forward.10} parent=11 // pred_fallthru
        _
    $region12: #{base_discriminator_forward.10} parent=5 // pred_fallthru
      _
    %p99 = scmp.lt.s32.totalorder %s8, 2
    // Predicated region
    $region17: #{base_discriminator_forward.10} parent=5 // pred_check
      %p100 = pneg %p99
    $region18: #{base_discriminator_forward.10} parent=5 // pred_check_branch
      %102 = sbr.rel (%p100) target = $region20
    $region19: #{base_discriminator_forward.10} parent=5 // pred_region
      // Predicated region
      $region21: #{base_discriminator_forward.10} parent=19 // pred_check
        %p103 = pneg %p28
      $region22: #{base_discriminator_forward.10} parent=19 // pred_check_branch
        %105 = sbr.rel (%p103) target = $region24
      $region23: #{base_discriminator_forward.10} parent=19 // pred_region
        %p106 = scmp.lt.s32.totalorder %s8, 1
        %s107 = scalar_select %p106, %s8, 1
        %s108 = smul.addr %s107, 35
        %s109 = smul.addr %s108, 4
        %s110 = scalar_lea.vmem %s0, %s109
      $region24: #{base_discriminator_forward.10} parent=19 // pred_fallthru
        _
    $region20: #{base_discriminator_forward.10} parent=5 // pred_fallthru
      _
    %p111 = scmp.le.s32.totalorder 1, %s8
    %p112 = scmp.lt.s32.totalorder %s8, 3
    %p113 = pnand %p111, %p112
    %p114 = pneg %p113
    // Predicated region
    $region25: #{base_discriminator_forward.10} parent=5 // pred_check
      _
    $region26: #{base_discriminator_forward.10} parent=5 // pred_check_branch
      %116 = sbr.rel (%p113) target = $region28
    $region27: #{base_discriminator_forward.10} parent=5 // pred_region
      %s117 = ssub.s32 %s8, 1
      %p118 = scmp.lt.s32.totalorder %s13, 1
      %s119 = scalar_select %p118, %s13, 1
      %s120 = smul.addr %s119, 35
      %s121 = smul.addr %s120, 4
      %s122 = scalar_lea.vmem %s0, %s121
      %p123 = pneg %p34
      %p124 = pneg %p31
      %p125 = pneg %p55
      %p126 = pneg %p52
      %p127 = pneg %p81
      %p128 = pneg %p78
      %p129 = scmp.lt.s32.totalorder %s13, 1
      %s130 = scalar_select %p129, %s13, 1
      %s131 = smul.addr %s130, 7
      %s132 = smul.addr %s131, 8
      %s133 = scalar_lea.vmem %s2, %s132
      %p134 = scmp.lt.s32.totalorder %s13, 1
      %s135 = scalar_select %p134, %s13, 1
      %s136 = smul.addr %s135, 35
      %s137 = smul.addr %s136, 4
      %s138 = scalar_lea.vmem %s0, %s137
      %p139 = scmp.lt.s32.totalorder %s13, 1
      %s140 = scalar_select %p139, %s13, 1
      %s141 = smul.addr %s140, 7
      %s142 = smul.addr %s141, 8
      %s143 = scalar_lea.vmem %s2, %s142
      %v145 = vld [vmem:[%s138] sm:$0xff]
      %v146 = vld [vmem:[%s138 + $0x8] sm:$0xff]
      %v147 = vld [vmem:[%s138 + $0x10] sm:$0xf]
      %v148 = vld [vmem:[%s138 + $0x14] sm:$0xff]
      %v149 = vld [vmem:[%s138 + $0x1c] sm:$0xff]
      %v150 = vld [vmem:[%s138 + $0x24] sm:$0xf]
      %v151 = vld [vmem:[%s138 + $0x28] sm:$0xff]
      %v152 = vld [vmem:[%s138 + $0x30] sm:$0xff]
      %v153 = vld [vmem:[%s138 + $0x38] sm:$0xf]
      %v154 = vld [vmem:[%s138 + $0x3c] sm:$0xff]
      %v155 = vld [vmem:[%s138 + $0x44] sm:$0xff]
      %v156 = vld [vmem:[%s138 + $0x4c] sm:$0xf]
      %v157 = vld [vmem:[%s138 + $0x50] sm:$0xff]
      %v158 = vld [vmem:[%s138 + $0x58] sm:$0xff]
      %v159 = vld [vmem:[%s138 + $0x60] sm:$0xf]
      %v160 = vld [vmem:[%s138 + $0x64] sm:$0xff]
      %v161 = vld [vmem:[%s138 + $0x6c] sm:$0xff]
      %v162 = vld [vmem:[%s138 + $0x74] sm:$0xf]
      %v163 = vld [vmem:[%s138 + $0x78] sm:$0x11]
      %v164 = vld [vmem:[%s138 + $0x80] sm:$0x11]
      %v165 = vld [vmem:[%s138 + $0x88] sm:$0x1]
      %v166 = vld [vmem:[%s1] sm:$0xf]
      %v167 = vld [vmem:[%s1 + $0x4] sm:$0xf]
      %v168 = vld [vmem:[%s1 + $0x8] sm:$0xf]
      %v169 = vld [vmem:[%s1 + $0xc] sm:$0xf]
      %v170 = vld [vmem:[%s1 + $0x10] sm:$0xf]
      %v171 = vld [vmem:[%s1 + $0x14] sm:$0xf]
      %v172 = vld [vmem:[%s1 + $0x18] sm:$0xf]
      %v173 = vld [vmem:[%s1 + $0x1c] sm:$0xf]
      %v174 = vld [vmem:[%s1 + $0x20] sm:$0xf]
      %v175 = vld [vmem:[%s1 + $0x24] sm:$0xf]
      %v176 = vld [vmem:[%s1 + $0x28] sm:$0xf]
      %v177 = vld [vmem:[%s1 + $0x2c] sm:$0xf]
      %v178 = vld [vmem:[%s1 + $0x30] sm:$0xf]
      %v179 = vld [vmem:[%s1 + $0x34] sm:$0xf]
      %v180 = vld [vmem:[%s1 + $0x38] sm:$0xf]
      %v181 = vld [vmem:[%s1 + $0x3c] sm:$0xf]
      %v182 = vld [vmem:[%s1 + $0x40] sm:$0xf]
      %v183 = vld [vmem:[%s1 + $0x44] sm:$0xf]
      %v184 = vld [vmem:[%s1 + $0x48] sm:$0xf]
      %v185 = vld [vmem:[%s1 + $0x4c] sm:$0xf]
      %v186 = vld [vmem:[%s1 + $0x50] sm:$0xf]
      %v187 = vld [vmem:[%s1 + $0x54] sm:$0xf]
      %v188 = vld [vmem:[%s1 + $0x58] sm:$0xf]
      %v189 = vld [vmem:[%s1 + $0x5c] sm:$0xf]
      %v190 = vld [vmem:[%s1 + $0x60] sm:$0xf]
      %v191 = vld [vmem:[%s1 + $0x64] sm:$0xf]
      %v192 = vld [vmem:[%s1 + $0x68] sm:$0xf]
      %v193 = vld [vmem:[%s1 + $0x6c] sm:$0xf]
      %v194 = vld [vmem:[%s1 + $0x70] sm:$0xf]
      %v195 = vld [vmem:[%s1 + $0x74] sm:$0xf]
      %v196 = vld [vmem:[%s1 + $0x78] sm:$0xf]
      %v197 = vld [vmem:[%s1 + $0x7c] sm:$0xf]
      %v198 = vld [vmem:[%s1 + $0x80] sm:$0xf]
      %v199 = vld [vmem:[%s1 + $0x84] sm:$0xf]
      %v200 = vld [vmem:[%s1 + $0x88] sm:$0xf]
      %v201 = vld [vmem:[%s1 + $0x8c] sm:$0xf]
      %v202 = vld [vmem:[%s1 + $0x90] sm:$0xf]
      %v203 = vld [vmem:[%s1 + $0x94] sm:$0xf]
      %v204 = vld [vmem:[%s1 + $0x98] sm:$0xf]
      %v205 = vld [vmem:[%s1 + $0x9c] sm:$0xf]
      %v206 = vld [vmem:[%s1 + $0xa0] sm:$0xf]
      %v207 = vld [vmem:[%s1 + $0xa4] sm:$0xf]
      %v208 = vld [vmem:[%s1 + $0xa8] sm:$0xf]
      %v209 = vld [vmem:[%s1 + $0xac] sm:$0xf]
      %v210 = vld [vmem:[%s1 + $0xb0] sm:$0xf]
      %v211 = vld [vmem:[%s1 + $0xb4] sm:$0xf]
      %v212 = vld [vmem:[%s1 + $0xb8] sm:$0xf]
      %v213 = vld [vmem:[%s1 + $0xbc] sm:$0xf]
      %v214 = vld [vmem:[%s1 + $0xc0] sm:$0xf]
      %v215 = vld [vmem:[%s1 + $0xc4] sm:$0xf]
      %v216 = vld [vmem:[%s1 + $0xc8] sm:$0xf]
      %v217 = vld [vmem:[%s1 + $0xcc] sm:$0xf]
      %v218 = vld [vmem:[%s1 + $0xd0] sm:$0xf]
      %v219 = vld [vmem:[%s1 + $0xd4] sm:$0xf]
      %v220 = vld [vmem:[%s1 + $0xd8] sm:$0xf]
      %v221 = vld [vmem:[%s1 + $0xdc] sm:$0xf]
      %v222 = vld [vmem:[%s1 + $0xe0] sm:$0xf]
      %v223 = vld [vmem:[%s1 + $0xe4] sm:$0xf]
      %v224 = vld [vmem:[%s1 + $0xe8] sm:$0xf]
      %v225 = vld [vmem:[%s1 + $0xec] sm:$0xf]
      %v226 = vld [vmem:[%s1 + $0xf0] sm:$0xf]
      %v227 = vld [vmem:[%s1 + $0xf4] sm:$0xf]
      %v228 = vld [vmem:[%s1 + $0xf8] sm:$0xf]
      %v229 = vld [vmem:[%s1 + $0xfc] sm:$0xf]
      %v230 = vld [vmem:[%s1 + $0x100] sm:$0xf]
      %v231 = vld [vmem:[%s1 + $0x104] sm:$0xf]
      %v232 = vld [vmem:[%s1 + $0x108] sm:$0xf]
      %v233 = vld [vmem:[%s1 + $0x10c] sm:$0xf]
      %v234 = vld [vmem:[%s1 + $0x110] sm:$0xf]
      %v235 = vld [vmem:[%s1 + $0x114] sm:$0xf]
      %v236 = vld [vmem:[%s1 + $0x118] sm:$0xf]
      %v237 = vld [vmem:[%s1 + $0x11c] sm:$0xf]
      %v259 = vunpack.c.l.b16 %v145
      %v260 = vunpack.c.h.b16 %v145
      %v261 = vunpack.c.l.b16 %v146
      %v262 = vunpack.c.h.b16 %v146
      %v263 = vunpack.c.l.b16 %v147
      %v264 = vunpack.c.l.b16 %v148
      %v265 = vunpack.c.h.b16 %v148
      %v266 = vunpack.c.l.b16 %v149
      %v267 = vunpack.c.h.b16 %v149
      %v268 = vunpack.c.l.b16 %v150
      %v269 = vunpack.c.l.b16 %v151
      %v270 = vunpack.c.h.b16 %v151
      %v271 = vunpack.c.l.b16 %v152
      %v272 = vunpack.c.h.b16 %v152
      %v273 = vunpack.c.l.b16 %v153
      %v274 = vunpack.c.l.b16 %v154
      %v275 = vunpack.c.h.b16 %v154
      %v276 = vunpack.c.l.b16 %v155
      %v277 = vunpack.c.h.b16 %v155
      %v278 = vunpack.c.l.b16 %v156
      %v279 = vunpack.c.l.b16 %v157
      %v280 = vunpack.c.h.b16 %v157
      %v281 = vunpack.c.l.b16 %v158
      %v282 = vunpack.c.h.b16 %v158
      %v283 = vunpack.c.l.b16 %v159
      %v284 = vunpack.c.l.b16 %v160
      %v285 = vunpack.c.h.b16 %v160
      %v286 = vunpack.c.l.b16 %v161
      %v287 = vunpack.c.h.b16 %v161
      %v288 = vunpack.c.l.b16 %v162
      %v289 = vunpack.c.l.b16 %v163
      %v290 = vunpack.c.h.b16 %v163
      %v291 = vunpack.c.l.b16 %v164
      %v292 = vunpack.c.h.b16 %v164
      %v293 = vunpack.c.l.b16 %v165
      %v294 = vpack.c.b16 %v264, %v259
      %v295 = vpack.c.b16 %v265, %v260
      %v296 = vpack.c.b16 %v266, %v261
      %v297 = vpack.c.b16 %v267, %v262
      %v298 = vpack.c.b16 %v268, %v263
      %v299 = vpack.c.b16 %v274, %v269
      %v300 = vpack.c.b16 %v275, %v270
      %v301 = vpack.c.b16 %v276, %v271
      %v302 = vpack.c.b16 %v277, %v272
      %v303 = vpack.c.b16 %v278, %v273
      %v304 = vpack.c.b16 %v284, %v279
      %v305 = vpack.c.b16 %v285, %v280
      %v306 = vpack.c.b16 %v286, %v281
      %v307 = vpack.c.b16 %v287, %v282
      %v308 = vpack.c.b16 %v288, %v283
      %v309 = vpack.c.b16 %v289, %v289
      %v310 = vpack.c.b16 %v290, %v290
      %v311 = vpack.c.b16 %v291, %v291
      %v312 = vpack.c.b16 %v292, %v292
      %v313 = vpack.c.b16 %v293, %v293
      %v402 = vunpack.c.l.b16 %v166
      %v403 = vunpack.c.l.b16 %v167
      %v404 = vunpack.c.l.b16 %v168
      %v405 = vunpack.c.l.b16 %v169
      %v406 = vunpack.c.l.b16 %v170
      %v407 = vunpack.c.l.b16 %v171
      %v408 = vunpack.c.l.b16 %v172
      %v409 = vunpack.c.l.b16 %v173
      %v410 = vunpack.c.l.b16 %v174
      %v411 = vunpack.c.l.b16 %v175
      %v412 = vunpack.c.l.b16 %v176
      %v413 = vunpack.c.l.b16 %v177
      %v414 = vunpack.c.l.b16 %v178
      %v415 = vunpack.c.l.b16 %v179
      %v416 = vunpack.c.l.b16 %v180
      %v417 = vunpack.c.l.b16 %v181
      %v418 = vunpack.c.l.b16 %v182
      %v419 = vunpack.c.l.b16 %v183
      %v420 = vunpack.c.l.b16 %v184
      %v421 = vunpack.c.l.b16 %v185
      %v422 = vunpack.c.l.b16 %v186
      %v423 = vunpack.c.l.b16 %v187
      %v424 = vunpack.c.l.b16 %v188
      %v425 = vunpack.c.l.b16 %v189
      %v426 = vunpack.c.l.b16 %v190
      %v427 = vunpack.c.l.b16 %v191
      %v428 = vunpack.c.l.b16 %v192
      %v429 = vunpack.c.l.b16 %v193
      %v430 = vunpack.c.l.b16 %v194
      %v431 = vunpack.c.l.b16 %v195
      %v432 = vunpack.c.l.b16 %v196
      %v433 = vunpack.c.l.b16 %v197
      %v434 = vunpack.c.l.b16 %v198
      %v435 = vunpack.c.l.b16 %v199
      %v436 = vunpack.c.l.b16 %v200
      %v437 = vunpack.c.l.b16 %v201
      %v438 = vunpack.c.l.b16 %v202
      %v439 = vunpack.c.l.b16 %v203
      %v440 = vunpack.c.l.b16 %v204
      %v441 = vunpack.c.l.b16 %v205
      %v442 = vunpack.c.l.b16 %v206
      %v443 = vunpack.c.l.b16 %v207
      %v444 = vunpack.c.l.b16 %v208
      %v445 = vunpack.c.l.b16 %v209
      %v446 = vunpack.c.l.b16 %v210
      %v447 = vunpack.c.l.b16 %v211
      %v448 = vunpack.c.l.b16 %v212
      %v449 = vunpack.c.l.b16 %v213
      %v450 = vunpack.c.l.b16 %v214
      %v451 = vunpack.c.l.b16 %v215
      %v452 = vunpack.c.l.b16 %v216
      %v453 = vunpack.c.l.b16 %v217
      %v454 = vunpack.c.l.b16 %v218
      %v455 = vunpack.c.l.b16 %v219
      %v456 = vunpack.c.l.b16 %v220
      %v457 = vunpack.c.l.b16 %v221
      %v458 = vunpack.c.l.b16 %v222
      %v459 = vunpack.c.l.b16 %v223
      %v460 = vunpack.c.l.b16 %v224
      %v461 = vunpack.c.l.b16 %v225
      %v462 = vunpack.c.l.b16 %v226
      %v463 = vunpack.c.l.b16 %v227
      %v464 = vunpack.c.l.b16 %v228
      %v465 = vunpack.c.l.b16 %v229
      %v466 = vunpack.c.l.b16 %v230
      %v467 = vunpack.c.l.b16 %v231
      %v468 = vunpack.c.l.b16 %v232
      %v469 = vunpack.c.l.b16 %v233
      %v470 = vunpack.c.l.b16 %v234
      %v471 = vunpack.c.l.b16 %v235
      %v472 = vunpack.c.l.b16 %v236
      %v473 = vunpack.c.l.b16 %v237
      %v474 = vpack.c.b16 %v403, %v402
      %v475 = vpack.c.b16 %v405, %v404
      %v476 = vpack.c.b16 %v407, %v406
      %v477 = vpack.c.b16 %v409, %v408
      %v478 = vpack.c.b16 %v411, %v410
      %v479 = vpack.c.b16 %v413, %v412
      %v480 = vpack.c.b16 %v415, %v414
      %v481 = vpack.c.b16 %v417, %v416
      %v482 = vpack.c.b16 %v419, %v418
      %v483 = vpack.c.b16 %v421, %v420
      %v484 = vpack.c.b16 %v423, %v422
      %v485 = vpack.c.b16 %v425, %v424
      %v486 = vpack.c.b16 %v427, %v426
      %v487 = vpack.c.b16 %v429, %v428
      %v488 = vpack.c.b16 %v431, %v430
      %v489 = vpack.c.b16 %v433, %v432
      %v490 = vpack.c.b16 %v435, %v434
      %v491 = vpack.c.b16 %v437, %v436
      %v492 = vpack.c.b16 %v439, %v438
      %v493 = vpack.c.b16 %v441, %v440
      %v494 = vpack.c.b16 %v443, %v442
      %v495 = vpack.c.b16 %v445, %v444
      %v496 = vpack.c.b16 %v447, %v446
      %v497 = vpack.c.b16 %v449, %v448
      %v498 = vpack.c.b16 %v451, %v450
      %v499 = vpack.c.b16 %v453, %v452
      %v500 = vpack.c.b16 %v455, %v454
      %v501 = vpack.c.b16 %v457, %v456
      %v502 = vpack.c.b16 %v459, %v458
      %v503 = vpack.c.b16 %v461, %v460
      %v504 = vpack.c.b16 %v463, %v462
      %v505 = vpack.c.b16 %v465, %v464
      %v506 = vpack.c.b16 %v467, %v466
      %v507 = vpack.c.b16 %v469, %v468
      %v508 = vpack.c.b16 %v471, %v470
      %v509 = vpack.c.b16 %v473, %v472
      %vm546 = vcmask 523264
      %v548 = vsel %vm546, %v298, 0
      %v551 = vsel %vm546, %v303, 0
      %v554 = vsel %vm546, %v308, 0
      %v557 = vsel %vm546, %v313, 0
      %559 = vmatprep.subr.bf16.mxu0 0
      %560 = vmatpush1.bf16.msra.mxu0 %v474
      %561 = vmatprep.subr.bf16.mxu0 0
      %562 = vmatpush1.bf16.msra.mxu0 %v475
      %563 = vmatprep.subr.bf16.mxu0 0
      %564 = vmatpush1.bf16.msra.mxu0 %v476
      %565 = vmatprep.subr.bf16.mxu0 0
      %566 = vmatpush1.bf16.msra.mxu0 %v477
      %567 = vmatprep.subr.bf16.mxu0 0
      %568 = vmatpush1.bf16.msra.mxu0 %v478
      %569 = vmatprep.subr.bf16.mxu0 0
      %570 = vmatpush1.bf16.msra.mxu0 %v479
      %571 = vmatprep.subr.bf16.mxu0 0
      %572 = vmatpush1.bf16.msra.mxu0 %v480
      %573 = vmatprep.subr.bf16.mxu0 0
      %574 = vmatpush1.bf16.msra.mxu0 %v481
      %575 = vmatprep.subr.bf16.mxu0 0
      %576 = vmatpush1.bf16.msra.mxu0 %v482
      %577 = vmatprep.subr.bf16.mxu0 0
      %578 = vmatpush1.bf16.msra.mxu0 %v483
      %579 = vmatprep.subr.bf16.mxu0 0
      %580 = vmatpush1.bf16.msra.mxu0 %v484
      %581 = vmatprep.subr.bf16.mxu0 0
      %582 = vmatpush1.bf16.msra.mxu0 %v485
      %583 = vmatprep.subr.bf16.mxu0 0
      %584 = vmatpush1.bf16.msra.mxu0 %v486
      %585 = vmatprep.subr.bf16.mxu0 0
      %586 = vmatpush1.bf16.msra.mxu0 %v487
      %587 = vmatprep.subr.bf16.mxu0 0
      %588 = vmatpush1.bf16.msra.mxu0 %v488
      %589 = vmatprep.subr.bf16.mxu0 0
      %590 = vmatpush1.bf16.msra.mxu0 %v489
      %591 = vmatprep.mubr.bf16.mxu0 %v295
      %592 = vmatmul.mubr.bf16.gmra.mrb[0].mxu0 %v294
      %v593 = vpop.f32.mrb[0].mxu0
      %v594 = vadd.f32 0.0, %v593
      %v595 = vpop.f32.mrb[0].mxu0
      %v596 = vpop.f32.mrb[0].mxu0
      %v597 = vadd.f32 0.0, %v596
      %v598 = vpop.f32.mrb[0].mxu0
      %599 = vmatprep.mubr.bf16.mxu0 %v300
      %600 = vmatmul.mubr.bf16.gmra.mrb[0].mxu0 %v299
      %v601 = vpop.f32.mrb[0].mxu0
      %v602 = vadd.f32 0.0, %v601
      %v603 = vpop.f32.mrb[0].mxu0
      %v604 = vpop.f32.mrb[0].mxu0
      %v605 = vadd.f32 0.0, %v604
      %v606 = vpop.f32.mrb[0].mxu0
      %607 = vmatprep.mubr.bf16.mxu0 %v305
      %608 = vmatmul.mubr.bf16.gmra.mrb[0].mxu0 %v304
      %v609 = vpop.f32.mrb[0].mxu0
      %v610 = vadd.f32 0.0, %v609
      %v611 = vpop.f32.mrb[0].mxu0
      %v612 = vpop.f32.mrb[0].mxu0
      %v613 = vadd.f32 0.0, %v612
      %v614 = vpop.f32.mrb[0].mxu0
      %615 = vmatprep.mubr.bf16.mxu0 %v310
      %616 = vmatmul.mubr.bf16.gmra.mrb[0].mxu0 %v309
      %v617 = vpop.f32.mrb[0].mxu0
      %v618 = vadd.f32 0.0, %v617
      %v619 = vpop.f32.mrb[0].mxu0
      %v620 = vpop.f32.mrb[0].mxu0
      %v621 = vpop.f32.mrb[0].mxu0
      %622 = vdwg.mxu0
      %623 = vmatprep.subr.bf16.mxu0 0
      %624 = vmatpush1.bf16.msra.mxu0 %v490
      %625 = vmatprep.subr.bf16.mxu0 0
      %626 = vmatpush1.bf16.msra.mxu0 %v491
      %627 = vmatprep.subr.bf16.mxu0 0
      %628 = vmatpush1.bf16.msra.mxu0 %v492
      %629 = vmatprep.subr.bf16.mxu0 0
      %630 = vmatpush1.bf16.msra.mxu0 %v493
      %631 = vmatprep.subr.bf16.mxu0 0
      %632 = vmatpush1.bf16.msra.mxu0 %v494
      %633 = vmatprep.subr.bf16.mxu0 0
      %634 = vmatpush1.bf16.msra.mxu0 %v495
      %635 = vmatprep.subr.bf16.mxu0 0
      %636 = vmatpush1.bf16.msra.mxu0 %v496
      %637 = vmatprep.subr.bf16.mxu0 0
      %638 = vmatpush1.bf16.msra.mxu0 %v497
      %639 = vmatprep.subr.bf16.mxu0 0
      %640 = vmatpush1.bf16.msra.mxu0 %v498
      %641 = vmatprep.subr.bf16.mxu0 0
      %642 = vmatpush1.bf16.msra.mxu0 %v499
      %643 = vmatprep.subr.bf16.mxu0 0
      %644 = vmatpush1.bf16.msra.mxu0 %v500
      %645 = vmatprep.subr.bf16.mxu0 0
      %646 = vmatpush1.bf16.msra.mxu0 %v501
      %647 = vmatprep.subr.bf16.mxu0 0
      %648 = vmatpush1.bf16.msra.mxu0 %v502
      %649 = vmatprep.subr.bf16.mxu0 0
      %650 = vmatpush1.bf16.msra.mxu0 %v503
      %651 = vmatprep.subr.bf16.mxu0 0
      %652 = vmatpush1.bf16.msra.mxu0 %v504
      %653 = vmatprep.subr.bf16.mxu0 0
      %654 = vmatpush1.bf16.msra.mxu0 %v505
      %655 = vmatprep.mubr.bf16.mxu0 %v297
      %656 = vmatmul.mubr.bf16.gmra.mrb[0].mxu0 %v296
      %v657 = vpop.f32.mrb[0].mxu0
      %v658 = vadd.f32 %v594, %v657
      %v659 = vpop.f32.mrb[0].mxu0
      %v660 = vpop.f32.mrb[0].mxu0
      %v661 = vadd.f32 %v597, %v660
      %v662 = vpop.f32.mrb[0].mxu0
      %663 = vmatprep.mubr.bf16.mxu0 %v302
      %664 = vmatmul.mubr.bf16.gmra.mrb[0].mxu0 %v301
      %v665 = vpop.f32.mrb[0].mxu0
      %v666 = vadd.f32 %v602, %v665
      %v667 = vpop.f32.mrb[0].mxu0
      %v668 = vpop.f32.mrb[0].mxu0
      %v669 = vadd.f32 %v605, %v668
      %v670 = vpop.f32.mrb[0].mxu0
      %671 = vmatprep.mubr.bf16.mxu0 %v307
      %672 = vmatmul.mubr.bf16.gmra.mrb[0].mxu0 %v306
      %v673 = vpop.f32.mrb[0].mxu0
      %v674 = vadd.f32 %v610, %v673
      %v675 = vpop.f32.mrb[0].mxu0
      %v676 = vpop.f32.mrb[0].mxu0
      %v677 = vadd.f32 %v613, %v676
      %v678 = vpop.f32.mrb[0].mxu0
      %679 = vmatprep.mubr.bf16.mxu0 %v312
      %680 = vmatmul.mubr.bf16.gmra.mrb[0].mxu0 %v311
      %v681 = vpop.f32.mrb[0].mxu0
      %v682 = vadd.f32 %v618, %v681
      %v683 = vpop.f32.mrb[0].mxu0
      %v684 = vpop.f32.mrb[0].mxu0
      %v685 = vpop.f32.mrb[0].mxu0
      %686 = vdwg.mxu0
      %687 = vmatprep.subr.bf16.mxu0 0
      %688 = vmatpush1.bf16.msra.mxu0 %v506
      %689 = vmatprep.subr.bf16.mxu0 0
      %690 = vmatpush1.bf16.msra.mxu0 %v507
      %691 = vmatprep.subr.bf16.mxu0 0
      %692 = vmatpush1.bf16.msra.mxu0 %v508
      %693 = vmatprep.subr.bf16.mxu0 0
      %694 = vmatpush1.bf16.msra.mxu0 %v509
      %695 = vmatprep.subr.bf16.mxu0 0
      %696 = vmatpush1.bf16.msra.mxu0 0
      %697 = vmatprep.subr.bf16.mxu0 0
      %698 = vmatpush1.bf16.msra.mxu0 0
      %699 = vmatprep.subr.bf16.mxu0 0
      %700 = vmatpush1.bf16.msra.mxu0 0
      %701 = vmatprep.subr.bf16.mxu0 0
      %702 = vmatpush1.bf16.msra.mxu0 0
      %703 = vmatprep.subr.bf16.mxu0 0
      %704 = vmatpush1.bf16.msra.mxu0 0
      %705 = vmatprep.subr.bf16.mxu0 0
      %706 = vmatpush1.bf16.msra.mxu0 0
      %707 = vmatprep.subr.bf16.mxu0 0
      %708 = vmatpush1.bf16.msra.mxu0 0
      %709 = vmatprep.subr.bf16.mxu0 0
      %710 = vmatpush1.bf16.msra.mxu0 0
      %711 = vmatprep.subr.bf16.mxu0 0
      %712 = vmatpush1.bf16.msra.mxu0 0
      %713 = vmatprep.subr.bf16.mxu0 0
      %714 = vmatpush1.bf16.msra.mxu0 0
      %715 = vmatprep.subr.bf16.mxu0 0
      %716 = vmatpush1.bf16.msra.mxu0 0
      %717 = vmatprep.subr.bf16.mxu0 0
      %718 = vmatpush1.bf16.msra.mxu0 0
      %719 = vmatprep.mubr.bf16.mxu0 0
      %720 = vmatmul.mubr.bf16.gmra.mrb[0].mxu0 %v548
      %v721 = vpop.f32.mrb[0].mxu0
      %v722 = vadd.f32 %v658, %v721
      %v723 = vpop.f32.mrb[0].mxu0
      %v724 = vpop.f32.mrb[0].mxu0
      %v725 = vadd.f32 %v661, %v724
      %v726 = vpop.f32.mrb[0].mxu0
      %727 = vmatprep.mubr.bf16.mxu0 0
      %728 = vmatmul.mubr.bf16.gmra.mrb[0].mxu0 %v551
      %v729 = vpop.f32.mrb[0].mxu0
      %v730 = vadd.f32 %v666, %v729
      %v731 = vpop.f32.mrb[0].mxu0
      %v732 = vpop.f32.mrb[0].mxu0
      %v733 = vadd.f32 %v669, %v732
      %v734 = vpop.f32.mrb[0].mxu0
      %735 = vmatprep.mubr.bf16.mxu0 0
      %736 = vmatmul.mubr.bf16.gmra.mrb[0].mxu0 %v554
      %v737 = vpop.f32.mrb[0].mxu0
      %v738 = vadd.f32 %v674, %v737
      %v739 = vpop.f32.mrb[0].mxu0
      %v740 = vpop.f32.mrb[0].mxu0
      %v741 = vadd.f32 %v677, %v740
      %v742 = vpop.f32.mrb[0].mxu0
      %743 = vmatprep.mubr.bf16.mxu0 0
      %744 = vmatmul.mubr.bf16.gmra.mrb[0].mxu0 %v557
      %v745 = vpop.f32.mrb[0].mxu0
      %v746 = vadd.f32 %v682, %v745
      %v747 = vpop.f32.mrb[0].mxu0
      %v748 = vpop.f32.mrb[0].mxu0
      %v749 = vpop.f32.mrb[0].mxu0
      %750 = vdwg.mxu0
      %v751 = vmax.f32 %v722, 0.0
      %v752 = vmax.f32 %v725, 0.0
      %v753 = vmax.f32 %v730, 0.0
      %v754 = vmax.f32 %v733, 0.0
      %v755 = vmax.f32 %v738, 0.0
      %v756 = vmax.f32 %v741, 0.0
      %v757 = vmax.f32 %v746, 0.0
      %v758 = vadd.f32 %v751, %v752
      %v759 = vadd.f32 %v758, %v753
      %v760 = vadd.f32 %v759, %v754
      %v761 = vadd.f32 %v760, %v755
      %v762 = vadd.f32 %v761, %v756
      %vm763 = vcmask 1040384
      %v764 = vsel %vm763, %v757, 0.0
      %v765 = vadd.f32 %v762, %v764
      %v766 = vrot.slane %v765, 4
      %v767 = vadd.f32 %v765, %v766
      %v768 = vrot.slane %v767, 2
      %v769 = vadd.f32 %v767, %v768
      %v770 = vrot.slane %v769, 1
      %v771 = vadd.f32 %v769, %v770
      %v772 = vrcp.pop 49.0
      %v773 = vmul.f32 %v771, %v772
      %v774 = vsub.f32 %v751, %v773
      %v775 = vsub.f32 %v752, %v773
      %v776 = vsub.f32 %v753, %v773
      %v777 = vsub.f32 %v754, %v773
      %v778 = vsub.f32 %v755, %v773
      %v779 = vsub.f32 %v756, %v773
      %v780 = vsub.f32 %v757, %v773
      %v781 = vmul.f32 %v774, %v774
      %v782 = vmul.f32 %v775, %v775
      %v783 = vmul.f32 %v776, %v776
      %v784 = vmul.f32 %v777, %v777
      %v785 = vmul.f32 %v778, %v778
      %v786 = vmul.f32 %v779, %v779
      %v787 = vmul.f32 %v780, %v780
      %v788 = vadd.f32 %v781, %v782
      %v789 = vadd.f32 %v788, %v783
      %v790 = vadd.f32 %v789, %v784
      %v791 = vadd.f32 %v790, %v785
      %v792 = vadd.f32 %v791, %v786
      %v793 = vsel %vm763, %v787, 0.0
      %v794 = vadd.f32 %v792, %v793
      %v795 = vrot.slane %v794, 4
      %v796 = vadd.f32 %v794, %v795
      %v797 = vrot.slane %v796, 2
      %v798 = vadd.f32 %v796, %v797
      %v799 = vrot.slane %v798, 1
      %v800 = vadd.f32 %v798, %v799
      %v801 = vmul.f32 %v800, %v772
      %v802 = vadd.f32 %v801, 1e-05
      %v803 = vrsqrt.pop %v802
      %v804 = vmul.f32 %v774, %v803
      %v805 = vmul.f32 %v775, %v803
      %v806 = vmul.f32 %v776, %v803
      %v807 = vmul.f32 %v777, %v803
      %v808 = vmul.f32 %v778, %v803
      %v809 = vmul.f32 %v779, %v803
      %v810 = vmul.f32 %v780, %v803
      %811 = vst [vmem:[%s143] sm:$0xff] %v804
      %812 = vst [vmem:[%s143 + $0x8] sm:$0xff] %v805
      %813 = vst [vmem:[%s143 + $0x10] sm:$0xff] %v806
      %814 = vst [vmem:[%s143 + $0x18] sm:$0xff] %v807
      %815 = vst [vmem:[%s143 + $0x20] sm:$0xff] %v808
      %816 = vst [vmem:[%s143 + $0x28] sm:$0xff] %v809
      %817 = vst [vmem:[%s143 + $0x30] sm:$0x1] %v810
      %p818 = scmp.lt.s32.totalorder %s13, 1
      %s819 = scalar_select %p818, %s13, 1
      %s820 = smul.addr %s819, 7
      %s821 = smul.addr %s820, 8
      %s822 = scalar_lea.vmem %s2, %s821
      // Predicated region
      $region29: #{base_discriminator_forward.10} parent=27 // pred_check
        %p823 = pneg %p78
      $region30: #{base_discriminator_forward.10} parent=27 // pred_check_branch
        %825 = sbr.rel (%p823) target = $region32
      $region31: #{base_discriminator_forward.10} parent=27 // pred_region
        _
      $region32: #{base_discriminator_forward.10} parent=27 // pred_fallthru
        _
    $region28: #{base_discriminator_forward.10} parent=5 // pred_fallthru
      _
    %p826 = scmp.le.s32.totalorder 2, %s8
    // Predicated region
    $region33: #{base_discriminator_forward.10} parent=5 // pred_check
      %p827 = pneg %p826
    $region34: #{base_discriminator_forward.10} parent=5 // pred_check_branch
      %829 = sbr.rel (%p827) target = $region36
    $region35: #{base_discriminator_forward.10} parent=5 // pred_region
      %s830 = ssub.s32 %s8, 2
      // Predicated region
      $region37: #{base_discriminator_forward.10} parent=35 // pred_check
        %p831 = pneg %p84
      $region38: #{base_discriminator_forward.10} parent=35 // pred_check_branch
        %833 = sbr.rel (%p831) target = $region40
      $region39: #{base_discriminator_forward.10} parent=35 // pred_region
        %p834 = scmp.lt.s32.totalorder %s14, 1
        %s835 = scalar_select %p834, %s14, 1
        %s836 = smul.addr %s835, 7
        %s837 = smul.addr %s836, 8
        %s838 = scalar_lea.vmem %s2, %s837
      $region40: #{base_discriminator_forward.10} parent=35 // pred_fallthru
        _
    $region36: #{base_discriminator_forward.10} parent=5 // pred_fallthru
      _
  $region6: #{base_discriminator_forward.10} parent=0 // loop_footer
    %s12 = sadd.s32 1, %s8
  $region7: #{base_discriminator_forward.10} parent=0 // loop_footer_branch
    %7 = sbr.rel target = $region3
  $region8: #{base_discriminator_forward.10} parent=0 // loop_exit
    _

// kernel: base_discriminator_forward.11
$region0: #{base_discriminator_forward.11}
  #allocation0 [shape = 'u32[]', space=smem, size = 0x4, offset = 0x4, fixed_abs, tag = 'smem constant byte address 0x4 - core index']
  #allocation1 [shape = 'u32[144,128]{1,0:T(1,128)}', space=vmem, size = 0x12000, scoped, tag = 'internal scratch']
  %s0 = inlined_call_operand.vmem [shape: bf16[2,25,1152], index: 0, kind: input, shape index: {}]
  %s1 = inlined_call_operand.vmem [shape: bf16[1152,128], index: 1, kind: input, shape index: {}]
  %s2 = inlined_call_operand.vmem [shape: f32[2,25,128], index: 2, kind: output, shape index: {}]
  %s3 = sld [smem:[#allocation0]]
  $region41: #{base_discriminator_forward.11} parent=0
    _
  %s5 = ssub.s32 1, %s3
  %s6 = scalar_select 0, %s5, %s3
  loop: start=0, step=1, limit=4
  $region2: #{base_discriminator_forward.11} parent=0 // loop_pre_header
    _
  $region3: #{base_discriminator_forward.11} parent=0 // loop_header
    %s8 = sphi 0, %s12
    %p9 = scmp.ge.s32.totalorder %s8, 4
    %s18 = sphi 0, %s20
    %s21 = sphi 0, %s18
    %s22 = sphi 0, %s21
    %s38 = sphi 0, %s22
    %s42 = sphi 0, %s42
    %s44 = sphi 0, %s42
    %s45 = sphi 0, %s44
    %s59 = sphi 0, %s45
    %s65 = sphi 0, %s67
    %s68 = sphi 0, %s65
    %s69 = sphi 0, %s68
    %s85 = sphi 0, %s69
  $region4: #{base_discriminator_forward.11} parent=0 // loop_header_branch
    %11 = sbr.rel (%p9) target = $region8
  $region5: #{base_discriminator_forward.11} parent=0 // loop_body
    %s13 = ssub.s32 %s8, 1
    %s14 = ssub.s32 %s8, 2
    %s15 = sadd.s32 %s8, 1
    %s16 = ssub.s32 %s8, %s15
    %p17 = scmp.eq.s32.totalorder %s16, 0
    %s19 = sadd.s32 %s18, 1
    %s20 = scalar_select %p17, %s18, %s19
    %p23 = pneg %p17
    %p24 = scmp.eq.s32.totalorder %s8, 1
    %p25 = por %p23, %p24
    %p26 = scmp.ne.s32.totalorder %s18, %s21
    %p27 = scmp.eq.s32.totalorder %s8, 0
    %p28 = por %p26, %p27
    %p29 = scmp.ne.s32.totalorder %s18, %s21
    %p30 = scmp.eq.s32.totalorder %s13, 1
    %p31 = por %p29, %p30
    %p32 = scmp.ne.s32.totalorder %s21, %s22
    %p33 = scmp.eq.s32.totalorder %s13, 0
    %p34 = por %p32, %p33
    %p35 = scmp.ne.s32.totalorder %s21, %s22
    %p36 = scmp.eq.s32.totalorder %s14, 1
    %p37 = por %p35, %p36
    %p39 = scmp.ne.s32.totalorder %s22, %s38
    %p40 = scmp.eq.s32.totalorder %s14, 0
    %p41 = por %p39, %p40
    %s43 = sadd.s32 %s42, 1
    %p46 = scmp.eq.s32.totalorder %s8, 1
    %p47 = scmp.ne.s32.totalorder %s42, %s44
    %p48 = scmp.eq.s32.totalorder %s8, 0
    %p49 = por %p47, %p48
    %p50 = scmp.ne.s32.totalorder %s42, %s44
    %p51 = scmp.eq.s32.totalorder %s13, 1
    %p52 = por %p50, %p51
    %p53 = scmp.ne.s32.totalorder %s44, %s45
    %p54 = scmp.eq.s32.totalorder %s13, 0
    %p55 = por %p53, %p54
    %p56 = scmp.ne.s32.totalorder %s44, %s45
    %p57 = scmp.eq.s32.totalorder %s14, 1
    %p58 = por %p56, %p57
    %p60 = scmp.ne.s32.totalorder %s45, %s59
    %p61 = scmp.eq.s32.totalorder %s14, 0
    %p62 = por %p60, %p61
    %s63 = ssub.s32 %s8, %s15
    %p64 = scmp.eq.s32.totalorder %s63, 0
    %s66 = sadd.s32 %s65, 1
    %s67 = scalar_select %p64, %s65, %s66
    %p70 = pneg %p64
    %p71 = scmp.eq.s32.totalorder %s8, 1
    %p72 = por %p70, %p71
    %p73 = scmp.ne.s32.totalorder %s65, %s68
    %p74 = scmp.eq.s32.totalorder %s8, 0
    %p75 = por %p73, %p74
    %p76 = scmp.ne.s32.totalorder %s65, %s68
    %p77 = scmp.eq.s32.totalorder %s13, 1
    %p78 = por %p76, %p77
    %p79 = scmp.ne.s32.totalorder %s68, %s69
    %p80 = scmp.eq.s32.totalorder %s13, 0
    %p81 = por %p79, %p80
    %p82 = scmp.ne.s32.totalorder %s68, %s69
    %p83 = scmp.eq.s32.totalorder %s14, 1
    %p84 = por %p82, %p83
    %p86 = scmp.ne.s32.totalorder %s69, %s85
    %p87 = scmp.eq.s32.totalorder %s14, 0
    %p88 = por %p86, %p87
    %p89 = scmp.le.s32.totalorder 1, %s8
    %p90 = scmp.lt.s32.totalorder %s8, 3
    %p91 = pnand %p89, %p90
    %p92 = pneg %p91
    // Predicated region
    $region9: #{base_discriminator_forward.11} parent=5 // pred_check
      _
    $region10: #{base_discriminator_forward.11} parent=5 // pred_check_branch
      %94 = sbr.rel (%p91) target = $region12
    $region11: #{base_discriminator_forward.11} parent=5 // pred_region
      %s95 = ssub.s32 %s8, 1
      // Predicated region
      $region13: #{base_discriminator_forward.11} parent=11 // pred_check
        %p96 = pneg %p55
      $region14: #{base_discriminator_forward.11} parent=11 // pred_check_branch
        %98 = sbr.rel (%p96) target = $region16
      $region15: #{base_discriminator_forward.11} parent=11 // pred_region
        _
      $region16: #{base_discriminator_forward.11} parent=11 // pred_fallthru
        _
    $region12: #{base_discriminator_forward.11} parent=5 // pred_fallthru
      _
    %p99 = scmp.lt.s32.totalorder %s8, 2
    // Predicated region
    $region17: #{base_discriminator_forward.11} parent=5 // pred_check
      %p100 = pneg %p99
    $region18: #{base_discriminator_forward.11} parent=5 // pred_check_branch
      %102 = sbr.rel (%p100) target = $region20
    $region19: #{base_discriminator_forward.11} parent=5 // pred_region
      // Predicated region
      $region21: #{base_discriminator_forward.11} parent=19 // pred_check
        %p103 = pneg %p28
      $region22: #{base_discriminator_forward.11} parent=19 // pred_check_branch
        %105 = sbr.rel (%p103) target = $region24
      $region23: #{base_discriminator_forward.11} parent=19 // pred_region
        %p106 = scmp.lt.s32.totalorder %s8, 1
        %s107 = scalar_select %p106, %s8, 1
        %s108 = smul.addr %s107, 36
        %s109 = smul.addr %s108, 4
        %s110 = scalar_lea.vmem %s0, %s109
      $region24: #{base_discriminator_forward.11} parent=19 // pred_fallthru
        _
    $region20: #{base_discriminator_forward.11} parent=5 // pred_fallthru
      _
    %p111 = scmp.le.s32.totalorder 1, %s8
    %p112 = scmp.lt.s32.totalorder %s8, 3
    %p113 = pnand %p111, %p112
    %p114 = pneg %p113
    // Predicated region
    $region25: #{base_discriminator_forward.11} parent=5 // pred_check
      _
    $region26: #{base_discriminator_forward.11} parent=5 // pred_check_branch
      %116 = sbr.rel (%p113) target = $region28
    $region27: #{base_discriminator_forward.11} parent=5 // pred_region
      %s117 = ssub.s32 %s8, 1
      %p118 = scmp.lt.s32.totalorder %s13, 1
      %s119 = scalar_select %p118, %s13, 1
      %s120 = smul.addr %s119, 36
      %s121 = smul.addr %s120, 4
      %s122 = scalar_lea.vmem %s0, %s121
      %p123 = pneg %p34
      %p124 = pneg %p31
      %p125 = pneg %p55
      %p126 = pneg %p52
      %p127 = pneg %p81
      %p128 = pneg %p78
      %p129 = scmp.lt.s32.totalorder %s13, 1
      %s130 = scalar_select %p129, %s13, 1
      %s131 = smul.addr %s130, 4
      %s132 = smul.addr %s131, 8
      %s133 = scalar_lea.vmem %s2, %s132
      %p134 = scmp.lt.s32.totalorder %s13, 1
      %s135 = scalar_select %p134, %s13, 1
      %s136 = smul.addr %s135, 36
      %s137 = smul.addr %s136, 4
      %s138 = scalar_lea.vmem %s0, %s137
      %p139 = scmp.lt.s32.totalorder %s13, 1
      %s140 = scalar_select %p139, %s13, 1
      %s141 = smul.addr %s140, 4
      %s142 = smul.addr %s141, 8
      %s143 = scalar_lea.vmem %s2, %s142
      %v145 = vld [vmem:[%s138] sm:$0xff]
      %v146 = vld [vmem:[%s138 + $0x8] sm:$0xff]
      %v147 = vld [vmem:[%s138 + $0x10] sm:$0xff]
      %v148 = vld [vmem:[%s138 + $0x18] sm:$0xff]
      %v149 = vld [vmem:[%s138 + $0x20] sm:$0xf]
      %v150 = vld [vmem:[%s138 + $0x24] sm:$0xff]
      %v151 = vld [vmem:[%s138 + $0x2c] sm:$0xff]
      %v152 = vld [vmem:[%s138 + $0x34] sm:$0xff]
      %v153 = vld [vmem:[%s138 + $0x3c] sm:$0xff]
      %v154 = vld [vmem:[%s138 + $0x44] sm:$0xf]
      %v155 = vld [vmem:[%s138 + $0x48] sm:$0xff]
      %v156 = vld [vmem:[%s138 + $0x50] sm:$0xff]
      %v157 = vld [vmem:[%s138 + $0x58] sm:$0xff]
      %v158 = vld [vmem:[%s138 + $0x60] sm:$0xff]
      %v159 = vld [vmem:[%s138 + $0x68] sm:$0xf]
      %v160 = vld [vmem:[%s138 + $0x6c] sm:$0x11]
      %v161 = vld [vmem:[%s138 + $0x74] sm:$0x11]
      %v162 = vld [vmem:[%s138 + $0x7c] sm:$0x11]
      %v163 = vld [vmem:[%s138 + $0x84] sm:$0x11]
      %v164 = vld [vmem:[%s138 + $0x8c] sm:$0x1]
      %v165 = vld [vmem:[%s1] sm:$0xf]
      %v166 = vld [vmem:[%s1 + $0x4] sm:$0xf]
      %v167 = vld [vmem:[%s1 + $0x8] sm:$0xf]
      %v168 = vld [vmem:[%s1 + $0xc] sm:$0xf]
      %v169 = vld [vmem:[%s1 + $0x10] sm:$0xf]
      %v170 = vld [vmem:[%s1 + $0x14] sm:$0xf]
      %v171 = vld [vmem:[%s1 + $0x18] sm:$0xf]
      %v172 = vld [vmem:[%s1 + $0x1c] sm:$0xf]
      %v173 = vld [vmem:[%s1 + $0x20] sm:$0xf]
      %v174 = vld [vmem:[%s1 + $0x24] sm:$0xf]
      %v175 = vld [vmem:[%s1 + $0x28] sm:$0xf]
      %v176 = vld [vmem:[%s1 + $0x2c] sm:$0xf]
      %v177 = vld [vmem:[%s1 + $0x30] sm:$0xf]
      %v178 = vld [vmem:[%s1 + $0x34] sm:$0xf]
      %v179 = vld [vmem:[%s1 + $0x38] sm:$0xf]
      %v180 = vld [vmem:[%s1 + $0x3c] sm:$0xf]
      %v181 = vld [vmem:[%s1 + $0x40] sm:$0xf]
      %v182 = vld [vmem:[%s1 + $0x44] sm:$0xf]
      %v183 = vld [vmem:[%s1 + $0x48] sm:$0xf]
      %v184 = vld [vmem:[%s1 + $0x4c] sm:$0xf]
      %v185 = vld [vmem:[%s1 + $0x50] sm:$0xf]
      %v186 = vld [vmem:[%s1 + $0x54] sm:$0xf]
      %v187 = vld [vmem:[%s1 + $0x58] sm:$0xf]
      %v188 = vld [vmem:[%s1 + $0x5c] sm:$0xf]
      %v189 = vld [vmem:[%s1 + $0x60] sm:$0xf]
      %v190 = vld [vmem:[%s1 + $0x64] sm:$0xf]
      %v191 = vld [vmem:[%s1 + $0x68] sm:$0xf]
      %v192 = vld [vmem:[%s1 + $0x6c] sm:$0xf]
      %v193 = vld [vmem:[%s1 + $0x70] sm:$0xf]
      %v194 = vld [vmem:[%s1 + $0x74] sm:$0xf]
      %v195 = vld [vmem:[%s1 + $0x78] sm:$0xf]
      %v196 = vld [vmem:[%s1 + $0x7c] sm:$0xf]
      %v197 = vld [vmem:[%s1 + $0x80] sm:$0xf]
      %v198 = vld [vmem:[%s1 + $0x84] sm:$0xf]
      %v199 = vld [vmem:[%s1 + $0x88] sm:$0xf]
      %v200 = vld [vmem:[%s1 + $0x8c] sm:$0xf]
      %v201 = vld [vmem:[%s1 + $0x90] sm:$0xf]
      %v202 = vld [vmem:[%s1 + $0x94] sm:$0xf]
      %v203 = vld [vmem:[%s1 + $0x98] sm:$0xf]
      %v204 = vld [vmem:[%s1 + $0x9c] sm:$0xf]
      %v205 = vld [vmem:[%s1 + $0xa0] sm:$0xf]
      %v206 = vld [vmem:[%s1 + $0xa4] sm:$0xf]
      %v207 = vld [vmem:[%s1 + $0xa8] sm:$0xf]
      %v208 = vld [vmem:[%s1 + $0xac] sm:$0xf]
      %v209 = vld [vmem:[%s1 + $0xb0] sm:$0xf]
      %v210 = vld [vmem:[%s1 + $0xb4] sm:$0xf]
      %v211 = vld [vmem:[%s1 + $0xb8] sm:$0xf]
      %v212 = vld [vmem:[%s1 + $0xbc] sm:$0xf]
      %v213 = vld [vmem:[%s1 + $0xc0] sm:$0xf]
      %v214 = vld [vmem:[%s1 + $0xc4] sm:$0xf]
      %v215 = vld [vmem:[%s1 + $0xc8] sm:$0xf]
      %v216 = vld [vmem:[%s1 + $0xcc] sm:$0xf]
      %v217 = vld [vmem:[%s1 + $0xd0] sm:$0xf]
      %v218 = vld [vmem:[%s1 + $0xd4] sm:$0xf]
      %v219 = vld [vmem:[%s1 + $0xd8] sm:$0xf]
      %v220 = vld [vmem:[%s1 + $0xdc] sm:$0xf]
      %v221 = vld [vmem:[%s1 + $0xe0] sm:$0xf]
      %v222 = vld [vmem:[%s1 + $0xe4] sm:$0xf]
      %v223 = vld [vmem:[%s1 + $0xe8] sm:$0xf]
      %v224 = vld [vmem:[%s1 + $0xec] sm:$0xf]
      %v225 = vld [vmem:[%s1 + $0xf0] sm:$0xf]
      %v226 = vld [vmem:[%s1 + $0xf4] sm:$0xf]
      %v227 = vld [vmem:[%s1 + $0xf8] sm:$0xf]
      %v228 = vld [vmem:[%s1 + $0xfc] sm:$0xf]
      %v229 = vld [vmem:[%s1 + $0x100] sm:$0xf]
      %v230 = vld [vmem:[%s1 + $0x104] sm:$0xf]
      %v231 = vld [vmem:[%s1 + $0x108] sm:$0xf]
      %v232 = vld [vmem:[%s1 + $0x10c] sm:$0xf]
      %v233 = vld [vmem:[%s1 + $0x110] sm:$0xf]
      %v234 = vld [vmem:[%s1 + $0x114] sm:$0xf]
      %v235 = vld [vmem:[%s1 + $0x118] sm:$0xf]
      %v236 = vld [vmem:[%s1 + $0x11c] sm:$0xf]
      %v237 = vld [vmem:[%s1 + $0x120] sm:$0xf]
      %v238 = vld [vmem:[%s1 + $0x124] sm:$0xf]
      %v239 = vld [vmem:[%s1 + $0x128] sm:$0xf]
      %v240 = vld [vmem:[%s1 + $0x12c] sm:$0xf]
      %v241 = vld [vmem:[%s1 + $0x130] sm:$0xf]
      %v242 = vld [vmem:[%s1 + $0x134] sm:$0xf]
      %v243 = vld [vmem:[%s1 + $0x138] sm:$0xf]
      %v244 = vld [vmem:[%s1 + $0x13c] sm:$0xf]
      %v245 = vld [vmem:[%s1 + $0x140] sm:$0xf]
      %v246 = vld [vmem:[%s1 + $0x144] sm:$0xf]
      %v247 = vld [vmem:[%s1 + $0x148] sm:$0xf]
      %v248 = vld [vmem:[%s1 + $0x14c] sm:$0xf]
      %v249 = vld [vmem:[%s1 + $0x150] sm:$0xf]
      %v250 = vld [vmem:[%s1 + $0x154] sm:$0xf]
      %v251 = vld [vmem:[%s1 + $0x158] sm:$0xf]
      %v252 = vld [vmem:[%s1 + $0x15c] sm:$0xf]
      %v253 = vld [vmem:[%s1 + $0x160] sm:$0xf]
      %v254 = vld [vmem:[%s1 + $0x164] sm:$0xf]
      %v255 = vld [vmem:[%s1 + $0x168] sm:$0xf]
      %v256 = vld [vmem:[%s1 + $0x16c] sm:$0xf]
      %v257 = vld [vmem:[%s1 + $0x170] sm:$0xf]
      %v258 = vld [vmem:[%s1 + $0x174] sm:$0xf]
      %v259 = vld [vmem:[%s1 + $0x178] sm:$0xf]
      %v260 = vld [vmem:[%s1 + $0x17c] sm:$0xf]
      %v261 = vld [vmem:[%s1 + $0x180] sm:$0xf]
      %v262 = vld [vmem:[%s1 + $0x184] sm:$0xf]
      %v263 = vld [vmem:[%s1 + $0x188] sm:$0xf]
      %v264 = vld [vmem:[%s1 + $0x18c] sm:$0xf]
      %v265 = vld [vmem:[%s1 + $0x190] sm:$0xf]
      %v266 = vld [vmem:[%s1 + $0x194] sm:$0xf]
      %v267 = vld [vmem:[%s1 + $0x198] sm:$0xf]
      %v268 = vld [vmem:[%s1 + $0x19c] sm:$0xf]
      %v269 = vld [vmem:[%s1 + $0x1a0] sm:$0xf]
      %v270 = vld [vmem:[%s1 + $0x1a4] sm:$0xf]
      %v271 = vld [vmem:[%s1 + $0x1a8] sm:$0xf]
      %v272 = vld [vmem:[%s1 + $0x1ac] sm:$0xf]
      %v273 = vld [vmem:[%s1 + $0x1b0] sm:$0xf]
      %v274 = vld [vmem:[%s1 + $0x1b4] sm:$0xf]
      %v275 = vld [vmem:[%s1 + $0x1b8] sm:$0xf]
      %v276 = vld [vmem:[%s1 + $0x1bc] sm:$0xf]
      %v277 = vld [vmem:[%s1 + $0x1c0] sm:$0xf]
      %v278 = vld [vmem:[%s1 + $0x1c4] sm:$0xf]
      %v279 = vld [vmem:[%s1 + $0x1c8] sm:$0xf]
      %v280 = vld [vmem:[%s1 + $0x1cc] sm:$0xf]
      %v281 = vld [vmem:[%s1 + $0x1d0] sm:$0xf]
      %v282 = vld [vmem:[%s1 + $0x1d4] sm:$0xf]
      %v283 = vld [vmem:[%s1 + $0x1d8] sm:$0xf]
      %v284 = vld [vmem:[%s1 + $0x1dc] sm:$0xf]
      %v285 = vld [vmem:[%s1 + $0x1e0] sm:$0xf]
      %v286 = vld [vmem:[%s1 + $0x1e4] sm:$0xf]
      %v287 = vld [vmem:[%s1 + $0x1e8] sm:$0xf]
      %v288 = vld [vmem:[%s1 + $0x1ec] sm:$0xf]
      %v289 = vld [vmem:[%s1 + $0x1f0] sm:$0xf]
      %v290 = vld [vmem:[%s1 + $0x1f4] sm:$0xf]
      %v291 = vld [vmem:[%s1 + $0x1f8] sm:$0xf]
      %v292 = vld [vmem:[%s1 + $0x1fc] sm:$0xf]
      %v293 = vld [vmem:[%s1 + $0x200] sm:$0xf]
      %v294 = vld [vmem:[%s1 + $0x204] sm:$0xf]
      %v295 = vld [vmem:[%s1 + $0x208] sm:$0xf]
      %v296 = vld [vmem:[%s1 + $0x20c] sm:$0xf]
      %v297 = vld [vmem:[%s1 + $0x210] sm:$0xf]
      %v298 = vld [vmem:[%s1 + $0x214] sm:$0xf]
      %v299 = vld [vmem:[%s1 + $0x218] sm:$0xf]
      %v300 = vld [vmem:[%s1 + $0x21c] sm:$0xf]
      %v301 = vld [vmem:[%s1 + $0x220] sm:$0xf]
      %v302 = vld [vmem:[%s1 + $0x224] sm:$0xf]
      %v303 = vld [vmem:[%s1 + $0x228] sm:$0xf]
      %v304 = vld [vmem:[%s1 + $0x22c] sm:$0xf]
      %v305 = vld [vmem:[%s1 + $0x230] sm:$0xf]
      %v306 = vld [vmem:[%s1 + $0x234] sm:$0xf]
      %v307 = vld [vmem:[%s1 + $0x238] sm:$0xf]
      %v308 = vld [vmem:[%s1 + $0x23c] sm:$0xf]
      %v329 = vunpack.c.l.b16 %v145
      %v330 = vunpack.c.h.b16 %v145
      %v331 = vunpack.c.l.b16 %v146
      %v332 = vunpack.c.h.b16 %v146
      %v333 = vunpack.c.l.b16 %v147
      %v334 = vunpack.c.h.b16 %v147
      %v335 = vunpack.c.l.b16 %v148
      %v336 = vunpack.c.h.b16 %v148
      %v337 = vunpack.c.l.b16 %v149
      %v338 = vunpack.c.l.b16 %v150
      %v339 = vunpack.c.h.b16 %v150
      %v340 = vunpack.c.l.b16 %v151
      %v341 = vunpack.c.h.b16 %v151
      %v342 = vunpack.c.l.b16 %v152
      %v343 = vunpack.c.h.b16 %v152
      %v344 = vunpack.c.l.b16 %v153
      %v345 = vunpack.c.h.b16 %v153
      %v346 = vunpack.c.l.b16 %v154
      %v347 = vunpack.c.l.b16 %v155
      %v348 = vunpack.c.h.b16 %v155
      %v349 = vunpack.c.l.b16 %v156
      %v350 = vunpack.c.h.b16 %v156
      %v351 = vunpack.c.l.b16 %v157
      %v352 = vunpack.c.h.b16 %v157
      %v353 = vunpack.c.l.b16 %v158
      %v354 = vunpack.c.h.b16 %v158
      %v355 = vunpack.c.l.b16 %v159
      %v356 = vunpack.c.l.b16 %v160
      %v357 = vunpack.c.h.b16 %v160
      %v358 = vunpack.c.l.b16 %v161
      %v359 = vunpack.c.h.b16 %v161
      %v360 = vunpack.c.l.b16 %v162
      %v361 = vunpack.c.h.b16 %v162
      %v362 = vunpack.c.l.b16 %v163
      %v363 = vunpack.c.h.b16 %v163
      %v364 = vunpack.c.l.b16 %v164
      %v365 = vpack.c.b16 %v338, %v329
      %v366 = vpack.c.b16 %v339, %v330
      %v367 = vpack.c.b16 %v340, %v331
      %v368 = vpack.c.b16 %v341, %v332
      %v369 = vpack.c.b16 %v342, %v333
      %v370 = vpack.c.b16 %v343, %v334
      %v371 = vpack.c.b16 %v344, %v335
      %v372 = vpack.c.b16 %v345, %v336
      %v373 = vpack.c.b16 %v346, %v337
      %v374 = vpack.c.b16 %v356, %v347
      %v375 = vpack.c.b16 %v357, %v348
      %v376 = vpack.c.b16 %v358, %v349
      %v377 = vpack.c.b16 %v359, %v350
      %v378 = vpack.c.b16 %v360, %v351
      %v379 = vpack.c.b16 %v361, %v352
      %v380 = vpack.c.b16 %v362, %v353
      %v381 = vpack.c.b16 %v363, %v354
      %v382 = vpack.c.b16 %v364, %v355
      %v545 = vunpack.c.l.b16 %v165
      %v546 = vunpack.c.l.b16 %v166
      %v547 = vunpack.c.l.b16 %v167
      %v548 = vunpack.c.l.b16 %v168
      %v549 = vunpack.c.l.b16 %v169
      %v550 = vunpack.c.l.b16 %v170
      %v551 = vunpack.c.l.b16 %v171
      %v552 = vunpack.c.l.b16 %v172
      %v553 = vunpack.c.l.b16 %v173
      %v554 = vunpack.c.l.b16 %v174
      %v555 = vunpack.c.l.b16 %v175
      %v556 = vunpack.c.l.b16 %v176
      %v557 = vunpack.c.l.b16 %v177
      %v558 = vunpack.c.l.b16 %v178
      %v559 = vunpack.c.l.b16 %v179
      %v560 = vunpack.c.l.b16 %v180
      %v561 = vunpack.c.l.b16 %v181
      %v562 = vunpack.c.l.b16 %v182
      %v563 = vunpack.c.l.b16 %v183
      %v564 = vunpack.c.l.b16 %v184
      %v565 = vunpack.c.l.b16 %v185
      %v566 = vunpack.c.l.b16 %v186
      %v567 = vunpack.c.l.b16 %v187
      %v568 = vunpack.c.l.b16 %v188
      %v569 = vunpack.c.l.b16 %v189
      %v570 = vunpack.c.l.b16 %v190
      %v571 = vunpack.c.l.b16 %v191
      %v572 = vunpack.c.l.b16 %v192
      %v573 = vunpack.c.l.b16 %v193
      %v574 = vunpack.c.l.b16 %v194
      %v575 = vunpack.c.l.b16 %v195
      %v576 = vunpack.c.l.b16 %v196
      %v577 = vunpack.c.l.b16 %v197
      %v578 = vunpack.c.l.b16 %v198
      %v579 = vunpack.c.l.b16 %v199
      %v580 = vunpack.c.l.b16 %v200
      %v581 = vunpack.c.l.b16 %v201
      %v582 = vunpack.c.l.b16 %v202
      %v583 = vunpack.c.l.b16 %v203
      %v584 = vunpack.c.l.b16 %v204
      %v585 = vunpack.c.l.b16 %v205
      %v586 = vunpack.c.l.b16 %v206
      %v587 = vunpack.c.l.b16 %v207
      %v588 = vunpack.c.l.b16 %v208
      %v589 = vunpack.c.l.b16 %v209
      %v590 = vunpack.c.l.b16 %v210
      %v591 = vunpack.c.l.b16 %v211
      %v592 = vunpack.c.l.b16 %v212
      %v593 = vunpack.c.l.b16 %v213
      %v594 = vunpack.c.l.b16 %v214
      %v595 = vunpack.c.l.b16 %v215
      %v596 = vunpack.c.l.b16 %v216
      %v597 = vunpack.c.l.b16 %v217
      %v598 = vunpack.c.l.b16 %v218
      %v599 = vunpack.c.l.b16 %v219
      %v600 = vunpack.c.l.b16 %v220
      %v601 = vunpack.c.l.b16 %v221
      %v602 = vunpack.c.l.b16 %v222
      %v603 = vunpack.c.l.b16 %v223
      %v604 = vunpack.c.l.b16 %v224
      %v605 = vunpack.c.l.b16 %v225
      %v606 = vunpack.c.l.b16 %v226
      %v607 = vunpack.c.l.b16 %v227
      %v608 = vunpack.c.l.b16 %v228
      %v609 = vunpack.c.l.b16 %v229
      %v610 = vunpack.c.l.b16 %v230
      %v611 = vunpack.c.l.b16 %v231
      %v612 = vunpack.c.l.b16 %v232
      %v613 = vunpack.c.l.b16 %v233
      %v614 = vunpack.c.l.b16 %v234
      %v615 = vunpack.c.l.b16 %v235
      %v616 = vunpack.c.l.b16 %v236
      %v617 = vunpack.c.l.b16 %v237
      %v618 = vunpack.c.l.b16 %v238
      %v619 = vunpack.c.l.b16 %v239
      %v620 = vunpack.c.l.b16 %v240
      %v621 = vunpack.c.l.b16 %v241
      %v622 = vunpack.c.l.b16 %v242
      %v623 = vunpack.c.l.b16 %v243
      %v624 = vunpack.c.l.b16 %v244
      %v625 = vunpack.c.l.b16 %v245
      %v626 = vunpack.c.l.b16 %v246
      %v627 = vunpack.c.l.b16 %v247
      %v628 = vunpack.c.l.b16 %v248
      %v629 = vunpack.c.l.b16 %v249
      %v630 = vunpack.c.l.b16 %v250
      %v631 = vunpack.c.l.b16 %v251
      %v632 = vunpack.c.l.b16 %v252
      %v633 = vunpack.c.l.b16 %v253
      %v634 = vunpack.c.l.b16 %v254
      %v635 = vunpack.c.l.b16 %v255
      %v636 = vunpack.c.l.b16 %v256
      %v637 = vunpack.c.l.b16 %v257
      %v638 = vunpack.c.l.b16 %v258
      %v639 = vunpack.c.l.b16 %v259
      %v640 = vunpack.c.l.b16 %v260
      %v641 = vunpack.c.l.b16 %v261
      %v642 = vunpack.c.l.b16 %v262
      %v643 = vunpack.c.l.b16 %v263
      %v644 = vunpack.c.l.b16 %v264
      %v645 = vunpack.c.l.b16 %v265
      %v646 = vunpack.c.l.b16 %v266
      %v647 = vunpack.c.l.b16 %v267
      %v648 = vunpack.c.l.b16 %v268
      %v649 = vunpack.c.l.b16 %v269
      %v650 = vunpack.c.l.b16 %v270
      %v651 = vunpack.c.l.b16 %v271
      %v652 = vunpack.c.l.b16 %v272
      %v653 = vunpack.c.l.b16 %v273
      %v654 = vunpack.c.l.b16 %v274
      %v655 = vunpack.c.l.b16 %v275
      %v656 = vunpack.c.l.b16 %v276
      %v657 = vunpack.c.l.b16 %v277
      %v658 = vunpack.c.l.b16 %v278
      %v659 = vunpack.c.l.b16 %v279
      %v660 = vunpack.c.l.b16 %v280
      %v661 = vunpack.c.l.b16 %v281
      %v662 = vunpack.c.l.b16 %v282
      %v663 = vunpack.c.l.b16 %v283
      %v664 = vunpack.c.l.b16 %v284
      %v665 = vunpack.c.l.b16 %v285
      %v666 = vunpack.c.l.b16 %v286
      %v667 = vunpack.c.l.b16 %v287
      %v668 = vunpack.c.l.b16 %v288
      %v669 = vunpack.c.l.b16 %v289
      %v670 = vunpack.c.l.b16 %v290
      %v671 = vunpack.c.l.b16 %v291
      %v672 = vunpack.c.l.b16 %v292
      %v673 = vunpack.c.l.b16 %v293
      %v674 = vunpack.c.l.b16 %v294
      %v675 = vunpack.c.l.b16 %v295
      %v676 = vunpack.c.l.b16 %v296
      %v677 = vunpack.c.l.b16 %v297
      %v678 = vunpack.c.l.b16 %v298
      %v679 = vunpack.c.l.b16 %v299
      %v680 = vunpack.c.l.b16 %v300
      %v681 = vunpack.c.l.b16 %v301
      %v682 = vunpack.c.l.b16 %v302
      %v683 = vunpack.c.l.b16 %v303
      %v684 = vunpack.c.l.b16 %v304
      %v685 = vunpack.c.l.b16 %v305
      %v686 = vunpack.c.l.b16 %v306
      %v687 = vunpack.c.l.b16 %v307
      %v688 = vunpack.c.l.b16 %v308
      %v689 = vpack.c.b16 %v546, %v545
      %v690 = vpack.c.b16 %v548, %v547
      %v691 = vpack.c.b16 %v550, %v549
      %v692 = vpack.c.b16 %v552, %v551
      %v693 = vpack.c.b16 %v554, %v553
      %v694 = vpack.c.b16 %v556, %v555
      %v695 = vpack.c.b16 %v558, %v557
      %v696 = vpack.c.b16 %v560, %v559
      %v697 = vpack.c.b16 %v562, %v561
      %v698 = vpack.c.b16 %v564, %v563
      %v699 = vpack.c.b16 %v566, %v565
      %v700 = vpack.c.b16 %v568, %v567
      %v701 = vpack.c.b16 %v570, %v569
      %v702 = vpack.c.b16 %v572, %v571
      %v703 = vpack.c.b16 %v574, %v573
      %v704 = vpack.c.b16 %v576, %v575
      %v705 = vpack.c.b16 %v578, %v577
      %v706 = vpack.c.b16 %v580, %v579
      %v707 = vpack.c.b16 %v582, %v581
      %v708 = vpack.c.b16 %v584, %v583
      %v709 = vpack.c.b16 %v586, %v585
      %v710 = vpack.c.b16 %v588, %v587
      %v711 = vpack.c.b16 %v590, %v589
      %v712 = vpack.c.b16 %v592, %v591
      %v713 = vpack.c.b16 %v594, %v593
      %v714 = vpack.c.b16 %v596, %v595
      %v715 = vpack.c.b16 %v598, %v597
      %v716 = vpack.c.b16 %v600, %v599
      %v717 = vpack.c.b16 %v602, %v601
      %v718 = vpack.c.b16 %v604, %v603
      %v719 = vpack.c.b16 %v606, %v605
      %v720 = vpack.c.b16 %v608, %v607
      %v721 = vpack.c.b16 %v610, %v609
      %v722 = vpack.c.b16 %v612, %v611
      %v723 = vpack.c.b16 %v614, %v613
      %v724 = vpack.c.b16 %v616, %v615
      %v725 = vpack.c.b16 %v618, %v617
      %v726 = vpack.c.b16 %v620, %v619
      %v727 = vpack.c.b16 %v622, %v621
      %v728 = vpack.c.b16 %v624, %v623
      %v729 = vpack.c.b16 %v626, %v625
      %v730 = vpack.c.b16 %v628, %v627
      %v731 = vpack.c.b16 %v630, %v629
      %v732 = vpack.c.b16 %v632, %v631
      %v733 = vpack.c.b16 %v634, %v633
      %v734 = vpack.c.b16 %v636, %v635
      %v735 = vpack.c.b16 %v638, %v637
      %v736 = vpack.c.b16 %v640, %v639
      %v737 = vpack.c.b16 %v642, %v641
      %v738 = vpack.c.b16 %v644, %v643
      %v739 = vpack.c.b16 %v646, %v645
      %v740 = vpack.c.b16 %v648, %v647
      %v741 = vpack.c.b16 %v650, %v649
      %v742 = vpack.c.b16 %v652, %v651
      %v743 = vpack.c.b16 %v654, %v653
      %v744 = vpack.c.b16 %v656, %v655
      %v745 = vpack.c.b16 %v658, %v657
      %v746 = vpack.c.b16 %v660, %v659
      %v747 = vpack.c.b16 %v662, %v661
      %v748 = vpack.c.b16 %v664, %v663
      %v749 = vpack.c.b16 %v666, %v665
      %v750 = vpack.c.b16 %v668, %v667
      %v751 = vpack.c.b16 %v670, %v669
      %v752 = vpack.c.b16 %v672, %v671
      %v753 = vpack.c.b16 %v674, %v673
      %v754 = vpack.c.b16 %v676, %v675
      %v755 = vpack.c.b16 %v678, %v677
      %v756 = vpack.c.b16 %v680, %v679
      %v757 = vpack.c.b16 %v682, %v681
      %v758 = vpack.c.b16 %v684, %v683
      %v759 = vpack.c.b16 %v686, %v685
      %v760 = vpack.c.b16 %v688, %v687
      %833 = vmatprep.subr.bf16.mxu0 0
      %834 = vmatpush1.bf16.msra.mxu0 %v689
      %835 = vmatprep.subr.bf16.mxu0 0
      %836 = vmatpush1.bf16.msra.mxu0 %v690
      %837 = vmatprep.subr.bf16.mxu0 0
      %838 = vmatpush1.bf16.msra.mxu0 %v691
      %839 = vmatprep.subr.bf16.mxu0 0
      %840 = vmatpush1.bf16.msra.mxu0 %v692
      %841 = vmatprep.subr.bf16.mxu0 0
      %842 = vmatpush1.bf16.msra.mxu0 %v693
      %843 = vmatprep.subr.bf16.mxu0 0
      %844 = vmatpush1.bf16.msra.mxu0 %v694
      %845 = vmatprep.subr.bf16.mxu0 0
      %846 = vmatpush1.bf16.msra.mxu0 %v695
      %847 = vmatprep.subr.bf16.mxu0 0
      %848 = vmatpush1.bf16.msra.mxu0 %v696
      %849 = vmatprep.subr.bf16.mxu0 0
      %850 = vmatpush1.bf16.msra.mxu0 %v697
      %851 = vmatprep.subr.bf16.mxu0 0
      %852 = vmatpush1.bf16.msra.mxu0 %v698
      %853 = vmatprep.subr.bf16.mxu0 0
      %854 = vmatpush1.bf16.msra.mxu0 %v699
      %855 = vmatprep.subr.bf16.mxu0 0
      %856 = vmatpush1.bf16.msra.mxu0 %v700
      %857 = vmatprep.subr.bf16.mxu0 0
      %858 = vmatpush1.bf16.msra.mxu0 %v701
      %859 = vmatprep.subr.bf16.mxu0 0
      %860 = vmatpush1.bf16.msra.mxu0 %v702
      %861 = vmatprep.subr.bf16.mxu0 0
      %862 = vmatpush1.bf16.msra.mxu0 %v703
      %863 = vmatprep.subr.bf16.mxu0 0
      %864 = vmatpush1.bf16.msra.mxu0 %v704
      %865 = vmatprep.mubr.bf16.mxu0 %v366
      %866 = vmatmul.mubr.bf16.gmra.mrb[0].mxu0 %v365
      %v867 = vpop.f32.mrb[0].mxu0
      %v868 = vadd.f32 0.0, %v867
      %v869 = vpop.f32.mrb[0].mxu0
      %v870 = vpop.f32.mrb[0].mxu0
      %v871 = vadd.f32 0.0, %v870
      %v872 = vpop.f32.mrb[0].mxu0
      %873 = vmatprep.mubr.bf16.mxu0 %v375
      %874 = vmatmul.mubr.bf16.gmra.mrb[0].mxu0 %v374
      %v875 = vpop.f32.mrb[0].mxu0
      %v876 = vadd.f32 0.0, %v875
      %v877 = vpop.f32.mrb[0].mxu0
      %v878 = vpop.f32.mrb[0].mxu0
      %v879 = vadd.f32 0.0, %v878
      %v880 = vpop.f32.mrb[0].mxu0
      %881 = vdwg.mxu0
      %882 = vmatprep.subr.bf16.mxu0 0
      %883 = vmatpush1.bf16.msra.mxu0 %v705
      %884 = vmatprep.subr.bf16.mxu0 0
      %885 = vmatpush1.bf16.msra.mxu0 %v706
      %886 = vmatprep.subr.bf16.mxu0 0
      %887 = vmatpush1.bf16.msra.mxu0 %v707
      %888 = vmatprep.subr.bf16.mxu0 0
      %889 = vmatpush1.bf16.msra.mxu0 %v708
      %890 = vmatprep.subr.bf16.mxu0 0
      %891 = vmatpush1.bf16.msra.mxu0 %v709
      %892 = vmatprep.subr.bf16.mxu0 0
      %893 = vmatpush1.bf16.msra.mxu0 %v710
      %894 = vmatprep.subr.bf16.mxu0 0
      %895 = vmatpush1.bf16.msra.mxu0 %v711
      %896 = vmatprep.subr.bf16.mxu0 0
      %897 = vmatpush1.bf16.msra.mxu0 %v712
      %898 = vmatprep.subr.bf16.mxu0 0
      %899 = vmatpush1.bf16.msra.mxu0 %v713
      %900 = vmatprep.subr.bf16.mxu0 0
      %901 = vmatpush1.bf16.msra.mxu0 %v714
      %902 = vmatprep.subr.bf16.mxu0 0
      %903 = vmatpush1.bf16.msra.mxu0 %v715
      %904 = vmatprep.subr.bf16.mxu0 0
      %905 = vmatpush1.bf16.msra.mxu0 %v716
      %906 = vmatprep.subr.bf16.mxu0 0
      %907 = vmatpush1.bf16.msra.mxu0 %v717
      %908 = vmatprep.subr.bf16.mxu0 0
      %909 = vmatpush1.bf16.msra.mxu0 %v718
      %910 = vmatprep.subr.bf16.mxu0 0
      %911 = vmatpush1.bf16.msra.mxu0 %v719
      %912 = vmatprep.subr.bf16.mxu0 0
      %913 = vmatpush1.bf16.msra.mxu0 %v720
      %914 = vmatprep.mubr.bf16.mxu0 %v368
      %915 = vmatmul.mubr.bf16.gmra.mrb[0].mxu0 %v367
      %v916 = vpop.f32.mrb[0].mxu0
      %v917 = vadd.f32 %v868, %v916
      %v918 = vpop.f32.mrb[0].mxu0
      %v919 = vpop.f32.mrb[0].mxu0
      %v920 = vadd.f32 %v871, %v919
      %v921 = vpop.f32.mrb[0].mxu0
      %922 = vmatprep.mubr.bf16.mxu0 %v377
      %923 = vmatmul.mubr.bf16.gmra.mrb[0].mxu0 %v376
      %v924 = vpop.f32.mrb[0].mxu0
      %v925 = vadd.f32 %v876, %v924
      %v926 = vpop.f32.mrb[0].mxu0
      %v927 = vpop.f32.mrb[0].mxu0
      %v928 = vadd.f32 %v879, %v927
      %v929 = vpop.f32.mrb[0].mxu0
      %930 = vdwg.mxu0
      %931 = vmatprep.subr.bf16.mxu0 0
      %932 = vmatpush1.bf16.msra.mxu0 %v721
      %933 = vmatprep.subr.bf16.mxu0 0
      %934 = vmatpush1.bf16.msra.mxu0 %v722
      %935 = vmatprep.subr.bf16.mxu0 0
      %936 = vmatpush1.bf16.msra.mxu0 %v723
      %937 = vmatprep.subr.bf16.mxu0 0
      %938 = vmatpush1.bf16.msra.mxu0 %v724
      %939 = vmatprep.subr.bf16.mxu0 0
      %940 = vmatpush1.bf16.msra.mxu0 %v725
      %941 = vmatprep.subr.bf16.mxu0 0
      %942 = vmatpush1.bf16.msra.mxu0 %v726
      %943 = vmatprep.subr.bf16.mxu0 0
      %944 = vmatpush1.bf16.msra.mxu0 %v727
      %945 = vmatprep.subr.bf16.mxu0 0
      %946 = vmatpush1.bf16.msra.mxu0 %v728
      %947 = vmatprep.subr.bf16.mxu0 0
      %948 = vmatpush1.bf16.msra.mxu0 %v729
      %949 = vmatprep.subr.bf16.mxu0 0
      %950 = vmatpush1.bf16.msra.mxu0 %v730
      %951 = vmatprep.subr.bf16.mxu0 0
      %952 = vmatpush1.bf16.msra.mxu0 %v731
      %953 = vmatprep.subr.bf16.mxu0 0
      %954 = vmatpush1.bf16.msra.mxu0 %v732
      %955 = vmatprep.subr.bf16.mxu0 0
      %956 = vmatpush1.bf16.msra.mxu0 %v733
      %957 = vmatprep.subr.bf16.mxu0 0
      %958 = vmatpush1.bf16.msra.mxu0 %v734
      %959 = vmatprep.subr.bf16.mxu0 0
      %960 = vmatpush1.bf16.msra.mxu0 %v735
      %961 = vmatprep.subr.bf16.mxu0 0
      %962 = vmatpush1.bf16.msra.mxu0 %v736
      %963 = vmatprep.mubr.bf16.mxu0 %v370
      %964 = vmatmul.mubr.bf16.gmra.mrb[0].mxu0 %v369
      %v965 = vpop.f32.mrb[0].mxu0
      %v966 = vadd.f32 %v917, %v965
      %v967 = vpop.f32.mrb[0].mxu0
      %v968 = vpop.f32.mrb[0].mxu0
      %v969 = vadd.f32 %v920, %v968
      %v970 = vpop.f32.mrb[0].mxu0
      %971 = vmatprep.mubr.bf16.mxu0 %v379
      %972 = vmatmul.mubr.bf16.gmra.mrb[0].mxu0 %v378
      %v973 = vpop.f32.mrb[0].mxu0
      %v974 = vadd.f32 %v925, %v973
      %v975 = vpop.f32.mrb[0].mxu0
      %v976 = vpop.f32.mrb[0].mxu0
      %v977 = vadd.f32 %v928, %v976
      %v978 = vpop.f32.mrb[0].mxu0
      %979 = vdwg.mxu0
      %980 = vmatprep.subr.bf16.mxu0 0
      %981 = vmatpush1.bf16.msra.mxu0 %v737
      %982 = vmatprep.subr.bf16.mxu0 0
      %983 = vmatpush1.bf16.msra.mxu0 %v738
      %984 = vmatprep.subr.bf16.mxu0 0
      %985 = vmatpush1.bf16.msra.mxu0 %v739
      %986 = vmatprep.subr.bf16.mxu0 0
      %987 = vmatpush1.bf16.msra.mxu0 %v740
      %988 = vmatprep.subr.bf16.mxu0 0
      %989 = vmatpush1.bf16.msra.mxu0 %v741
      %990 = vmatprep.subr.bf16.mxu0 0
      %991 = vmatpush1.bf16.msra.mxu0 %v742
      %992 = vmatprep.subr.bf16.mxu0 0
      %993 = vmatpush1.bf16.msra.mxu0 %v743
      %994 = vmatprep.subr.bf16.mxu0 0
      %995 = vmatpush1.bf16.msra.mxu0 %v744
      %996 = vmatprep.subr.bf16.mxu0 0
      %997 = vmatpush1.bf16.msra.mxu0 %v745
      %998 = vmatprep.subr.bf16.mxu0 0
      %999 = vmatpush1.bf16.msra.mxu0 %v746
      %1000 = vmatprep.subr.bf16.mxu0 0
      %1001 = vmatpush1.bf16.msra.mxu0 %v747
      %1002 = vmatprep.subr.bf16.mxu0 0
      %1003 = vmatpush1.bf16.msra.mxu0 %v748
      %1004 = vmatprep.subr.bf16.mxu0 0
      %1005 = vmatpush1.bf16.msra.mxu0 %v749
      %1006 = vmatprep.subr.bf16.mxu0 0
      %1007 = vmatpush1.bf16.msra.mxu0 %v750
      %1008 = vmatprep.subr.bf16.mxu0 0
      %1009 = vmatpush1.bf16.msra.mxu0 %v751
      %1010 = vmatprep.subr.bf16.mxu0 0
      %1011 = vmatpush1.bf16.msra.mxu0 %v752
      %1012 = vmatprep.mubr.bf16.mxu0 %v372
      %1013 = vmatmul.mubr.bf16.gmra.mrb[0].mxu0 %v371
      %v1014 = vpop.f32.mrb[0].mxu0
      %v1015 = vadd.f32 %v966, %v1014
      %v1016 = vpop.f32.mrb[0].mxu0
      %v1017 = vpop.f32.mrb[0].mxu0
      %v1018 = vadd.f32 %v969, %v1017
      %v1019 = vpop.f32.mrb[0].mxu0
      %1020 = vmatprep.mubr.bf16.mxu0 %v381
      %1021 = vmatmul.mubr.bf16.gmra.mrb[0].mxu0 %v380
      %v1022 = vpop.f32.mrb[0].mxu0
      %v1023 = vadd.f32 %v974, %v1022
      %v1024 = vpop.f32.mrb[0].mxu0
      %v1025 = vpop.f32.mrb[0].mxu0
      %v1026 = vadd.f32 %v977, %v1025
      %v1027 = vpop.f32.mrb[0].mxu0
      %1028 = vdwg.mxu0
      %1029 = vmatprep.subr.bf16.mxu0 0
      %1030 = vmatpush1.bf16.msra.mxu0 %v753
      %1031 = vmatprep.subr.bf16.mxu0 0
      %1032 = vmatpush1.bf16.msra.mxu0 %v754
      %1033 = vmatprep.subr.bf16.mxu0 0
      %1034 = vmatpush1.bf16.msra.mxu0 %v755
      %1035 = vmatprep.subr.bf16.mxu0 0
      %1036 = vmatpush1.bf16.msra.mxu0 %v756
      %1037 = vmatprep.subr.bf16.mxu0 0
      %1038 = vmatpush1.bf16.msra.mxu0 %v757
      %1039 = vmatprep.subr.bf16.mxu0 0
      %1040 = vmatpush1.bf16.msra.mxu0 %v758
      %1041 = vmatprep.subr.bf16.mxu0 0
      %1042 = vmatpush1.bf16.msra.mxu0 %v759
      %1043 = vmatprep.subr.bf16.mxu0 0
      %1044 = vmatpush1.bf16.msra.mxu0 %v760
      %1045 = vmatprep.subr.bf16.mxu0 0
      %1046 = vmatpush1.bf16.msra.mxu0 0
      %1047 = vmatprep.subr.bf16.mxu0 0
      %1048 = vmatpush1.bf16.msra.mxu0 0
      %1049 = vmatprep.subr.bf16.mxu0 0
      %1050 = vmatpush1.bf16.msra.mxu0 0
      %1051 = vmatprep.subr.bf16.mxu0 0
      %1052 = vmatpush1.bf16.msra.mxu0 0
      %1053 = vmatprep.subr.bf16.mxu0 0
      %1054 = vmatpush1.bf16.msra.mxu0 0
      %1055 = vmatprep.subr.bf16.mxu0 0
      %1056 = vmatpush1.bf16.msra.mxu0 0
      %1057 = vmatprep.subr.bf16.mxu0 0
      %1058 = vmatpush1.bf16.msra.mxu0 0
      %1059 = vmatprep.subr.bf16.mxu0 0
      %1060 = vmatpush1.bf16.msra.mxu0 0
      %1061 = vmatprep.mubr.bf16.mxu0 0
      %1062 = vmatmul.mubr.bf16.gmra.mrb[0].mxu0 %v373
      %v1063 = vpop.f32.mrb[0].mxu0
      %v1064 = vadd.f32 %v1015, %v1063
      %v1065 = vpop.f32.mrb[0].mxu0
      %v1066 = vpop.f32.mrb[0].mxu0
      %v1067 = vadd.f32 %v1018, %v1066
      %v1068 = vpop.f32.mrb[0].mxu0
      %1069 = vmatprep.mubr.bf16.mxu0 0
      %1070 = vmatmul.mubr.bf16.gmra.mrb[0].mxu0 %v382
      %v1071 = vpop.f32.mrb[0].mxu0
      %v1072 = vadd.f32 %v1023, %v1071
      %v1073 = vpop.f32.mrb[0].mxu0
      %v1074 = vpop.f32.mrb[0].mxu0
      %v1075 = vadd.f32 %v1026, %v1074
      %v1076 = vpop.f32.mrb[0].mxu0
      %1077 = vdwg.mxu0
      %v1078 = vadd.f32 %v1064, %v1067
      %v1079 = vadd.f32 %v1078, %v1072
      %vm1080 = vcmask 1040384
      %v1081 = vsel %vm1080, %v1075, 0.0
      %v1082 = vadd.f32 %v1079, %v1081
      %v1083 = vrot.slane %v1082, 4
      %v1084 = vadd.f32 %v1082, %v1083
      %v1085 = vrot.slane %v1084, 2
      %v1086 = vadd.f32 %v1084, %v1085
      %v1087 = vrot.slane %v1086, 1
      %v1088 = vadd.f32 %v1086, %v1087
      %v1089 = vrcp.pop 25.0
      %v1090 = vmul.f32 %v1088, %v1089
      %v1091 = vsub.f32 %v1064, %v1090
      %v1092 = vsub.f32 %v1067, %v1090
      %v1093 = vsub.f32 %v1072, %v1090
      %v1094 = vsub.f32 %v1075, %v1090
      %v1095 = vmul.f32 %v1091, %v1091
      %v1096 = vmul.f32 %v1092, %v1092
      %v1097 = vmul.f32 %v1093, %v1093
      %v1098 = vmul.f32 %v1094, %v1094
      %v1099 = vadd.f32 %v1095, %v1096
      %v1100 = vadd.f32 %v1099, %v1097
      %v1101 = vsel %vm1080, %v1098, 0.0
      %v1102 = vadd.f32 %v1100, %v1101
      %v1103 = vrot.slane %v1102, 4
      %v1104 = vadd.f32 %v1102, %v1103
      %v1105 = vrot.slane %v1104, 2
      %v1106 = vadd.f32 %v1104, %v1105
      %v1107 = vrot.slane %v1106, 1
      %v1108 = vadd.f32 %v1106, %v1107
      %v1109 = vmul.f32 %v1108, %v1089
      %v1110 = vadd.f32 %v1109, 1e-05
      %v1111 = vrsqrt.pop %v1110
      %v1112 = vmul.f32 %v1091, %v1111
      %v1113 = vmul.f32 %v1092, %v1111
      %v1114 = vmul.f32 %v1093, %v1111
      %v1115 = vmul.f32 %v1094, %v1111
      %v1116 = vmax.f32 %v1112, 0.0
      %v1117 = vmax.f32 %v1113, 0.0
      %v1118 = vmax.f32 %v1114, 0.0
      %v1119 = vmax.f32 %v1115, 0.0
      %1120 = vst [vmem:[%s143] sm:$0xff] %v1116
      %1121 = vst [vmem:[%s143 + $0x8] sm:$0xff] %v1117
      %1122 = vst [vmem:[%s143 + $0x10] sm:$0xff] %v1118
      %1123 = vst [vmem:[%s143 + $0x18] sm:$0x1] %v1119
      %p1124 = scmp.lt.s32.totalorder %s13, 1
      %s1125 = scalar_select %p1124, %s13, 1
      %s1126 = smul.addr %s1125, 4
      %s1127 = smul.addr %s1126, 8
      %s1128 = scalar_lea.vmem %s2, %s1127
      // Predicated region
      $region29: #{base_discriminator_forward.11} parent=27 // pred_check
        %p1129 = pneg %p78
      $region30: #{base_discriminator_forward.11} parent=27 // pred_check_branch
        %1131 = sbr.rel (%p1129) target = $region32
      $region31: #{base_discriminator_forward.11} parent=27 // pred_region
        _
      $region32: #{base_discriminator_forward.11} parent=27 // pred_fallthru
        _
    $region28: #{base_discriminator_forward.11} parent=5 // pred_fallthru
      _
    %p1132 = scmp.le.s32.totalorder 2, %s8
    // Predicated region
    $region33: #{base_discriminator_forward.11} parent=5 // pred_check
      %p1133 = pneg %p1132
    $region34: #{base_discriminator_forward.11} parent=5 // pred_check_branch
      %1135 = sbr.rel (%p1133) target = $region36
    $region35: #{base_discriminator_forward.11} parent=5 // pred_region
      %s1136 = ssub.s32 %s8, 2
      // Predicated region
      $region37: #{base_discriminator_forward.11} parent=35 // pred_check
        %p1137 = pneg %p84
      $region38: #{base_discriminator_forward.11} parent=35 // pred_check_branch
        %1139 = sbr.rel (%p1137) target = $region40
      $region39: #{base_discriminator_forward.11} parent=35 // pred_region
        %p1140 = scmp.lt.s32.totalorder %s14, 1
        %s1141 = scalar_select %p1140, %s14, 1
        %s1142 = smul.addr %s1141, 4
        %s1143 = smul.addr %s1142, 8
        %s1144 = scalar_lea.vmem %s2, %s1143
      $region40: #{base_discriminator_forward.11} parent=35 // pred_fallthru
        _
    $region36: #{base_discriminator_forward.11} parent=5 // pred_fallthru
      _
  $region6: #{base_discriminator_forward.11} parent=0 // loop_footer
    %s12 = sadd.s32 1, %s8
  $region7: #{base_discriminator_forward.11} parent=0 // loop_footer_branch
    %7 = sbr.rel target = $region3
  $region8: #{base_discriminator_forward.11} parent=0 // loop_exit
    _

// kernel: base_discriminator_forward.12
$region0: #{base_discriminator_forward.12}
  #allocation0 [shape = 'u32[]', space=smem, size = 0x4, offset = 0x4, fixed_abs, tag = 'smem constant byte address 0x4 - core index']
  #allocation1 [shape = 'u32[144,128]{1,0:T(1,128)}', space=vmem, size = 0x12000, scoped, tag = 'internal scratch']
  %s0 = inlined_call_operand.vmem [shape: bf16[2,9,1152], index: 0, kind: input, shape index: {}]
  %s1 = inlined_call_operand.vmem [shape: bf16[1152,256], index: 1, kind: input, shape index: {}]
  %s2 = inlined_call_operand.vmem [shape: f32[2,9,256], index: 2, kind: output, shape index: {}]
  %s3 = sld [smem:[#allocation0]]
  $region41: #{base_discriminator_forward.12} parent=0
    _
  %s5 = ssub.s32 1, %s3
  %s6 = scalar_select 0, %s5, %s3
  loop: start=0, step=1, limit=4
  $region2: #{base_discriminator_forward.12} parent=0 // loop_pre_header
    _
  $region3: #{base_discriminator_forward.12} parent=0 // loop_header
    %s8 = sphi 0, %s12
    %p9 = scmp.ge.s32.totalorder %s8, 4
    %s18 = sphi 0, %s20
    %s21 = sphi 0, %s18
    %s22 = sphi 0, %s21
    %s38 = sphi 0, %s22
    %s42 = sphi 0, %s42
    %s44 = sphi 0, %s42
    %s45 = sphi 0, %s44
    %s59 = sphi 0, %s45
    %s65 = sphi 0, %s67
    %s68 = sphi 0, %s65
    %s69 = sphi 0, %s68
    %s85 = sphi 0, %s69
  $region4: #{base_discriminator_forward.12} parent=0 // loop_header_branch
    %11 = sbr.rel (%p9) target = $region8
  $region5: #{base_discriminator_forward.12} parent=0 // loop_body
    %s13 = ssub.s32 %s8, 1
    %s14 = ssub.s32 %s8, 2
    %s15 = sadd.s32 %s8, 1
    %s16 = ssub.s32 %s8, %s15
    %p17 = scmp.eq.s32.totalorder %s16, 0
    %s19 = sadd.s32 %s18, 1
    %s20 = scalar_select %p17, %s18, %s19
    %p23 = pneg %p17
    %p24 = scmp.eq.s32.totalorder %s8, 1
    %p25 = por %p23, %p24
    %p26 = scmp.ne.s32.totalorder %s18, %s21
    %p27 = scmp.eq.s32.totalorder %s8, 0
    %p28 = por %p26, %p27
    %p29 = scmp.ne.s32.totalorder %s18, %s21
    %p30 = scmp.eq.s32.totalorder %s13, 1
    %p31 = por %p29, %p30
    %p32 = scmp.ne.s32.totalorder %s21, %s22
    %p33 = scmp.eq.s32.totalorder %s13, 0
    %p34 = por %p32, %p33
    %p35 = scmp.ne.s32.totalorder %s21, %s22
    %p36 = scmp.eq.s32.totalorder %s14, 1
    %p37 = por %p35, %p36
    %p39 = scmp.ne.s32.totalorder %s22, %s38
    %p40 = scmp.eq.s32.totalorder %s14, 0
    %p41 = por %p39, %p40
    %s43 = sadd.s32 %s42, 1
    %p46 = scmp.eq.s32.totalorder %s8, 1
    %p47 = scmp.ne.s32.totalorder %s42, %s44
    %p48 = scmp.eq.s32.totalorder %s8, 0
    %p49 = por %p47, %p48
    %p50 = scmp.ne.s32.totalorder %s42, %s44
    %p51 = scmp.eq.s32.totalorder %s13, 1
    %p52 = por %p50, %p51
    %p53 = scmp.ne.s32.totalorder %s44, %s45
    %p54 = scmp.eq.s32.totalorder %s13, 0
    %p55 = por %p53, %p54
    %p56 = scmp.ne.s32.totalorder %s44, %s45
    %p57 = scmp.eq.s32.totalorder %s14, 1
    %p58 = por %p56, %p57
    %p60 = scmp.ne.s32.totalorder %s45, %s59
    %p61 = scmp.eq.s32.totalorder %s14, 0
    %p62 = por %p60, %p61
    %s63 = ssub.s32 %s8, %s15
    %p64 = scmp.eq.s32.totalorder %s63, 0
    %s66 = sadd.s32 %s65, 1
    %s67 = scalar_select %p64, %s65, %s66
    %p70 = pneg %p64
    %p71 = scmp.eq.s32.totalorder %s8, 1
    %p72 = por %p70, %p71
    %p73 = scmp.ne.s32.totalorder %s65, %s68
    %p74 = scmp.eq.s32.totalorder %s8, 0
    %p75 = por %p73, %p74
    %p76 = scmp.ne.s32.totalorder %s65, %s68
    %p77 = scmp.eq.s32.totalorder %s13, 1
    %p78 = por %p76, %p77
    %p79 = scmp.ne.s32.totalorder %s68, %s69
    %p80 = scmp.eq.s32.totalorder %s13, 0
    %p81 = por %p79, %p80
    %p82 = scmp.ne.s32.totalorder %s68, %s69
    %p83 = scmp.eq.s32.totalorder %s14, 1
    %p84 = por %p82, %p83
    %p86 = scmp.ne.s32.totalorder %s69, %s85
    %p87 = scmp.eq.s32.totalorder %s14, 0
    %p88 = por %p86, %p87
    %p89 = scmp.le.s32.totalorder 1, %s8
    %p90 = scmp.lt.s32.totalorder %s8, 3
    %p91 = pnand %p89, %p90
    %p92 = pneg %p91
    // Predicated region
    $region9: #{base_discriminator_forward.12} parent=5 // pred_check
      _
    $region10: #{base_discriminator_forward.12} parent=5 // pred_check_branch
      %94 = sbr.rel (%p91) target = $region12
    $region11: #{base_discriminator_forward.12} parent=5 // pred_region
      %s95 = ssub.s32 %s8, 1
      // Predicated region
      $region13: #{base_discriminator_forward.12} parent=11 // pred_check
        %p96 = pneg %p55
      $region14: #{base_discriminator_forward.12} parent=11 // pred_check_branch
        %98 = sbr.rel (%p96) target = $region16
      $region15: #{base_discriminator_forward.12} parent=11 // pred_region
        _
      $region16: #{base_discriminator_forward.12} parent=11 // pred_fallthru
        _
    $region12: #{base_discriminator_forward.12} parent=5 // pred_fallthru
      _
    %p99 = scmp.lt.s32.totalorder %s8, 2
    // Predicated region
    $region17: #{base_discriminator_forward.12} parent=5 // pred_check
      %p100 = pneg %p99
    $region18: #{base_discriminator_forward.12} parent=5 // pred_check_branch
      %102 = sbr.rel (%p100) target = $region20
    $region19: #{base_discriminator_forward.12} parent=5 // pred_region
      // Predicated region
      $region21: #{base_discriminator_forward.12} parent=19 // pred_check
        %p103 = pneg %p28
      $region22: #{base_discriminator_forward.12} parent=19 // pred_check_branch
        %105 = sbr.rel (%p103) target = $region24
      $region23: #{base_discriminator_forward.12} parent=19 // pred_region
        %p106 = scmp.lt.s32.totalorder %s8, 1
        %s107 = scalar_select %p106, %s8, 1
        %s108 = smul.addr %s107, 18
        %s109 = smul.addr %s108, 4
        %s110 = scalar_lea.vmem %s0, %s109
      $region24: #{base_discriminator_forward.12} parent=19 // pred_fallthru
        _
    $region20: #{base_discriminator_forward.12} parent=5 // pred_fallthru
      _
    %p111 = scmp.le.s32.totalorder 1, %s8
    %p112 = scmp.lt.s32.totalorder %s8, 3
    %p113 = pnand %p111, %p112
    %p114 = pneg %p113
    // Predicated region
    $region25: #{base_discriminator_forward.12} parent=5 // pred_check
      _
    $region26: #{base_discriminator_forward.12} parent=5 // pred_check_branch
      %116 = sbr.rel (%p113) target = $region28
    $region27: #{base_discriminator_forward.12} parent=5 // pred_region
      %s117 = ssub.s32 %s8, 1
      %p118 = scmp.lt.s32.totalorder %s13, 1
      %s119 = scalar_select %p118, %s13, 1
      %s120 = smul.addr %s119, 18
      %s121 = smul.addr %s120, 4
      %s122 = scalar_lea.vmem %s0, %s121
      %p123 = pneg %p34
      %p124 = pneg %p31
      %p125 = pneg %p55
      %p126 = pneg %p52
      %p127 = pneg %p81
      %p128 = pneg %p78
      %p129 = scmp.lt.s32.totalorder %s13, 1
      %s130 = scalar_select %p129, %s13, 1
      %s131 = smul.addr %s130, 4
      %s132 = smul.addr %s131, 8
      %s133 = scalar_lea.vmem %s2, %s132
      %p134 = scmp.lt.s32.totalorder %s13, 1
      %s135 = scalar_select %p134, %s13, 1
      %s136 = smul.addr %s135, 18
      %s137 = smul.addr %s136, 4
      %s138 = scalar_lea.vmem %s0, %s137
      %p139 = scmp.lt.s32.totalorder %s13, 1
      %s140 = scalar_select %p139, %s13, 1
      %s141 = smul.addr %s140, 4
      %s142 = smul.addr %s141, 8
      %s143 = scalar_lea.vmem %s2, %s142
      %v145 = vld [vmem:[%s138] sm:$0xff]
      %v146 = vld [vmem:[%s138 + $0x8] sm:$0xff]
      %v147 = vld [vmem:[%s138 + $0x10] sm:$0xff]
      %v148 = vld [vmem:[%s138 + $0x18] sm:$0xff]
      %v149 = vld [vmem:[%s138 + $0x20] sm:$0xf]
      %v150 = vld [vmem:[%s138 + $0x24] sm:$0x11]
      %v151 = vld [vmem:[%s138 + $0x2c] sm:$0x11]
      %v152 = vld [vmem:[%s138 + $0x34] sm:$0x11]
      %v153 = vld [vmem:[%s138 + $0x3c] sm:$0x11]
      %v154 = vld [vmem:[%s138 + $0x44] sm:$0x1]
      %v155 = vld [vmem:[%s1] sm:$0xff]
      %v156 = vld [vmem:[%s1 + $0x8] sm:$0xff]
      %v157 = vld [vmem:[%s1 + $0x10] sm:$0xff]
      %v158 = vld [vmem:[%s1 + $0x18] sm:$0xff]
      %v159 = vld [vmem:[%s1 + $0x20] sm:$0xff]
      %v160 = vld [vmem:[%s1 + $0x28] sm:$0xff]
      %v161 = vld [vmem:[%s1 + $0x30] sm:$0xff]
      %v162 = vld [vmem:[%s1 + $0x38] sm:$0xff]
      %v163 = vld [vmem:[%s1 + $0x40] sm:$0xff]
      %v164 = vld [vmem:[%s1 + $0x48] sm:$0xff]
      %v165 = vld [vmem:[%s1 + $0x50] sm:$0xff]
      %v166 = vld [vmem:[%s1 + $0x58] sm:$0xff]
      %v167 = vld [vmem:[%s1 + $0x60] sm:$0xff]
      %v168 = vld [vmem:[%s1 + $0x68] sm:$0xff]
      %v169 = vld [vmem:[%s1 + $0x70] sm:$0xff]
      %v170 = vld [vmem:[%s1 + $0x78] sm:$0xff]
      %v171 = vld [vmem:[%s1 + $0x80] sm:$0xff]
      %v172 = vld [vmem:[%s1 + $0x88] sm:$0xff]
      %v173 = vld [vmem:[%s1 + $0x90] sm:$0xff]
      %v174 = vld [vmem:[%s1 + $0x98] sm:$0xff]
      %v175 = vld [vmem:[%s1 + $0xa0] sm:$0xff]
      %v176 = vld [vmem:[%s1 + $0xa8] sm:$0xff]
      %v177 = vld [vmem:[%s1 + $0xb0] sm:$0xff]
      %v178 = vld [vmem:[%s1 + $0xb8] sm:$0xff]
      %v179 = vld [vmem:[%s1 + $0xc0] sm:$0xff]
      %v180 = vld [vmem:[%s1 + $0xc8] sm:$0xff]
      %v181 = vld [vmem:[%s1 + $0xd0] sm:$0xff]
      %v182 = vld [vmem:[%s1 + $0xd8] sm:$0xff]
      %v183 = vld [vmem:[%s1 + $0xe0] sm:$0xff]
      %v184 = vld [vmem:[%s1 + $0xe8] sm:$0xff]
      %v185 = vld [vmem:[%s1 + $0xf0] sm:$0xff]
      %v186 = vld [vmem:[%s1 + $0xf8] sm:$0xff]
      %v187 = vld [vmem:[%s1 + $0x100] sm:$0xff]
      %v188 = vld [vmem:[%s1 + $0x108] sm:$0xff]
      %v189 = vld [vmem:[%s1 + $0x110] sm:$0xff]
      %v190 = vld [vmem:[%s1 + $0x118] sm:$0xff]
      %v191 = vld [vmem:[%s1 + $0x120] sm:$0xff]
      %v192 = vld [vmem:[%s1 + $0x128] sm:$0xff]
      %v193 = vld [vmem:[%s1 + $0x130] sm:$0xff]
      %v194 = vld [vmem:[%s1 + $0x138] sm:$0xff]
      %v195 = vld [vmem:[%s1 + $0x140] sm:$0xff]
      %v196 = vld [vmem:[%s1 + $0x148] sm:$0xff]
      %v197 = vld [vmem:[%s1 + $0x150] sm:$0xff]
      %v198 = vld [vmem:[%s1 + $0x158] sm:$0xff]
      %v199 = vld [vmem:[%s1 + $0x160] sm:$0xff]
      %v200 = vld [vmem:[%s1 + $0x168] sm:$0xff]
      %v201 = vld [vmem:[%s1 + $0x170] sm:$0xff]
      %v202 = vld [vmem:[%s1 + $0x178] sm:$0xff]
      %v203 = vld [vmem:[%s1 + $0x180] sm:$0xff]
      %v204 = vld [vmem:[%s1 + $0x188] sm:$0xff]
      %v205 = vld [vmem:[%s1 + $0x190] sm:$0xff]
      %v206 = vld [vmem:[%s1 + $0x198] sm:$0xff]
      %v207 = vld [vmem:[%s1 + $0x1a0] sm:$0xff]
      %v208 = vld [vmem:[%s1 + $0x1a8] sm:$0xff]
      %v209 = vld [vmem:[%s1 + $0x1b0] sm:$0xff]
      %v210 = vld [vmem:[%s1 + $0x1b8] sm:$0xff]
      %v211 = vld [vmem:[%s1 + $0x1c0] sm:$0xff]
      %v212 = vld [vmem:[%s1 + $0x1c8] sm:$0xff]
      %v213 = vld [vmem:[%s1 + $0x1d0] sm:$0xff]
      %v214 = vld [vmem:[%s1 + $0x1d8] sm:$0xff]
      %v215 = vld [vmem:[%s1 + $0x1e0] sm:$0xff]
      %v216 = vld [vmem:[%s1 + $0x1e8] sm:$0xff]
      %v217 = vld [vmem:[%s1 + $0x1f0] sm:$0xff]
      %v218 = vld [vmem:[%s1 + $0x1f8] sm:$0xff]
      %v219 = vld [vmem:[%s1 + $0x200] sm:$0xff]
      %v220 = vld [vmem:[%s1 + $0x208] sm:$0xff]
      %v221 = vld [vmem:[%s1 + $0x210] sm:$0xff]
      %v222 = vld [vmem:[%s1 + $0x218] sm:$0xff]
      %v223 = vld [vmem:[%s1 + $0x220] sm:$0xff]
      %v224 = vld [vmem:[%s1 + $0x228] sm:$0xff]
      %v225 = vld [vmem:[%s1 + $0x230] sm:$0xff]
      %v226 = vld [vmem:[%s1 + $0x238] sm:$0xff]
      %v227 = vld [vmem:[%s1 + $0x240] sm:$0xff]
      %v228 = vld [vmem:[%s1 + $0x248] sm:$0xff]
      %v229 = vld [vmem:[%s1 + $0x250] sm:$0xff]
      %v230 = vld [vmem:[%s1 + $0x258] sm:$0xff]
      %v231 = vld [vmem:[%s1 + $0x260] sm:$0xff]
      %v232 = vld [vmem:[%s1 + $0x268] sm:$0xff]
      %v233 = vld [vmem:[%s1 + $0x270] sm:$0xff]
      %v234 = vld [vmem:[%s1 + $0x278] sm:$0xff]
      %v235 = vld [vmem:[%s1 + $0x280] sm:$0xff]
      %v236 = vld [vmem:[%s1 + $0x288] sm:$0xff]
      %v237 = vld [vmem:[%s1 + $0x290] sm:$0xff]
      %v238 = vld [vmem:[%s1 + $0x298] sm:$0xff]
      %v239 = vld [vmem:[%s1 + $0x2a0] sm:$0xff]
      %v240 = vld [vmem:[%s1 + $0x2a8] sm:$0xff]
      %v241 = vld [vmem:[%s1 + $0x2b0] sm:$0xff]
      %v242 = vld [vmem:[%s1 + $0x2b8] sm:$0xff]
      %v243 = vld [vmem:[%s1 + $0x2c0] sm:$0xff]
      %v244 = vld [vmem:[%s1 + $0x2c8] sm:$0xff]
      %v245 = vld [vmem:[%s1 + $0x2d0] sm:$0xff]
      %v246 = vld [vmem:[%s1 + $0x2d8] sm:$0xff]
      %v247 = vld [vmem:[%s1 + $0x2e0] sm:$0xff]
      %v248 = vld [vmem:[%s1 + $0x2e8] sm:$0xff]
      %v249 = vld [vmem:[%s1 + $0x2f0] sm:$0xff]
      %v250 = vld [vmem:[%s1 + $0x2f8] sm:$0xff]
      %v251 = vld [vmem:[%s1 + $0x300] sm:$0xff]
      %v252 = vld [vmem:[%s1 + $0x308] sm:$0xff]
      %v253 = vld [vmem:[%s1 + $0x310] sm:$0xff]
      %v254 = vld [vmem:[%s1 + $0x318] sm:$0xff]
      %v255 = vld [vmem:[%s1 + $0x320] sm:$0xff]
      %v256 = vld [vmem:[%s1 + $0x328] sm:$0xff]
      %v257 = vld [vmem:[%s1 + $0x330] sm:$0xff]
      %v258 = vld [vmem:[%s1 + $0x338] sm:$0xff]
      %v259 = vld [vmem:[%s1 + $0x340] sm:$0xff]
      %v260 = vld [vmem:[%s1 + $0x348] sm:$0xff]
      %v261 = vld [vmem:[%s1 + $0x350] sm:$0xff]
      %v262 = vld [vmem:[%s1 + $0x358] sm:$0xff]
      %v263 = vld [vmem:[%s1 + $0x360] sm:$0xff]
      %v264 = vld [vmem:[%s1 + $0x368] sm:$0xff]
      %v265 = vld [vmem:[%s1 + $0x370] sm:$0xff]
      %v266 = vld [vmem:[%s1 + $0x378] sm:$0xff]
      %v267 = vld [vmem:[%s1 + $0x380] sm:$0xff]
      %v268 = vld [vmem:[%s1 + $0x388] sm:$0xff]
      %v269 = vld [vmem:[%s1 + $0x390] sm:$0xff]
      %v270 = vld [vmem:[%s1 + $0x398] sm:$0xff]
      %v271 = vld [vmem:[%s1 + $0x3a0] sm:$0xff]
      %v272 = vld [vmem:[%s1 + $0x3a8] sm:$0xff]
      %v273 = vld [vmem:[%s1 + $0x3b0] sm:$0xff]
      %v274 = vld [vmem:[%s1 + $0x3b8] sm:$0xff]
      %v275 = vld [vmem:[%s1 + $0x3c0] sm:$0xff]
      %v276 = vld [vmem:[%s1 + $0x3c8] sm:$0xff]
      %v277 = vld [vmem:[%s1 + $0x3d0] sm:$0xff]
      %v278 = vld [vmem:[%s1 + $0x3d8] sm:$0xff]
      %v279 = vld [vmem:[%s1 + $0x3e0] sm:$0xff]
      %v280 = vld [vmem:[%s1 + $0x3e8] sm:$0xff]
      %v281 = vld [vmem:[%s1 + $0x3f0] sm:$0xff]
      %v282 = vld [vmem:[%s1 + $0x3f8] sm:$0xff]
      %v283 = vld [vmem:[%s1 + $0x400] sm:$0xff]
      %v284 = vld [vmem:[%s1 + $0x408] sm:$0xff]
      %v285 = vld [vmem:[%s1 + $0x410] sm:$0xff]
      %v286 = vld [vmem:[%s1 + $0x418] sm:$0xff]
      %v287 = vld [vmem:[%s1 + $0x420] sm:$0xff]
      %v288 = vld [vmem:[%s1 + $0x428] sm:$0xff]
      %v289 = vld [vmem:[%s1 + $0x430] sm:$0xff]
      %v290 = vld [vmem:[%s1 + $0x438] sm:$0xff]
      %v291 = vld [vmem:[%s1 + $0x440] sm:$0xff]
      %v292 = vld [vmem:[%s1 + $0x448] sm:$0xff]
      %v293 = vld [vmem:[%s1 + $0x450] sm:$0xff]
      %v294 = vld [vmem:[%s1 + $0x458] sm:$0xff]
      %v295 = vld [vmem:[%s1 + $0x460] sm:$0xff]
      %v296 = vld [vmem:[%s1 + $0x468] sm:$0xff]
      %v297 = vld [vmem:[%s1 + $0x470] sm:$0xff]
      %v298 = vld [vmem:[%s1 + $0x478] sm:$0xff]
      %v309 = vunpack.c.l.b16 %v145
      %v310 = vunpack.c.h.b16 %v145
      %v311 = vunpack.c.l.b16 %v146
      %v312 = vunpack.c.h.b16 %v146
      %v313 = vunpack.c.l.b16 %v147
      %v314 = vunpack.c.h.b16 %v147
      %v315 = vunpack.c.l.b16 %v148
      %v316 = vunpack.c.h.b16 %v148
      %v317 = vunpack.c.l.b16 %v149
      %v318 = vunpack.c.l.b16 %v150
      %v319 = vunpack.c.h.b16 %v150
      %v320 = vunpack.c.l.b16 %v151
      %v321 = vunpack.c.h.b16 %v151
      %v322 = vunpack.c.l.b16 %v152
      %v323 = vunpack.c.h.b16 %v152
      %v324 = vunpack.c.l.b16 %v153
      %v325 = vunpack.c.h.b16 %v153
      %v326 = vunpack.c.l.b16 %v154
      %v327 = vpack.c.b16 %v318, %v309
      %v328 = vpack.c.b16 %v319, %v310
      %v329 = vpack.c.b16 %v320, %v311
      %v330 = vpack.c.b16 %v321, %v312
      %v331 = vpack.c.b16 %v322, %v313
      %v332 = vpack.c.b16 %v323, %v314
      %v333 = vpack.c.b16 %v324, %v315
      %v334 = vpack.c.b16 %v325, %v316
      %v335 = vpack.c.b16 %v326, %v317
      %v489 = vunpack.c.l.b16 %v155
      %v490 = vunpack.c.h.b16 %v155
      %v491 = vunpack.c.l.b16 %v156
      %v492 = vunpack.c.h.b16 %v156
      %v493 = vunpack.c.l.b16 %v157
      %v494 = vunpack.c.h.b16 %v157
      %v495 = vunpack.c.l.b16 %v158
      %v496 = vunpack.c.h.b16 %v158
      %v497 = vunpack.c.l.b16 %v159
      %v498 = vunpack.c.h.b16 %v159
      %v499 = vunpack.c.l.b16 %v160
      %v500 = vunpack.c.h.b16 %v160
      %v501 = vunpack.c.l.b16 %v161
      %v502 = vunpack.c.h.b16 %v161
      %v503 = vunpack.c.l.b16 %v162
      %v504 = vunpack.c.h.b16 %v162
      %v505 = vunpack.c.l.b16 %v163
      %v506 = vunpack.c.h.b16 %v163
      %v507 = vunpack.c.l.b16 %v164
      %v508 = vunpack.c.h.b16 %v164
      %v509 = vunpack.c.l.b16 %v165
      %v510 = vunpack.c.h.b16 %v165
      %v511 = vunpack.c.l.b16 %v166
      %v512 = vunpack.c.h.b16 %v166
      %v513 = vunpack.c.l.b16 %v167
      %v514 = vunpack.c.h.b16 %v167
      %v515 = vunpack.c.l.b16 %v168
      %v516 = vunpack.c.h.b16 %v168
      %v517 = vunpack.c.l.b16 %v169
      %v518 = vunpack.c.h.b16 %v169
      %v519 = vunpack.c.l.b16 %v170
      %v520 = vunpack.c.h.b16 %v170
      %v521 = vunpack.c.l.b16 %v171
      %v522 = vunpack.c.h.b16 %v171
      %v523 = vunpack.c.l.b16 %v172
      %v524 = vunpack.c.h.b16 %v172
      %v525 = vunpack.c.l.b16 %v173
      %v526 = vunpack.c.h.b16 %v173
      %v527 = vunpack.c.l.b16 %v174
      %v528 = vunpack.c.h.b16 %v174
      %v529 = vunpack.c.l.b16 %v175
      %v530 = vunpack.c.h.b16 %v175
      %v531 = vunpack.c.l.b16 %v176
      %v532 = vunpack.c.h.b16 %v176
      %v533 = vunpack.c.l.b16 %v177
      %v534 = vunpack.c.h.b16 %v177
      %v535 = vunpack.c.l.b16 %v178
      %v536 = vunpack.c.h.b16 %v178
      %v537 = vunpack.c.l.b16 %v179
      %v538 = vunpack.c.h.b16 %v179
      %v539 = vunpack.c.l.b16 %v180
      %v540 = vunpack.c.h.b16 %v180
      %v541 = vunpack.c.l.b16 %v181
      %v542 = vunpack.c.h.b16 %v181
      %v543 = vunpack.c.l.b16 %v182
      %v544 = vunpack.c.h.b16 %v182
      %v545 = vunpack.c.l.b16 %v183
      %v546 = vunpack.c.h.b16 %v183
      %v547 = vunpack.c.l.b16 %v184
      %v548 = vunpack.c.h.b16 %v184
      %v549 = vunpack.c.l.b16 %v185
      %v550 = vunpack.c.h.b16 %v185
      %v551 = vunpack.c.l.b16 %v186
      %v552 = vunpack.c.h.b16 %v186
      %v553 = vunpack.c.l.b16 %v187
      %v554 = vunpack.c.h.b16 %v187
      %v555 = vunpack.c.l.b16 %v188
      %v556 = vunpack.c.h.b16 %v188
      %v557 = vunpack.c.l.b16 %v189
      %v558 = vunpack.c.h.b16 %v189
      %v559 = vunpack.c.l.b16 %v190
      %v560 = vunpack.c.h.b16 %v190
      %v561 = vunpack.c.l.b16 %v191
      %v562 = vunpack.c.h.b16 %v191
      %v563 = vunpack.c.l.b16 %v192
      %v564 = vunpack.c.h.b16 %v192
      %v565 = vunpack.c.l.b16 %v193
      %v566 = vunpack.c.h.b16 %v193
      %v567 = vunpack.c.l.b16 %v194
      %v568 = vunpack.c.h.b16 %v194
      %v569 = vunpack.c.l.b16 %v195
      %v570 = vunpack.c.h.b16 %v195
      %v571 = vunpack.c.l.b16 %v196
      %v572 = vunpack.c.h.b16 %v196
      %v573 = vunpack.c.l.b16 %v197
      %v574 = vunpack.c.h.b16 %v197
      %v575 = vunpack.c.l.b16 %v198
      %v576 = vunpack.c.h.b16 %v198
      %v577 = vunpack.c.l.b16 %v199
      %v578 = vunpack.c.h.b16 %v199
      %v579 = vunpack.c.l.b16 %v200
      %v580 = vunpack.c.h.b16 %v200
      %v581 = vunpack.c.l.b16 %v201
      %v582 = vunpack.c.h.b16 %v201
      %v583 = vunpack.c.l.b16 %v202
      %v584 = vunpack.c.h.b16 %v202
      %v585 = vunpack.c.l.b16 %v203
      %v586 = vunpack.c.h.b16 %v203
      %v587 = vunpack.c.l.b16 %v204
      %v588 = vunpack.c.h.b16 %v204
      %v589 = vunpack.c.l.b16 %v205
      %v590 = vunpack.c.h.b16 %v205
      %v591 = vunpack.c.l.b16 %v206
      %v592 = vunpack.c.h.b16 %v206
      %v593 = vunpack.c.l.b16 %v207
      %v594 = vunpack.c.h.b16 %v207
      %v595 = vunpack.c.l.b16 %v208
      %v596 = vunpack.c.h.b16 %v208
      %v597 = vunpack.c.l.b16 %v209
      %v598 = vunpack.c.h.b16 %v209
      %v599 = vunpack.c.l.b16 %v210
      %v600 = vunpack.c.h.b16 %v210
      %v601 = vunpack.c.l.b16 %v211
      %v602 = vunpack.c.h.b16 %v211
      %v603 = vunpack.c.l.b16 %v212
      %v604 = vunpack.c.h.b16 %v212
      %v605 = vunpack.c.l.b16 %v213
      %v606 = vunpack.c.h.b16 %v213
      %v607 = vunpack.c.l.b16 %v214
      %v608 = vunpack.c.h.b16 %v214
      %v609 = vunpack.c.l.b16 %v215
      %v610 = vunpack.c.h.b16 %v215
      %v611 = vunpack.c.l.b16 %v216
      %v612 = vunpack.c.h.b16 %v216
      %v613 = vunpack.c.l.b16 %v217
      %v614 = vunpack.c.h.b16 %v217
      %v615 = vunpack.c.l.b16 %v218
      %v616 = vunpack.c.h.b16 %v218
      %v617 = vunpack.c.l.b16 %v219
      %v618 = vunpack.c.h.b16 %v219
      %v619 = vunpack.c.l.b16 %v220
      %v620 = vunpack.c.h.b16 %v220
      %v621 = vunpack.c.l.b16 %v221
      %v622 = vunpack.c.h.b16 %v221
      %v623 = vunpack.c.l.b16 %v222
      %v624 = vunpack.c.h.b16 %v222
      %v625 = vunpack.c.l.b16 %v223
      %v626 = vunpack.c.h.b16 %v223
      %v627 = vunpack.c.l.b16 %v224
      %v628 = vunpack.c.h.b16 %v224
      %v629 = vunpack.c.l.b16 %v225
      %v630 = vunpack.c.h.b16 %v225
      %v631 = vunpack.c.l.b16 %v226
      %v632 = vunpack.c.h.b16 %v226
      %v633 = vunpack.c.l.b16 %v227
      %v634 = vunpack.c.h.b16 %v227
      %v635 = vunpack.c.l.b16 %v228
      %v636 = vunpack.c.h.b16 %v228
      %v637 = vunpack.c.l.b16 %v229
      %v638 = vunpack.c.h.b16 %v229
      %v639 = vunpack.c.l.b16 %v230
      %v640 = vunpack.c.h.b16 %v230
      %v641 = vunpack.c.l.b16 %v231
      %v642 = vunpack.c.h.b16 %v231
      %v643 = vunpack.c.l.b16 %v232
      %v644 = vunpack.c.h.b16 %v232
      %v645 = vunpack.c.l.b16 %v233
      %v646 = vunpack.c.h.b16 %v233
      %v647 = vunpack.c.l.b16 %v234
      %v648 = vunpack.c.h.b16 %v234
      %v649 = vunpack.c.l.b16 %v235
      %v650 = vunpack.c.h.b16 %v235
      %v651 = vunpack.c.l.b16 %v236
      %v652 = vunpack.c.h.b16 %v236
      %v653 = vunpack.c.l.b16 %v237
      %v654 = vunpack.c.h.b16 %v237
      %v655 = vunpack.c.l.b16 %v238
      %v656 = vunpack.c.h.b16 %v238
      %v657 = vunpack.c.l.b16 %v239
      %v658 = vunpack.c.h.b16 %v239
      %v659 = vunpack.c.l.b16 %v240
      %v660 = vunpack.c.h.b16 %v240
      %v661 = vunpack.c.l.b16 %v241
      %v662 = vunpack.c.h.b16 %v241
      %v663 = vunpack.c.l.b16 %v242
      %v664 = vunpack.c.h.b16 %v242
      %v665 = vunpack.c.l.b16 %v243
      %v666 = vunpack.c.h.b16 %v243
      %v667 = vunpack.c.l.b16 %v244
      %v668 = vunpack.c.h.b16 %v244
      %v669 = vunpack.c.l.b16 %v245
      %v670 = vunpack.c.h.b16 %v245
      %v671 = vunpack.c.l.b16 %v246
      %v672 = vunpack.c.h.b16 %v246
      %v673 = vunpack.c.l.b16 %v247
      %v674 = vunpack.c.h.b16 %v247
      %v675 = vunpack.c.l.b16 %v248
      %v676 = vunpack.c.h.b16 %v248
      %v677 = vunpack.c.l.b16 %v249
      %v678 = vunpack.c.h.b16 %v249
      %v679 = vunpack.c.l.b16 %v250
      %v680 = vunpack.c.h.b16 %v250
      %v681 = vunpack.c.l.b16 %v251
      %v682 = vunpack.c.h.b16 %v251
      %v683 = vunpack.c.l.b16 %v252
      %v684 = vunpack.c.h.b16 %v252
      %v685 = vunpack.c.l.b16 %v253
      %v686 = vunpack.c.h.b16 %v253
      %v687 = vunpack.c.l.b16 %v254
      %v688 = vunpack.c.h.b16 %v254
      %v689 = vunpack.c.l.b16 %v255
      %v690 = vunpack.c.h.b16 %v255
      %v691 = vunpack.c.l.b16 %v256
      %v692 = vunpack.c.h.b16 %v256
      %v693 = vunpack.c.l.b16 %v257
      %v694 = vunpack.c.h.b16 %v257
      %v695 = vunpack.c.l.b16 %v258
      %v696 = vunpack.c.h.b16 %v258
      %v697 = vunpack.c.l.b16 %v259
      %v698 = vunpack.c.h.b16 %v259
      %v699 = vunpack.c.l.b16 %v260
      %v700 = vunpack.c.h.b16 %v260
      %v701 = vunpack.c.l.b16 %v261
      %v702 = vunpack.c.h.b16 %v261
      %v703 = vunpack.c.l.b16 %v262
      %v704 = vunpack.c.h.b16 %v262
      %v705 = vunpack.c.l.b16 %v263
      %v706 = vunpack.c.h.b16 %v263
      %v707 = vunpack.c.l.b16 %v264
      %v708 = vunpack.c.h.b16 %v264
      %v709 = vunpack.c.l.b16 %v265
      %v710 = vunpack.c.h.b16 %v265
      %v711 = vunpack.c.l.b16 %v266
      %v712 = vunpack.c.h.b16 %v266
      %v713 = vunpack.c.l.b16 %v267
      %v714 = vunpack.c.h.b16 %v267
      %v715 = vunpack.c.l.b16 %v268
      %v716 = vunpack.c.h.b16 %v268
      %v717 = vunpack.c.l.b16 %v269
      %v718 = vunpack.c.h.b16 %v269
      %v719 = vunpack.c.l.b16 %v270
      %v720 = vunpack.c.h.b16 %v270
      %v721 = vunpack.c.l.b16 %v271
      %v722 = vunpack.c.h.b16 %v271
      %v723 = vunpack.c.l.b16 %v272
      %v724 = vunpack.c.h.b16 %v272
      %v725 = vunpack.c.l.b16 %v273
      %v726 = vunpack.c.h.b16 %v273
      %v727 = vunpack.c.l.b16 %v274
      %v728 = vunpack.c.h.b16 %v274
      %v729 = vunpack.c.l.b16 %v275
      %v730 = vunpack.c.h.b16 %v275
      %v731 = vunpack.c.l.b16 %v276
      %v732 = vunpack.c.h.b16 %v276
      %v733 = vunpack.c.l.b16 %v277
      %v734 = vunpack.c.h.b16 %v277
      %v735 = vunpack.c.l.b16 %v278
      %v736 = vunpack.c.h.b16 %v278
      %v737 = vunpack.c.l.b16 %v279
      %v738 = vunpack.c.h.b16 %v279
      %v739 = vunpack.c.l.b16 %v280
      %v740 = vunpack.c.h.b16 %v280
      %v741 = vunpack.c.l.b16 %v281
      %v742 = vunpack.c.h.b16 %v281
      %v743 = vunpack.c.l.b16 %v282
      %v744 = vunpack.c.h.b16 %v282
      %v745 = vunpack.c.l.b16 %v283
      %v746 = vunpack.c.h.b16 %v283
      %v747 = vunpack.c.l.b16 %v284
      %v748 = vunpack.c.h.b16 %v284
      %v749 = vunpack.c.l.b16 %v285
      %v750 = vunpack.c.h.b16 %v285
      %v751 = vunpack.c.l.b16 %v286
      %v752 = vunpack.c.h.b16 %v286
      %v753 = vunpack.c.l.b16 %v287
      %v754 = vunpack.c.h.b16 %v287
      %v755 = vunpack.c.l.b16 %v288
      %v756 = vunpack.c.h.b16 %v288
      %v757 = vunpack.c.l.b16 %v289
      %v758 = vunpack.c.h.b16 %v289
      %v759 = vunpack.c.l.b16 %v290
      %v760 = vunpack.c.h.b16 %v290
      %v761 = vunpack.c.l.b16 %v291
      %v762 = vunpack.c.h.b16 %v291
      %v763 = vunpack.c.l.b16 %v292
      %v764 = vunpack.c.h.b16 %v292
      %v765 = vunpack.c.l.b16 %v293
      %v766 = vunpack.c.h.b16 %v293
      %v767 = vunpack.c.l.b16 %v294
      %v768 = vunpack.c.h.b16 %v294
      %v769 = vunpack.c.l.b16 %v295
      %v770 = vunpack.c.h.b16 %v295
      %v771 = vunpack.c.l.b16 %v296
      %v772 = vunpack.c.h.b16 %v296
      %v773 = vunpack.c.l.b16 %v297
      %v774 = vunpack.c.h.b16 %v297
      %v775 = vunpack.c.l.b16 %v298
      %v776 = vunpack.c.h.b16 %v298
      %v777 = vpack.c.b16 %v491, %v489
      %v778 = vpack.c.b16 %v492, %v490
      %v779 = vpack.c.b16 %v495, %v493
      %v780 = vpack.c.b16 %v496, %v494
      %v781 = vpack.c.b16 %v499, %v497
      %v782 = vpack.c.b16 %v500, %v498
      %v783 = vpack.c.b16 %v503, %v501
      %v784 = vpack.c.b16 %v504, %v502
      %v785 = vpack.c.b16 %v507, %v505
      %v786 = vpack.c.b16 %v508, %v506
      %v787 = vpack.c.b16 %v511, %v509
      %v788 = vpack.c.b16 %v512, %v510
      %v789 = vpack.c.b16 %v515, %v513
      %v790 = vpack.c.b16 %v516, %v514
      %v791 = vpack.c.b16 %v519, %v517
      %v792 = vpack.c.b16 %v520, %v518
      %v793 = vpack.c.b16 %v523, %v521
      %v794 = vpack.c.b16 %v524, %v522
      %v795 = vpack.c.b16 %v527, %v525
      %v796 = vpack.c.b16 %v528, %v526
      %v797 = vpack.c.b16 %v531, %v529
      %v798 = vpack.c.b16 %v532, %v530
      %v799 = vpack.c.b16 %v535, %v533
      %v800 = vpack.c.b16 %v536, %v534
      %v801 = vpack.c.b16 %v539, %v537
      %v802 = vpack.c.b16 %v540, %v538
      %v803 = vpack.c.b16 %v543, %v541
      %v804 = vpack.c.b16 %v544, %v542
      %v805 = vpack.c.b16 %v547, %v545
      %v806 = vpack.c.b16 %v548, %v546
      %v807 = vpack.c.b16 %v551, %v549
      %v808 = vpack.c.b16 %v552, %v550
      %v809 = vpack.c.b16 %v555, %v553
      %v810 = vpack.c.b16 %v556, %v554
      %v811 = vpack.c.b16 %v559, %v557
      %v812 = vpack.c.b16 %v560, %v558
      %v813 = vpack.c.b16 %v563, %v561
      %v814 = vpack.c.b16 %v564, %v562
      %v815 = vpack.c.b16 %v567, %v565
      %v816 = vpack.c.b16 %v568, %v566
      %v817 = vpack.c.b16 %v571, %v569
      %v818 = vpack.c.b16 %v572, %v570
      %v819 = vpack.c.b16 %v575, %v573
      %v820 = vpack.c.b16 %v576, %v574
      %v821 = vpack.c.b16 %v579, %v577
      %v822 = vpack.c.b16 %v580, %v578
      %v823 = vpack.c.b16 %v583, %v581
      %v824 = vpack.c.b16 %v584, %v582
      %v825 = vpack.c.b16 %v587, %v585
      %v826 = vpack.c.b16 %v588, %v586
      %v827 = vpack.c.b16 %v591, %v589
      %v828 = vpack.c.b16 %v592, %v590
      %v829 = vpack.c.b16 %v595, %v593
      %v830 = vpack.c.b16 %v596, %v594
      %v831 = vpack.c.b16 %v599, %v597
      %v832 = vpack.c.b16 %v600, %v598
      %v833 = vpack.c.b16 %v603, %v601
      %v834 = vpack.c.b16 %v604, %v602
      %v835 = vpack.c.b16 %v607, %v605
      %v836 = vpack.c.b16 %v608, %v606
      %v837 = vpack.c.b16 %v611, %v609
      %v838 = vpack.c.b16 %v612, %v610
      %v839 = vpack.c.b16 %v615, %v613
      %v840 = vpack.c.b16 %v616, %v614
      %v841 = vpack.c.b16 %v619, %v617
      %v842 = vpack.c.b16 %v620, %v618
      %v843 = vpack.c.b16 %v623, %v621
      %v844 = vpack.c.b16 %v624, %v622
      %v845 = vpack.c.b16 %v627, %v625
      %v846 = vpack.c.b16 %v628, %v626
      %v847 = vpack.c.b16 %v631, %v629
      %v848 = vpack.c.b16 %v632, %v630
      %v849 = vpack.c.b16 %v635, %v633
      %v850 = vpack.c.b16 %v636, %v634
      %v851 = vpack.c.b16 %v639, %v637
      %v852 = vpack.c.b16 %v640, %v638
      %v853 = vpack.c.b16 %v643, %v641
      %v854 = vpack.c.b16 %v644, %v642
      %v855 = vpack.c.b16 %v647, %v645
      %v856 = vpack.c.b16 %v648, %v646
      %v857 = vpack.c.b16 %v651, %v649
      %v858 = vpack.c.b16 %v652, %v650
      %v859 = vpack.c.b16 %v655, %v653
      %v860 = vpack.c.b16 %v656, %v654
      %v861 = vpack.c.b16 %v659, %v657
      %v862 = vpack.c.b16 %v660, %v658
      %v863 = vpack.c.b16 %v663, %v661
      %v864 = vpack.c.b16 %v664, %v662
      %v865 = vpack.c.b16 %v667, %v665
      %v866 = vpack.c.b16 %v668, %v666
      %v867 = vpack.c.b16 %v671, %v669
      %v868 = vpack.c.b16 %v672, %v670
      %v869 = vpack.c.b16 %v675, %v673
      %v870 = vpack.c.b16 %v676, %v674
      %v871 = vpack.c.b16 %v679, %v677
      %v872 = vpack.c.b16 %v680, %v678
      %v873 = vpack.c.b16 %v683, %v681
      %v874 = vpack.c.b16 %v684, %v682
      %v875 = vpack.c.b16 %v687, %v685
      %v876 = vpack.c.b16 %v688, %v686
      %v877 = vpack.c.b16 %v691, %v689
      %v878 = vpack.c.b16 %v692, %v690
      %v879 = vpack.c.b16 %v695, %v693
      %v880 = vpack.c.b16 %v696, %v694
      %v881 = vpack.c.b16 %v699, %v697
      %v882 = vpack.c.b16 %v700, %v698
      %v883 = vpack.c.b16 %v703, %v701
      %v884 = vpack.c.b16 %v704, %v702
      %v885 = vpack.c.b16 %v707, %v705
      %v886 = vpack.c.b16 %v708, %v706
      %v887 = vpack.c.b16 %v711, %v709
      %v888 = vpack.c.b16 %v712, %v710
      %v889 = vpack.c.b16 %v715, %v713
      %v890 = vpack.c.b16 %v716, %v714
      %v891 = vpack.c.b16 %v719, %v717
      %v892 = vpack.c.b16 %v720, %v718
      %v893 = vpack.c.b16 %v723, %v721
      %v894 = vpack.c.b16 %v724, %v722
      %v895 = vpack.c.b16 %v727, %v725
      %v896 = vpack.c.b16 %v728, %v726
      %v897 = vpack.c.b16 %v731, %v729
      %v898 = vpack.c.b16 %v732, %v730
      %v899 = vpack.c.b16 %v735, %v733
      %v900 = vpack.c.b16 %v736, %v734
      %v901 = vpack.c.b16 %v739, %v737
      %v902 = vpack.c.b16 %v740, %v738
      %v903 = vpack.c.b16 %v743, %v741
      %v904 = vpack.c.b16 %v744, %v742
      %v905 = vpack.c.b16 %v747, %v745
      %v906 = vpack.c.b16 %v748, %v746
      %v907 = vpack.c.b16 %v751, %v749
      %v908 = vpack.c.b16 %v752, %v750
      %v909 = vpack.c.b16 %v755, %v753
      %v910 = vpack.c.b16 %v756, %v754
      %v911 = vpack.c.b16 %v759, %v757
      %v912 = vpack.c.b16 %v760, %v758
      %v913 = vpack.c.b16 %v763, %v761
      %v914 = vpack.c.b16 %v764, %v762
      %v915 = vpack.c.b16 %v767, %v765
      %v916 = vpack.c.b16 %v768, %v766
      %v917 = vpack.c.b16 %v771, %v769
      %v918 = vpack.c.b16 %v772, %v770
      %v919 = vpack.c.b16 %v775, %v773
      %v920 = vpack.c.b16 %v776, %v774
      %1065 = vmatprep.subr.bf16.mxu0 %v778
      %1066 = vmatpush1.bf16.msra.mxu0 %v777
      %1067 = vmatprep.subr.bf16.mxu0 %v780
      %1068 = vmatpush1.bf16.msra.mxu0 %v779
      %1069 = vmatprep.subr.bf16.mxu0 %v782
      %1070 = vmatpush1.bf16.msra.mxu0 %v781
      %1071 = vmatprep.subr.bf16.mxu0 %v784
      %1072 = vmatpush1.bf16.msra.mxu0 %v783
      %1073 = vmatprep.subr.bf16.mxu0 %v786
      %1074 = vmatpush1.bf16.msra.mxu0 %v785
      %1075 = vmatprep.subr.bf16.mxu0 %v788
      %1076 = vmatpush1.bf16.msra.mxu0 %v787
      %1077 = vmatprep.subr.bf16.mxu0 %v790
      %1078 = vmatpush1.bf16.msra.mxu0 %v789
      %1079 = vmatprep.subr.bf16.mxu0 %v792
      %1080 = vmatpush1.bf16.msra.mxu0 %v791
      %1081 = vmatprep.subr.bf16.mxu0 %v794
      %1082 = vmatpush1.bf16.msra.mxu0 %v793
      %1083 = vmatprep.subr.bf16.mxu0 %v796
      %1084 = vmatpush1.bf16.msra.mxu0 %v795
      %1085 = vmatprep.subr.bf16.mxu0 %v798
      %1086 = vmatpush1.bf16.msra.mxu0 %v797
      %1087 = vmatprep.subr.bf16.mxu0 %v800
      %1088 = vmatpush1.bf16.msra.mxu0 %v799
      %1089 = vmatprep.subr.bf16.mxu0 %v802
      %1090 = vmatpush1.bf16.msra.mxu0 %v801
      %1091 = vmatprep.subr.bf16.mxu0 %v804
      %1092 = vmatpush1.bf16.msra.mxu0 %v803
      %1093 = vmatprep.subr.bf16.mxu0 %v806
      %1094 = vmatpush1.bf16.msra.mxu0 %v805
      %1095 = vmatprep.subr.bf16.mxu0 %v808
      %1096 = vmatpush1.bf16.msra.mxu0 %v807
      %1097 = vmatprep.mubr.bf16.mxu0 %v328
      %1098 = vmatmul.mubr.bf16.gmra.mrb[0].mxu0 %v327
      %v1099 = vpop.f32.mrb[0].mxu0
      %v1100 = vadd.f32 0.0, %v1099
      %v1101 = vpop.f32.mrb[0].mxu0
      %v1102 = vadd.f32 0.0, %v1101
      %v1103 = vpop.f32.mrb[0].mxu0
      %v1104 = vadd.f32 0.0, %v1103
      %v1105 = vpop.f32.mrb[0].mxu0
      %v1106 = vadd.f32 0.0, %v1105
      %1107 = vdwg.mxu0
      %1108 = vmatprep.subr.bf16.mxu0 %v810
      %1109 = vmatpush1.bf16.msra.mxu0 %v809
      %1110 = vmatprep.subr.bf16.mxu0 %v812
      %1111 = vmatpush1.bf16.msra.mxu0 %v811
      %1112 = vmatprep.subr.bf16.mxu0 %v814
      %1113 = vmatpush1.bf16.msra.mxu0 %v813
      %1114 = vmatprep.subr.bf16.mxu0 %v816
      %1115 = vmatpush1.bf16.msra.mxu0 %v815
      %1116 = vmatprep.subr.bf16.mxu0 %v818
      %1117 = vmatpush1.bf16.msra.mxu0 %v817
      %1118 = vmatprep.subr.bf16.mxu0 %v820
      %1119 = vmatpush1.bf16.msra.mxu0 %v819
      %1120 = vmatprep.subr.bf16.mxu0 %v822
      %1121 = vmatpush1.bf16.msra.mxu0 %v821
      %1122 = vmatprep.subr.bf16.mxu0 %v824
      %1123 = vmatpush1.bf16.msra.mxu0 %v823
      %1124 = vmatprep.subr.bf16.mxu0 %v826
      %1125 = vmatpush1.bf16.msra.mxu0 %v825
      %1126 = vmatprep.subr.bf16.mxu0 %v828
      %1127 = vmatpush1.bf16.msra.mxu0 %v827
      %1128 = vmatprep.subr.bf16.mxu0 %v830
      %1129 = vmatpush1.bf16.msra.mxu0 %v829
      %1130 = vmatprep.subr.bf16.mxu0 %v832
      %1131 = vmatpush1.bf16.msra.mxu0 %v831
      %1132 = vmatprep.subr.bf16.mxu0 %v834
      %1133 = vmatpush1.bf16.msra.mxu0 %v833
      %1134 = vmatprep.subr.bf16.mxu0 %v836
      %1135 = vmatpush1.bf16.msra.mxu0 %v835
      %1136 = vmatprep.subr.bf16.mxu0 %v838
      %1137 = vmatpush1.bf16.msra.mxu0 %v837
      %1138 = vmatprep.subr.bf16.mxu0 %v840
      %1139 = vmatpush1.bf16.msra.mxu0 %v839
      %1140 = vmatprep.mubr.bf16.mxu0 %v330
      %1141 = vmatmul.mubr.bf16.gmra.mrb[0].mxu0 %v329
      %v1142 = vpop.f32.mrb[0].mxu0
      %v1143 = vadd.f32 %v1100, %v1142
      %v1144 = vpop.f32.mrb[0].mxu0
      %v1145 = vadd.f32 %v1102, %v1144
      %v1146 = vpop.f32.mrb[0].mxu0
      %v1147 = vadd.f32 %v1104, %v1146
      %v1148 = vpop.f32.mrb[0].mxu0
      %v1149 = vadd.f32 %v1106, %v1148
      %1150 = vdwg.mxu0
      %1151 = vmatprep.subr.bf16.mxu0 %v842
      %1152 = vmatpush1.bf16.msra.mxu0 %v841
      %1153 = vmatprep.subr.bf16.mxu0 %v844
      %1154 = vmatpush1.bf16.msra.mxu0 %v843
      %1155 = vmatprep.subr.bf16.mxu0 %v846
      %1156 = vmatpush1.bf16.msra.mxu0 %v845
      %1157 = vmatprep.subr.bf16.mxu0 %v848
      %1158 = vmatpush1.bf16.msra.mxu0 %v847
      %1159 = vmatprep.subr.bf16.mxu0 %v850
      %1160 = vmatpush1.bf16.msra.mxu0 %v849
      %1161 = vmatprep.subr.bf16.mxu0 %v852
      %1162 = vmatpush1.bf16.msra.mxu0 %v851
      %1163 = vmatprep.subr.bf16.mxu0 %v854
      %1164 = vmatpush1.bf16.msra.mxu0 %v853
      %1165 = vmatprep.subr.bf16.mxu0 %v856
      %1166 = vmatpush1.bf16.msra.mxu0 %v855
      %1167 = vmatprep.subr.bf16.mxu0 %v858
      %1168 = vmatpush1.bf16.msra.mxu0 %v857
      %1169 = vmatprep.subr.bf16.mxu0 %v860
      %1170 = vmatpush1.bf16.msra.mxu0 %v859
      %1171 = vmatprep.subr.bf16.mxu0 %v862
      %1172 = vmatpush1.bf16.msra.mxu0 %v861
      %1173 = vmatprep.subr.bf16.mxu0 %v864
      %1174 = vmatpush1.bf16.msra.mxu0 %v863
      %1175 = vmatprep.subr.bf16.mxu0 %v866
      %1176 = vmatpush1.bf16.msra.mxu0 %v865
      %1177 = vmatprep.subr.bf16.mxu0 %v868
      %1178 = vmatpush1.bf16.msra.mxu0 %v867
      %1179 = vmatprep.subr.bf16.mxu0 %v870
      %1180 = vmatpush1.bf16.msra.mxu0 %v869
      %1181 = vmatprep.subr.bf16.mxu0 %v872
      %1182 = vmatpush1.bf16.msra.mxu0 %v871
      %1183 = vmatprep.mubr.bf16.mxu0 %v332
      %1184 = vmatmul.mubr.bf16.gmra.mrb[0].mxu0 %v331
      %v1185 = vpop.f32.mrb[0].mxu0
      %v1186 = vadd.f32 %v1143, %v1185
      %v1187 = vpop.f32.mrb[0].mxu0
      %v1188 = vadd.f32 %v1145, %v1187
      %v1189 = vpop.f32.mrb[0].mxu0
      %v1190 = vadd.f32 %v1147, %v1189
      %v1191 = vpop.f32.mrb[0].mxu0
      %v1192 = vadd.f32 %v1149, %v1191
      %1193 = vdwg.mxu0
      %1194 = vmatprep.subr.bf16.mxu0 %v874
      %1195 = vmatpush1.bf16.msra.mxu0 %v873
      %1196 = vmatprep.subr.bf16.mxu0 %v876
      %1197 = vmatpush1.bf16.msra.mxu0 %v875
      %1198 = vmatprep.subr.bf16.mxu0 %v878
      %1199 = vmatpush1.bf16.msra.mxu0 %v877
      %1200 = vmatprep.subr.bf16.mxu0 %v880
      %1201 = vmatpush1.bf16.msra.mxu0 %v879
      %1202 = vmatprep.subr.bf16.mxu0 %v882
      %1203 = vmatpush1.bf16.msra.mxu0 %v881
      %1204 = vmatprep.subr.bf16.mxu0 %v884
      %1205 = vmatpush1.bf16.msra.mxu0 %v883
      %1206 = vmatprep.subr.bf16.mxu0 %v886
      %1207 = vmatpush1.bf16.msra.mxu0 %v885
      %1208 = vmatprep.subr.bf16.mxu0 %v888
      %1209 = vmatpush1.bf16.msra.mxu0 %v887
      %1210 = vmatprep.subr.bf16.mxu0 %v890
      %1211 = vmatpush1.bf16.msra.mxu0 %v889
      %1212 = vmatprep.subr.bf16.mxu0 %v892
      %1213 = vmatpush1.bf16.msra.mxu0 %v891
      %1214 = vmatprep.subr.bf16.mxu0 %v894
      %1215 = vmatpush1.bf16.msra.mxu0 %v893
      %1216 = vmatprep.subr.bf16.mxu0 %v896
      %1217 = vmatpush1.bf16.msra.mxu0 %v895
      %1218 = vmatprep.subr.bf16.mxu0 %v898
      %1219 = vmatpush1.bf16.msra.mxu0 %v897
      %1220 = vmatprep.subr.bf16.mxu0 %v900
      %1221 = vmatpush1.bf16.msra.mxu0 %v899
      %1222 = vmatprep.subr.bf16.mxu0 %v902
      %1223 = vmatpush1.bf16.msra.mxu0 %v901
      %1224 = vmatprep.subr.bf16.mxu0 %v904
      %1225 = vmatpush1.bf16.msra.mxu0 %v903
      %1226 = vmatprep.mubr.bf16.mxu0 %v334
      %1227 = vmatmul.mubr.bf16.gmra.mrb[0].mxu0 %v333
      %v1228 = vpop.f32.mrb[0].mxu0
      %v1229 = vadd.f32 %v1186, %v1228
      %v1230 = vpop.f32.mrb[0].mxu0
      %v1231 = vadd.f32 %v1188, %v1230
      %v1232 = vpop.f32.mrb[0].mxu0
      %v1233 = vadd.f32 %v1190, %v1232
      %v1234 = vpop.f32.mrb[0].mxu0
      %v1235 = vadd.f32 %v1192, %v1234
      %1236 = vdwg.mxu0
      %1237 = vmatprep.subr.bf16.mxu0 %v906
      %1238 = vmatpush1.bf16.msra.mxu0 %v905
      %1239 = vmatprep.subr.bf16.mxu0 %v908
      %1240 = vmatpush1.bf16.msra.mxu0 %v907
      %1241 = vmatprep.subr.bf16.mxu0 %v910
      %1242 = vmatpush1.bf16.msra.mxu0 %v909
      %1243 = vmatprep.subr.bf16.mxu0 %v912
      %1244 = vmatpush1.bf16.msra.mxu0 %v911
      %1245 = vmatprep.subr.bf16.mxu0 %v914
      %1246 = vmatpush1.bf16.msra.mxu0 %v913
      %1247 = vmatprep.subr.bf16.mxu0 %v916
      %1248 = vmatpush1.bf16.msra.mxu0 %v915
      %1249 = vmatprep.subr.bf16.mxu0 %v918
      %1250 = vmatpush1.bf16.msra.mxu0 %v917
      %1251 = vmatprep.subr.bf16.mxu0 %v920
      %1252 = vmatpush1.bf16.msra.mxu0 %v919
      %1253 = vmatprep.subr.bf16.mxu0 0
      %1254 = vmatpush1.bf16.msra.mxu0 0
      %1255 = vmatprep.subr.bf16.mxu0 0
      %1256 = vmatpush1.bf16.msra.mxu0 0
      %1257 = vmatprep.subr.bf16.mxu0 0
      %1258 = vmatpush1.bf16.msra.mxu0 0
      %1259 = vmatprep.subr.bf16.mxu0 0
      %1260 = vmatpush1.bf16.msra.mxu0 0
      %1261 = vmatprep.subr.bf16.mxu0 0
      %1262 = vmatpush1.bf16.msra.mxu0 0
      %1263 = vmatprep.subr.bf16.mxu0 0
      %1264 = vmatpush1.bf16.msra.mxu0 0
      %1265 = vmatprep.subr.bf16.mxu0 0
      %1266 = vmatpush1.bf16.msra.mxu0 0
      %1267 = vmatprep.subr.bf16.mxu0 0
      %1268 = vmatpush1.bf16.msra.mxu0 0
      %1269 = vmatprep.mubr.bf16.mxu0 0
      %1270 = vmatmul.mubr.bf16.gmra.mrb[0].mxu0 %v335
      %v1271 = vpop.f32.mrb[0].mxu0
      %v1272 = vadd.f32 %v1229, %v1271
      %v1273 = vpop.f32.mrb[0].mxu0
      %v1274 = vadd.f32 %v1231, %v1273
      %v1275 = vpop.f32.mrb[0].mxu0
      %v1276 = vadd.f32 %v1233, %v1275
      %v1277 = vpop.f32.mrb[0].mxu0
      %v1278 = vadd.f32 %v1235, %v1277
      %1279 = vdwg.mxu0
      %vm1280 = vcmask 1040384
      %v1281 = vsel %vm1280, %v1276, 0.0
      %v1282 = vadd.f32 %v1272, %v1281
      %v1283 = vrot.slane %v1282, 4
      %v1284 = vadd.f32 %v1282, %v1283
      %v1285 = vrot.slane %v1284, 2
      %v1286 = vadd.f32 %v1284, %v1285
      %v1287 = vrot.slane %v1286, 1
      %v1288 = vadd.f32 %v1286, %v1287
      %v1289 = vsel %vm1280, %v1278, 0.0
      %v1290 = vadd.f32 %v1274, %v1289
      %v1291 = vrot.slane %v1290, 4
      %v1292 = vadd.f32 %v1290, %v1291
      %v1293 = vrot.slane %v1292, 2
      %v1294 = vadd.f32 %v1292, %v1293
      %v1295 = vrot.slane %v1294, 1
      %v1296 = vadd.f32 %v1294, %v1295
      %v1297 = vrcp.pop 9.0
      %v1298 = vmul.f32 %v1288, %v1297
      %v1299 = vmul.f32 %v1296, %v1297
      %v1300 = vsub.f32 %v1272, %v1298
      %v1301 = vsub.f32 %v1274, %v1299
      %v1302 = vsub.f32 %v1276, %v1298
      %v1303 = vsub.f32 %v1278, %v1299
      %v1304 = vmul.f32 %v1300, %v1300
      %v1305 = vmul.f32 %v1301, %v1301
      %v1306 = vmul.f32 %v1302, %v1302
      %v1307 = vmul.f32 %v1303, %v1303
      %v1308 = vsel %vm1280, %v1306, 0.0
      %v1309 = vadd.f32 %v1304, %v1308
      %v1310 = vrot.slane %v1309, 4
      %v1311 = vadd.f32 %v1309, %v1310
      %v1312 = vrot.slane %v1311, 2
      %v1313 = vadd.f32 %v1311, %v1312
      %v1314 = vrot.slane %v1313, 1
      %v1315 = vadd.f32 %v1313, %v1314
      %v1316 = vsel %vm1280, %v1307, 0.0
      %v1317 = vadd.f32 %v1305, %v1316
      %v1318 = vrot.slane %v1317, 4
      %v1319 = vadd.f32 %v1317, %v1318
      %v1320 = vrot.slane %v1319, 2
      %v1321 = vadd.f32 %v1319, %v1320
      %v1322 = vrot.slane %v1321, 1
      %v1323 = vadd.f32 %v1321, %v1322
      %v1324 = vmul.f32 %v1315, %v1297
      %v1325 = vmul.f32 %v1323, %v1297
      %v1326 = vadd.f32 %v1324, 1e-05
      %v1327 = vadd.f32 %v1325, 1e-05
      %v1328 = vrsqrt.pop %v1326
      %v1329 = vrsqrt.pop %v1327
      %v1330 = vmul.f32 %v1300, %v1328
      %v1331 = vmul.f32 %v1301, %v1329
      %v1332 = vmul.f32 %v1302, %v1328
      %v1333 = vmul.f32 %v1303, %v1329
      %v1334 = vmax.f32 %v1330, 0.0
      %v1335 = vmax.f32 %v1331, 0.0
      %v1336 = vmax.f32 %v1332, 0.0
      %v1337 = vmax.f32 %v1333, 0.0
      %1338 = vst [vmem:[%s143] sm:$0xff] %v1334
      %1339 = vst [vmem:[%s143 + $0x8] sm:$0xff] %v1335
      %1340 = vst [vmem:[%s143 + $0x10] sm:$0x1] %v1336
      %1341 = vst [vmem:[%s143 + $0x18] sm:$0x1] %v1337
      %p1342 = scmp.lt.s32.totalorder %s13, 1
      %s1343 = scalar_select %p1342, %s13, 1
      %s1344 = smul.addr %s1343, 4
      %s1345 = smul.addr %s1344, 8
      %s1346 = scalar_lea.vmem %s2, %s1345
      // Predicated region
      $region29: #{base_discriminator_forward.12} parent=27 // pred_check
        %p1347 = pneg %p78
      $region30: #{base_discriminator_forward.12} parent=27 // pred_check_branch
        %1349 = sbr.rel (%p1347) target = $region32
      $region31: #{base_discriminator_forward.12} parent=27 // pred_region
        _
      $region32: #{base_discriminator_forward.12} parent=27 // pred_fallthru
        _
    $region28: #{base_discriminator_forward.12} parent=5 // pred_fallthru
      _
    %p1350 = scmp.le.s32.totalorder 2, %s8
    // Predicated region
    $region33: #{base_discriminator_forward.12} parent=5 // pred_check
      %p1351 = pneg %p1350
    $region34: #{base_discriminator_forward.12} parent=5 // pred_check_branch
      %1353 = sbr.rel (%p1351) target = $region36
    $region35: #{base_discriminator_forward.12} parent=5 // pred_region
      %s1354 = ssub.s32 %s8, 2
      // Predicated region
      $region37: #{base_discriminator_forward.12} parent=35 // pred_check
        %p1355 = pneg %p84
      $region38: #{base_discriminator_forward.12} parent=35 // pred_check_branch
        %1357 = sbr.rel (%p1355) target = $region40
      $region39: #{base_discriminator_forward.12} parent=35 // pred_region
        %p1358 = scmp.lt.s32.totalorder %s14, 1
        %s1359 = scalar_select %p1358, %s14, 1
        %s1360 = smul.addr %s1359, 4
        %s1361 = smul.addr %s1360, 8
        %s1362 = scalar_lea.vmem %s2, %s1361
      $region40: #{base_discriminator_forward.12} parent=35 // pred_fallthru
        _
    $region36: #{base_discriminator_forward.12} parent=5 // pred_fallthru
      _
  $region6: #{base_discriminator_forward.12} parent=0 // loop_footer
    %s12 = sadd.s32 1, %s8
  $region7: #{base_discriminator_forward.12} parent=0 // loop_footer_branch
    %7 = sbr.rel target = $region3
  $region8: #{base_discriminator_forward.12} parent=0 // loop_exit
    _

// kernel: base_discriminator_forward.13
$region0: #{base_discriminator_forward.13}
  #allocation0 [shape = 'u32[]', space=smem, size = 0x4, offset = 0x4, fixed_abs, tag = 'smem constant byte address 0x4 - core index']
  #allocation1 [shape = 'u32[144,128]{1,0:T(1,128)}', space=vmem, size = 0x12000, scoped, tag = 'internal scratch']
  %s0 = inlined_call_operand.vmem [shape: bf16[2,1,2304], index: 0, kind: input, shape index: {}]
  %s1 = inlined_call_operand.vmem [shape: bf16[1,2304], index: 1, kind: input, shape index: {}]
  %s2 = inlined_call_operand.vmem [shape: f32[2,1,1], index: 2, kind: output, shape index: {}]
  %s3 = sld [smem:[#allocation0]]
  $region41: #{base_discriminator_forward.13} parent=0
    _
  %s5 = ssub.s32 1, %s3
  %s6 = scalar_select 0, %s5, %s3
  loop: start=0, step=1, limit=4
  $region2: #{base_discriminator_forward.13} parent=0 // loop_pre_header
    _
  $region3: #{base_discriminator_forward.13} parent=0 // loop_header
    %s8 = sphi 0, %s12
    %p9 = scmp.ge.s32.totalorder %s8, 4
    %s18 = sphi 0, %s20
    %s21 = sphi 0, %s18
    %s22 = sphi 0, %s21
    %s38 = sphi 0, %s22
    %s42 = sphi 0, %s42
    %s44 = sphi 0, %s42
    %s45 = sphi 0, %s44
    %s59 = sphi 0, %s45
    %s65 = sphi 0, %s67
    %s68 = sphi 0, %s65
    %s69 = sphi 0, %s68
    %s85 = sphi 0, %s69
  $region4: #{base_discriminator_forward.13} parent=0 // loop_header_branch
    %11 = sbr.rel (%p9) target = $region8
  $region5: #{base_discriminator_forward.13} parent=0 // loop_body
    %s13 = ssub.s32 %s8, 1
    %s14 = ssub.s32 %s8, 2
    %s15 = sadd.s32 %s8, 1
    %s16 = ssub.s32 %s8, %s15
    %p17 = scmp.eq.s32.totalorder %s16, 0
    %s19 = sadd.s32 %s18, 1
    %s20 = scalar_select %p17, %s18, %s19
    %p23 = pneg %p17
    %p24 = scmp.eq.s32.totalorder %s8, 1
    %p25 = por %p23, %p24
    %p26 = scmp.ne.s32.totalorder %s18, %s21
    %p27 = scmp.eq.s32.totalorder %s8, 0
    %p28 = por %p26, %p27
    %p29 = scmp.ne.s32.totalorder %s18, %s21
    %p30 = scmp.eq.s32.totalorder %s13, 1
    %p31 = por %p29, %p30
    %p32 = scmp.ne.s32.totalorder %s21, %s22
    %p33 = scmp.eq.s32.totalorder %s13, 0
    %p34 = por %p32, %p33
    %p35 = scmp.ne.s32.totalorder %s21, %s22
    %p36 = scmp.eq.s32.totalorder %s14, 1
    %p37 = por %p35, %p36
    %p39 = scmp.ne.s32.totalorder %s22, %s38
    %p40 = scmp.eq.s32.totalorder %s14, 0
    %p41 = por %p39, %p40
    %s43 = sadd.s32 %s42, 1
    %p46 = scmp.eq.s32.totalorder %s8, 1
    %p47 = scmp.ne.s32.totalorder %s42, %s44
    %p48 = scmp.eq.s32.totalorder %s8, 0
    %p49 = por %p47, %p48
    %p50 = scmp.ne.s32.totalorder %s42, %s44
    %p51 = scmp.eq.s32.totalorder %s13, 1
    %p52 = por %p50, %p51
    %p53 = scmp.ne.s32.totalorder %s44, %s45
    %p54 = scmp.eq.s32.totalorder %s13, 0
    %p55 = por %p53, %p54
    %p56 = scmp.ne.s32.totalorder %s44, %s45
    %p57 = scmp.eq.s32.totalorder %s14, 1
    %p58 = por %p56, %p57
    %p60 = scmp.ne.s32.totalorder %s45, %s59
    %p61 = scmp.eq.s32.totalorder %s14, 0
    %p62 = por %p60, %p61
    %s63 = ssub.s32 %s8, %s15
    %p64 = scmp.eq.s32.totalorder %s63, 0
    %s66 = sadd.s32 %s65, 1
    %s67 = scalar_select %p64, %s65, %s66
    %p70 = pneg %p64
    %p71 = scmp.eq.s32.totalorder %s8, 1
    %p72 = por %p70, %p71
    %p73 = scmp.ne.s32.totalorder %s65, %s68
    %p74 = scmp.eq.s32.totalorder %s8, 0
    %p75 = por %p73, %p74
    %p76 = scmp.ne.s32.totalorder %s65, %s68
    %p77 = scmp.eq.s32.totalorder %s13, 1
    %p78 = por %p76, %p77
    %p79 = scmp.ne.s32.totalorder %s68, %s69
    %p80 = scmp.eq.s32.totalorder %s13, 0
    %p81 = por %p79, %p80
    %p82 = scmp.ne.s32.totalorder %s68, %s69
    %p83 = scmp.eq.s32.totalorder %s14, 1
    %p84 = por %p82, %p83
    %p86 = scmp.ne.s32.totalorder %s69, %s85
    %p87 = scmp.eq.s32.totalorder %s14, 0
    %p88 = por %p86, %p87
    %p89 = scmp.le.s32.totalorder 1, %s8
    %p90 = scmp.lt.s32.totalorder %s8, 3
    %p91 = pnand %p89, %p90
    %p92 = pneg %p91
    // Predicated region
    $region9: #{base_discriminator_forward.13} parent=5 // pred_check
      _
    $region10: #{base_discriminator_forward.13} parent=5 // pred_check_branch
      %94 = sbr.rel (%p91) target = $region12
    $region11: #{base_discriminator_forward.13} parent=5 // pred_region
      %s95 = ssub.s32 %s8, 1
      // Predicated region
      $region13: #{base_discriminator_forward.13} parent=11 // pred_check
        %p96 = pneg %p55
      $region14: #{base_discriminator_forward.13} parent=11 // pred_check_branch
        %98 = sbr.rel (%p96) target = $region16
      $region15: #{base_discriminator_forward.13} parent=11 // pred_region
        _
      $region16: #{base_discriminator_forward.13} parent=11 // pred_fallthru
        _
    $region12: #{base_discriminator_forward.13} parent=5 // pred_fallthru
      _
    %p99 = scmp.lt.s32.totalorder %s8, 2
    // Predicated region
    $region17: #{base_discriminator_forward.13} parent=5 // pred_check
      %p100 = pneg %p99
    $region18: #{base_discriminator_forward.13} parent=5 // pred_check_branch
      %102 = sbr.rel (%p100) target = $region20
    $region19: #{base_discriminator_forward.13} parent=5 // pred_region
      // Predicated region
      $region21: #{base_discriminator_forward.13} parent=19 // pred_check
        %p103 = pneg %p28
      $region22: #{base_discriminator_forward.13} parent=19 // pred_check_branch
        %105 = sbr.rel (%p103) target = $region24
      $region23: #{base_discriminator_forward.13} parent=19 // pred_region
        %p106 = scmp.lt.s32.totalorder %s8, 1
        %s107 = scalar_select %p106, %s8, 1
        %s108 = smul.addr %s107, 18
        %s109 = scalar_lea.vmem %s0, %s108
      $region24: #{base_discriminator_forward.13} parent=19 // pred_fallthru
        _
    $region20: #{base_discriminator_forward.13} parent=5 // pred_fallthru
      _
    %p110 = scmp.le.s32.totalorder 1, %s8
    %p111 = scmp.lt.s32.totalorder %s8, 3
    %p112 = pnand %p110, %p111
    %p113 = pneg %p112
    // Predicated region
    $region25: #{base_discriminator_forward.13} parent=5 // pred_check
      _
    $region26: #{base_discriminator_forward.13} parent=5 // pred_check_branch
      %115 = sbr.rel (%p112) target = $region28
    $region27: #{base_discriminator_forward.13} parent=5 // pred_region
      %s116 = ssub.s32 %s8, 1
      %p117 = scmp.lt.s32.totalorder %s13, 1
      %s118 = scalar_select %p117, %s13, 1
      %s119 = smul.addr %s118, 18
      %s120 = scalar_lea.vmem %s0, %s119
      %p121 = pneg %p34
      %p122 = pneg %p31
      %p123 = pneg %p55
      %p124 = pneg %p52
      %p125 = pneg %p81
      %p126 = pneg %p78
      %p127 = scmp.lt.s32.totalorder %s13, 1
      %s128 = scalar_select %p127, %s13, 1
      %s129 = scalar_lea.vmem %s2, %s128
      %p130 = scmp.lt.s32.totalorder %s13, 1
      %s131 = scalar_select %p130, %s13, 1
      %s132 = smul.addr %s131, 18
      %s133 = scalar_lea.vmem %s0, %s132
      %p134 = scmp.lt.s32.totalorder %s13, 1
      %s135 = scalar_select %p134, %s13, 1
      %s136 = scalar_lea.vmem %s2, %s135
      %v137 = vld [vmem:[%s133] sm:$0xff]
      %v138 = vld [vmem:[%s133 + $0x8] sm:$0xff]
      %v139 = vld [vmem:[%s133 + $0x10] sm:$0x3]
      %v140 = vld [vmem:[%s1] sm:$0xff]
      %v141 = vld [vmem:[%s1 + $0x8] sm:$0xff]
      %v142 = vld [vmem:[%s1 + $0x10] sm:$0x3]
      %v143 = vunpack.c.l.bf16 %v140
      %v144 = vunpack.c.h.bf16 %v140
      %v145 = vunpack.c.l.bf16 %v141
      %v146 = vunpack.c.h.bf16 %v141
      %v147 = vunpack.c.l.bf16 %v142
      %v148 = vunpack.c.l.bf16 %v137
      %v149 = vunpack.c.h.bf16 %v137
      %v150 = vunpack.c.l.bf16 %v138
      %v151 = vunpack.c.h.bf16 %v138
      %v152 = vunpack.c.l.bf16 %v139
      %v153 = vmul.f32 %v148, %v143
      %v154 = vmul.f32 %v149, %v144
      %v155 = vmul.f32 %v150, %v145
      %v156 = vmul.f32 %v151, %v146
      %v157 = vmul.f32 %v152, %v147
      %v163 = vlaneseq
      %v164 = vshrl.u32 %v163, 7
      %v165 = vsub.s32 0, %v164
      %v166 = vrot.slane %v153, %v165
      %v167 = vlaneseq
      %v168 = vshrl.u32 %v167, 7
      %v169 = vsub.s32 2, %v168
      %v170 = vrot.slane %v153, %v169
      %v171 = vlaneseq
      %v172 = vshrl.u32 %v171, 7
      %v173 = vsub.s32 4, %v172
      %v174 = vrot.slane %v153, %v173
      %v175 = vlaneseq
      %v176 = vshrl.u32 %v175, 7
      %v177 = vsub.s32 6, %v176
      %v178 = vrot.slane %v153, %v177
      %v179 = vlaneseq
      %v180 = vshrl.u32 %v179, 7
      %v181 = vsub.s32 0, %v180
      %v182 = vrot.slane %v154, %v181
      %v183 = vlaneseq
      %v184 = vshrl.u32 %v183, 7
      %v185 = vsub.s32 2, %v184
      %v186 = vrot.slane %v154, %v185
      %v187 = vlaneseq
      %v188 = vshrl.u32 %v187, 7
      %v189 = vsub.s32 4, %v188
      %v190 = vrot.slane %v154, %v189
      %v191 = vlaneseq
      %v192 = vshrl.u32 %v191, 7
      %v193 = vsub.s32 6, %v192
      %v194 = vrot.slane %v154, %v193
      %v195 = vlaneseq
      %v196 = vshrl.u32 %v195, 7
      %v197 = vsub.s32 0, %v196
      %v198 = vrot.slane %v155, %v197
      %v199 = vlaneseq
      %v200 = vshrl.u32 %v199, 7
      %v201 = vsub.s32 2, %v200
      %v202 = vrot.slane %v155, %v201
      %v203 = vlaneseq
      %v204 = vshrl.u32 %v203, 7
      %v205 = vsub.s32 4, %v204
      %v206 = vrot.slane %v155, %v205
      %v207 = vlaneseq
      %v208 = vshrl.u32 %v207, 7
      %v209 = vsub.s32 6, %v208
      %v210 = vrot.slane %v155, %v209
      %v211 = vlaneseq
      %v212 = vshrl.u32 %v211, 7
      %v213 = vsub.s32 0, %v212
      %v214 = vrot.slane %v156, %v213
      %v215 = vlaneseq
      %v216 = vshrl.u32 %v215, 7
      %v217 = vsub.s32 2, %v216
      %v218 = vrot.slane %v156, %v217
      %v219 = vlaneseq
      %v220 = vshrl.u32 %v219, 7
      %v221 = vsub.s32 4, %v220
      %v222 = vrot.slane %v156, %v221
      %v223 = vlaneseq
      %v224 = vshrl.u32 %v223, 7
      %v225 = vsub.s32 6, %v224
      %v226 = vrot.slane %v156, %v225
      %v227 = vlaneseq
      %v228 = vshrl.u32 %v227, 7
      %v229 = vsub.s32 0, %v228
      %v230 = vrot.slane %v157, %v229
      %v231 = vlaneseq
      %v232 = vshrl.u32 %v231, 7
      %v233 = vsub.s32 2, %v232
      %v234 = vrot.slane %v157, %v233
      %vm253 = vcmask 1040384
      %v254 = vsel %vm253, %v166, 0.0
      %v255 = vsel %vm253, %v170, 0.0
      %v256 = vadd.f32 %v254, %v255
      %v257 = vsel %vm253, %v174, 0.0
      %v258 = vadd.f32 %v256, %v257
      %v259 = vsel %vm253, %v178, 0.0
      %v260 = vadd.f32 %v258, %v259
      %v261 = vsel %vm253, %v182, 0.0
      %v262 = vadd.f32 %v260, %v261
      %v263 = vsel %vm253, %v186, 0.0
      %v264 = vadd.f32 %v262, %v263
      %v265 = vsel %vm253, %v190, 0.0
      %v266 = vadd.f32 %v264, %v265
      %v267 = vsel %vm253, %v194, 0.0
      %v268 = vadd.f32 %v266, %v267
      %v269 = vsel %vm253, %v198, 0.0
      %v270 = vadd.f32 %v268, %v269
      %v271 = vsel %vm253, %v202, 0.0
      %v272 = vadd.f32 %v270, %v271
      %v273 = vsel %vm253, %v206, 0.0
      %v274 = vadd.f32 %v272, %v273
      %v275 = vsel %vm253, %v210, 0.0
      %v276 = vadd.f32 %v274, %v275
      %v277 = vsel %vm253, %v214, 0.0
      %v278 = vadd.f32 %v276, %v277
      %v279 = vsel %vm253, %v218, 0.0
      %v280 = vadd.f32 %v278, %v279
      %v281 = vsel %vm253, %v222, 0.0
      %v282 = vadd.f32 %v280, %v281
      %v283 = vsel %vm253, %v226, 0.0
      %v284 = vadd.f32 %v282, %v283
      %v285 = vsel %vm253, %v230, 0.0
      %v286 = vadd.f32 %v284, %v285
      %v287 = vsel %vm253, %v234, 0.0
      %v288 = vadd.f32 %v286, %v287
      %289 = vadd.xlane.f32.xlu0 %v288
      %v290 = vpop.xlane.xlu0 %289
      %vm291 = vcmask 0
      %292 = vst.msk [vmem:[%s136] sm:$0x1] %vm291, %v290
      %p293 = scmp.lt.s32.totalorder %s13, 1
      %s294 = scalar_select %p293, %s13, 1
      %s295 = scalar_lea.vmem %s2, %s294
      // Predicated region
      $region29: #{base_discriminator_forward.13} parent=27 // pred_check
        %p296 = pneg %p78
      $region30: #{base_discriminator_forward.13} parent=27 // pred_check_branch
        %298 = sbr.rel (%p296) target = $region32
      $region31: #{base_discriminator_forward.13} parent=27 // pred_region
        _
      $region32: #{base_discriminator_forward.13} parent=27 // pred_fallthru
        _
    $region28: #{base_discriminator_forward.13} parent=5 // pred_fallthru
      _
    %p299 = scmp.le.s32.totalorder 2, %s8
    // Predicated region
    $region33: #{base_discriminator_forward.13} parent=5 // pred_check
      %p300 = pneg %p299
    $region34: #{base_discriminator_forward.13} parent=5 // pred_check_branch
      %302 = sbr.rel (%p300) target = $region36
    $region35: #{base_discriminator_forward.13} parent=5 // pred_region
      %s303 = ssub.s32 %s8, 2
      // Predicated region
      $region37: #{base_discriminator_forward.13} parent=35 // pred_check
        %p304 = pneg %p84
      $region38: #{base_discriminator_forward.13} parent=35 // pred_check_branch
        %306 = sbr.rel (%p304) target = $region40
      $region39: #{base_discriminator_forward.13} parent=35 // pred_region
        %p307 = scmp.lt.s32.totalorder %s14, 1
        %s308 = scalar_select %p307, %s14, 1
        %s309 = scalar_lea.vmem %s2, %s308
      $region40: #{base_discriminator_forward.13} parent=35 // pred_fallthru
        _
    $region36: #{base_discriminator_forward.13} parent=5 // pred_fallthru
      _
  $region6: #{base_discriminator_forward.13} parent=0 // loop_footer
    %s12 = sadd.s32 1, %s8
  $region7: #{base_discriminator_forward.13} parent=0 // loop_footer_branch
    %7 = sbr.rel target = $region3
  $region8: #{base_discriminator_forward.13} parent=0 // loop_exit
    _

</llo_original>
